<compile_context>
chip_gen: v6e
topology: v6e:2x2x1
jax: 0.10.0
libtpu: 0.0.40
codegen_flags: <defaults>
</compile_context>

<pallas_src>
import jax
import jax.numpy as jnp
from jax.experimental import pallas as pl
from jax.experimental.pallas import tpu as pltpu

SCALE = 4  # hard-coded in the PyTorch module


def _round_up(x, m):
    return -(-x // m) * m


def _interp_matrix(in_size, out_size):
    """1-D bilinear interpolation matrix (out, in), align_corners=True.
    Every row sums to 1 (required for the exactness of the bd->b1 fold)."""
    if in_size == 1:
        return jnp.ones((out_size, 1), jnp.float32)
    src = jnp.arange(out_size, dtype=jnp.float32) * ((in_size - 1) / (out_size - 1))
    i0 = jnp.clip(jnp.floor(src).astype(jnp.int32), 0, in_size - 2)
    frac = src - i0.astype(jnp.float32)
    rows = jnp.arange(out_size)
    a = jnp.zeros((out_size, in_size), jnp.float32)
    a = a.at[rows, i0].add(1.0 - frac)
    a = a.at[rows, i0 + 1].add(frac)
    return a


def build_allmlp_decoder(p, in_shapes, *, tile_rows=32):
    """Fold constants once and return a jitted callable (x1..x4) -> NCHW logits.

    in_shapes: list of 4 NCHW shapes (the PyTorch input layout)."""
    f32, bf16 = jnp.float32, jnp.bfloat16
    HIGH = jax.lax.Precision.HIGHEST

    N = in_shapes[0][0]
    D = p['b1'].shape[-1]
    K = p['w2t'].shape[0]
    OH = in_shapes[0][2] * SCALE
    OW = in_shapes[0][3] * SCALE
    tile_rows = min(tile_rows, OH)
    assert OH % tile_rows == 0, (OH, tile_rows)
    R = OH // tile_rows
    TRW = tile_rows * OW                      # output pixels per grid step
    assert TRW % 128 == 0, TRW                # lane-dense output store

    # ---- one-time constant folding -------------------------------------
    wfs, u_cols, sizes, offsets = [], [], [], []
    b1f = p['b1']
    off = 0
    for i, (_, Ci, Hi, Wi) in enumerate(in_shapes):
        Pi = Hi * Wi
        Pi_pad = _round_up(Pi, 16)            # bf16 sublane-tile aligned rows
        # decode conv folded into linear1's slice for this level
        wfs.append(jnp.dot(p['wd'][i], p['w1'][i], precision=HIGH).astype(bf16))
        b1f = b1f + jnp.dot(p['bd'][i], p['w1'][i], precision=HIGH)[None, :]
        # per-level bilinear (align_corners) upsample as one matrix, zero-padded cols
        u = jnp.kron(_interp_matrix(Hi, OH), _interp_matrix(Wi, OW))   # (OH*OW, Pi)
        u_cols.append(jnp.pad(u, ((0, 0), (0, Pi_pad - Pi))))
        offsets.append(off)
        sizes.append(Pi_pad)
        off += Pi_pad
    P_total = off
    U = jnp.concatenate(u_cols, axis=1).astype(bf16)                  # (OH*OW, P_total)

    # inference BatchNorm folded into linear2 (BN sits after ReLU -> exact)
    w2f = (p['w2t'] * p['bn_s']).astype(bf16)                          # (K, D)
    b2f = (p['b2'] + jnp.dot(p['w2t'], p['bn_b'][0], precision=HIGH)[:, None]).astype(f32)
    b1f = b1f.astype(f32)

    level_dims = [(s[1], _round_up(s[2] * s[3], 16)) for s in in_shapes]   # (Ci, Pi_pad)

    # ---- kernel ---------------------------------------------------------
    def kernel(x1, x2, x3, x4, u_ref, wf1, wf2, wf3, wf4,
               b1_ref, w2_ref, b2_ref, o_ref, t_scr):
        # low-res fused decode-conv + linear1 per level -> concatenated scratch
        # (recomputed per row tile; with the wd@w1 fold this is ~1% of the FLOPs)
        for x_ref, wf_ref, o_, s_ in zip((x1, x2, x3, x4), (wf1, wf2, wf3, wf4),
                                         offsets, sizes):
            t = jnp.dot(x_ref[...], wf_ref[...], preferred_element_type=jnp.float32)
            t_scr[o_:o_ + s_, :] = t.astype(jnp.bfloat16)
        # single merged bilinear-upsample matmul: (TRW, P_total) @ (P_total, D)
        acc = jnp.dot(u_ref[...], t_scr[...], preferred_element_type=jnp.float32)
        # linear1 bias (with folded decode biases) + ReLU, f32 elementwise
        h = jnp.maximum(acc + b1_ref[...], 0.0)
        # linear2 (BN folded in), produced transposed -> lane-dense (K, TRW) store
        out_t = jax.lax.dot_general(w2_ref[...], h.astype(jnp.bfloat16),
                                    (((1,), (1,)), ((), ())),
                                    preferred_element_type=jnp.float32)
        o_ref[...] = (out_t + b2_ref[...]).astype(o_ref.dtype)

    # ---- specs ----------------------------------------------------------
    in_specs = []
    for Ci, Pi_pad in level_dims:                                   # x slabs (per batch)
        in_specs.append(pl.BlockSpec((None, Pi_pad, Ci), lambda r, n: (n, 0, 0)))
    in_specs.append(pl.BlockSpec((TRW, P_total), lambda r, n: (r, 0)))   # U row tile
    for Ci, _ in level_dims:                                        # fused weights
        in_specs.append(pl.BlockSpec((Ci, D), lambda r, n: (0, 0)))
    in_specs.append(pl.BlockSpec((1, D), lambda r, n: (0, 0)))      # b1 (folded)
    in_specs.append(pl.BlockSpec((K, D), lambda r, n: (0, 0)))      # w2 (BN folded)
    in_specs.append(pl.BlockSpec((K, 1), lambda r, n: (0, 0)))      # b2 (BN folded)

    call = pl.pallas_call(
        kernel,
        out_shape=jax.ShapeDtypeStruct((N, K, OH * OW), jnp.float32),
        grid_spec=pltpu.PrefetchScalarGridSpec(
            num_scalar_prefetch=0,
            # batch innermost: the U row tile keeps the same block index across
            # consecutive steps and is only DMA'd once per row tile.
            grid=(R, N),
            in_specs=in_specs,
            out_specs=pl.BlockSpec((None, K, TRW), lambda r, n: (n, 0, r)),
            scratch_shapes=[pltpu.VMEM((P_total, D), jnp.bfloat16)],
        ),
        compiler_params=pltpu.CompilerParams(
            dimension_semantics=("parallel", "parallel"),
            # explicit limit (well above the ~6 MiB actually used) so the same
            # code is safe on v5e's 16 MiB default and v7x's 64 MiB physical VMEM.
            vmem_limit_bytes=48 * 1024 * 1024,
        ),
    )

    @jax.jit
    def run(x1, x2, x3, x4):
        slabs = []
        for x, (Ci, Pi_pad) in zip((x1, x2, x3, x4), level_dims):
            n, c, hh, ww = x.shape
            xl = jnp.transpose(x, (0, 2, 3, 1)).reshape(n, hh * ww, c)
            xl = jnp.pad(xl, ((0, 0), (0, Pi_pad - hh * ww), (0, 0)))
            slabs.append(xl.astype(bf16))
        out = call(*slabs, U, *wfs, b1f, w2f, b2f)
        return out.reshape(N, K, OH, OW)

    return run


def init_params(key, in_channels, decoder_channels, class_num):
    D = decoder_channels
    ks = list(jax.random.split(key, 3 * len(in_channels) + 8))
    kit = iter(ks)
    f32 = jnp.float32
    p = {'wd': [], 'bd': [], 'w1': []}
    for Ci in in_channels:
        p['wd'].append((jax.random.normal(next(kit), (Ci, D)) / jnp.sqrt(Ci)).astype(f32))
        p['bd'].append((0.1 * jax.random.normal(next(kit), (D,))).astype(f32))
        p['w1'].append((jax.random.normal(next(kit), (D, D)) * (0.5 / jnp.sqrt(D))).astype(f32))
    p['b1'] = (0.1 * jax.random.normal(next(kit), (1, D))).astype(f32)
    # BatchNorm2d (inference): fold gamma/beta/running stats -> scale & bias.
    gamma = 1.0 + 0.1 * jax.random.normal(next(kit), (1, D))
    beta = 0.1 * jax.random.normal(next(kit), (1, D))
    rmean = 0.1 * jax.random.normal(next(kit), (1, D))
    rvar = jax.random.uniform(next(kit), (1, D), minval=0.5, maxval=1.5)
    scale = gamma * jax.lax.rsqrt(rvar + 1e-5)
    p['bn_s'] = scale.astype(f32)
    p['bn_b'] = (beta - rmean * scale).astype(f32)
    p['w2t'] = (jax.random.normal(next(kit), (class_num, D)) / jnp.sqrt(D)).astype(f32)
    p['b2'] = (0.1 * jax.random.normal(next(kit), (class_num, 1))).astype(f32)
    return p


def allmlp_decoder_reference(xs_nchw, p):
    """Faithful op-order reference (conv -> upsample -> concat -> linear1 ->
    ReLU -> BN -> linear2) in f32 at HIGHEST precision, using the UNFUSED
    parameters (so it also validates the offline weight folds)."""
    HIGH = jax.lax.Precision.HIGHEST
    OH = xs_nchw[0].shape[2] * SCALE
    OW = xs_nchw[0].shape[3] * SCALE
    ups = []
    for i, x in enumerate(xs_nchw):
        xl = jnp.transpose(x, (0, 2, 3, 1)).astype(jnp.float32)        # NHWC
        z = jnp.einsum('nhwc,cd->nhwd', xl, p['wd'][i], precision=HIGH) + p['bd'][i]
        ah = _interp_matrix(xl.shape[1], OH)
        aw = _interp_matrix(xl.shape[2], OW)
        ups.append(jnp.einsum('Hh,Ww,nhwd->nHWd', ah, aw, z, precision=HIGH))
    cat = jnp.concatenate(ups, axis=-1)                                 # (N, OH, OW, 4D)
    w1_full = jnp.concatenate(p['w1'], axis=0)                          # (4D, D)
    h = jnp.einsum('nHWc,cd->nHWd', cat, w1_full, precision=HIGH) + p['b1'][0]
    h = jnp.maximum(h, 0.0)
    h = h * p['bn_s'][0] + p['bn_b'][0]
    out = jnp.einsum('nHWd,kd->nHWk', h, p['w2t'], precision=HIGH) + p['b2'][:, 0]
    return jnp.transpose(out, (0, 3, 1, 2))


if __name__ == "__main__":
    N = 2
    in_channels = (8, 16, 32, 64)       # l1..l4 channels (small test config)
    decoder_channels = 256              # hard-coded in the PyTorch module
    class_num = 8
    H1, W1 = 16, 16                     # x2/x3/x4 at 1/2, 1/4, 1/8 of this

    key = jax.random.PRNGKey(0)
    kx, kp = jax.random.split(key)
    kxs = jax.random.split(kx, 4)
    xs = [jax.random.normal(kxs[i], (N, Ci, H1 >> i, W1 >> i), dtype=jnp.float32)
          for i, Ci in enumerate(in_channels)]
    params = init_params(kp, in_channels, decoder_channels, class_num)

    decoder = build_allmlp_decoder(params, [x.shape for x in xs], tile_rows=32)
    out = jax.block_until_ready(decoder(*xs))

    ref = allmlp_decoder_reference(xs, params)
    assert out.shape == (N, class_num, SCALE * H1, SCALE * W1), out.shape
    max_diff = float(jnp.max(jnp.abs(out - ref)))
    # Tolerance covers bf16 MXU operands (f32 accumulation) + offline weight
    # folds vs the f32-HIGHEST unfused reference.
    if not jnp.allclose(out, ref, atol=5e-2, rtol=5e-2):
        raise AssertionError(f"Pallas kernel mismatch vs reference, max|diff|={max_diff}")
    print("KERNEL_OK")
</pallas_src>

<mosaic_0001>
module attributes {stable_mosaic.version = 11 : i64} {
  func.func @kernel(%arg0: i32, %arg1: i32, %arg2: memref<1x256x8xbf16, #tpu.memory_space<vmem>>, %arg3: memref<1x64x16xbf16, #tpu.memory_space<vmem>>, %arg4: memref<1x16x32xbf16, #tpu.memory_space<vmem>>, %arg5: memref<1x16x64xbf16, #tpu.memory_space<vmem>>, %arg6: memref<2048x352xbf16, #tpu.memory_space<vmem>>, %arg7: memref<8x256xbf16, #tpu.memory_space<vmem>>, %arg8: memref<16x256xbf16, #tpu.memory_space<vmem>>, %arg9: memref<32x256xbf16, #tpu.memory_space<vmem>>, %arg10: memref<64x256xbf16, #tpu.memory_space<vmem>>, %arg11: memref<1x256xf32, #tpu.memory_space<vmem>>, %arg12: memref<8x256xbf16, #tpu.memory_space<vmem>>, %arg13: memref<8x1xf32, #tpu.memory_space<vmem>>, %arg14: memref<1x8x2048xf32, #tpu.memory_space<vmem>>, %arg15: memref<352x256xbf16, #tpu.memory_space<vmem>>) attributes {dimension_semantics = [#tpu.dimension_semantics<parallel>, #tpu.dimension_semantics<parallel>], iteration_bounds = array<i64: 2, 2>, scalar_prefetch = 0 : i64, scratch_operands = 1 : i64, tpu.core_type = #tpu.core_type<tc>, window_params = [{transform_indices = @transform_0, window_bounds = array<i64: 1, 256, 8>}, {transform_indices = @transform_1, window_bounds = array<i64: 1, 64, 16>}, {transform_indices = @transform_2, window_bounds = array<i64: 1, 16, 32>}, {transform_indices = @transform_3, window_bounds = array<i64: 1, 16, 64>}, {transform_indices = @transform_4, window_bounds = array<i64: 2048, 352>}, {pipeline_mode = #tpu.pipeline_mode<synchronous>, transform_indices = @transform_5, window_bounds = array<i64: 8, 256>}, {pipeline_mode = #tpu.pipeline_mode<synchronous>, transform_indices = @transform_6, window_bounds = array<i64: 16, 256>}, {pipeline_mode = #tpu.pipeline_mode<synchronous>, transform_indices = @transform_7, window_bounds = array<i64: 32, 256>}, {pipeline_mode = #tpu.pipeline_mode<synchronous>, transform_indices = @transform_8, window_bounds = array<i64: 64, 256>}, {pipeline_mode = #tpu.pipeline_mode<synchronous>, transform_indices = @transform_9, window_bounds = array<i64: 1, 256>}, {pipeline_mode = #tpu.pipeline_mode<synchronous>, transform_indices = @transform_10, window_bounds = array<i64: 8, 256>}, {pipeline_mode = #tpu.pipeline_mode<synchronous>, transform_indices = @transform_11, window_bounds = array<i64: 8, 1>}, {transform_indices = @transform_12, window_bounds = array<i64: 1, 8, 2048>}]} {
    %c0 = arith.constant 0 : index
    %c0_0 = arith.constant 0 : index
    %c0_1 = arith.constant 0 : index
    %0 = vector.load %arg2[%c0, %c0_0, %c0_1] : memref<1x256x8xbf16, #tpu.memory_space<vmem>>, vector<1x256x8xbf16>
    %1 = vector.shape_cast %0 : vector<1x256x8xbf16> to vector<256x8xbf16>
    %c0_2 = arith.constant 0 : index
    %c0_3 = arith.constant 0 : index
    %2 = vector.load %arg7[%c0_2, %c0_3] : memref<8x256xbf16, #tpu.memory_space<vmem>>, vector<8x256xbf16>
    %cst = arith.constant dense<0.000000e+00> : vector<256x256xf32>
    %3 = tpu.matmul %1, %2, %cst {dimension_numbers = #tpu.dot_dimension_numbers<[1], [0], [0], [1], [0, 0, 1, 1], [], []>} : vector<256x8xbf16>, vector<8x256xbf16>, vector<256x256xf32> -> vector<256x256xf32>
    %4 = arith.truncf %3 : vector<256x256xf32> to vector<256x256xbf16>
    %c0_4 = arith.constant 0 : index
    %c0_5 = arith.constant 0 : index
    %5 = vector.load %arg15[%c0_4, %c0_5] : memref<352x256xbf16, #tpu.memory_space<vmem>>, vector<256x256xbf16>
    tpu.vector_store %arg15[%c0_4, %c0_5], %4 {strides = array<i32>} : memref<352x256xbf16, #tpu.memory_space<vmem>>, vector<256x256xbf16>,
    %c0_6 = arith.constant 0 : index
    %c0_7 = arith.constant 0 : index
    %c0_8 = arith.constant 0 : index
    %6 = vector.load %arg3[%c0_6, %c0_7, %c0_8] : memref<1x64x16xbf16, #tpu.memory_space<vmem>>, vector<1x64x16xbf16>
    %7 = vector.shape_cast %6 : vector<1x64x16xbf16> to vector<64x16xbf16>
    %c0_9 = arith.constant 0 : index
    %c0_10 = arith.constant 0 : index
    %8 = vector.load %arg8[%c0_9, %c0_10] : memref<16x256xbf16, #tpu.memory_space<vmem>>, vector<16x256xbf16>
    %cst_11 = arith.constant dense<0.000000e+00> : vector<64x256xf32>
    %9 = tpu.matmul %7, %8, %cst_11 {dimension_numbers = #tpu.dot_dimension_numbers<[1], [0], [0], [1], [0, 0, 1, 1], [], []>} : vector<64x16xbf16>, vector<16x256xbf16>, vector<64x256xf32> -> vector<64x256xf32>
    %10 = arith.truncf %9 : vector<64x256xf32> to vector<64x256xbf16>
    %c256 = arith.constant 256 : index
    %c0_12 = arith.constant 0 : index
    %11 = vector.load %arg15[%c256, %c0_12] : memref<352x256xbf16, #tpu.memory_space<vmem>>, vector<64x256xbf16>
    tpu.vector_store %arg15[%c256, %c0_12], %10 {strides = array<i32>} : memref<352x256xbf16, #tpu.memory_space<vmem>>, vector<64x256xbf16>,
    %c0_13 = arith.constant 0 : index
    %c0_14 = arith.constant 0 : index
    %c0_15 = arith.constant 0 : index
    %12 = vector.load %arg4[%c0_13, %c0_14, %c0_15] : memref<1x16x32xbf16, #tpu.memory_space<vmem>>, vector<1x16x32xbf16>
    %13 = vector.shape_cast %12 : vector<1x16x32xbf16> to vector<16x32xbf16>
    %c0_16 = arith.constant 0 : index
    %c0_17 = arith.constant 0 : index
    %14 = vector.load %arg9[%c0_16, %c0_17] : memref<32x256xbf16, #tpu.memory_space<vmem>>, vector<32x256xbf16>
    %cst_18 = arith.constant dense<0.000000e+00> : vector<16x256xf32>
    %15 = tpu.matmul %13, %14, %cst_18 {dimension_numbers = #tpu.dot_dimension_numbers<[1], [0], [0], [1], [0, 0, 1, 1], [], []>} : vector<16x32xbf16>, vector<32x256xbf16>, vector<16x256xf32> -> vector<16x256xf32>
    %16 = arith.truncf %15 : vector<16x256xf32> to vector<16x256xbf16>
    %c320 = arith.constant 320 : index
    %c0_19 = arith.constant 0 : index
    %17 = vector.load %arg15[%c320, %c0_19] : memref<352x256xbf16, #tpu.memory_space<vmem>>, vector<16x256xbf16>
    tpu.vector_store %arg15[%c320, %c0_19], %16 {strides = array<i32>} : memref<352x256xbf16, #tpu.memory_space<vmem>>, vector<16x256xbf16>,
    %c0_20 = arith.constant 0 : index
    %c0_21 = arith.constant 0 : index
    %c0_22 = arith.constant 0 : index
    %18 = vector.load %arg5[%c0_20, %c0_21, %c0_22] : memref<1x16x64xbf16, #tpu.memory_space<vmem>>, vector<1x16x64xbf16>
    %19 = vector.shape_cast %18 : vector<1x16x64xbf16> to vector<16x64xbf16>
    %c0_23 = arith.constant 0 : index
    %c0_24 = arith.constant 0 : index
    %20 = vector.load %arg10[%c0_23, %c0_24] : memref<64x256xbf16, #tpu.memory_space<vmem>>, vector<64x256xbf16>
    %cst_25 = arith.constant dense<0.000000e+00> : vector<16x256xf32>
    %21 = tpu.matmul %19, %20, %cst_25 {dimension_numbers = #tpu.dot_dimension_numbers<[1], [0], [0], [1], [0, 0, 1, 1], [], []>} : vector<16x64xbf16>, vector<64x256xbf16>, vector<16x256xf32> -> vector<16x256xf32>
    %22 = arith.truncf %21 : vector<16x256xf32> to vector<16x256xbf16>
    %c336 = arith.constant 336 : index
    %c0_26 = arith.constant 0 : index
    %23 = vector.load %arg15[%c336, %c0_26] : memref<352x256xbf16, #tpu.memory_space<vmem>>, vector<16x256xbf16>
    tpu.vector_store %arg15[%c336, %c0_26], %22 {strides = array<i32>} : memref<352x256xbf16, #tpu.memory_space<vmem>>, vector<16x256xbf16>,
    %c0_27 = arith.constant 0 : index
    %c0_28 = arith.constant 0 : index
    %24 = vector.load %arg6[%c0_27, %c0_28] : memref<2048x352xbf16, #tpu.memory_space<vmem>>, vector<2048x352xbf16>
    %c0_29 = arith.constant 0 : index
    %c0_30 = arith.constant 0 : index
    %25 = vector.load %arg15[%c0_29, %c0_30] : memref<352x256xbf16, #tpu.memory_space<vmem>>, vector<352x256xbf16>
    %cst_31 = arith.constant dense<0.000000e+00> : vector<2048x256xf32>
    %26 = tpu.matmul %24, %25, %cst_31 {dimension_numbers = #tpu.dot_dimension_numbers<[1], [0], [0], [1], [0, 0, 1, 1], [], []>} : vector<2048x352xbf16>, vector<352x256xbf16>, vector<2048x256xf32> -> vector<2048x256xf32>
    %c0_32 = arith.constant 0 : index
    %c0_33 = arith.constant 0 : index
    %27 = vector.load %arg11[%c0_32, %c0_33] : memref<1x256xf32, #tpu.memory_space<vmem>>, vector<1x256xf32>
    %28 = vector.broadcast %27 : vector<1x256xf32> to vector<2048x256xf32>
    %29 = arith.addf %26, %28 : vector<2048x256xf32>
    %cst_34 = arith.constant 0.000000e+00 : f32
    %30 = vector.broadcast %cst_34 : f32 to vector<2048x256xf32>
    %31 = arith.maximumf %29, %30 : vector<2048x256xf32>
    %c0_35 = arith.constant 0 : index
    %c0_36 = arith.constant 0 : index
    %32 = vector.load %arg12[%c0_35, %c0_36] : memref<8x256xbf16, #tpu.memory_space<vmem>>, vector<8x256xbf16>
    %33 = arith.truncf %31 : vector<2048x256xf32> to vector<2048x256xbf16>
    %cst_37 = arith.constant dense<0.000000e+00> : vector<8x2048xf32>
    %34 = tpu.matmul %32, %33, %cst_37 {dimension_numbers = #tpu.dot_dimension_numbers<[1], [1], [0], [0], [0, 0, 1, 0], [], []>} : vector<8x256xbf16>, vector<2048x256xbf16>, vector<8x2048xf32> -> vector<8x2048xf32>
    %c0_38 = arith.constant 0 : index
    %c0_39 = arith.constant 0 : index
    %35 = vector.load %arg13[%c0_38, %c0_39] : memref<8x1xf32, #tpu.memory_space<vmem>>, vector<8x1xf32>
    %36 = vector.broadcast %35 : vector<8x1xf32> to vector<8x2048xf32>
    %37 = arith.addf %34, %36 : vector<8x2048xf32>
    %c0_40 = arith.constant 0 : index
    %c0_41 = arith.constant 0 : index
    %c0_42 = arith.constant 0 : index
    %38 = vector.load %arg14[%c0_40, %c0_41, %c0_42] : memref<1x8x2048xf32, #tpu.memory_space<vmem>>, vector<1x8x2048xf32>
    %39 = vector.shape_cast %38 : vector<1x8x2048xf32> to vector<8x2048xf32>
    %40 = vector.shape_cast %37 : vector<8x2048xf32> to vector<1x8x2048xf32>
    tpu.vector_store %arg14[%c0_40, %c0_41, %c0_42], %40 {strides = array<i32>} : memref<1x8x2048xf32, #tpu.memory_space<vmem>>, vector<1x8x2048xf32>,
    return
  }
  func.func @transform_0(%arg0: i32, %arg1: i32) -> (i32, i32, i32) {
    %c0_i32 = arith.constant 0 : i32
    %c0_i32_0 = arith.constant 0 : i32
    %c0_i32_1 = arith.constant 0 : i32
    return %arg1, %c0_i32, %c0_i32_0 : i32, i32, i32
  }
  func.func @transform_1(%arg0: i32, %arg1: i32) -> (i32, i32, i32) {
    %c0_i32 = arith.constant 0 : i32
    %c0_i32_0 = arith.constant 0 : i32
    %c0_i32_1 = arith.constant 0 : i32
    return %arg1, %c0_i32, %c0_i32_0 : i32, i32, i32
  }
  func.func @transform_2(%arg0: i32, %arg1: i32) -> (i32, i32, i32) {
    %c0_i32 = arith.constant 0 : i32
    %c0_i32_0 = arith.constant 0 : i32
    %c0_i32_1 = arith.constant 0 : i32
    return %arg1, %c0_i32, %c0_i32_0 : i32, i32, i32
  }
  func.func @transform_3(%arg0: i32, %arg1: i32) -> (i32, i32, i32) {
    %c0_i32 = arith.constant 0 : i32
    %c0_i32_0 = arith.constant 0 : i32
    %c0_i32_1 = arith.constant 0 : i32
    return %arg1, %c0_i32, %c0_i32_0 : i32, i32, i32
  }
  func.func @transform_4(%arg0: i32, %arg1: i32) -> (i32, i32) {
    %c0_i32 = arith.constant 0 : i32
    %c0_i32_0 = arith.constant 0 : i32
    return %arg0, %c0_i32 : i32, i32
  }
  func.func @transform_5(%arg0: i32, %arg1: i32) -> (i32, i32) {
    %c0_i32 = arith.constant 0 : i32
    %c0_i32_0 = arith.constant 0 : i32
    %c0_i32_1 = arith.constant 0 : i32
    return %c0_i32, %c0_i32_0 : i32, i32
  }
  func.func @transform_6(%arg0: i32, %arg1: i32) -> (i32, i32) {
    %c0_i32 = arith.constant 0 : i32
    %c0_i32_0 = arith.constant 0 : i32
    %c0_i32_1 = arith.constant 0 : i32
    return %c0_i32, %c0_i32_0 : i32, i32
  }
  func.func @transform_7(%arg0: i32, %arg1: i32) -> (i32, i32) {
    %c0_i32 = arith.constant 0 : i32
    %c0_i32_0 = arith.constant 0 : i32
    %c0_i32_1 = arith.constant 0 : i32
    return %c0_i32, %c0_i32_0 : i32, i32
  }
  func.func @transform_8(%arg0: i32, %arg1: i32) -> (i32, i32) {
    %c0_i32 = arith.constant 0 : i32
    %c0_i32_0 = arith.constant 0 : i32
    %c0_i32_1 = arith.constant 0 : i32
    return %c0_i32, %c0_i32_0 : i32, i32
  }
  func.func @transform_9(%arg0: i32, %arg1: i32) -> (i32, i32) {
    %c0_i32 = arith.constant 0 : i32
    %c0_i32_0 = arith.constant 0 : i32
    %c0_i32_1 = arith.constant 0 : i32
    return %c0_i32, %c0_i32_0 : i32, i32
  }
  func.func @transform_10(%arg0: i32, %arg1: i32) -> (i32, i32) {
    %c0_i32 = arith.constant 0 : i32
    %c0_i32_0 = arith.constant 0 : i32
    %c0_i32_1 = arith.constant 0 : i32
    return %c0_i32, %c0_i32_0 : i32, i32
  }
  func.func @transform_11(%arg0: i32, %arg1: i32) -> (i32, i32) {
    %c0_i32 = arith.constant 0 : i32
    %c0_i32_0 = arith.constant 0 : i32
    %c0_i32_1 = arith.constant 0 : i32
    return %c0_i32, %c0_i32_0 : i32, i32
  }
  func.func @transform_12(%arg0: i32, %arg1: i32) -> (i32, i32, i32) {
    %c0_i32 = arith.constant 0 : i32
    %c0_i32_0 = arith.constant 0 : i32
    return %arg1, %c0_i32, %arg0 : i32, i32, i32
  }
}

</mosaic_0001>

<llo_original>
// kernel: run.1
$region0: #{run.1}
  #allocation0 [shape = 'u32[]', space=smem, size = 0x4, offset = 0x4, fixed_abs, tag = 'smem constant byte address 0x4 - core index']
  #allocation1 [shape = 'u32[144,128]{1,0:T(1,128)}', space=vmem, size = 0x12000, scoped, tag = 'internal scratch']
  #allocation2 [shape = 'bf16[352,256]{1,0:T(8,128)(2,1)}', space=vmem, size = 0x2c000, scoped, tag = 'scratch operand']
  %s0 = inlined_call_operand.vmem [shape: bf16[2,256,8], index: 0, kind: input, shape index: {}]
  %s1 = inlined_call_operand.vmem [shape: bf16[2,64,16], index: 1, kind: input, shape index: {}]
  %s2 = inlined_call_operand.vmem [shape: bf16[2,16,32], index: 2, kind: input, shape index: {}]
  %s3 = inlined_call_operand.vmem [shape: bf16[2,16,64], index: 3, kind: input, shape index: {}]
  %s4 = inlined_call_operand.hbm [shape: bf16[4096,352], index: 4, kind: input, shape index: {}]
  %s5 = inlined_call_operand.hbm [shape: bf16[8,256], index: 5, kind: input, shape index: {}]
  %s6 = inlined_call_operand.hbm [shape: bf16[16,256], index: 6, kind: input, shape index: {}]
  %s7 = inlined_call_operand.hbm [shape: bf16[32,256], index: 7, kind: input, shape index: {}]
  %s8 = inlined_call_operand.hbm [shape: bf16[64,256], index: 8, kind: input, shape index: {}]
  %s9 = inlined_call_operand.hbm [shape: f32[1,256], index: 9, kind: input, shape index: {}]
  %s10 = inlined_call_operand.hbm [shape: bf16[8,256], index: 10, kind: input, shape index: {}]
  %s11 = inlined_call_operand.hbm [shape: f32[8,1], index: 11, kind: input, shape index: {}]
  %s12 = inlined_call_operand.vmem [shape: f32[2,8,4096], index: 12, kind: output, shape index: {}]
  %s13 = sld [smem:[#allocation0]]
  $region113: #{run.1} parent=0
    _
  %s15 = ssub.s32 1, %s13
  %s16 = scalar_select 0, %s15, %s13
  $region1: #{run.1} parent=0
    #allocation3 [shape = 'u8[3145728]{0}', space=vmem, size = 0x300000, scoped, tag = 'input window, operand 4']
    #allocation4 [shape = 's32[2]{0}', space=sflag, size = 0x8, scoped, tag = 'scoped memory for run.1']
    #allocation5 [shape = 'u8[4096]{0}', space=vmem, size = 0x1000, scoped, tag = 'input window, operand 5, single buffered']
    #allocation6 [shape = 's32[1]{0}', space=sflag, size = 0x4, scoped, tag = 'scoped memory for run.1']
    #allocation7 [shape = 'u8[8192]{0}', space=vmem, size = 0x2000, scoped, tag = 'input window, operand 6, single buffered']
    #allocation8 [shape = 'u8[16384]{0}', space=vmem, size = 0x4000, scoped, tag = 'input window, operand 7, single buffered']
    #allocation9 [shape = 's32[1]{0}', space=sflag, size = 0x4, scoped, tag = 'scoped memory for run.1']
    #allocation10 [shape = 'u8[32768]{0}', space=vmem, size = 0x8000, scoped, tag = 'input window, operand 8, single buffered']
    #allocation11 [shape = 'u8[1024]{0}', space=vmem, size = 0x400, scoped, tag = 'input window, operand 9, single buffered']
    #allocation12 [shape = 's32[1]{0}', space=sflag, size = 0x4, scoped, tag = 'scoped memory for run.1']
    #allocation13 [shape = 'u8[4096]{0}', space=vmem, size = 0x1000, scoped, tag = 'input window, operand 10, single buffered']
    #allocation14 [shape = 'u8[4096]{0}', space=vmem, size = 0x1000, scoped, tag = 'input window, operand 11, single buffered']
    #allocation15 [shape = 's32[1]{0}', space=sflag, size = 0x4, scoped, tag = 'scoped memory for run.1']
    %17 = vsyncpa [#allocation4], 0
    %s18 = scalar_lea.sflag [#allocation4], 1
    %19 = vsyncpa %s18, 0
    %20 = vsyncpa [#allocation6], 0
    %21 = vsyncpa [#allocation9], 0
    %22 = vsyncpa [#allocation12], 0
    %23 = vsyncpa [#allocation15], 0
    loop: start=0, step=1, limit=6
    $region2: #{run.1} parent=1 // loop_pre_header
      _
    $region3: #{run.1} parent=1 // loop_header
      %s25 = sphi 0, %s29
      %p26 = scmp.ge.s32.totalorder %s25, 6
      %s32 = sphi 0, %s44
      %s33 = sphi 0, %s40
      %s34 = sphi 0, %s32
      %s35 = sphi 0, %s33
      %s36 = sphi 0, %s34
      %s37 = sphi 0, %s35
      %s47 = sphi 0, %s49
      %s50 = sphi 0, %s47
      %s51 = sphi 0, %s50
      %s67 = sphi 0, %s51
      %s73 = sphi 0, %s75
      %s76 = sphi 0, %s73
      %s77 = sphi 0, %s76
      %s93 = sphi 0, %s77
      %s99 = sphi 0, %s101
      %s102 = sphi 0, %s99
      %s103 = sphi 0, %s102
      %s119 = sphi 0, %s103
      %s125 = sphi 0, %s127
      %s128 = sphi 0, %s125
      %s129 = sphi 0, %s128
      %s145 = sphi 0, %s129
      %s151 = sphi 0, %s153
      %s154 = sphi 0, %s151
      %s155 = sphi 0, %s154
      %s171 = sphi 0, %s155
      %s175 = sphi 0, %s175
      %s177 = sphi 0, %s175
      %s178 = sphi 0, %s177
      %s192 = sphi 0, %s178
      %s196 = sphi 0, %s196
      %s198 = sphi 0, %s196
      %s199 = sphi 0, %s198
      %s213 = sphi 0, %s199
      %s217 = sphi 0, %s217
      %s219 = sphi 0, %s217
      %s220 = sphi 0, %s219
      %s234 = sphi 0, %s220
      %s238 = sphi 0, %s238
      %s240 = sphi 0, %s238
      %s241 = sphi 0, %s240
      %s255 = sphi 0, %s241
      %s259 = sphi 0, %s259
      %s261 = sphi 0, %s259
      %s262 = sphi 0, %s261
      %s276 = sphi 0, %s262
      %s280 = sphi 0, %s280
      %s282 = sphi 0, %s280
      %s283 = sphi 0, %s282
      %s297 = sphi 0, %s283
      %s301 = sphi 0, %s301
      %s303 = sphi 0, %s301
      %s304 = sphi 0, %s303
      %s318 = sphi 0, %s304
      %s326 = sphi 0, %s328
      %s329 = sphi 0, %s326
      %s330 = sphi 0, %s329
      %s346 = sphi 0, %s330
    $region4: #{run.1} parent=1 // loop_header_branch
      %28 = sbr.rel (%p26) target = $region8
    $region5: #{run.1} parent=1 // loop_body
      %s30 = ssub.s32 %s25, 1
      %s31 = ssub.s32 %s25, 2
      %s38 = sadd.s32 1, %s33
      %p39 = scmp.ge.s32.totalorder %s38, 2
      %s40 = scalar_select %p39, 0, %s38
      %s41 = sadd.s32 1, %s32
      %s42 = scalar_select %p39, %s41, %s32
      %p43 = scmp.ge.s32.totalorder %s42, 2
      %s44 = scalar_select %p43, 0, %s42
      %s45 = ssub.s32 %s33, %s40
      %p46 = scmp.eq.s32.totalorder %s45, 0
      %s48 = sadd.s32 %s47, 1
      %s49 = scalar_select %p46, %s47, %s48
      %p52 = pneg %p46
      %p53 = scmp.eq.s32.totalorder %s25, 3
      %p54 = por %p52, %p53
      %p55 = scmp.ne.s32.totalorder %s47, %s50
      %p56 = scmp.eq.s32.totalorder %s25, 0
      %p57 = por %p55, %p56
      %p58 = scmp.ne.s32.totalorder %s47, %s50
      %p59 = scmp.eq.s32.totalorder %s30, 3
      %p60 = por %p58, %p59
      %p61 = scmp.ne.s32.totalorder %s50, %s51
      %p62 = scmp.eq.s32.totalorder %s30, 0
      %p63 = por %p61, %p62
      %p64 = scmp.ne.s32.totalorder %s50, %s51
      %p65 = scmp.eq.s32.totalorder %s31, 3
      %p66 = por %p64, %p65
      %p68 = scmp.ne.s32.totalorder %s51, %s67
      %p69 = scmp.eq.s32.totalorder %s31, 0
      %p70 = por %p68, %p69
      %s71 = ssub.s32 %s33, %s40
      %p72 = scmp.eq.s32.totalorder %s71, 0
      %s74 = sadd.s32 %s73, 1
      %s75 = scalar_select %p72, %s73, %s74
      %p78 = pneg %p72
      %p79 = scmp.eq.s32.totalorder %s25, 3
      %p80 = por %p78, %p79
      %p81 = scmp.ne.s32.totalorder %s73, %s76
      %p82 = scmp.eq.s32.totalorder %s25, 0
      %p83 = por %p81, %p82
      %p84 = scmp.ne.s32.totalorder %s73, %s76
      %p85 = scmp.eq.s32.totalorder %s30, 3
      %p86 = por %p84, %p85
      %p87 = scmp.ne.s32.totalorder %s76, %s77
      %p88 = scmp.eq.s32.totalorder %s30, 0
      %p89 = por %p87, %p88
      %p90 = scmp.ne.s32.totalorder %s76, %s77
      %p91 = scmp.eq.s32.totalorder %s31, 3
      %p92 = por %p90, %p91
      %p94 = scmp.ne.s32.totalorder %s77, %s93
      %p95 = scmp.eq.s32.totalorder %s31, 0
      %p96 = por %p94, %p95
      %s97 = ssub.s32 %s33, %s40
      %p98 = scmp.eq.s32.totalorder %s97, 0
      %s100 = sadd.s32 %s99, 1
      %s101 = scalar_select %p98, %s99, %s100
      %p104 = pneg %p98
      %p105 = scmp.eq.s32.totalorder %s25, 3
      %p106 = por %p104, %p105
      %p107 = scmp.ne.s32.totalorder %s99, %s102
      %p108 = scmp.eq.s32.totalorder %s25, 0
      %p109 = por %p107, %p108
      %p110 = scmp.ne.s32.totalorder %s99, %s102
      %p111 = scmp.eq.s32.totalorder %s30, 3
      %p112 = por %p110, %p111
      %p113 = scmp.ne.s32.totalorder %s102, %s103
      %p114 = scmp.eq.s32.totalorder %s30, 0
      %p115 = por %p113, %p114
      %p116 = scmp.ne.s32.totalorder %s102, %s103
      %p117 = scmp.eq.s32.totalorder %s31, 3
      %p118 = por %p116, %p117
      %p120 = scmp.ne.s32.totalorder %s103, %s119
      %p121 = scmp.eq.s32.totalorder %s31, 0
      %p122 = por %p120, %p121
      %s123 = ssub.s32 %s33, %s40
      %p124 = scmp.eq.s32.totalorder %s123, 0
      %s126 = sadd.s32 %s125, 1
      %s127 = scalar_select %p124, %s125, %s126
      %p130 = pneg %p124
      %p131 = scmp.eq.s32.totalorder %s25, 3
      %p132 = por %p130, %p131
      %p133 = scmp.ne.s32.totalorder %s125, %s128
      %p134 = scmp.eq.s32.totalorder %s25, 0
      %p135 = por %p133, %p134
      %p136 = scmp.ne.s32.totalorder %s125, %s128
      %p137 = scmp.eq.s32.totalorder %s30, 3
      %p138 = por %p136, %p137
      %p139 = scmp.ne.s32.totalorder %s128, %s129
      %p140 = scmp.eq.s32.totalorder %s30, 0
      %p141 = por %p139, %p140
      %p142 = scmp.ne.s32.totalorder %s128, %s129
      %p143 = scmp.eq.s32.totalorder %s31, 3
      %p144 = por %p142, %p143
      %p146 = scmp.ne.s32.totalorder %s129, %s145
      %p147 = scmp.eq.s32.totalorder %s31, 0
      %p148 = por %p146, %p147
      %s149 = ssub.s32 %s32, %s44
      %p150 = scmp.eq.s32.totalorder %s149, 0
      %s152 = sadd.s32 %s151, 1
      %s153 = scalar_select %p150, %s151, %s152
      %p156 = pneg %p150
      %p157 = scmp.eq.s32.totalorder %s25, 3
      %p158 = por %p156, %p157
      %p159 = scmp.ne.s32.totalorder %s151, %s154
      %p160 = scmp.eq.s32.totalorder %s25, 0
      %p161 = por %p159, %p160
      %p162 = scmp.ne.s32.totalorder %s151, %s154
      %p163 = scmp.eq.s32.totalorder %s30, 3
      %p164 = por %p162, %p163
      %p165 = scmp.ne.s32.totalorder %s154, %s155
      %p166 = scmp.eq.s32.totalorder %s30, 0
      %p167 = por %p165, %p166
      %p168 = scmp.ne.s32.totalorder %s154, %s155
      %p169 = scmp.eq.s32.totalorder %s31, 3
      %p170 = por %p168, %p169
      %p172 = scmp.ne.s32.totalorder %s155, %s171
      %p173 = scmp.eq.s32.totalorder %s31, 0
      %p174 = por %p172, %p173
      %s176 = sadd.s32 %s175, 1
      %p179 = scmp.eq.s32.totalorder %s25, 3
      %p180 = scmp.ne.s32.totalorder %s175, %s177
      %p181 = scmp.eq.s32.totalorder %s25, 0
      %p182 = por %p180, %p181
      %p183 = scmp.ne.s32.totalorder %s175, %s177
      %p184 = scmp.eq.s32.totalorder %s30, 3
      %p185 = por %p183, %p184
      %p186 = scmp.ne.s32.totalorder %s177, %s178
      %p187 = scmp.eq.s32.totalorder %s30, 0
      %p188 = por %p186, %p187
      %p189 = scmp.ne.s32.totalorder %s177, %s178
      %p190 = scmp.eq.s32.totalorder %s31, 3
      %p191 = por %p189, %p190
      %p193 = scmp.ne.s32.totalorder %s178, %s192
      %p194 = scmp.eq.s32.totalorder %s31, 0
      %p195 = por %p193, %p194
      %s197 = sadd.s32 %s196, 1
      %p200 = scmp.eq.s32.totalorder %s25, 3
      %p201 = scmp.ne.s32.totalorder %s196, %s198
      %p202 = scmp.eq.s32.totalorder %s25, 0
      %p203 = por %p201, %p202
      %p204 = scmp.ne.s32.totalorder %s196, %s198
      %p205 = scmp.eq.s32.totalorder %s30, 3
      %p206 = por %p204, %p205
      %p207 = scmp.ne.s32.totalorder %s198, %s199
      %p208 = scmp.eq.s32.totalorder %s30, 0
      %p209 = por %p207, %p208
      %p210 = scmp.ne.s32.totalorder %s198, %s199
      %p211 = scmp.eq.s32.totalorder %s31, 3
      %p212 = por %p210, %p211
      %p214 = scmp.ne.s32.totalorder %s199, %s213
      %p215 = scmp.eq.s32.totalorder %s31, 0
      %p216 = por %p214, %p215
      %s218 = sadd.s32 %s217, 1
      %p221 = scmp.eq.s32.totalorder %s25, 3
      %p222 = scmp.ne.s32.totalorder %s217, %s219
      %p223 = scmp.eq.s32.totalorder %s25, 0
      %p224 = por %p222, %p223
      %p225 = scmp.ne.s32.totalorder %s217, %s219
      %p226 = scmp.eq.s32.totalorder %s30, 3
      %p227 = por %p225, %p226
      %p228 = scmp.ne.s32.totalorder %s219, %s220
      %p229 = scmp.eq.s32.totalorder %s30, 0
      %p230 = por %p228, %p229
      %p231 = scmp.ne.s32.totalorder %s219, %s220
      %p232 = scmp.eq.s32.totalorder %s31, 3
      %p233 = por %p231, %p232
      %p235 = scmp.ne.s32.totalorder %s220, %s234
      %p236 = scmp.eq.s32.totalorder %s31, 0
      %p237 = por %p235, %p236
      %s239 = sadd.s32 %s238, 1
      %p242 = scmp.eq.s32.totalorder %s25, 3
      %p243 = scmp.ne.s32.totalorder %s238, %s240
      %p244 = scmp.eq.s32.totalorder %s25, 0
      %p245 = por %p243, %p244
      %p246 = scmp.ne.s32.totalorder %s238, %s240
      %p247 = scmp.eq.s32.totalorder %s30, 3
      %p248 = por %p246, %p247
      %p249 = scmp.ne.s32.totalorder %s240, %s241
      %p250 = scmp.eq.s32.totalorder %s30, 0
      %p251 = por %p249, %p250
      %p252 = scmp.ne.s32.totalorder %s240, %s241
      %p253 = scmp.eq.s32.totalorder %s31, 3
      %p254 = por %p252, %p253
      %p256 = scmp.ne.s32.totalorder %s241, %s255
      %p257 = scmp.eq.s32.totalorder %s31, 0
      %p258 = por %p256, %p257
      %s260 = sadd.s32 %s259, 1
      %p263 = scmp.eq.s32.totalorder %s25, 3
      %p264 = scmp.ne.s32.totalorder %s259, %s261
      %p265 = scmp.eq.s32.totalorder %s25, 0
      %p266 = por %p264, %p265
      %p267 = scmp.ne.s32.totalorder %s259, %s261
      %p268 = scmp.eq.s32.totalorder %s30, 3
      %p269 = por %p267, %p268
      %p270 = scmp.ne.s32.totalorder %s261, %s262
      %p271 = scmp.eq.s32.totalorder %s30, 0
      %p272 = por %p270, %p271
      %p273 = scmp.ne.s32.totalorder %s261, %s262
      %p274 = scmp.eq.s32.totalorder %s31, 3
      %p275 = por %p273, %p274
      %p277 = scmp.ne.s32.totalorder %s262, %s276
      %p278 = scmp.eq.s32.totalorder %s31, 0
      %p279 = por %p277, %p278
      %s281 = sadd.s32 %s280, 1
      %p284 = scmp.eq.s32.totalorder %s25, 3
      %p285 = scmp.ne.s32.totalorder %s280, %s282
      %p286 = scmp.eq.s32.totalorder %s25, 0
      %p287 = por %p285, %p286
      %p288 = scmp.ne.s32.totalorder %s280, %s282
      %p289 = scmp.eq.s32.totalorder %s30, 3
      %p290 = por %p288, %p289
      %p291 = scmp.ne.s32.totalorder %s282, %s283
      %p292 = scmp.eq.s32.totalorder %s30, 0
      %p293 = por %p291, %p292
      %p294 = scmp.ne.s32.totalorder %s282, %s283
      %p295 = scmp.eq.s32.totalorder %s31, 3
      %p296 = por %p294, %p295
      %p298 = scmp.ne.s32.totalorder %s283, %s297
      %p299 = scmp.eq.s32.totalorder %s31, 0
      %p300 = por %p298, %p299
      %s302 = sadd.s32 %s301, 1
      %p305 = scmp.eq.s32.totalorder %s25, 3
      %p306 = scmp.ne.s32.totalorder %s301, %s303
      %p307 = scmp.eq.s32.totalorder %s25, 0
      %p308 = por %p306, %p307
      %p309 = scmp.ne.s32.totalorder %s301, %s303
      %p310 = scmp.eq.s32.totalorder %s30, 3
      %p311 = por %p309, %p310
      %p312 = scmp.ne.s32.totalorder %s303, %s304
      %p313 = scmp.eq.s32.totalorder %s30, 0
      %p314 = por %p312, %p313
      %p315 = scmp.ne.s32.totalorder %s303, %s304
      %p316 = scmp.eq.s32.totalorder %s31, 3
      %p317 = por %p315, %p316
      %p319 = scmp.ne.s32.totalorder %s304, %s318
      %p320 = scmp.eq.s32.totalorder %s31, 0
      %p321 = por %p319, %p320
      %s322 = ssub.s32 %s33, %s40
      %s323 = ssub.s32 %s32, %s44
      %s324 = sor.u32 %s322, %s323
      %p325 = scmp.eq.s32.totalorder %s324, 0
      %s327 = sadd.s32 %s326, 1
      %s328 = scalar_select %p325, %s326, %s327
      %p331 = pneg %p325
      %p332 = scmp.eq.s32.totalorder %s25, 3
      %p333 = por %p331, %p332
      %p334 = scmp.ne.s32.totalorder %s326, %s329
      %p335 = scmp.eq.s32.totalorder %s25, 0
      %p336 = por %p334, %p335
      %p337 = scmp.ne.s32.totalorder %s326, %s329
      %p338 = scmp.eq.s32.totalorder %s30, 3
      %p339 = por %p337, %p338
      %p340 = scmp.ne.s32.totalorder %s329, %s330
      %p341 = scmp.eq.s32.totalorder %s30, 0
      %p342 = por %p340, %p341
      %p343 = scmp.ne.s32.totalorder %s329, %s330
      %p344 = scmp.eq.s32.totalorder %s31, 3
      %p345 = por %p343, %p344
      %p347 = scmp.ne.s32.totalorder %s330, %s346
      %p348 = scmp.eq.s32.totalorder %s31, 0
      %p349 = por %p347, %p348
      %p350 = scmp.le.s32.totalorder 1, %s25
      %p351 = scmp.lt.s32.totalorder %s25, 5
      %p352 = pnand %p350, %p351
      %p353 = pneg %p352
      // Predicated region
      $region9: #{run.1} parent=5 // pred_check
        _
      $region10: #{run.1} parent=5 // pred_check_branch
        %355 = sbr.rel (%p352) target = $region12
      $region11: #{run.1} parent=5 // pred_region
        %s356 = ssub.s32 %s25, 1
        // Predicated region
        $region13: #{run.1} parent=11 // pred_check
          %p357 = pneg %p188
        $region14: #{run.1} parent=11 // pred_check_branch
          %359 = sbr.rel (%p357) target = $region16
        $region15: #{run.1} parent=11 // pred_region
          %s361 = ssub.s32 128, 128
          %362 = vsyncadd [#allocation6], %s361
          %s364 = sshll.u32 [#allocation5], 4
          %s365 = int_to_ptr.vmem [resolvable:$true] %s364
          %367 = dma.hbm_to_vmem [thread:$0]  %s5, 128, %s365, [#allocation6]
        $region16: #{run.1} parent=11 // pred_fallthru
          _
        // Predicated region
        $region17: #{run.1} parent=11 // pred_check
          %p368 = pneg %p209
        $region18: #{run.1} parent=11 // pred_check_branch
          %370 = sbr.rel (%p368) target = $region20
        $region19: #{run.1} parent=11 // pred_region
          %s372 = ssub.s32 256, 256
          %373 = vsyncadd [#allocation6], %s372
          %s374 = sshll.u32 [#allocation7], 4
          %s375 = int_to_ptr.vmem [resolvable:$true] %s374
          %380 = dma.hbm_to_vmem [thread:$0]  %s6, 256, %s375, [#allocation6], 128, 128, 8
        $region20: #{run.1} parent=11 // pred_fallthru
          _
        // Predicated region
        $region21: #{run.1} parent=11 // pred_check
          %p381 = pneg %p230
        $region22: #{run.1} parent=11 // pred_check_branch
          %383 = sbr.rel (%p381) target = $region24
        $region23: #{run.1} parent=11 // pred_region
          %s385 = ssub.s32 512, 512
          %386 = vsyncadd [#allocation9], %s385
          %s387 = sshll.u32 [#allocation8], 4
          %s388 = int_to_ptr.vmem [resolvable:$true] %s387
          %393 = dma.hbm_to_vmem [thread:$0]  %s7, 512, %s388, [#allocation9], 128, 128, 8
        $region24: #{run.1} parent=11 // pred_fallthru
          _
        // Predicated region
        $region25: #{run.1} parent=11 // pred_check
          %p394 = pneg %p251
        $region26: #{run.1} parent=11 // pred_check_branch
          %396 = sbr.rel (%p394) target = $region28
        $region27: #{run.1} parent=11 // pred_region
          %s398 = ssub.s32 1024, 1024
          %399 = vsyncadd [#allocation9], %s398
          %s400 = sshll.u32 [#allocation10], 4
          %s401 = int_to_ptr.vmem [resolvable:$true] %s400
          %406 = dma.hbm_to_vmem [thread:$0]  %s8, 1024, %s401, [#allocation9], 128, 128, 8
        $region28: #{run.1} parent=11 // pred_fallthru
          _
        // Predicated region
        $region29: #{run.1} parent=11 // pred_check
          %p407 = pneg %p272
        $region30: #{run.1} parent=11 // pred_check_branch
          %409 = sbr.rel (%p407) target = $region32
        $region31: #{run.1} parent=11 // pred_region
          %s411 = ssub.s32 32, 32
          %412 = vsyncadd [#allocation12], %s411
          %s414 = sshll.u32 [#allocation11], 4
          %s415 = int_to_ptr.vmem [resolvable:$true] %s414
          %417 = dma.hbm_to_vmem [thread:$0]  %s9, 32, %s415, [#allocation12]
        $region32: #{run.1} parent=11 // pred_fallthru
          _
        // Predicated region
        $region33: #{run.1} parent=11 // pred_check
          %p418 = pneg %p293
        $region34: #{run.1} parent=11 // pred_check_branch
          %420 = sbr.rel (%p418) target = $region36
        $region35: #{run.1} parent=11 // pred_region
          %s422 = ssub.s32 128, 128
          %423 = vsyncadd [#allocation12], %s422
          %s425 = sshll.u32 [#allocation13], 4
          %s426 = int_to_ptr.vmem [resolvable:$true] %s425
          %428 = dma.hbm_to_vmem [thread:$0]  %s10, 128, %s426, [#allocation12]
        $region36: #{run.1} parent=11 // pred_fallthru
          _
        // Predicated region
        $region37: #{run.1} parent=11 // pred_check
          %p429 = pneg %p314
        $region38: #{run.1} parent=11 // pred_check_branch
          %431 = sbr.rel (%p429) target = $region40
        $region39: #{run.1} parent=11 // pred_region
          %s433 = ssub.s32 128, 128
          %434 = vsyncadd [#allocation15], %s433
          %s436 = sshll.u32 [#allocation14], 4
          %s437 = int_to_ptr.vmem [resolvable:$true] %s436
          %439 = dma.hbm_to_vmem [thread:$0]  %s11, 128, %s437, [#allocation15]
        $region40: #{run.1} parent=11 // pred_fallthru
          _
      $region12: #{run.1} parent=5 // pred_fallthru
        _
      %p440 = scmp.lt.s32.totalorder %s25, 4
      // Predicated region
      $region41: #{run.1} parent=5 // pred_check
        %p441 = pneg %p440
      $region42: #{run.1} parent=5 // pred_check_branch
        %443 = sbr.rel (%p441) target = $region44
      $region43: #{run.1} parent=5 // pred_region
        // Predicated region
        $region45: #{run.1} parent=43 // pred_check
          %p444 = pneg %p57
        $region46: #{run.1} parent=43 // pred_check_branch
          %446 = sbr.rel (%p444) target = $region48
        $region47: #{run.1} parent=43 // pred_region
          %p447 = scmp.lt.s32.totalorder %s33, 1
          %s448 = scalar_select %p447, %s33, 1
          %s449 = smul.addr %s448, 32
          %s450 = smul.addr %s449, 4
          %s451 = scalar_lea.vmem %s0, %s450
        $region48: #{run.1} parent=43 // pred_fallthru
          _
        // Predicated region
        $region49: #{run.1} parent=43 // pred_check
          %p452 = pneg %p83
        $region50: #{run.1} parent=43 // pred_check_branch
          %454 = sbr.rel (%p452) target = $region52
        $region51: #{run.1} parent=43 // pred_region
          %p455 = scmp.lt.s32.totalorder %s33, 1
          %s456 = scalar_select %p455, %s33, 1
          %s457 = smul.addr %s456, 8
          %s458 = smul.addr %s457, 4
          %s459 = scalar_lea.vmem %s1, %s458
        $region52: #{run.1} parent=43 // pred_fallthru
          _
        // Predicated region
        $region53: #{run.1} parent=43 // pred_check
          %p460 = pneg %p109
        $region54: #{run.1} parent=43 // pred_check_branch
          %462 = sbr.rel (%p460) target = $region56
        $region55: #{run.1} parent=43 // pred_region
          %p463 = scmp.lt.s32.totalorder %s33, 1
          %s464 = scalar_select %p463, %s33, 1
          %s465 = smul.addr %s464, 2
          %s466 = smul.addr %s465, 4
          %s467 = scalar_lea.vmem %s2, %s466
        $region56: #{run.1} parent=43 // pred_fallthru
          _
        // Predicated region
        $region57: #{run.1} parent=43 // pred_check
          %p468 = pneg %p135
        $region58: #{run.1} parent=43 // pred_check_branch
          %470 = sbr.rel (%p468) target = $region60
        $region59: #{run.1} parent=43 // pred_region
          %p471 = scmp.lt.s32.totalorder %s33, 1
          %s472 = scalar_select %p471, %s33, 1
          %s473 = smul.addr %s472, 2
          %s474 = smul.addr %s473, 4
          %s475 = scalar_lea.vmem %s3, %s474
        $region60: #{run.1} parent=43 // pred_fallthru
          _
        // Predicated region
        $region61: #{run.1} parent=43 // pred_check
          %p476 = pneg %p161
        $region62: #{run.1} parent=43 // pred_check_branch
          %478 = sbr.rel (%p476) target = $region64
        $region63: #{run.1} parent=43 // pred_region
          %s479 = sand.u32 %s151, 1
          %s480 = scalar_lea.sflag [#allocation4], %s479
          %s481 = sand.u32 %s151, 1
          %s482 = smul.addr %s481, 3072
          %s483 = scalar_lea.vmem [#allocation3], %s482
          %s484 = smul.u32 256, %s32
          %s486 = ssub.s32 49152, 49152
          %487 = vsyncadd %s480, %s486
          %s488 = smul.addr %s484, 3
          %s489 = smul.addr %s488, 64
          %s490 = scalar_lea.hbm %s4, %s489
          %s491 = sshll.u32 %s483, 4
          %s492 = int_to_ptr.vmem [resolvable:$true] %s491
          %497 = dma.hbm_to_vmem [thread:$0]  %s490, 49152, %s492, %s480, 192, 192, 12
        $region64: #{run.1} parent=43 // pred_fallthru
          _
      $region44: #{run.1} parent=5 // pred_fallthru
        _
      %p498 = scmp.le.s32.totalorder 1, %s25
      %p499 = scmp.lt.s32.totalorder %s25, 5
      %p500 = pnand %p498, %p499
      %p501 = pneg %p500
      // Predicated region
      $region65: #{run.1} parent=5 // pred_check
        _
      $region66: #{run.1} parent=5 // pred_check_branch
        %503 = sbr.rel (%p500) target = $region68
      $region67: #{run.1} parent=5 // pred_region
        %s504 = ssub.s32 %s25, 1
        %s505 = sand.u32 %s154, 1
        %s506 = scalar_lea.sflag [#allocation4], %s505
        %s507 = sand.u32 %s154, 1
        %s508 = smul.addr %s507, 3072
        %s509 = scalar_lea.vmem [#allocation3], %s508
        // Predicated region
        $region69: #{run.1} parent=67 // pred_check
          %p510 = pneg %p167
        $region70: #{run.1} parent=67 // pred_check_branch
          %512 = sbr.rel (%p510) target = $region72
        $region71: #{run.1} parent=67 // pred_region
          %513 = dma.done %s506, 49152
        $region72: #{run.1} parent=67 // pred_fallthru
          _
        // Predicated region
        $region73: #{run.1} parent=67 // pred_check
          %p514 = pneg %p188
        $region74: #{run.1} parent=67 // pred_check_branch
          %516 = sbr.rel (%p514) target = $region76
        $region75: #{run.1} parent=67 // pred_region
          %517 = dma.done [#allocation6], 128
        $region76: #{run.1} parent=67 // pred_fallthru
          _
        // Predicated region
        $region77: #{run.1} parent=67 // pred_check
          %p518 = pneg %p209
        $region78: #{run.1} parent=67 // pred_check_branch
          %520 = sbr.rel (%p518) target = $region80
        $region79: #{run.1} parent=67 // pred_region
          %521 = dma.done [#allocation6], 256
        $region80: #{run.1} parent=67 // pred_fallthru
          _
        // Predicated region
        $region81: #{run.1} parent=67 // pred_check
          %p522 = pneg %p230
        $region82: #{run.1} parent=67 // pred_check_branch
          %524 = sbr.rel (%p522) target = $region84
        $region83: #{run.1} parent=67 // pred_region
          %525 = dma.done [#allocation9], 512
        $region84: #{run.1} parent=67 // pred_fallthru
          _
        // Predicated region
        $region85: #{run.1} parent=67 // pred_check
          %p526 = pneg %p251
        $region86: #{run.1} parent=67 // pred_check_branch
          %528 = sbr.rel (%p526) target = $region88
        $region87: #{run.1} parent=67 // pred_region
          %529 = dma.done [#allocation9], 1024
        $region88: #{run.1} parent=67 // pred_fallthru
          _
        // Predicated region
        $region89: #{run.1} parent=67 // pred_check
          %p530 = pneg %p272
        $region90: #{run.1} parent=67 // pred_check_branch
          %532 = sbr.rel (%p530) target = $region92
        $region91: #{run.1} parent=67 // pred_region
          %533 = dma.done [#allocation12], 32
        $region92: #{run.1} parent=67 // pred_fallthru
          _
        // Predicated region
        $region93: #{run.1} parent=67 // pred_check
          %p534 = pneg %p293
        $region94: #{run.1} parent=67 // pred_check_branch
          %536 = sbr.rel (%p534) target = $region96
        $region95: #{run.1} parent=67 // pred_region
          %537 = dma.done [#allocation12], 128
        $region96: #{run.1} parent=67 // pred_fallthru
          _
        // Predicated region
        $region97: #{run.1} parent=67 // pred_check
          %p538 = pneg %p314
        $region98: #{run.1} parent=67 // pred_check_branch
          %540 = sbr.rel (%p538) target = $region100
        $region99: #{run.1} parent=67 // pred_region
          %541 = dma.done [#allocation15], 128
        $region100: #{run.1} parent=67 // pred_fallthru
          _
        %p542 = scmp.lt.s32.totalorder %s35, 1
        %s543 = scalar_select %p542, %s35, 1
        %s544 = smul.addr %s543, 32
        %s545 = smul.addr %s544, 4
        %s546 = scalar_lea.vmem %s0, %s545
        %p547 = pneg %p63
        %p548 = pneg %p60
        %p549 = scmp.lt.s32.totalorder %s35, 1
        %s550 = scalar_select %p549, %s35, 1
        %s551 = smul.addr %s550, 8
        %s552 = smul.addr %s551, 4
        %s553 = scalar_lea.vmem %s1, %s552
        %p554 = pneg %p89
        %p555 = pneg %p86
        %p556 = scmp.lt.s32.totalorder %s35, 1
        %s557 = scalar_select %p556, %s35, 1
        %s558 = smul.addr %s557, 2
        %s559 = smul.addr %s558, 4
        %s560 = scalar_lea.vmem %s2, %s559
        %p561 = pneg %p115
        %p562 = pneg %p112
        %p563 = scmp.lt.s32.totalorder %s35, 1
        %s564 = scalar_select %p563, %s35, 1
        %s565 = smul.addr %s564, 2
        %s566 = smul.addr %s565, 4
        %s567 = scalar_lea.vmem %s3, %s566
        %p568 = pneg %p141
        %p569 = pneg %p138
        %s570 = sand.u32 %s154, 1
        %s571 = scalar_lea.sflag [#allocation4], %s570
        %s572 = sand.u32 %s154, 1
        %s573 = smul.addr %s572, 3072
        %s574 = scalar_lea.vmem [#allocation3], %s573
        %p575 = pneg %p167
        %p576 = pneg %p164
        %p577 = pneg %p188
        %p578 = pneg %p185
        %p579 = pneg %p209
        %p580 = pneg %p206
        %p581 = pneg %p230
        %p582 = pneg %p227
        %p583 = pneg %p251
        %p584 = pneg %p248
        %p585 = pneg %p272
        %p586 = pneg %p269
        %p587 = pneg %p293
        %p588 = pneg %p290
        %p589 = pneg %p314
        %p590 = pneg %p311
        %p591 = pneg %p342
        %p592 = pneg %p339
        %s593 = smul.u32 16, %s34
        %p594 = scmp.lt.s32.totalorder %s35, 1
        %s595 = scalar_select %p594, %s35, 1
        %p596 = scmp.lt.s32.totalorder %s593, 31
        %s597 = scalar_select %p596, %s593, 31
        %s598 = smul.addr %s595, 32
        %s599 = sadd.s32 %s597, %s598
        %s600 = smul.addr %s599, 8
        %s601 = scalar_lea.vmem %s12, %s600
        %p602 = scmp.lt.s32.totalorder %s35, 1
        %s603 = scalar_select %p602, %s35, 1
        %s604 = smul.addr %s603, 32
        %s605 = smul.addr %s604, 4
        %s606 = scalar_lea.vmem %s0, %s605
        %p607 = scmp.lt.s32.totalorder %s35, 1
        %s608 = scalar_select %p607, %s35, 1
        %s609 = smul.addr %s608, 8
        %s610 = smul.addr %s609, 4
        %s611 = scalar_lea.vmem %s1, %s610
        %p612 = scmp.lt.s32.totalorder %s35, 1
        %s613 = scalar_select %p612, %s35, 1
        %s614 = smul.addr %s613, 2
        %s615 = smul.addr %s614, 4
        %s616 = scalar_lea.vmem %s2, %s615
        %p617 = scmp.lt.s32.totalorder %s35, 1
        %s618 = scalar_select %p617, %s35, 1
        %s619 = smul.addr %s618, 2
        %s620 = smul.addr %s619, 4
        %s621 = scalar_lea.vmem %s3, %s620
        %s622 = smul.u32 256, %s34
        %s623 = smul.u32 16, %s34
        %p624 = scmp.lt.s32.totalorder %s35, 1
        %s625 = scalar_select %p624, %s35, 1
        %p626 = scmp.lt.s32.totalorder %s623, 31
        %s627 = scalar_select %p626, %s623, 31
        %s628 = smul.addr %s625, 32
        %s629 = sadd.s32 %s627, %s628
        %s630 = smul.addr %s629, 8
        %s631 = scalar_lea.vmem %s12, %s630
        %s632 = smul.u32 16, %s34
        %v634 = vld [vmem:[%s606] sm:$0xf]
        %v635 = vld [vmem:[%s606 + $0x4] sm:$0xf]
        %v636 = vld [vmem:[%s606 + $0x8] sm:$0xf]
        %v637 = vld [vmem:[%s606 + $0xc] sm:$0xf]
        %v638 = vld [vmem:[%s606 + $0x10] sm:$0xf]
        %v639 = vld [vmem:[%s606 + $0x14] sm:$0xf]
        %v640 = vld [vmem:[%s606 + $0x18] sm:$0xf]
        %v641 = vld [vmem:[%s606 + $0x1c] sm:$0xf]
        %v642 = vld [vmem:[%s606 + $0x20] sm:$0xf]
        %v643 = vld [vmem:[%s606 + $0x24] sm:$0xf]
        %v644 = vld [vmem:[%s606 + $0x28] sm:$0xf]
        %v645 = vld [vmem:[%s606 + $0x2c] sm:$0xf]
        %v646 = vld [vmem:[%s606 + $0x30] sm:$0xf]
        %v647 = vld [vmem:[%s606 + $0x34] sm:$0xf]
        %v648 = vld [vmem:[%s606 + $0x38] sm:$0xf]
        %v649 = vld [vmem:[%s606 + $0x3c] sm:$0xf]
        %v650 = vld [vmem:[%s606 + $0x40] sm:$0xf]
        %v651 = vld [vmem:[%s606 + $0x44] sm:$0xf]
        %v652 = vld [vmem:[%s606 + $0x48] sm:$0xf]
        %v653 = vld [vmem:[%s606 + $0x4c] sm:$0xf]
        %v654 = vld [vmem:[%s606 + $0x50] sm:$0xf]
        %v655 = vld [vmem:[%s606 + $0x54] sm:$0xf]
        %v656 = vld [vmem:[%s606 + $0x58] sm:$0xf]
        %v657 = vld [vmem:[%s606 + $0x5c] sm:$0xf]
        %v658 = vld [vmem:[%s606 + $0x60] sm:$0xf]
        %v659 = vld [vmem:[%s606 + $0x64] sm:$0xf]
        %v660 = vld [vmem:[%s606 + $0x68] sm:$0xf]
        %v661 = vld [vmem:[%s606 + $0x6c] sm:$0xf]
        %v662 = vld [vmem:[%s606 + $0x70] sm:$0xf]
        %v663 = vld [vmem:[%s606 + $0x74] sm:$0xf]
        %v664 = vld [vmem:[%s606 + $0x78] sm:$0xf]
        %v665 = vld [vmem:[%s606 + $0x7c] sm:$0xf]
        %v666 = vld [vmem:[#allocation5] sm:$0xff]
        %v699 = vunpack.c.l.b16 %v634
        %v700 = vunpack.c.l.b16 %v635
        %v701 = vunpack.c.l.b16 %v636
        %v702 = vunpack.c.l.b16 %v637
        %v703 = vunpack.c.l.b16 %v638
        %v704 = vunpack.c.l.b16 %v639
        %v705 = vunpack.c.l.b16 %v640
        %v706 = vunpack.c.l.b16 %v641
        %v707 = vunpack.c.l.b16 %v642
        %v708 = vunpack.c.l.b16 %v643
        %v709 = vunpack.c.l.b16 %v644
        %v710 = vunpack.c.l.b16 %v645
        %v711 = vunpack.c.l.b16 %v646
        %v712 = vunpack.c.l.b16 %v647
        %v713 = vunpack.c.l.b16 %v648
        %v714 = vunpack.c.l.b16 %v649
        %v715 = vunpack.c.l.b16 %v650
        %v716 = vunpack.c.l.b16 %v651
        %v717 = vunpack.c.l.b16 %v652
        %v718 = vunpack.c.l.b16 %v653
        %v719 = vunpack.c.l.b16 %v654
        %v720 = vunpack.c.l.b16 %v655
        %v721 = vunpack.c.l.b16 %v656
        %v722 = vunpack.c.l.b16 %v657
        %v723 = vunpack.c.l.b16 %v658
        %v724 = vunpack.c.l.b16 %v659
        %v725 = vunpack.c.l.b16 %v660
        %v726 = vunpack.c.l.b16 %v661
        %v727 = vunpack.c.l.b16 %v662
        %v728 = vunpack.c.l.b16 %v663
        %v729 = vunpack.c.l.b16 %v664
        %v730 = vunpack.c.l.b16 %v665
        %v731 = vpack.c.b16 %v700, %v699
        %v732 = vpack.c.b16 %v702, %v701
        %v733 = vpack.c.b16 %v704, %v703
        %v734 = vpack.c.b16 %v706, %v705
        %v735 = vpack.c.b16 %v708, %v707
        %v736 = vpack.c.b16 %v710, %v709
        %v737 = vpack.c.b16 %v712, %v711
        %v738 = vpack.c.b16 %v714, %v713
        %v739 = vpack.c.b16 %v716, %v715
        %v740 = vpack.c.b16 %v718, %v717
        %v741 = vpack.c.b16 %v720, %v719
        %v742 = vpack.c.b16 %v722, %v721
        %v743 = vpack.c.b16 %v724, %v723
        %v744 = vpack.c.b16 %v726, %v725
        %v745 = vpack.c.b16 %v728, %v727
        %v746 = vpack.c.b16 %v730, %v729
        %v748 = vunpack.c.l.b16 %v666
        %v749 = vunpack.c.h.b16 %v666
        %v750 = vpack.c.b16 %v748, %v748
        %v751 = vpack.c.b16 %v749, %v749
        %vm752 = vcmask 64512
        %v754 = vsel %vm752, %v731, 0
        %v757 = vsel %vm752, %v732, 0
        %v760 = vsel %vm752, %v733, 0
        %v763 = vsel %vm752, %v734, 0
        %v766 = vsel %vm752, %v735, 0
        %v769 = vsel %vm752, %v736, 0
        %v772 = vsel %vm752, %v737, 0
        %v775 = vsel %vm752, %v738, 0
        %v778 = vsel %vm752, %v739, 0
        %v781 = vsel %vm752, %v740, 0
        %v784 = vsel %vm752, %v741, 0
        %v787 = vsel %vm752, %v742, 0
        %v790 = vsel %vm752, %v743, 0
        %v793 = vsel %vm752, %v744, 0
        %v796 = vsel %vm752, %v745, 0
        %v799 = vsel %vm752, %v746, 0
        %vm801 = vcmask 1043456
        %v803 = vsel %vm801, %v750, 0
        %v806 = vsel %vm801, %v751, 0
        %808 = vmatprep.subr.bf16.mxu0 0
        %809 = vmatpush1.bf16.msra.mxu0 0
        %810 = vmatprep.subr.bf16.mxu0 0
        %811 = vmatpush1.bf16.msra.mxu0 0
        %812 = vmatprep.subr.bf16.mxu0 0
        %813 = vmatpush1.bf16.msra.mxu0 0
        %814 = vmatprep.subr.bf16.mxu0 0
        %815 = vmatpush1.bf16.msra.mxu0 0
        %816 = vmatprep.subr.bf16.mxu0 0
        %817 = vmatpush1.bf16.msra.mxu0 0
        %818 = vmatprep.subr.bf16.mxu0 0
        %819 = vmatpush1.bf16.msra.mxu0 0
        %820 = vmatprep.subr.bf16.mxu0 0
        %821 = vmatpush1.bf16.msra.mxu0 0
        %822 = vmatprep.subr.bf16.mxu0 %v806
        %823 = vmatpush1.bf16.msra.mxu0 %v803
        %824 = vmatprep.subr.bf16.mxu0 0
        %825 = vmatpush2.bf16.msra.mxu0 0
        %826 = vmatprep.subr.bf16.mxu0 0
        %827 = vmatpush2.bf16.msra.mxu0 0
        %828 = vmatprep.subr.bf16.mxu0 0
        %829 = vmatpush2.bf16.msra.mxu0 0
        %830 = vmatprep.subr.bf16.mxu0 0
        %831 = vmatpush2.bf16.msra.mxu0 0
        %832 = vmatprep.subr.bf16.mxu0 0
        %833 = vmatpush2.bf16.msra.mxu0 0
        %834 = vmatprep.subr.bf16.mxu0 0
        %835 = vmatpush2.bf16.msra.mxu0 0
        %836 = vmatprep.subr.bf16.mxu0 0
        %837 = vmatpush2.bf16.msra.mxu0 0
        %838 = vmatprep.subr.bf16.mxu0 0
        %839 = vmatpush2.bf16.msra.mxu0 0
        %840 = vmatprep.mubr.bf16.mxu0 0
        %841 = vmatmul.mubr.bf16.gmra.mxu0 %v754
        %v842 = vpop.f32.mrf.mxu0
        %v843 = vadd.f32 0.0, %v842
        %v844 = vpop.f32.mrf.mxu0
        %v845 = vadd.f32 0.0, %v844
        %v846 = vpop.f32.mrf.mxu0
        %v847 = vadd.f32 0.0, %v846
        %v848 = vpop.f32.mrf.mxu0
        %v849 = vadd.f32 0.0, %v848
        %850 = vmatprep.mubr.bf16.mxu0 0
        %851 = vmatmul.mubr.bf16.gmra.mxu0 %v757
        %v852 = vpop.f32.mrf.mxu0
        %v853 = vadd.f32 0.0, %v852
        %v854 = vpop.f32.mrf.mxu0
        %v855 = vadd.f32 0.0, %v854
        %v856 = vpop.f32.mrf.mxu0
        %v857 = vadd.f32 0.0, %v856
        %v858 = vpop.f32.mrf.mxu0
        %v859 = vadd.f32 0.0, %v858
        %860 = vmatprep.mubr.bf16.mxu0 0
        %861 = vmatmul.mubr.bf16.gmra.mxu0 %v760
        %v862 = vpop.f32.mrf.mxu0
        %v863 = vadd.f32 0.0, %v862
        %v864 = vpop.f32.mrf.mxu0
        %v865 = vadd.f32 0.0, %v864
        %v866 = vpop.f32.mrf.mxu0
        %v867 = vadd.f32 0.0, %v866
        %v868 = vpop.f32.mrf.mxu0
        %v869 = vadd.f32 0.0, %v868
        %870 = vmatprep.mubr.bf16.mxu0 0
        %871 = vmatmul.mubr.bf16.gmra.mxu0 %v763
        %v872 = vpop.f32.mrf.mxu0
        %v873 = vadd.f32 0.0, %v872
        %v874 = vpop.f32.mrf.mxu0
        %v875 = vadd.f32 0.0, %v874
        %v876 = vpop.f32.mrf.mxu0
        %v877 = vadd.f32 0.0, %v876
        %v878 = vpop.f32.mrf.mxu0
        %v879 = vadd.f32 0.0, %v878
        %880 = vmatprep.mubr.bf16.mxu0 0
        %881 = vmatmul.mubr.bf16.gmra.mxu0 %v766
        %v882 = vpop.f32.mrf.mxu0
        %v883 = vadd.f32 0.0, %v882
        %v884 = vpop.f32.mrf.mxu0
        %v885 = vadd.f32 0.0, %v884
        %v886 = vpop.f32.mrf.mxu0
        %v887 = vadd.f32 0.0, %v886
        %v888 = vpop.f32.mrf.mxu0
        %v889 = vadd.f32 0.0, %v888
        %890 = vmatprep.mubr.bf16.mxu0 0
        %891 = vmatmul.mubr.bf16.gmra.mxu0 %v769
        %v892 = vpop.f32.mrf.mxu0
        %v893 = vadd.f32 0.0, %v892
        %v894 = vpop.f32.mrf.mxu0
        %v895 = vadd.f32 0.0, %v894
        %v896 = vpop.f32.mrf.mxu0
        %v897 = vadd.f32 0.0, %v896
        %v898 = vpop.f32.mrf.mxu0
        %v899 = vadd.f32 0.0, %v898
        %900 = vmatprep.mubr.bf16.mxu0 0
        %901 = vmatmul.mubr.bf16.gmra.mxu0 %v772
        %v902 = vpop.f32.mrf.mxu0
        %v903 = vadd.f32 0.0, %v902
        %v904 = vpop.f32.mrf.mxu0
        %v905 = vadd.f32 0.0, %v904
        %v906 = vpop.f32.mrf.mxu0
        %v907 = vadd.f32 0.0, %v906
        %v908 = vpop.f32.mrf.mxu0
        %v909 = vadd.f32 0.0, %v908
        %910 = vmatprep.mubr.bf16.mxu0 0
        %911 = vmatmul.mubr.bf16.gmra.mxu0 %v775
        %v912 = vpop.f32.mrf.mxu0
        %v913 = vadd.f32 0.0, %v912
        %v914 = vpop.f32.mrf.mxu0
        %v915 = vadd.f32 0.0, %v914
        %v916 = vpop.f32.mrf.mxu0
        %v917 = vadd.f32 0.0, %v916
        %v918 = vpop.f32.mrf.mxu0
        %v919 = vadd.f32 0.0, %v918
        %920 = vmatprep.mubr.bf16.mxu0 0
        %921 = vmatmul.mubr.bf16.gmra.mxu0 %v778
        %v922 = vpop.f32.mrf.mxu0
        %v923 = vadd.f32 0.0, %v922
        %v924 = vpop.f32.mrf.mxu0
        %v925 = vadd.f32 0.0, %v924
        %v926 = vpop.f32.mrf.mxu0
        %v927 = vadd.f32 0.0, %v926
        %v928 = vpop.f32.mrf.mxu0
        %v929 = vadd.f32 0.0, %v928
        %930 = vmatprep.mubr.bf16.mxu0 0
        %931 = vmatmul.mubr.bf16.gmra.mxu0 %v781
        %v932 = vpop.f32.mrf.mxu0
        %v933 = vadd.f32 0.0, %v932
        %v934 = vpop.f32.mrf.mxu0
        %v935 = vadd.f32 0.0, %v934
        %v936 = vpop.f32.mrf.mxu0
        %v937 = vadd.f32 0.0, %v936
        %v938 = vpop.f32.mrf.mxu0
        %v939 = vadd.f32 0.0, %v938
        %940 = vmatprep.mubr.bf16.mxu0 0
        %941 = vmatmul.mubr.bf16.gmra.mxu0 %v784
        %v942 = vpop.f32.mrf.mxu0
        %v943 = vadd.f32 0.0, %v942
        %v944 = vpop.f32.mrf.mxu0
        %v945 = vadd.f32 0.0, %v944
        %v946 = vpop.f32.mrf.mxu0
        %v947 = vadd.f32 0.0, %v946
        %v948 = vpop.f32.mrf.mxu0
        %v949 = vadd.f32 0.0, %v948
        %950 = vmatprep.mubr.bf16.mxu0 0
        %951 = vmatmul.mubr.bf16.gmra.mxu0 %v787
        %v952 = vpop.f32.mrf.mxu0
        %v953 = vadd.f32 0.0, %v952
        %v954 = vpop.f32.mrf.mxu0
        %v955 = vadd.f32 0.0, %v954
        %v956 = vpop.f32.mrf.mxu0
        %v957 = vadd.f32 0.0, %v956
        %v958 = vpop.f32.mrf.mxu0
        %v959 = vadd.f32 0.0, %v958
        %960 = vmatprep.mubr.bf16.mxu0 0
        %961 = vmatmul.mubr.bf16.gmra.mxu0 %v790
        %v962 = vpop.f32.mrf.mxu0
        %v963 = vadd.f32 0.0, %v962
        %v964 = vpop.f32.mrf.mxu0
        %v965 = vadd.f32 0.0, %v964
        %v966 = vpop.f32.mrf.mxu0
        %v967 = vadd.f32 0.0, %v966
        %v968 = vpop.f32.mrf.mxu0
        %v969 = vadd.f32 0.0, %v968
        %970 = vmatprep.mubr.bf16.mxu0 0
        %971 = vmatmul.mubr.bf16.gmra.mxu0 %v793
        %v972 = vpop.f32.mrf.mxu0
        %v973 = vadd.f32 0.0, %v972
        %v974 = vpop.f32.mrf.mxu0
        %v975 = vadd.f32 0.0, %v974
        %v976 = vpop.f32.mrf.mxu0
        %v977 = vadd.f32 0.0, %v976
        %v978 = vpop.f32.mrf.mxu0
        %v979 = vadd.f32 0.0, %v978
        %980 = vmatprep.mubr.bf16.mxu0 0
        %981 = vmatmul.mubr.bf16.gmra.mxu0 %v796
        %v982 = vpop.f32.mrf.mxu0
        %v983 = vadd.f32 0.0, %v982
        %v984 = vpop.f32.mrf.mxu0
        %v985 = vadd.f32 0.0, %v984
        %v986 = vpop.f32.mrf.mxu0
        %v987 = vadd.f32 0.0, %v986
        %v988 = vpop.f32.mrf.mxu0
        %v989 = vadd.f32 0.0, %v988
        %990 = vmatprep.mubr.bf16.mxu0 0
        %991 = vmatmul.mubr.bf16.gmra.mxu0 %v799
        %v992 = vpop.f32.mrf.mxu0
        %v993 = vadd.f32 0.0, %v992
        %v994 = vpop.f32.mrf.mxu0
        %v995 = vadd.f32 0.0, %v994
        %v996 = vpop.f32.mrf.mxu0
        %v997 = vadd.f32 0.0, %v996
        %v998 = vpop.f32.mrf.mxu0
        %v999 = vadd.f32 0.0, %v998
        %1000 = vdwg.mxu0
        %v1001 = vpack.c.bf16 %v847, %v843
        %v1002 = vpack.c.bf16 %v849, %v845
        %v1003 = vpack.c.bf16 %v857, %v853
        %v1004 = vpack.c.bf16 %v859, %v855
        %v1005 = vpack.c.bf16 %v867, %v863
        %v1006 = vpack.c.bf16 %v869, %v865
        %v1007 = vpack.c.bf16 %v877, %v873
        %v1008 = vpack.c.bf16 %v879, %v875
        %v1009 = vpack.c.bf16 %v887, %v883
        %v1010 = vpack.c.bf16 %v889, %v885
        %v1011 = vpack.c.bf16 %v897, %v893
        %v1012 = vpack.c.bf16 %v899, %v895
        %v1013 = vpack.c.bf16 %v907, %v903
        %v1014 = vpack.c.bf16 %v909, %v905
        %v1015 = vpack.c.bf16 %v917, %v913
        %v1016 = vpack.c.bf16 %v919, %v915
        %v1017 = vpack.c.bf16 %v927, %v923
        %v1018 = vpack.c.bf16 %v929, %v925
        %v1019 = vpack.c.bf16 %v937, %v933
        %v1020 = vpack.c.bf16 %v939, %v935
        %v1021 = vpack.c.bf16 %v947, %v943
        %v1022 = vpack.c.bf16 %v949, %v945
        %v1023 = vpack.c.bf16 %v957, %v953
        %v1024 = vpack.c.bf16 %v959, %v955
        %v1025 = vpack.c.bf16 %v967, %v963
        %v1026 = vpack.c.bf16 %v969, %v965
        %v1027 = vpack.c.bf16 %v977, %v973
        %v1028 = vpack.c.bf16 %v979, %v975
        %v1029 = vpack.c.bf16 %v987, %v983
        %v1030 = vpack.c.bf16 %v989, %v985
        %v1031 = vpack.c.bf16 %v997, %v993
        %v1032 = vpack.c.bf16 %v999, %v995
        %v1065 = vunpack.c.l.b16 %v1001
        %v1066 = vunpack.c.l.b16 %v1002
        %v1067 = vunpack.c.h.b16 %v1001
        %v1068 = vunpack.c.h.b16 %v1002
        %v1069 = vunpack.c.l.b16 %v1003
        %v1070 = vunpack.c.l.b16 %v1004
        %v1071 = vunpack.c.h.b16 %v1003
        %v1072 = vunpack.c.h.b16 %v1004
        %v1073 = vunpack.c.l.b16 %v1005
        %v1074 = vunpack.c.l.b16 %v1006
        %v1075 = vunpack.c.h.b16 %v1005
        %v1076 = vunpack.c.h.b16 %v1006
        %v1077 = vunpack.c.l.b16 %v1007
        %v1078 = vunpack.c.l.b16 %v1008
        %v1079 = vunpack.c.h.b16 %v1007
        %v1080 = vunpack.c.h.b16 %v1008
        %v1081 = vunpack.c.l.b16 %v1009
        %v1082 = vunpack.c.l.b16 %v1010
        %v1083 = vunpack.c.h.b16 %v1009
        %v1084 = vunpack.c.h.b16 %v1010
        %v1085 = vunpack.c.l.b16 %v1011
        %v1086 = vunpack.c.l.b16 %v1012
        %v1087 = vunpack.c.h.b16 %v1011
        %v1088 = vunpack.c.h.b16 %v1012
        %v1089 = vunpack.c.l.b16 %v1013
        %v1090 = vunpack.c.l.b16 %v1014
        %v1091 = vunpack.c.h.b16 %v1013
        %v1092 = vunpack.c.h.b16 %v1014
        %v1093 = vunpack.c.l.b16 %v1015
        %v1094 = vunpack.c.l.b16 %v1016
        %v1095 = vunpack.c.h.b16 %v1015
        %v1096 = vunpack.c.h.b16 %v1016
        %v1097 = vunpack.c.l.b16 %v1017
        %v1098 = vunpack.c.l.b16 %v1018
        %v1099 = vunpack.c.h.b16 %v1017
        %v1100 = vunpack.c.h.b16 %v1018
        %v1101 = vunpack.c.l.b16 %v1019
        %v1102 = vunpack.c.l.b16 %v1020
        %v1103 = vunpack.c.h.b16 %v1019
        %v1104 = vunpack.c.h.b16 %v1020
        %v1105 = vunpack.c.l.b16 %v1021
        %v1106 = vunpack.c.l.b16 %v1022
        %v1107 = vunpack.c.h.b16 %v1021
        %v1108 = vunpack.c.h.b16 %v1022
        %v1109 = vunpack.c.l.b16 %v1023
        %v1110 = vunpack.c.l.b16 %v1024
        %v1111 = vunpack.c.h.b16 %v1023
        %v1112 = vunpack.c.h.b16 %v1024
        %v1113 = vunpack.c.l.b16 %v1025
        %v1114 = vunpack.c.l.b16 %v1026
        %v1115 = vunpack.c.h.b16 %v1025
        %v1116 = vunpack.c.h.b16 %v1026
        %v1117 = vunpack.c.l.b16 %v1027
        %v1118 = vunpack.c.l.b16 %v1028
        %v1119 = vunpack.c.h.b16 %v1027
        %v1120 = vunpack.c.h.b16 %v1028
        %v1121 = vunpack.c.l.b16 %v1029
        %v1122 = vunpack.c.l.b16 %v1030
        %v1123 = vunpack.c.h.b16 %v1029
        %v1124 = vunpack.c.h.b16 %v1030
        %v1125 = vunpack.c.l.b16 %v1031
        %v1126 = vunpack.c.l.b16 %v1032
        %v1127 = vunpack.c.h.b16 %v1031
        %v1128 = vunpack.c.h.b16 %v1032
        %v1129 = vpack.c.b16 %v1066, %v1065
        %v1130 = vpack.c.b16 %v1068, %v1067
        %v1131 = vpack.c.b16 %v1070, %v1069
        %v1132 = vpack.c.b16 %v1072, %v1071
        %v1133 = vpack.c.b16 %v1074, %v1073
        %v1134 = vpack.c.b16 %v1076, %v1075
        %v1135 = vpack.c.b16 %v1078, %v1077
        %v1136 = vpack.c.b16 %v1080, %v1079
        %v1137 = vpack.c.b16 %v1082, %v1081
        %v1138 = vpack.c.b16 %v1084, %v1083
        %v1139 = vpack.c.b16 %v1086, %v1085
        %v1140 = vpack.c.b16 %v1088, %v1087
        %v1141 = vpack.c.b16 %v1090, %v1089
        %v1142 = vpack.c.b16 %v1092, %v1091
        %v1143 = vpack.c.b16 %v1094, %v1093
        %v1144 = vpack.c.b16 %v1096, %v1095
        %v1145 = vpack.c.b16 %v1098, %v1097
        %v1146 = vpack.c.b16 %v1100, %v1099
        %v1147 = vpack.c.b16 %v1102, %v1101
        %v1148 = vpack.c.b16 %v1104, %v1103
        %v1149 = vpack.c.b16 %v1106, %v1105
        %v1150 = vpack.c.b16 %v1108, %v1107
        %v1151 = vpack.c.b16 %v1110, %v1109
        %v1152 = vpack.c.b16 %v1112, %v1111
        %v1153 = vpack.c.b16 %v1114, %v1113
        %v1154 = vpack.c.b16 %v1116, %v1115
        %v1155 = vpack.c.b16 %v1118, %v1117
        %v1156 = vpack.c.b16 %v1120, %v1119
        %v1157 = vpack.c.b16 %v1122, %v1121
        %v1158 = vpack.c.b16 %v1124, %v1123
        %v1159 = vpack.c.b16 %v1126, %v1125
        %v1160 = vpack.c.b16 %v1128, %v1127
        %1193 = vst [vmem:[#allocation2] sm:$0xff] %v1129
        %1194 = vst [vmem:[#allocation2 + $0x8] sm:$0xff] %v1130
        %1195 = vst [vmem:[#allocation2 + $0x10] sm:$0xff] %v1131
        %1196 = vst [vmem:[#allocation2 + $0x18] sm:$0xff] %v1132
        %1197 = vst [vmem:[#allocation2 + $0x20] sm:$0xff] %v1133
        %1198 = vst [vmem:[#allocation2 + $0x28] sm:$0xff] %v1134
        %1199 = vst [vmem:[#allocation2 + $0x30] sm:$0xff] %v1135
        %1200 = vst [vmem:[#allocation2 + $0x38] sm:$0xff] %v1136
        %1201 = vst [vmem:[#allocation2 + $0x40] sm:$0xff] %v1137
        %1202 = vst [vmem:[#allocation2 + $0x48] sm:$0xff] %v1138
        %1203 = vst [vmem:[#allocation2 + $0x50] sm:$0xff] %v1139
        %1204 = vst [vmem:[#allocation2 + $0x58] sm:$0xff] %v1140
        %1205 = vst [vmem:[#allocation2 + $0x60] sm:$0xff] %v1141
        %1206 = vst [vmem:[#allocation2 + $0x68] sm:$0xff] %v1142
        %1207 = vst [vmem:[#allocation2 + $0x70] sm:$0xff] %v1143
        %1208 = vst [vmem:[#allocation2 + $0x78] sm:$0xff] %v1144
        %1209 = vst [vmem:[#allocation2 + $0x80] sm:$0xff] %v1145
        %1210 = vst [vmem:[#allocation2 + $0x88] sm:$0xff] %v1146
        %1211 = vst [vmem:[#allocation2 + $0x90] sm:$0xff] %v1147
        %1212 = vst [vmem:[#allocation2 + $0x98] sm:$0xff] %v1148
        %1213 = vst [vmem:[#allocation2 + $0xa0] sm:$0xff] %v1149
        %1214 = vst [vmem:[#allocation2 + $0xa8] sm:$0xff] %v1150
        %1215 = vst [vmem:[#allocation2 + $0xb0] sm:$0xff] %v1151
        %1216 = vst [vmem:[#allocation2 + $0xb8] sm:$0xff] %v1152
        %1217 = vst [vmem:[#allocation2 + $0xc0] sm:$0xff] %v1153
        %1218 = vst [vmem:[#allocation2 + $0xc8] sm:$0xff] %v1154
        %1219 = vst [vmem:[#allocation2 + $0xd0] sm:$0xff] %v1155
        %1220 = vst [vmem:[#allocation2 + $0xd8] sm:$0xff] %v1156
        %1221 = vst [vmem:[#allocation2 + $0xe0] sm:$0xff] %v1157
        %1222 = vst [vmem:[#allocation2 + $0xe8] sm:$0xff] %v1158
        %1223 = vst [vmem:[#allocation2 + $0xf0] sm:$0xff] %v1159
        %1224 = vst [vmem:[#allocation2 + $0xf8] sm:$0xff] %v1160
        %v1225 = vld [vmem:[%s611] sm:$0xf]
        %v1226 = vld [vmem:[%s611 + $0x4] sm:$0xf]
        %v1227 = vld [vmem:[%s611 + $0x8] sm:$0xf]
        %v1228 = vld [vmem:[%s611 + $0xc] sm:$0xf]
        %v1229 = vld [vmem:[%s611 + $0x10] sm:$0xf]
        %v1230 = vld [vmem:[%s611 + $0x14] sm:$0xf]
        %v1231 = vld [vmem:[%s611 + $0x18] sm:$0xf]
        %v1232 = vld [vmem:[%s611 + $0x1c] sm:$0xf]
        %v1233 = vld [vmem:[#allocation7] sm:$0xff]
        %v1234 = vld [vmem:[#allocation7 + $0x8] sm:$0xff]
        %v1243 = vunpack.c.l.b16 %v1225
        %v1244 = vunpack.c.l.b16 %v1226
        %v1245 = vunpack.c.l.b16 %v1227
        %v1246 = vunpack.c.l.b16 %v1228
        %v1247 = vunpack.c.l.b16 %v1229
        %v1248 = vunpack.c.l.b16 %v1230
        %v1249 = vunpack.c.l.b16 %v1231
        %v1250 = vunpack.c.l.b16 %v1232
        %v1251 = vpack.c.b16 %v1244, %v1243
        %v1252 = vpack.c.b16 %v1246, %v1245
        %v1253 = vpack.c.b16 %v1248, %v1247
        %v1254 = vpack.c.b16 %v1250, %v1249
        %v1257 = vunpack.c.l.b16 %v1233
        %v1258 = vunpack.c.h.b16 %v1233
        %v1259 = vunpack.c.l.b16 %v1234
        %v1260 = vunpack.c.h.b16 %v1234
        %v1261 = vpack.c.b16 %v1259, %v1257
        %v1262 = vpack.c.b16 %v1260, %v1258
        %vm1265 = vcmask 130048
        %v1267 = vsel %vm1265, %v1251, 0
        %v1270 = vsel %vm1265, %v1252, 0
        %v1273 = vsel %vm1265, %v1253, 0
        %v1276 = vsel %vm1265, %v1254, 0
        %1278 = vmatprep.subr.bf16.mxu0 0
        %1279 = vmatpush1.bf16.msra.mxu0 0
        %1280 = vmatprep.subr.bf16.mxu0 0
        %1281 = vmatpush1.bf16.msra.mxu0 0
        %1282 = vmatprep.subr.bf16.mxu0 0
        %1283 = vmatpush1.bf16.msra.mxu0 0
        %1284 = vmatprep.subr.bf16.mxu0 0
        %1285 = vmatpush1.bf16.msra.mxu0 0
        %1286 = vmatprep.subr.bf16.mxu0 0
        %1287 = vmatpush1.bf16.msra.mxu0 0
        %1288 = vmatprep.subr.bf16.mxu0 0
        %1289 = vmatpush1.bf16.msra.mxu0 0
        %1290 = vmatprep.subr.bf16.mxu0 0
        %1291 = vmatpush1.bf16.msra.mxu0 0
        %1292 = vmatprep.subr.bf16.mxu0 %v1262
        %1293 = vmatpush1.bf16.msra.mxu0 %v1261
        %1294 = vmatprep.subr.bf16.mxu0 0
        %1295 = vmatpush2.bf16.msra.mxu0 0
        %1296 = vmatprep.subr.bf16.mxu0 0
        %1297 = vmatpush2.bf16.msra.mxu0 0
        %1298 = vmatprep.subr.bf16.mxu0 0
        %1299 = vmatpush2.bf16.msra.mxu0 0
        %1300 = vmatprep.subr.bf16.mxu0 0
        %1301 = vmatpush2.bf16.msra.mxu0 0
        %1302 = vmatprep.subr.bf16.mxu0 0
        %1303 = vmatpush2.bf16.msra.mxu0 0
        %1304 = vmatprep.subr.bf16.mxu0 0
        %1305 = vmatpush2.bf16.msra.mxu0 0
        %1306 = vmatprep.subr.bf16.mxu0 0
        %1307 = vmatpush2.bf16.msra.mxu0 0
        %1308 = vmatprep.subr.bf16.mxu0 0
        %1309 = vmatpush2.bf16.msra.mxu0 0
        %1310 = vmatprep.mubr.bf16.mxu0 0
        %1311 = vmatmul.mubr.bf16.gmra.mxu0 %v1267
        %v1312 = vpop.f32.mrf.mxu0
        %v1313 = vadd.f32 0.0, %v1312
        %v1314 = vpop.f32.mrf.mxu0
        %v1315 = vadd.f32 0.0, %v1314
        %v1316 = vpop.f32.mrf.mxu0
        %v1317 = vadd.f32 0.0, %v1316
        %v1318 = vpop.f32.mrf.mxu0
        %v1319 = vadd.f32 0.0, %v1318
        %1320 = vmatprep.mubr.bf16.mxu0 0
        %1321 = vmatmul.mubr.bf16.gmra.mxu0 %v1270
        %v1322 = vpop.f32.mrf.mxu0
        %v1323 = vadd.f32 0.0, %v1322
        %v1324 = vpop.f32.mrf.mxu0
        %v1325 = vadd.f32 0.0, %v1324
        %v1326 = vpop.f32.mrf.mxu0
        %v1327 = vadd.f32 0.0, %v1326
        %v1328 = vpop.f32.mrf.mxu0
        %v1329 = vadd.f32 0.0, %v1328
        %1330 = vmatprep.mubr.bf16.mxu0 0
        %1331 = vmatmul.mubr.bf16.gmra.mxu0 %v1273
        %v1332 = vpop.f32.mrf.mxu0
        %v1333 = vadd.f32 0.0, %v1332
        %v1334 = vpop.f32.mrf.mxu0
        %v1335 = vadd.f32 0.0, %v1334
        %v1336 = vpop.f32.mrf.mxu0
        %v1337 = vadd.f32 0.0, %v1336
        %v1338 = vpop.f32.mrf.mxu0
        %v1339 = vadd.f32 0.0, %v1338
        %1340 = vmatprep.mubr.bf16.mxu0 0
        %1341 = vmatmul.mubr.bf16.gmra.mxu0 %v1276
        %v1342 = vpop.f32.mrf.mxu0
        %v1343 = vadd.f32 0.0, %v1342
        %v1344 = vpop.f32.mrf.mxu0
        %v1345 = vadd.f32 0.0, %v1344
        %v1346 = vpop.f32.mrf.mxu0
        %v1347 = vadd.f32 0.0, %v1346
        %v1348 = vpop.f32.mrf.mxu0
        %v1349 = vadd.f32 0.0, %v1348
        %1350 = vdwg.mxu0
        %v1351 = vpack.c.bf16 %v1317, %v1313
        %v1352 = vpack.c.bf16 %v1319, %v1315
        %v1353 = vpack.c.bf16 %v1327, %v1323
        %v1354 = vpack.c.bf16 %v1329, %v1325
        %v1355 = vpack.c.bf16 %v1337, %v1333
        %v1356 = vpack.c.bf16 %v1339, %v1335
        %v1357 = vpack.c.bf16 %v1347, %v1343
        %v1358 = vpack.c.bf16 %v1349, %v1345
        %v1367 = vunpack.c.l.b16 %v1351
        %v1368 = vunpack.c.l.b16 %v1352
        %v1369 = vunpack.c.h.b16 %v1351
        %v1370 = vunpack.c.h.b16 %v1352
        %v1371 = vunpack.c.l.b16 %v1353
        %v1372 = vunpack.c.l.b16 %v1354
        %v1373 = vunpack.c.h.b16 %v1353
        %v1374 = vunpack.c.h.b16 %v1354
        %v1375 = vunpack.c.l.b16 %v1355
        %v1376 = vunpack.c.l.b16 %v1356
        %v1377 = vunpack.c.h.b16 %v1355
        %v1378 = vunpack.c.h.b16 %v1356
        %v1379 = vunpack.c.l.b16 %v1357
        %v1380 = vunpack.c.l.b16 %v1358
        %v1381 = vunpack.c.h.b16 %v1357
        %v1382 = vunpack.c.h.b16 %v1358
        %v1383 = vpack.c.b16 %v1368, %v1367
        %v1384 = vpack.c.b16 %v1370, %v1369
        %v1385 = vpack.c.b16 %v1372, %v1371
        %v1386 = vpack.c.b16 %v1374, %v1373
        %v1387 = vpack.c.b16 %v1376, %v1375
        %v1388 = vpack.c.b16 %v1378, %v1377
        %v1389 = vpack.c.b16 %v1380, %v1379
        %v1390 = vpack.c.b16 %v1382, %v1381
        %1399 = vst [vmem:[#allocation2 + $0x100] sm:$0xff] %v1383
        %1400 = vst [vmem:[#allocation2 + $0x108] sm:$0xff] %v1384
        %1401 = vst [vmem:[#allocation2 + $0x110] sm:$0xff] %v1385
        %1402 = vst [vmem:[#allocation2 + $0x118] sm:$0xff] %v1386
        %1403 = vst [vmem:[#allocation2 + $0x120] sm:$0xff] %v1387
        %1404 = vst [vmem:[#allocation2 + $0x128] sm:$0xff] %v1388
        %1405 = vst [vmem:[#allocation2 + $0x130] sm:$0xff] %v1389
        %1406 = vst [vmem:[#allocation2 + $0x138] sm:$0xff] %v1390
        %v1407 = vld [vmem:[%s616] sm:$0xf]
        %v1408 = vld [vmem:[%s616 + $0x4] sm:$0xf]
        %v1409 = vld [vmem:[#allocation8] sm:$0xff]
        %v1410 = vld [vmem:[#allocation8 + $0x8] sm:$0xff]
        %v1411 = vld [vmem:[#allocation8 + $0x10] sm:$0xff]
        %v1412 = vld [vmem:[#allocation8 + $0x18] sm:$0xff]
        %v1415 = vunpack.c.l.b16 %v1407
        %v1416 = vunpack.c.l.b16 %v1408
        %v1417 = vpack.c.b16 %v1416, %v1415
        %v1422 = vunpack.c.l.b16 %v1409
        %v1423 = vunpack.c.h.b16 %v1409
        %v1424 = vunpack.c.l.b16 %v1410
        %v1425 = vunpack.c.h.b16 %v1410
        %v1426 = vunpack.c.l.b16 %v1411
        %v1427 = vunpack.c.h.b16 %v1411
        %v1428 = vunpack.c.l.b16 %v1412
        %v1429 = vunpack.c.h.b16 %v1412
        %v1430 = vpack.c.b16 %v1424, %v1422
        %v1431 = vpack.c.b16 %v1425, %v1423
        %v1432 = vpack.c.b16 %v1428, %v1426
        %v1433 = vpack.c.b16 %v1429, %v1427
        %vm1438 = vcmask 261120
        %v1440 = vsel %vm1438, %v1417, 0
        %1442 = vmatprep.subr.bf16.mxu0 0
        %1443 = vmatpush1.bf16.msra.mxu0 0
        %1444 = vmatprep.subr.bf16.mxu0 0
        %1445 = vmatpush1.bf16.msra.mxu0 0
        %1446 = vmatprep.subr.bf16.mxu0 0
        %1447 = vmatpush1.bf16.msra.mxu0 0
        %1448 = vmatprep.subr.bf16.mxu0 0
        %1449 = vmatpush1.bf16.msra.mxu0 0
        %1450 = vmatprep.subr.bf16.mxu0 0
        %1451 = vmatpush1.bf16.msra.mxu0 0
        %1452 = vmatprep.subr.bf16.mxu0 0
        %1453 = vmatpush1.bf16.msra.mxu0 0
        %1454 = vmatprep.subr.bf16.mxu0 %v1433
        %1455 = vmatpush1.bf16.msra.mxu0 %v1432
        %1456 = vmatprep.subr.bf16.mxu0 %v1431
        %1457 = vmatpush1.bf16.msra.mxu0 %v1430
        %1458 = vmatprep.subr.bf16.mxu0 0
        %1459 = vmatpush2.bf16.msra.mxu0 0
        %1460 = vmatprep.subr.bf16.mxu0 0
        %1461 = vmatpush2.bf16.msra.mxu0 0
        %1462 = vmatprep.subr.bf16.mxu0 0
        %1463 = vmatpush2.bf16.msra.mxu0 0
        %1464 = vmatprep.subr.bf16.mxu0 0
        %1465 = vmatpush2.bf16.msra.mxu0 0
        %1466 = vmatprep.subr.bf16.mxu0 0
        %1467 = vmatpush2.bf16.msra.mxu0 0
        %1468 = vmatprep.subr.bf16.mxu0 0
        %1469 = vmatpush2.bf16.msra.mxu0 0
        %1470 = vmatprep.subr.bf16.mxu0 0
        %1471 = vmatpush2.bf16.msra.mxu0 0
        %1472 = vmatprep.subr.bf16.mxu0 0
        %1473 = vmatpush2.bf16.msra.mxu0 0
        %1474 = vmatprep.mubr.bf16.mxu0 0
        %1475 = vmatmul.mubr.bf16.gmra.mxu0 %v1440
        %v1476 = vpop.f32.mrf.mxu0
        %v1477 = vadd.f32 0.0, %v1476
        %v1478 = vpop.f32.mrf.mxu0
        %v1479 = vadd.f32 0.0, %v1478
        %v1480 = vpop.f32.mrf.mxu0
        %v1481 = vadd.f32 0.0, %v1480
        %v1482 = vpop.f32.mrf.mxu0
        %v1483 = vadd.f32 0.0, %v1482
        %1484 = vdwg.mxu0
        %v1485 = vpack.c.bf16 %v1481, %v1477
        %v1486 = vpack.c.bf16 %v1483, %v1479
        %v1489 = vunpack.c.l.b16 %v1485
        %v1490 = vunpack.c.l.b16 %v1486
        %v1491 = vunpack.c.h.b16 %v1485
        %v1492 = vunpack.c.h.b16 %v1486
        %v1493 = vpack.c.b16 %v1490, %v1489
        %v1494 = vpack.c.b16 %v1492, %v1491
        %1497 = vst [vmem:[#allocation2 + $0x140] sm:$0xff] %v1493
        %1498 = vst [vmem:[#allocation2 + $0x148] sm:$0xff] %v1494
        %v1499 = vld [vmem:[%s621] sm:$0xf]
        %v1500 = vld [vmem:[%s621 + $0x4] sm:$0xf]
        %v1501 = vld [vmem:[#allocation10] sm:$0xff]
        %v1502 = vld [vmem:[#allocation10 + $0x8] sm:$0xff]
        %v1503 = vld [vmem:[#allocation10 + $0x10] sm:$0xff]
        %v1504 = vld [vmem:[#allocation10 + $0x18] sm:$0xff]
        %v1505 = vld [vmem:[#allocation10 + $0x20] sm:$0xff]
        %v1506 = vld [vmem:[#allocation10 + $0x28] sm:$0xff]
        %v1507 = vld [vmem:[#allocation10 + $0x30] sm:$0xff]
        %v1508 = vld [vmem:[#allocation10 + $0x38] sm:$0xff]
        %v1511 = vunpack.c.l.b16 %v1499
        %v1512 = vunpack.c.l.b16 %v1500
        %v1513 = vpack.c.b16 %v1512, %v1511
        %v1522 = vunpack.c.l.b16 %v1501
        %v1523 = vunpack.c.h.b16 %v1501
        %v1524 = vunpack.c.l.b16 %v1502
        %v1525 = vunpack.c.h.b16 %v1502
        %v1526 = vunpack.c.l.b16 %v1503
        %v1527 = vunpack.c.h.b16 %v1503
        %v1528 = vunpack.c.l.b16 %v1504
        %v1529 = vunpack.c.h.b16 %v1504
        %v1530 = vunpack.c.l.b16 %v1505
        %v1531 = vunpack.c.h.b16 %v1505
        %v1532 = vunpack.c.l.b16 %v1506
        %v1533 = vunpack.c.h.b16 %v1506
        %v1534 = vunpack.c.l.b16 %v1507
        %v1535 = vunpack.c.h.b16 %v1507
        %v1536 = vunpack.c.l.b16 %v1508
        %v1537 = vunpack.c.h.b16 %v1508
        %v1538 = vpack.c.b16 %v1524, %v1522
        %v1539 = vpack.c.b16 %v1525, %v1523
        %v1540 = vpack.c.b16 %v1528, %v1526
        %v1541 = vpack.c.b16 %v1529, %v1527
        %v1542 = vpack.c.b16 %v1532, %v1530
        %v1543 = vpack.c.b16 %v1533, %v1531
        %v1544 = vpack.c.b16 %v1536, %v1534
        %v1545 = vpack.c.b16 %v1537, %v1535
        %vm1554 = vcmask 523264
        %v1556 = vsel %vm1554, %v1513, 0
        %1558 = vmatprep.subr.bf16.mxu0 0
        %1559 = vmatpush1.bf16.msra.mxu0 0
        %1560 = vmatprep.subr.bf16.mxu0 0
        %1561 = vmatpush1.bf16.msra.mxu0 0
        %1562 = vmatprep.subr.bf16.mxu0 0
        %1563 = vmatpush1.bf16.msra.mxu0 0
        %1564 = vmatprep.subr.bf16.mxu0 0
        %1565 = vmatpush1.bf16.msra.mxu0 0
        %1566 = vmatprep.subr.bf16.mxu0 %v1545
        %1567 = vmatpush1.bf16.msra.mxu0 %v1544
        %1568 = vmatprep.subr.bf16.mxu0 %v1543
        %1569 = vmatpush1.bf16.msra.mxu0 %v1542
        %1570 = vmatprep.subr.bf16.mxu0 %v1541
        %1571 = vmatpush1.bf16.msra.mxu0 %v1540
        %1572 = vmatprep.subr.bf16.mxu0 %v1539
        %1573 = vmatpush1.bf16.msra.mxu0 %v1538
        %1574 = vmatprep.subr.bf16.mxu0 0
        %1575 = vmatpush2.bf16.msra.mxu0 0
        %1576 = vmatprep.subr.bf16.mxu0 0
        %1577 = vmatpush2.bf16.msra.mxu0 0
        %1578 = vmatprep.subr.bf16.mxu0 0
        %1579 = vmatpush2.bf16.msra.mxu0 0
        %1580 = vmatprep.subr.bf16.mxu0 0
        %1581 = vmatpush2.bf16.msra.mxu0 0
        %1582 = vmatprep.subr.bf16.mxu0 0
        %1583 = vmatpush2.bf16.msra.mxu0 0
        %1584 = vmatprep.subr.bf16.mxu0 0
        %1585 = vmatpush2.bf16.msra.mxu0 0
        %1586 = vmatprep.subr.bf16.mxu0 0
        %1587 = vmatpush2.bf16.msra.mxu0 0
        %1588 = vmatprep.subr.bf16.mxu0 0
        %1589 = vmatpush2.bf16.msra.mxu0 0
        %1590 = vmatprep.mubr.bf16.mxu0 0
        %1591 = vmatmul.mubr.bf16.gmra.mxu0 %v1556
        %v1592 = vpop.f32.mrf.mxu0
        %v1593 = vadd.f32 0.0, %v1592
        %v1594 = vpop.f32.mrf.mxu0
        %v1595 = vadd.f32 0.0, %v1594
        %v1596 = vpop.f32.mrf.mxu0
        %v1597 = vadd.f32 0.0, %v1596
        %v1598 = vpop.f32.mrf.mxu0
        %v1599 = vadd.f32 0.0, %v1598
        %1600 = vdwg.mxu0
        %v1601 = vpack.c.bf16 %v1597, %v1593
        %v1602 = vpack.c.bf16 %v1599, %v1595
        %v1605 = vunpack.c.l.b16 %v1601
        %v1606 = vunpack.c.l.b16 %v1602
        %v1607 = vunpack.c.h.b16 %v1601
        %v1608 = vunpack.c.h.b16 %v1602
        %v1609 = vpack.c.b16 %v1606, %v1605
        %v1610 = vpack.c.b16 %v1608, %v1607
        %1613 = vst [vmem:[#allocation2 + $0x150] sm:$0xff] %v1609
        %1614 = vst [vmem:[#allocation2 + $0x158] sm:$0xff] %v1610
        %v1615 = vld [vmem:[%s509] sm:$0xff]
        %v1616 = vld [vmem:[%s509 + $0x8] sm:$0xf]
        %v1617 = vld [vmem:[%s509 + $0xc] sm:$0xff]
        %v1618 = vld [vmem:[%s509 + $0x14] sm:$0xf]
        %v1619 = vld [vmem:[%s509 + $0x18] sm:$0xff]
        %v1620 = vld [vmem:[%s509 + $0x20] sm:$0xf]
        %v1621 = vld [vmem:[%s509 + $0x24] sm:$0xff]
        %v1622 = vld [vmem:[%s509 + $0x2c] sm:$0xf]
        %v1623 = vld [vmem:[%s509 + $0x30] sm:$0xff]
        %v1624 = vld [vmem:[%s509 + $0x38] sm:$0xf]
        %v1625 = vld [vmem:[%s509 + $0x3c] sm:$0xff]
        %v1626 = vld [vmem:[%s509 + $0x44] sm:$0xf]
        %v1627 = vld [vmem:[%s509 + $0x48] sm:$0xff]
        %v1628 = vld [vmem:[%s509 + $0x50] sm:$0xf]
        %v1629 = vld [vmem:[%s509 + $0x54] sm:$0xff]
        %v1630 = vld [vmem:[%s509 + $0x5c] sm:$0xf]
        %v1631 = vld [vmem:[%s509 + $0x60] sm:$0xff]
        %v1632 = vld [vmem:[%s509 + $0x68] sm:$0xf]
        %v1633 = vld [vmem:[%s509 + $0x6c] sm:$0xff]
        %v1634 = vld [vmem:[%s509 + $0x74] sm:$0xf]
        %v1635 = vld [vmem:[%s509 + $0x78] sm:$0xff]
        %v1636 = vld [vmem:[%s509 + $0x80] sm:$0xf]
        %v1637 = vld [vmem:[%s509 + $0x84] sm:$0xff]
        %v1638 = vld [vmem:[%s509 + $0x8c] sm:$0xf]
        %v1639 = vld [vmem:[%s509 + $0x90] sm:$0xff]
        %v1640 = vld [vmem:[%s509 + $0x98] sm:$0xf]
        %v1641 = vld [vmem:[%s509 + $0x9c] sm:$0xff]
        %v1642 = vld [vmem:[%s509 + $0xa4] sm:$0xf]
        %v1643 = vld [vmem:[%s509 + $0xa8] sm:$0xff]
        %v1644 = vld [vmem:[%s509 + $0xb0] sm:$0xf]
        %v1645 = vld [vmem:[%s509 + $0xb4] sm:$0xff]
        %v1646 = vld [vmem:[%s509 + $0xbc] sm:$0xf]
        %v1647 = vld [vmem:[%s509 + $0xc0] sm:$0xff]
        %v1648 = vld [vmem:[%s509 + $0xc8] sm:$0xf]
        %v1649 = vld [vmem:[%s509 + $0xcc] sm:$0xff]
        %v1650 = vld [vmem:[%s509 + $0xd4] sm:$0xf]
        %v1651 = vld [vmem:[%s509 + $0xd8] sm:$0xff]
        %v1652 = vld [vmem:[%s509 + $0xe0] sm:$0xf]
        %v1653 = vld [vmem:[%s509 + $0xe4] sm:$0xff]
        %v1654 = vld [vmem:[%s509 + $0xec] sm:$0xf]
        %v1655 = vld [vmem:[%s509 + $0xf0] sm:$0xff]
        %v1656 = vld [vmem:[%s509 + $0xf8] sm:$0xf]
        %v1657 = vld [vmem:[%s509 + $0xfc] sm:$0xff]
        %v1658 = vld [vmem:[%s509 + $0x104] sm:$0xf]
        %v1659 = vld [vmem:[%s509 + $0x108] sm:$0xff]
        %v1660 = vld [vmem:[%s509 + $0x110] sm:$0xf]
        %v1661 = vld [vmem:[%s509 + $0x114] sm:$0xff]
        %v1662 = vld [vmem:[%s509 + $0x11c] sm:$0xf]
        %v1663 = vld [vmem:[%s509 + $0x120] sm:$0xff]
        %v1664 = vld [vmem:[%s509 + $0x128] sm:$0xf]
        %v1665 = vld [vmem:[%s509 + $0x12c] sm:$0xff]
        %v1666 = vld [vmem:[%s509 + $0x134] sm:$0xf]
        %v1667 = vld [vmem:[%s509 + $0x138] sm:$0xff]
        %v1668 = vld [vmem:[%s509 + $0x140] sm:$0xf]
        %v1669 = vld [vmem:[%s509 + $0x144] sm:$0xff]
        %v1670 = vld [vmem:[%s509 + $0x14c] sm:$0xf]
        %v1671 = vld [vmem:[%s509 + $0x150] sm:$0xff]
        %v1672 = vld [vmem:[%s509 + $0x158] sm:$0xf]
        %v1673 = vld [vmem:[%s509 + $0x15c] sm:$0xff]
        %v1674 = vld [vmem:[%s509 + $0x164] sm:$0xf]
        %v1675 = vld [vmem:[%s509 + $0x168] sm:$0xff]
        %v1676 = vld [vmem:[%s509 + $0x170] sm:$0xf]
        %v1677 = vld [vmem:[%s509 + $0x174] sm:$0xff]
        %v1678 = vld [vmem:[%s509 + $0x17c] sm:$0xf]
        %v1679 = vld [vmem:[%s509 + $0x180] sm:$0xff]
        %v1680 = vld [vmem:[%s509 + $0x188] sm:$0xf]
        %v1681 = vld [vmem:[%s509 + $0x18c] sm:$0xff]
        %v1682 = vld [vmem:[%s509 + $0x194] sm:$0xf]
        %v1683 = vld [vmem:[%s509 + $0x198] sm:$0xff]
        %v1684 = vld [vmem:[%s509 + $0x1a0] sm:$0xf]
        %v1685 = vld [vmem:[%s509 + $0x1a4] sm:$0xff]
        %v1686 = vld [vmem:[%s509 + $0x1ac] sm:$0xf]
        %v1687 = vld [vmem:[%s509 + $0x1b0] sm:$0xff]
        %v1688 = vld [vmem:[%s509 + $0x1b8] sm:$0xf]
        %v1689 = vld [vmem:[%s509 + $0x1bc] sm:$0xff]
        %v1690 = vld [vmem:[%s509 + $0x1c4] sm:$0xf]
        %v1691 = vld [vmem:[%s509 + $0x1c8] sm:$0xff]
        %v1692 = vld [vmem:[%s509 + $0x1d0] sm:$0xf]
        %v1693 = vld [vmem:[%s509 + $0x1d4] sm:$0xff]
        %v1694 = vld [vmem:[%s509 + $0x1dc] sm:$0xf]
        %v1695 = vld [vmem:[%s509 + $0x1e0] sm:$0xff]
        %v1696 = vld [vmem:[%s509 + $0x1e8] sm:$0xf]
        %v1697 = vld [vmem:[%s509 + $0x1ec] sm:$0xff]
        %v1698 = vld [vmem:[%s509 + $0x1f4] sm:$0xf]
        %v1699 = vld [vmem:[%s509 + $0x1f8] sm:$0xff]
        %v1700 = vld [vmem:[%s509 + $0x200] sm:$0xf]
        %v1701 = vld [vmem:[%s509 + $0x204] sm:$0xff]
        %v1702 = vld [vmem:[%s509 + $0x20c] sm:$0xf]
        %v1703 = vld [vmem:[%s509 + $0x210] sm:$0xff]
        %v1704 = vld [vmem:[%s509 + $0x218] sm:$0xf]
        %v1705 = vld [vmem:[%s509 + $0x21c] sm:$0xff]
        %v1706 = vld [vmem:[%s509 + $0x224] sm:$0xf]
        %v1707 = vld [vmem:[%s509 + $0x228] sm:$0xff]
        %v1708 = vld [vmem:[%s509 + $0x230] sm:$0xf]
        %v1709 = vld [vmem:[%s509 + $0x234] sm:$0xff]
        %v1710 = vld [vmem:[%s509 + $0x23c] sm:$0xf]
        %v1711 = vld [vmem:[%s509 + $0x240] sm:$0xff]
        %v1712 = vld [vmem:[%s509 + $0x248] sm:$0xf]
        %v1713 = vld [vmem:[%s509 + $0x24c] sm:$0xff]
        %v1714 = vld [vmem:[%s509 + $0x254] sm:$0xf]
        %v1715 = vld [vmem:[%s509 + $0x258] sm:$0xff]
        %v1716 = vld [vmem:[%s509 + $0x260] sm:$0xf]
        %v1717 = vld [vmem:[%s509 + $0x264] sm:$0xff]
        %v1718 = vld [vmem:[%s509 + $0x26c] sm:$0xf]
        %v1719 = vld [vmem:[%s509 + $0x270] sm:$0xff]
        %v1720 = vld [vmem:[%s509 + $0x278] sm:$0xf]
        %v1721 = vld [vmem:[%s509 + $0x27c] sm:$0xff]
        %v1722 = vld [vmem:[%s509 + $0x284] sm:$0xf]
        %v1723 = vld [vmem:[%s509 + $0x288] sm:$0xff]
        %v1724 = vld [vmem:[%s509 + $0x290] sm:$0xf]
        %v1725 = vld [vmem:[%s509 + $0x294] sm:$0xff]
        %v1726 = vld [vmem:[%s509 + $0x29c] sm:$0xf]
        %v1727 = vld [vmem:[%s509 + $0x2a0] sm:$0xff]
        %v1728 = vld [vmem:[%s509 + $0x2a8] sm:$0xf]
        %v1729 = vld [vmem:[%s509 + $0x2ac] sm:$0xff]
        %v1730 = vld [vmem:[%s509 + $0x2b4] sm:$0xf]
        %v1731 = vld [vmem:[%s509 + $0x2b8] sm:$0xff]
        %v1732 = vld [vmem:[%s509 + $0x2c0] sm:$0xf]
        %v1733 = vld [vmem:[%s509 + $0x2c4] sm:$0xff]
        %v1734 = vld [vmem:[%s509 + $0x2cc] sm:$0xf]
        %v1735 = vld [vmem:[%s509 + $0x2d0] sm:$0xff]
        %v1736 = vld [vmem:[%s509 + $0x2d8] sm:$0xf]
        %v1737 = vld [vmem:[%s509 + $0x2dc] sm:$0xff]
        %v1738 = vld [vmem:[%s509 + $0x2e4] sm:$0xf]
        %v1739 = vld [vmem:[%s509 + $0x2e8] sm:$0xff]
        %v1740 = vld [vmem:[%s509 + $0x2f0] sm:$0xf]
        %v1741 = vld [vmem:[%s509 + $0x2f4] sm:$0xff]
        %v1742 = vld [vmem:[%s509 + $0x2fc] sm:$0xf]
        %v1743 = vld [vmem:[%s509 + $0x300] sm:$0xff]
        %v1744 = vld [vmem:[%s509 + $0x308] sm:$0xf]
        %v1745 = vld [vmem:[%s509 + $0x30c] sm:$0xff]
        %v1746 = vld [vmem:[%s509 + $0x314] sm:$0xf]
        %v1747 = vld [vmem:[%s509 + $0x318] sm:$0xff]
        %v1748 = vld [vmem:[%s509 + $0x320] sm:$0xf]
        %v1749 = vld [vmem:[%s509 + $0x324] sm:$0xff]
        %v1750 = vld [vmem:[%s509 + $0x32c] sm:$0xf]
        %v1751 = vld [vmem:[%s509 + $0x330] sm:$0xff]
        %v1752 = vld [vmem:[%s509 + $0x338] sm:$0xf]
        %v1753 = vld [vmem:[%s509 + $0x33c] sm:$0xff]
        %v1754 = vld [vmem:[%s509 + $0x344] sm:$0xf]
        %v1755 = vld [vmem:[%s509 + $0x348] sm:$0xff]
        %v1756 = vld [vmem:[%s509 + $0x350] sm:$0xf]
        %v1757 = vld [vmem:[%s509 + $0x354] sm:$0xff]
        %v1758 = vld [vmem:[%s509 + $0x35c] sm:$0xf]
        %v1759 = vld [vmem:[%s509 + $0x360] sm:$0xff]
        %v1760 = vld [vmem:[%s509 + $0x368] sm:$0xf]
        %v1761 = vld [vmem:[%s509 + $0x36c] sm:$0xff]
        %v1762 = vld [vmem:[%s509 + $0x374] sm:$0xf]
        %v1763 = vld [vmem:[%s509 + $0x378] sm:$0xff]
        %v1764 = vld [vmem:[%s509 + $0x380] sm:$0xf]
        %v1765 = vld [vmem:[%s509 + $0x384] sm:$0xff]
        %v1766 = vld [vmem:[%s509 + $0x38c] sm:$0xf]
        %v1767 = vld [vmem:[%s509 + $0x390] sm:$0xff]
        %v1768 = vld [vmem:[%s509 + $0x398] sm:$0xf]
        %v1769 = vld [vmem:[%s509 + $0x39c] sm:$0xff]
        %v1770 = vld [vmem:[%s509 + $0x3a4] sm:$0xf]
        %v1771 = vld [vmem:[%s509 + $0x3a8] sm:$0xff]
        %v1772 = vld [vmem:[%s509 + $0x3b0] sm:$0xf]
        %v1773 = vld [vmem:[%s509 + $0x3b4] sm:$0xff]
        %v1774 = vld [vmem:[%s509 + $0x3bc] sm:$0xf]
        %v1775 = vld [vmem:[%s509 + $0x3c0] sm:$0xff]
        %v1776 = vld [vmem:[%s509 + $0x3c8] sm:$0xf]
        %v1777 = vld [vmem:[%s509 + $0x3cc] sm:$0xff]
        %v1778 = vld [vmem:[%s509 + $0x3d4] sm:$0xf]
        %v1779 = vld [vmem:[%s509 + $0x3d8] sm:$0xff]
        %v1780 = vld [vmem:[%s509 + $0x3e0] sm:$0xf]
        %v1781 = vld [vmem:[%s509 + $0x3e4] sm:$0xff]
        %v1782 = vld [vmem:[%s509 + $0x3ec] sm:$0xf]
        %v1783 = vld [vmem:[%s509 + $0x3f0] sm:$0xff]
        %v1784 = vld [vmem:[%s509 + $0x3f8] sm:$0xf]
        %v1785 = vld [vmem:[%s509 + $0x3fc] sm:$0xff]
        %v1786 = vld [vmem:[%s509 + $0x404] sm:$0xf]
        %v1787 = vld [vmem:[%s509 + $0x408] sm:$0xff]
        %v1788 = vld [vmem:[%s509 + $0x410] sm:$0xf]
        %v1789 = vld [vmem:[%s509 + $0x414] sm:$0xff]
        %v1790 = vld [vmem:[%s509 + $0x41c] sm:$0xf]
        %v1791 = vld [vmem:[%s509 + $0x420] sm:$0xff]
        %v1792 = vld [vmem:[%s509 + $0x428] sm:$0xf]
        %v1793 = vld [vmem:[%s509 + $0x42c] sm:$0xff]
        %v1794 = vld [vmem:[%s509 + $0x434] sm:$0xf]
        %v1795 = vld [vmem:[%s509 + $0x438] sm:$0xff]
        %v1796 = vld [vmem:[%s509 + $0x440] sm:$0xf]
        %v1797 = vld [vmem:[%s509 + $0x444] sm:$0xff]
        %v1798 = vld [vmem:[%s509 + $0x44c] sm:$0xf]
        %v1799 = vld [vmem:[%s509 + $0x450] sm:$0xff]
        %v1800 = vld [vmem:[%s509 + $0x458] sm:$0xf]
        %v1801 = vld [vmem:[%s509 + $0x45c] sm:$0xff]
        %v1802 = vld [vmem:[%s509 + $0x464] sm:$0xf]
        %v1803 = vld [vmem:[%s509 + $0x468] sm:$0xff]
        %v1804 = vld [vmem:[%s509 + $0x470] sm:$0xf]
        %v1805 = vld [vmem:[%s509 + $0x474] sm:$0xff]
        %v1806 = vld [vmem:[%s509 + $0x47c] sm:$0xf]
        %v1807 = vld [vmem:[%s509 + $0x480] sm:$0xff]
        %v1808 = vld [vmem:[%s509 + $0x488] sm:$0xf]
        %v1809 = vld [vmem:[%s509 + $0x48c] sm:$0xff]
        %v1810 = vld [vmem:[%s509 + $0x494] sm:$0xf]
        %v1811 = vld [vmem:[%s509 + $0x498] sm:$0xff]
        %v1812 = vld [vmem:[%s509 + $0x4a0] sm:$0xf]
        %v1813 = vld [vmem:[%s509 + $0x4a4] sm:$0xff]
        %v1814 = vld [vmem:[%s509 + $0x4ac] sm:$0xf]
        %v1815 = vld [vmem:[%s509 + $0x4b0] sm:$0xff]
        %v1816 = vld [vmem:[%s509 + $0x4b8] sm:$0xf]
        %v1817 = vld [vmem:[%s509 + $0x4bc] sm:$0xff]
        %v1818 = vld [vmem:[%s509 + $0x4c4] sm:$0xf]
        %v1819 = vld [vmem:[%s509 + $0x4c8] sm:$0xff]
        %v1820 = vld [vmem:[%s509 + $0x4d0] sm:$0xf]
        %v1821 = vld [vmem:[%s509 + $0x4d4] sm:$0xff]
        %v1822 = vld [vmem:[%s509 + $0x4dc] sm:$0xf]
        %v1823 = vld [vmem:[%s509 + $0x4e0] sm:$0xff]
        %v1824 = vld [vmem:[%s509 + $0x4e8] sm:$0xf]
        %v1825 = vld [vmem:[%s509 + $0x4ec] sm:$0xff]
        %v1826 = vld [vmem:[%s509 + $0x4f4] sm:$0xf]
        %v1827 = vld [vmem:[%s509 + $0x4f8] sm:$0xff]
        %v1828 = vld [vmem:[%s509 + $0x500] sm:$0xf]
        %v1829 = vld [vmem:[%s509 + $0x504] sm:$0xff]
        %v1830 = vld [vmem:[%s509 + $0x50c] sm:$0xf]
        %v1831 = vld [vmem:[%s509 + $0x510] sm:$0xff]
        %v1832 = vld [vmem:[%s509 + $0x518] sm:$0xf]
        %v1833 = vld [vmem:[%s509 + $0x51c] sm:$0xff]
        %v1834 = vld [vmem:[%s509 + $0x524] sm:$0xf]
        %v1835 = vld [vmem:[%s509 + $0x528] sm:$0xff]
        %v1836 = vld [vmem:[%s509 + $0x530] sm:$0xf]
        %v1837 = vld [vmem:[%s509 + $0x534] sm:$0xff]
        %v1838 = vld [vmem:[%s509 + $0x53c] sm:$0xf]
        %v1839 = vld [vmem:[%s509 + $0x540] sm:$0xff]
        %v1840 = vld [vmem:[%s509 + $0x548] sm:$0xf]
        %v1841 = vld [vmem:[%s509 + $0x54c] sm:$0xff]
        %v1842 = vld [vmem:[%s509 + $0x554] sm:$0xf]
        %v1843 = vld [vmem:[%s509 + $0x558] sm:$0xff]
        %v1844 = vld [vmem:[%s509 + $0x560] sm:$0xf]
        %v1845 = vld [vmem:[%s509 + $0x564] sm:$0xff]
        %v1846 = vld [vmem:[%s509 + $0x56c] sm:$0xf]
        %v1847 = vld [vmem:[%s509 + $0x570] sm:$0xff]
        %v1848 = vld [vmem:[%s509 + $0x578] sm:$0xf]
        %v1849 = vld [vmem:[%s509 + $0x57c] sm:$0xff]
        %v1850 = vld [vmem:[%s509 + $0x584] sm:$0xf]
        %v1851 = vld [vmem:[%s509 + $0x588] sm:$0xff]
        %v1852 = vld [vmem:[%s509 + $0x590] sm:$0xf]
        %v1853 = vld [vmem:[%s509 + $0x594] sm:$0xff]
        %v1854 = vld [vmem:[%s509 + $0x59c] sm:$0xf]
        %v1855 = vld [vmem:[%s509 + $0x5a0] sm:$0xff]
        %v1856 = vld [vmem:[%s509 + $0x5a8] sm:$0xf]
        %v1857 = vld [vmem:[%s509 + $0x5ac] sm:$0xff]
        %v1858 = vld [vmem:[%s509 + $0x5b4] sm:$0xf]
        %v1859 = vld [vmem:[%s509 + $0x5b8] sm:$0xff]
        %v1860 = vld [vmem:[%s509 + $0x5c0] sm:$0xf]
        %v1861 = vld [vmem:[%s509 + $0x5c4] sm:$0xff]
        %v1862 = vld [vmem:[%s509 + $0x5cc] sm:$0xf]
        %v1863 = vld [vmem:[%s509 + $0x5d0] sm:$0xff]
        %v1864 = vld [vmem:[%s509 + $0x5d8] sm:$0xf]
        %v1865 = vld [vmem:[%s509 + $0x5dc] sm:$0xff]
        %v1866 = vld [vmem:[%s509 + $0x5e4] sm:$0xf]
        %v1867 = vld [vmem:[%s509 + $0x5e8] sm:$0xff]
        %v1868 = vld [vmem:[%s509 + $0x5f0] sm:$0xf]
        %v1869 = vld [vmem:[%s509 + $0x5f4] sm:$0xff]
        %v1870 = vld [vmem:[%s509 + $0x5fc] sm:$0xf]
        %v1871 = vld [vmem:[%s509 + $0x600] sm:$0xff]
        %v1872 = vld [vmem:[%s509 + $0x608] sm:$0xf]
        %v1873 = vld [vmem:[%s509 + $0x60c] sm:$0xff]
        %v1874 = vld [vmem:[%s509 + $0x614] sm:$0xf]
        %v1875 = vld [vmem:[%s509 + $0x618] sm:$0xff]
        %v1876 = vld [vmem:[%s509 + $0x620] sm:$0xf]
        %v1877 = vld [vmem:[%s509 + $0x624] sm:$0xff]
        %v1878 = vld [vmem:[%s509 + $0x62c] sm:$0xf]
        %v1879 = vld [vmem:[%s509 + $0x630] sm:$0xff]
        %v1880 = vld [vmem:[%s509 + $0x638] sm:$0xf]
        %v1881 = vld [vmem:[%s509 + $0x63c] sm:$0xff]
        %v1882 = vld [vmem:[%s509 + $0x644] sm:$0xf]
        %v1883 = vld [vmem:[%s509 + $0x648] sm:$0xff]
        %v1884 = vld [vmem:[%s509 + $0x650] sm:$0xf]
        %v1885 = vld [vmem:[%s509 + $0x654] sm:$0xff]
        %v1886 = vld [vmem:[%s509 + $0x65c] sm:$0xf]
        %v1887 = vld [vmem:[%s509 + $0x660] sm:$0xff]
        %v1888 = vld [vmem:[%s509 + $0x668] sm:$0xf]
        %v1889 = vld [vmem:[%s509 + $0x66c] sm:$0xff]
        %v1890 = vld [vmem:[%s509 + $0x674] sm:$0xf]
        %v1891 = vld [vmem:[%s509 + $0x678] sm:$0xff]
        %v1892 = vld [vmem:[%s509 + $0x680] sm:$0xf]
        %v1893 = vld [vmem:[%s509 + $0x684] sm:$0xff]
        %v1894 = vld [vmem:[%s509 + $0x68c] sm:$0xf]
        %v1895 = vld [vmem:[%s509 + $0x690] sm:$0xff]
        %v1896 = vld [vmem:[%s509 + $0x698] sm:$0xf]
        %v1897 = vld [vmem:[%s509 + $0x69c] sm:$0xff]
        %v1898 = vld [vmem:[%s509 + $0x6a4] sm:$0xf]
        %v1899 = vld [vmem:[%s509 + $0x6a8] sm:$0xff]
        %v1900 = vld [vmem:[%s509 + $0x6b0] sm:$0xf]
        %v1901 = vld [vmem:[%s509 + $0x6b4] sm:$0xff]
        %v1902 = vld [vmem:[%s509 + $0x6bc] sm:$0xf]
        %v1903 = vld [vmem:[%s509 + $0x6c0] sm:$0xff]
        %v1904 = vld [vmem:[%s509 + $0x6c8] sm:$0xf]
        %v1905 = vld [vmem:[%s509 + $0x6cc] sm:$0xff]
        %v1906 = vld [vmem:[%s509 + $0x6d4] sm:$0xf]
        %v1907 = vld [vmem:[%s509 + $0x6d8] sm:$0xff]
        %v1908 = vld [vmem:[%s509 + $0x6e0] sm:$0xf]
        %v1909 = vld [vmem:[%s509 + $0x6e4] sm:$0xff]
        %v1910 = vld [vmem:[%s509 + $0x6ec] sm:$0xf]
        %v1911 = vld [vmem:[%s509 + $0x6f0] sm:$0xff]
        %v1912 = vld [vmem:[%s509 + $0x6f8] sm:$0xf]
        %v1913 = vld [vmem:[%s509 + $0x6fc] sm:$0xff]
        %v1914 = vld [vmem:[%s509 + $0x704] sm:$0xf]
        %v1915 = vld [vmem:[%s509 + $0x708] sm:$0xff]
        %v1916 = vld [vmem:[%s509 + $0x710] sm:$0xf]
        %v1917 = vld [vmem:[%s509 + $0x714] sm:$0xff]
        %v1918 = vld [vmem:[%s509 + $0x71c] sm:$0xf]
        %v1919 = vld [vmem:[%s509 + $0x720] sm:$0xff]
        %v1920 = vld [vmem:[%s509 + $0x728] sm:$0xf]
        %v1921 = vld [vmem:[%s509 + $0x72c] sm:$0xff]
        %v1922 = vld [vmem:[%s509 + $0x734] sm:$0xf]
        %v1923 = vld [vmem:[%s509 + $0x738] sm:$0xff]
        %v1924 = vld [vmem:[%s509 + $0x740] sm:$0xf]
        %v1925 = vld [vmem:[%s509 + $0x744] sm:$0xff]
        %v1926 = vld [vmem:[%s509 + $0x74c] sm:$0xf]
        %v1927 = vld [vmem:[%s509 + $0x750] sm:$0xff]
        %v1928 = vld [vmem:[%s509 + $0x758] sm:$0xf]
        %v1929 = vld [vmem:[%s509 + $0x75c] sm:$0xff]
        %v1930 = vld [vmem:[%s509 + $0x764] sm:$0xf]
        %v1931 = vld [vmem:[%s509 + $0x768] sm:$0xff]
        %v1932 = vld [vmem:[%s509 + $0x770] sm:$0xf]
        %v1933 = vld [vmem:[%s509 + $0x774] sm:$0xff]
        %v1934 = vld [vmem:[%s509 + $0x77c] sm:$0xf]
        %v1935 = vld [vmem:[%s509 + $0x780] sm:$0xff]
        %v1936 = vld [vmem:[%s509 + $0x788] sm:$0xf]
        %v1937 = vld [vmem:[%s509 + $0x78c] sm:$0xff]
        %v1938 = vld [vmem:[%s509 + $0x794] sm:$0xf]
        %v1939 = vld [vmem:[%s509 + $0x798] sm:$0xff]
        %v1940 = vld [vmem:[%s509 + $0x7a0] sm:$0xf]
        %v1941 = vld [vmem:[%s509 + $0x7a4] sm:$0xff]
        %v1942 = vld [vmem:[%s509 + $0x7ac] sm:$0xf]
        %v1943 = vld [vmem:[%s509 + $0x7b0] sm:$0xff]
        %v1944 = vld [vmem:[%s509 + $0x7b8] sm:$0xf]
        %v1945 = vld [vmem:[%s509 + $0x7bc] sm:$0xff]
        %v1946 = vld [vmem:[%s509 + $0x7c4] sm:$0xf]
        %v1947 = vld [vmem:[%s509 + $0x7c8] sm:$0xff]
        %v1948 = vld [vmem:[%s509 + $0x7d0] sm:$0xf]
        %v1949 = vld [vmem:[%s509 + $0x7d4] sm:$0xff]
        %v1950 = vld [vmem:[%s509 + $0x7dc] sm:$0xf]
        %v1951 = vld [vmem:[%s509 + $0x7e0] sm:$0xff]
        %v1952 = vld [vmem:[%s509 + $0x7e8] sm:$0xf]
        %v1953 = vld [vmem:[%s509 + $0x7ec] sm:$0xff]
        %v1954 = vld [vmem:[%s509 + $0x7f4] sm:$0xf]
        %v1955 = vld [vmem:[%s509 + $0x7f8] sm:$0xff]
        %v1956 = vld [vmem:[%s509 + $0x800] sm:$0xf]
        %v1957 = vld [vmem:[%s509 + $0x804] sm:$0xff]
        %v1958 = vld [vmem:[%s509 + $0x80c] sm:$0xf]
        %v1959 = vld [vmem:[%s509 + $0x810] sm:$0xff]
        %v1960 = vld [vmem:[%s509 + $0x818] sm:$0xf]
        %v1961 = vld [vmem:[%s509 + $0x81c] sm:$0xff]
        %v1962 = vld [vmem:[%s509 + $0x824] sm:$0xf]
        %v1963 = vld [vmem:[%s509 + $0x828] sm:$0xff]
        %v1964 = vld [vmem:[%s509 + $0x830] sm:$0xf]
        %v1965 = vld [vmem:[%s509 + $0x834] sm:$0xff]
        %v1966 = vld [vmem:[%s509 + $0x83c] sm:$0xf]
        %v1967 = vld [vmem:[%s509 + $0x840] sm:$0xff]
        %v1968 = vld [vmem:[%s509 + $0x848] sm:$0xf]
        %v1969 = vld [vmem:[%s509 + $0x84c] sm:$0xff]
        %v1970 = vld [vmem:[%s509 + $0x854] sm:$0xf]
        %v1971 = vld [vmem:[%s509 + $0x858] sm:$0xff]
        %v1972 = vld [vmem:[%s509 + $0x860] sm:$0xf]
        %v1973 = vld [vmem:[%s509 + $0x864] sm:$0xff]
        %v1974 = vld [vmem:[%s509 + $0x86c] sm:$0xf]
        %v1975 = vld [vmem:[%s509 + $0x870] sm:$0xff]
        %v1976 = vld [vmem:[%s509 + $0x878] sm:$0xf]
        %v1977 = vld [vmem:[%s509 + $0x87c] sm:$0xff]
        %v1978 = vld [vmem:[%s509 + $0x884] sm:$0xf]
        %v1979 = vld [vmem:[%s509 + $0x888] sm:$0xff]
        %v1980 = vld [vmem:[%s509 + $0x890] sm:$0xf]
        %v1981 = vld [vmem:[%s509 + $0x894] sm:$0xff]
        %v1982 = vld [vmem:[%s509 + $0x89c] sm:$0xf]
        %v1983 = vld [vmem:[%s509 + $0x8a0] sm:$0xff]
        %v1984 = vld [vmem:[%s509 + $0x8a8] sm:$0xf]
        %v1985 = vld [vmem:[%s509 + $0x8ac] sm:$0xff]
        %v1986 = vld [vmem:[%s509 + $0x8b4] sm:$0xf]
        %v1987 = vld [vmem:[%s509 + $0x8b8] sm:$0xff]
        %v1988 = vld [vmem:[%s509 + $0x8c0] sm:$0xf]
        %v1989 = vld [vmem:[%s509 + $0x8c4] sm:$0xff]
        %v1990 = vld [vmem:[%s509 + $0x8cc] sm:$0xf]
        %v1991 = vld [vmem:[%s509 + $0x8d0] sm:$0xff]
        %v1992 = vld [vmem:[%s509 + $0x8d8] sm:$0xf]
        %v1993 = vld [vmem:[%s509 + $0x8dc] sm:$0xff]
        %v1994 = vld [vmem:[%s509 + $0x8e4] sm:$0xf]
        %v1995 = vld [vmem:[%s509 + $0x8e8] sm:$0xff]
        %v1996 = vld [vmem:[%s509 + $0x8f0] sm:$0xf]
        %v1997 = vld [vmem:[%s509 + $0x8f4] sm:$0xff]
        %v1998 = vld [vmem:[%s509 + $0x8fc] sm:$0xf]
        %v1999 = vld [vmem:[%s509 + $0x900] sm:$0xff]
        %v2000 = vld [vmem:[%s509 + $0x908] sm:$0xf]
        %v2001 = vld [vmem:[%s509 + $0x90c] sm:$0xff]
        %v2002 = vld [vmem:[%s509 + $0x914] sm:$0xf]
        %v2003 = vld [vmem:[%s509 + $0x918] sm:$0xff]
        %v2004 = vld [vmem:[%s509 + $0x920] sm:$0xf]
        %v2005 = vld [vmem:[%s509 + $0x924] sm:$0xff]
        %v2006 = vld [vmem:[%s509 + $0x92c] sm:$0xf]
        %v2007 = vld [vmem:[%s509 + $0x930] sm:$0xff]
        %v2008 = vld [vmem:[%s509 + $0x938] sm:$0xf]
        %v2009 = vld [vmem:[%s509 + $0x93c] sm:$0xff]
        %v2010 = vld [vmem:[%s509 + $0x944] sm:$0xf]
        %v2011 = vld [vmem:[%s509 + $0x948] sm:$0xff]
        %v2012 = vld [vmem:[%s509 + $0x950] sm:$0xf]
        %v2013 = vld [vmem:[%s509 + $0x954] sm:$0xff]
        %v2014 = vld [vmem:[%s509 + $0x95c] sm:$0xf]
        %v2015 = vld [vmem:[%s509 + $0x960] sm:$0xff]
        %v2016 = vld [vmem:[%s509 + $0x968] sm:$0xf]
        %v2017 = vld [vmem:[%s509 + $0x96c] sm:$0xff]
        %v2018 = vld [vmem:[%s509 + $0x974] sm:$0xf]
        %v2019 = vld [vmem:[%s509 + $0x978] sm:$0xff]
        %v2020 = vld [vmem:[%s509 + $0x980] sm:$0xf]
        %v2021 = vld [vmem:[%s509 + $0x984] sm:$0xff]
        %v2022 = vld [vmem:[%s509 + $0x98c] sm:$0xf]
        %v2023 = vld [vmem:[%s509 + $0x990] sm:$0xff]
        %v2024 = vld [vmem:[%s509 + $0x998] sm:$0xf]
        %v2025 = vld [vmem:[%s509 + $0x99c] sm:$0xff]
        %v2026 = vld [vmem:[%s509 + $0x9a4] sm:$0xf]
        %v2027 = vld [vmem:[%s509 + $0x9a8] sm:$0xff]
        %v2028 = vld [vmem:[%s509 + $0x9b0] sm:$0xf]
        %v2029 = vld [vmem:[%s509 + $0x9b4] sm:$0xff]
        %v2030 = vld [vmem:[%s509 + $0x9bc] sm:$0xf]
        %v2031 = vld [vmem:[%s509 + $0x9c0] sm:$0xff]
        %v2032 = vld [vmem:[%s509 + $0x9c8] sm:$0xf]
        %v2033 = vld [vmem:[%s509 + $0x9cc] sm:$0xff]
        %v2034 = vld [vmem:[%s509 + $0x9d4] sm:$0xf]
        %v2035 = vld [vmem:[%s509 + $0x9d8] sm:$0xff]
        %v2036 = vld [vmem:[%s509 + $0x9e0] sm:$0xf]
        %v2037 = vld [vmem:[%s509 + $0x9e4] sm:$0xff]
        %v2038 = vld [vmem:[%s509 + $0x9ec] sm:$0xf]
        %v2039 = vld [vmem:[%s509 + $0x9f0] sm:$0xff]
        %v2040 = vld [vmem:[%s509 + $0x9f8] sm:$0xf]
        %v2041 = vld [vmem:[%s509 + $0x9fc] sm:$0xff]
        %v2042 = vld [vmem:[%s509 + $0xa04] sm:$0xf]
        %v2043 = vld [vmem:[%s509 + $0xa08] sm:$0xff]
        %v2044 = vld [vmem:[%s509 + $0xa10] sm:$0xf]
        %v2045 = vld [vmem:[%s509 + $0xa14] sm:$0xff]
        %v2046 = vld [vmem:[%s509 + $0xa1c] sm:$0xf]
        %v2047 = vld [vmem:[%s509 + $0xa20] sm:$0xff]
        %v2048 = vld [vmem:[%s509 + $0xa28] sm:$0xf]
        %v2049 = vld [vmem:[%s509 + $0xa2c] sm:$0xff]
        %v2050 = vld [vmem:[%s509 + $0xa34] sm:$0xf]
        %v2051 = vld [vmem:[%s509 + $0xa38] sm:$0xff]
        %v2052 = vld [vmem:[%s509 + $0xa40] sm:$0xf]
        %v2053 = vld [vmem:[%s509 + $0xa44] sm:$0xff]
        %v2054 = vld [vmem:[%s509 + $0xa4c] sm:$0xf]
        %v2055 = vld [vmem:[%s509 + $0xa50] sm:$0xff]
        %v2056 = vld [vmem:[%s509 + $0xa58] sm:$0xf]
        %v2057 = vld [vmem:[%s509 + $0xa5c] sm:$0xff]
        %v2058 = vld [vmem:[%s509 + $0xa64] sm:$0xf]
        %v2059 = vld [vmem:[%s509 + $0xa68] sm:$0xff]
        %v2060 = vld [vmem:[%s509 + $0xa70] sm:$0xf]
        %v2061 = vld [vmem:[%s509 + $0xa74] sm:$0xff]
        %v2062 = vld [vmem:[%s509 + $0xa7c] sm:$0xf]
        %v2063 = vld [vmem:[%s509 + $0xa80] sm:$0xff]
        %v2064 = vld [vmem:[%s509 + $0xa88] sm:$0xf]
        %v2065 = vld [vmem:[%s509 + $0xa8c] sm:$0xff]
        %v2066 = vld [vmem:[%s509 + $0xa94] sm:$0xf]
        %v2067 = vld [vmem:[%s509 + $0xa98] sm:$0xff]
        %v2068 = vld [vmem:[%s509 + $0xaa0] sm:$0xf]
        %v2069 = vld [vmem:[%s509 + $0xaa4] sm:$0xff]
        %v2070 = vld [vmem:[%s509 + $0xaac] sm:$0xf]
        %v2071 = vld [vmem:[%s509 + $0xab0] sm:$0xff]
        %v2072 = vld [vmem:[%s509 + $0xab8] sm:$0xf]
        %v2073 = vld [vmem:[%s509 + $0xabc] sm:$0xff]
        %v2074 = vld [vmem:[%s509 + $0xac4] sm:$0xf]
        %v2075 = vld [vmem:[%s509 + $0xac8] sm:$0xff]
        %v2076 = vld [vmem:[%s509 + $0xad0] sm:$0xf]
        %v2077 = vld [vmem:[%s509 + $0xad4] sm:$0xff]
        %v2078 = vld [vmem:[%s509 + $0xadc] sm:$0xf]
        %v2079 = vld [vmem:[%s509 + $0xae0] sm:$0xff]
        %v2080 = vld [vmem:[%s509 + $0xae8] sm:$0xf]
        %v2081 = vld [vmem:[%s509 + $0xaec] sm:$0xff]
        %v2082 = vld [vmem:[%s509 + $0xaf4] sm:$0xf]
        %v2083 = vld [vmem:[%s509 + $0xaf8] sm:$0xff]
        %v2084 = vld [vmem:[%s509 + $0xb00] sm:$0xf]
        %v2085 = vld [vmem:[%s509 + $0xb04] sm:$0xff]
        %v2086 = vld [vmem:[%s509 + $0xb0c] sm:$0xf]
        %v2087 = vld [vmem:[%s509 + $0xb10] sm:$0xff]
        %v2088 = vld [vmem:[%s509 + $0xb18] sm:$0xf]
        %v2089 = vld [vmem:[%s509 + $0xb1c] sm:$0xff]
        %v2090 = vld [vmem:[%s509 + $0xb24] sm:$0xf]
        %v2091 = vld [vmem:[%s509 + $0xb28] sm:$0xff]
        %v2092 = vld [vmem:[%s509 + $0xb30] sm:$0xf]
        %v2093 = vld [vmem:[%s509 + $0xb34] sm:$0xff]
        %v2094 = vld [vmem:[%s509 + $0xb3c] sm:$0xf]
        %v2095 = vld [vmem:[%s509 + $0xb40] sm:$0xff]
        %v2096 = vld [vmem:[%s509 + $0xb48] sm:$0xf]
        %v2097 = vld [vmem:[%s509 + $0xb4c] sm:$0xff]
        %v2098 = vld [vmem:[%s509 + $0xb54] sm:$0xf]
        %v2099 = vld [vmem:[%s509 + $0xb58] sm:$0xff]
        %v2100 = vld [vmem:[%s509 + $0xb60] sm:$0xf]
        %v2101 = vld [vmem:[%s509 + $0xb64] sm:$0xff]
        %v2102 = vld [vmem:[%s509 + $0xb6c] sm:$0xf]
        %v2103 = vld [vmem:[%s509 + $0xb70] sm:$0xff]
        %v2104 = vld [vmem:[%s509 + $0xb78] sm:$0xf]
        %v2105 = vld [vmem:[%s509 + $0xb7c] sm:$0xff]
        %v2106 = vld [vmem:[%s509 + $0xb84] sm:$0xf]
        %v2107 = vld [vmem:[%s509 + $0xb88] sm:$0xff]
        %v2108 = vld [vmem:[%s509 + $0xb90] sm:$0xf]
        %v2109 = vld [vmem:[%s509 + $0xb94] sm:$0xff]
        %v2110 = vld [vmem:[%s509 + $0xb9c] sm:$0xf]
        %v2111 = vld [vmem:[%s509 + $0xba0] sm:$0xff]
        %v2112 = vld [vmem:[%s509 + $0xba8] sm:$0xf]
        %v2113 = vld [vmem:[%s509 + $0xbac] sm:$0xff]
        %v2114 = vld [vmem:[%s509 + $0xbb4] sm:$0xf]
        %v2115 = vld [vmem:[%s509 + $0xbb8] sm:$0xff]
        %v2116 = vld [vmem:[%s509 + $0xbc0] sm:$0xf]
        %v2117 = vld [vmem:[%s509 + $0xbc4] sm:$0xff]
        %v2118 = vld [vmem:[%s509 + $0xbcc] sm:$0xf]
        %v2119 = vld [vmem:[%s509 + $0xbd0] sm:$0xff]
        %v2120 = vld [vmem:[%s509 + $0xbd8] sm:$0xf]
        %v2121 = vld [vmem:[%s509 + $0xbdc] sm:$0xff]
        %v2122 = vld [vmem:[%s509 + $0xbe4] sm:$0xf]
        %v2123 = vld [vmem:[%s509 + $0xbe8] sm:$0xff]
        %v2124 = vld [vmem:[%s509 + $0xbf0] sm:$0xf]
        %v2125 = vld [vmem:[%s509 + $0xbf4] sm:$0xff]
        %v2126 = vld [vmem:[%s509 + $0xbfc] sm:$0xf]
        %v2127 = vld [vmem:[#allocation2] sm:$0xff]
        %v2128 = vld [vmem:[#allocation2 + $0x8] sm:$0xff]
        %v2129 = vld [vmem:[#allocation2 + $0x10] sm:$0xff]
        %v2130 = vld [vmem:[#allocation2 + $0x18] sm:$0xff]
        %v2131 = vld [vmem:[#allocation2 + $0x20] sm:$0xff]
        %v2132 = vld [vmem:[#allocation2 + $0x28] sm:$0xff]
        %v2133 = vld [vmem:[#allocation2 + $0x30] sm:$0xff]
        %v2134 = vld [vmem:[#allocation2 + $0x38] sm:$0xff]
        %v2135 = vld [vmem:[#allocation2 + $0x40] sm:$0xff]
        %v2136 = vld [vmem:[#allocation2 + $0x48] sm:$0xff]
        %v2137 = vld [vmem:[#allocation2 + $0x50] sm:$0xff]
        %v2138 = vld [vmem:[#allocation2 + $0x58] sm:$0xff]
        %v2139 = vld [vmem:[#allocation2 + $0x60] sm:$0xff]
        %v2140 = vld [vmem:[#allocation2 + $0x68] sm:$0xff]
        %v2141 = vld [vmem:[#allocation2 + $0x70] sm:$0xff]
        %v2142 = vld [vmem:[#allocation2 + $0x78] sm:$0xff]
        %v2143 = vld [vmem:[#allocation2 + $0x80] sm:$0xff]
        %v2144 = vld [vmem:[#allocation2 + $0x88] sm:$0xff]
        %v2145 = vld [vmem:[#allocation2 + $0x90] sm:$0xff]
        %v2146 = vld [vmem:[#allocation2 + $0x98] sm:$0xff]
        %v2147 = vld [vmem:[#allocation2 + $0xa0] sm:$0xff]
        %v2148 = vld [vmem:[#allocation2 + $0xa8] sm:$0xff]
        %v2149 = vld [vmem:[#allocation2 + $0xb0] sm:$0xff]
        %v2150 = vld [vmem:[#allocation2 + $0xb8] sm:$0xff]
        %v2151 = vld [vmem:[#allocation2 + $0xc0] sm:$0xff]
        %v2152 = vld [vmem:[#allocation2 + $0xc8] sm:$0xff]
        %v2153 = vld [vmem:[#allocation2 + $0xd0] sm:$0xff]
        %v2154 = vld [vmem:[#allocation2 + $0xd8] sm:$0xff]
        %v2155 = vld [vmem:[#allocation2 + $0xe0] sm:$0xff]
        %v2156 = vld [vmem:[#allocation2 + $0xe8] sm:$0xff]
        %v2157 = vld [vmem:[#allocation2 + $0xf0] sm:$0xff]
        %v2158 = vld [vmem:[#allocation2 + $0xf8] sm:$0xff]
        %v2159 = vld [vmem:[#allocation2 + $0x100] sm:$0xff]
        %v2160 = vld [vmem:[#allocation2 + $0x108] sm:$0xff]
        %v2161 = vld [vmem:[#allocation2 + $0x110] sm:$0xff]
        %v2162 = vld [vmem:[#allocation2 + $0x118] sm:$0xff]
        %v2163 = vld [vmem:[#allocation2 + $0x120] sm:$0xff]
        %v2164 = vld [vmem:[#allocation2 + $0x128] sm:$0xff]
        %v2165 = vld [vmem:[#allocation2 + $0x130] sm:$0xff]
        %v2166 = vld [vmem:[#allocation2 + $0x138] sm:$0xff]
        %v2167 = vld [vmem:[#allocation2 + $0x140] sm:$0xff]
        %v2168 = vld [vmem:[#allocation2 + $0x148] sm:$0xff]
        %v2169 = vld [vmem:[#allocation2 + $0x150] sm:$0xff]
        %v2170 = vld [vmem:[#allocation2 + $0x158] sm:$0xff]
        %v2171 = vld [vmem:[#allocation11] sm:$0x3]
        %v2173 = vlaneseq
        %v2174 = vshrl.u32 %v2173, 7
        %v2175 = vsub.s32 0, %v2174
        %v2176 = vrot.slane %v2171, %v2175
        %v2177 = vlaneseq
        %v2178 = vshrl.u32 %v2177, 7
        %v2179 = vsub.s32 1, %v2178
        %v2180 = vrot.slane %v2171, %v2179
        %v2695 = vunpack.c.l.b16 %v1615
        %v2696 = vunpack.c.h.b16 %v1615
        %v2697 = vunpack.c.l.b16 %v1616
        %v2698 = vunpack.c.l.b16 %v1617
        %v2699 = vunpack.c.h.b16 %v1617
        %v2700 = vunpack.c.l.b16 %v1618
        %v2701 = vunpack.c.l.b16 %v1619
        %v2702 = vunpack.c.h.b16 %v1619
        %v2703 = vunpack.c.l.b16 %v1620
        %v2704 = vunpack.c.l.b16 %v1621
        %v2705 = vunpack.c.h.b16 %v1621
        %v2706 = vunpack.c.l.b16 %v1622
        %v2707 = vunpack.c.l.b16 %v1623
        %v2708 = vunpack.c.h.b16 %v1623
        %v2709 = vunpack.c.l.b16 %v1624
        %v2710 = vunpack.c.l.b16 %v1625
        %v2711 = vunpack.c.h.b16 %v1625
        %v2712 = vunpack.c.l.b16 %v1626
        %v2713 = vunpack.c.l.b16 %v1627
        %v2714 = vunpack.c.h.b16 %v1627
        %v2715 = vunpack.c.l.b16 %v1628
        %v2716 = vunpack.c.l.b16 %v1629
        %v2717 = vunpack.c.h.b16 %v1629
        %v2718 = vunpack.c.l.b16 %v1630
        %v2719 = vunpack.c.l.b16 %v1631
        %v2720 = vunpack.c.h.b16 %v1631
        %v2721 = vunpack.c.l.b16 %v1632
        %v2722 = vunpack.c.l.b16 %v1633
        %v2723 = vunpack.c.h.b16 %v1633
        %v2724 = vunpack.c.l.b16 %v1634
        %v2725 = vunpack.c.l.b16 %v1635
        %v2726 = vunpack.c.h.b16 %v1635
        %v2727 = vunpack.c.l.b16 %v1636
        %v2728 = vunpack.c.l.b16 %v1637
        %v2729 = vunpack.c.h.b16 %v1637
        %v2730 = vunpack.c.l.b16 %v1638
        %v2731 = vunpack.c.l.b16 %v1639
        %v2732 = vunpack.c.h.b16 %v1639
        %v2733 = vunpack.c.l.b16 %v1640
        %v2734 = vunpack.c.l.b16 %v1641
        %v2735 = vunpack.c.h.b16 %v1641
        %v2736 = vunpack.c.l.b16 %v1642
        %v2737 = vunpack.c.l.b16 %v1643
        %v2738 = vunpack.c.h.b16 %v1643
        %v2739 = vunpack.c.l.b16 %v1644
        %v2740 = vunpack.c.l.b16 %v1645
        %v2741 = vunpack.c.h.b16 %v1645
        %v2742 = vunpack.c.l.b16 %v1646
        %v2743 = vunpack.c.l.b16 %v1647
        %v2744 = vunpack.c.h.b16 %v1647
        %v2745 = vunpack.c.l.b16 %v1648
        %v2746 = vunpack.c.l.b16 %v1649
        %v2747 = vunpack.c.h.b16 %v1649
        %v2748 = vunpack.c.l.b16 %v1650
        %v2749 = vunpack.c.l.b16 %v1651
        %v2750 = vunpack.c.h.b16 %v1651
        %v2751 = vunpack.c.l.b16 %v1652
        %v2752 = vunpack.c.l.b16 %v1653
        %v2753 = vunpack.c.h.b16 %v1653
        %v2754 = vunpack.c.l.b16 %v1654
        %v2755 = vunpack.c.l.b16 %v1655
        %v2756 = vunpack.c.h.b16 %v1655
        %v2757 = vunpack.c.l.b16 %v1656
        %v2758 = vunpack.c.l.b16 %v1657
        %v2759 = vunpack.c.h.b16 %v1657
        %v2760 = vunpack.c.l.b16 %v1658
        %v2761 = vunpack.c.l.b16 %v1659
        %v2762 = vunpack.c.h.b16 %v1659
        %v2763 = vunpack.c.l.b16 %v1660
        %v2764 = vunpack.c.l.b16 %v1661
        %v2765 = vunpack.c.h.b16 %v1661
        %v2766 = vunpack.c.l.b16 %v1662
        %v2767 = vunpack.c.l.b16 %v1663
        %v2768 = vunpack.c.h.b16 %v1663
        %v2769 = vunpack.c.l.b16 %v1664
        %v2770 = vunpack.c.l.b16 %v1665
        %v2771 = vunpack.c.h.b16 %v1665
        %v2772 = vunpack.c.l.b16 %v1666
        %v2773 = vunpack.c.l.b16 %v1667
        %v2774 = vunpack.c.h.b16 %v1667
        %v2775 = vunpack.c.l.b16 %v1668
        %v2776 = vunpack.c.l.b16 %v1669
        %v2777 = vunpack.c.h.b16 %v1669
        %v2778 = vunpack.c.l.b16 %v1670
        %v2779 = vunpack.c.l.b16 %v1671
        %v2780 = vunpack.c.h.b16 %v1671
        %v2781 = vunpack.c.l.b16 %v1672
        %v2782 = vunpack.c.l.b16 %v1673
        %v2783 = vunpack.c.h.b16 %v1673
        %v2784 = vunpack.c.l.b16 %v1674
        %v2785 = vunpack.c.l.b16 %v1675
        %v2786 = vunpack.c.h.b16 %v1675
        %v2787 = vunpack.c.l.b16 %v1676
        %v2788 = vunpack.c.l.b16 %v1677
        %v2789 = vunpack.c.h.b16 %v1677
        %v2790 = vunpack.c.l.b16 %v1678
        %v2791 = vunpack.c.l.b16 %v1679
        %v2792 = vunpack.c.h.b16 %v1679
        %v2793 = vunpack.c.l.b16 %v1680
        %v2794 = vunpack.c.l.b16 %v1681
        %v2795 = vunpack.c.h.b16 %v1681
        %v2796 = vunpack.c.l.b16 %v1682
        %v2797 = vunpack.c.l.b16 %v1683
        %v2798 = vunpack.c.h.b16 %v1683
        %v2799 = vunpack.c.l.b16 %v1684
        %v2800 = vunpack.c.l.b16 %v1685
        %v2801 = vunpack.c.h.b16 %v1685
        %v2802 = vunpack.c.l.b16 %v1686
        %v2803 = vunpack.c.l.b16 %v1687
        %v2804 = vunpack.c.h.b16 %v1687
        %v2805 = vunpack.c.l.b16 %v1688
        %v2806 = vunpack.c.l.b16 %v1689
        %v2807 = vunpack.c.h.b16 %v1689
        %v2808 = vunpack.c.l.b16 %v1690
        %v2809 = vunpack.c.l.b16 %v1691
        %v2810 = vunpack.c.h.b16 %v1691
        %v2811 = vunpack.c.l.b16 %v1692
        %v2812 = vunpack.c.l.b16 %v1693
        %v2813 = vunpack.c.h.b16 %v1693
        %v2814 = vunpack.c.l.b16 %v1694
        %v2815 = vunpack.c.l.b16 %v1695
        %v2816 = vunpack.c.h.b16 %v1695
        %v2817 = vunpack.c.l.b16 %v1696
        %v2818 = vunpack.c.l.b16 %v1697
        %v2819 = vunpack.c.h.b16 %v1697
        %v2820 = vunpack.c.l.b16 %v1698
        %v2821 = vunpack.c.l.b16 %v1699
        %v2822 = vunpack.c.h.b16 %v1699
        %v2823 = vunpack.c.l.b16 %v1700
        %v2824 = vunpack.c.l.b16 %v1701
        %v2825 = vunpack.c.h.b16 %v1701
        %v2826 = vunpack.c.l.b16 %v1702
        %v2827 = vunpack.c.l.b16 %v1703
        %v2828 = vunpack.c.h.b16 %v1703
        %v2829 = vunpack.c.l.b16 %v1704
        %v2830 = vunpack.c.l.b16 %v1705
        %v2831 = vunpack.c.h.b16 %v1705
        %v2832 = vunpack.c.l.b16 %v1706
        %v2833 = vunpack.c.l.b16 %v1707
        %v2834 = vunpack.c.h.b16 %v1707
        %v2835 = vunpack.c.l.b16 %v1708
        %v2836 = vunpack.c.l.b16 %v1709
        %v2837 = vunpack.c.h.b16 %v1709
        %v2838 = vunpack.c.l.b16 %v1710
        %v2839 = vunpack.c.l.b16 %v1711
        %v2840 = vunpack.c.h.b16 %v1711
        %v2841 = vunpack.c.l.b16 %v1712
        %v2842 = vunpack.c.l.b16 %v1713
        %v2843 = vunpack.c.h.b16 %v1713
        %v2844 = vunpack.c.l.b16 %v1714
        %v2845 = vunpack.c.l.b16 %v1715
        %v2846 = vunpack.c.h.b16 %v1715
        %v2847 = vunpack.c.l.b16 %v1716
        %v2848 = vunpack.c.l.b16 %v1717
        %v2849 = vunpack.c.h.b16 %v1717
        %v2850 = vunpack.c.l.b16 %v1718
        %v2851 = vunpack.c.l.b16 %v1719
        %v2852 = vunpack.c.h.b16 %v1719
        %v2853 = vunpack.c.l.b16 %v1720
        %v2854 = vunpack.c.l.b16 %v1721
        %v2855 = vunpack.c.h.b16 %v1721
        %v2856 = vunpack.c.l.b16 %v1722
        %v2857 = vunpack.c.l.b16 %v1723
        %v2858 = vunpack.c.h.b16 %v1723
        %v2859 = vunpack.c.l.b16 %v1724
        %v2860 = vunpack.c.l.b16 %v1725
        %v2861 = vunpack.c.h.b16 %v1725
        %v2862 = vunpack.c.l.b16 %v1726
        %v2863 = vunpack.c.l.b16 %v1727
        %v2864 = vunpack.c.h.b16 %v1727
        %v2865 = vunpack.c.l.b16 %v1728
        %v2866 = vunpack.c.l.b16 %v1729
        %v2867 = vunpack.c.h.b16 %v1729
        %v2868 = vunpack.c.l.b16 %v1730
        %v2869 = vunpack.c.l.b16 %v1731
        %v2870 = vunpack.c.h.b16 %v1731
        %v2871 = vunpack.c.l.b16 %v1732
        %v2872 = vunpack.c.l.b16 %v1733
        %v2873 = vunpack.c.h.b16 %v1733
        %v2874 = vunpack.c.l.b16 %v1734
        %v2875 = vunpack.c.l.b16 %v1735
        %v2876 = vunpack.c.h.b16 %v1735
        %v2877 = vunpack.c.l.b16 %v1736
        %v2878 = vunpack.c.l.b16 %v1737
        %v2879 = vunpack.c.h.b16 %v1737
        %v2880 = vunpack.c.l.b16 %v1738
        %v2881 = vunpack.c.l.b16 %v1739
        %v2882 = vunpack.c.h.b16 %v1739
        %v2883 = vunpack.c.l.b16 %v1740
        %v2884 = vunpack.c.l.b16 %v1741
        %v2885 = vunpack.c.h.b16 %v1741
        %v2886 = vunpack.c.l.b16 %v1742
        %v2887 = vunpack.c.l.b16 %v1743
        %v2888 = vunpack.c.h.b16 %v1743
        %v2889 = vunpack.c.l.b16 %v1744
        %v2890 = vunpack.c.l.b16 %v1745
        %v2891 = vunpack.c.h.b16 %v1745
        %v2892 = vunpack.c.l.b16 %v1746
        %v2893 = vunpack.c.l.b16 %v1747
        %v2894 = vunpack.c.h.b16 %v1747
        %v2895 = vunpack.c.l.b16 %v1748
        %v2896 = vunpack.c.l.b16 %v1749
        %v2897 = vunpack.c.h.b16 %v1749
        %v2898 = vunpack.c.l.b16 %v1750
        %v2899 = vunpack.c.l.b16 %v1751
        %v2900 = vunpack.c.h.b16 %v1751
        %v2901 = vunpack.c.l.b16 %v1752
        %v2902 = vunpack.c.l.b16 %v1753
        %v2903 = vunpack.c.h.b16 %v1753
        %v2904 = vunpack.c.l.b16 %v1754
        %v2905 = vunpack.c.l.b16 %v1755
        %v2906 = vunpack.c.h.b16 %v1755
        %v2907 = vunpack.c.l.b16 %v1756
        %v2908 = vunpack.c.l.b16 %v1757
        %v2909 = vunpack.c.h.b16 %v1757
        %v2910 = vunpack.c.l.b16 %v1758
        %v2911 = vunpack.c.l.b16 %v1759
        %v2912 = vunpack.c.h.b16 %v1759
        %v2913 = vunpack.c.l.b16 %v1760
        %v2914 = vunpack.c.l.b16 %v1761
        %v2915 = vunpack.c.h.b16 %v1761
        %v2916 = vunpack.c.l.b16 %v1762
        %v2917 = vunpack.c.l.b16 %v1763
        %v2918 = vunpack.c.h.b16 %v1763
        %v2919 = vunpack.c.l.b16 %v1764
        %v2920 = vunpack.c.l.b16 %v1765
        %v2921 = vunpack.c.h.b16 %v1765
        %v2922 = vunpack.c.l.b16 %v1766
        %v2923 = vunpack.c.l.b16 %v1767
        %v2924 = vunpack.c.h.b16 %v1767
        %v2925 = vunpack.c.l.b16 %v1768
        %v2926 = vunpack.c.l.b16 %v1769
        %v2927 = vunpack.c.h.b16 %v1769
        %v2928 = vunpack.c.l.b16 %v1770
        %v2929 = vunpack.c.l.b16 %v1771
        %v2930 = vunpack.c.h.b16 %v1771
        %v2931 = vunpack.c.l.b16 %v1772
        %v2932 = vunpack.c.l.b16 %v1773
        %v2933 = vunpack.c.h.b16 %v1773
        %v2934 = vunpack.c.l.b16 %v1774
        %v2935 = vunpack.c.l.b16 %v1775
        %v2936 = vunpack.c.h.b16 %v1775
        %v2937 = vunpack.c.l.b16 %v1776
        %v2938 = vunpack.c.l.b16 %v1777
        %v2939 = vunpack.c.h.b16 %v1777
        %v2940 = vunpack.c.l.b16 %v1778
        %v2941 = vunpack.c.l.b16 %v1779
        %v2942 = vunpack.c.h.b16 %v1779
        %v2943 = vunpack.c.l.b16 %v1780
        %v2944 = vunpack.c.l.b16 %v1781
        %v2945 = vunpack.c.h.b16 %v1781
        %v2946 = vunpack.c.l.b16 %v1782
        %v2947 = vunpack.c.l.b16 %v1783
        %v2948 = vunpack.c.h.b16 %v1783
        %v2949 = vunpack.c.l.b16 %v1784
        %v2950 = vunpack.c.l.b16 %v1785
        %v2951 = vunpack.c.h.b16 %v1785
        %v2952 = vunpack.c.l.b16 %v1786
        %v2953 = vunpack.c.l.b16 %v1787
        %v2954 = vunpack.c.h.b16 %v1787
        %v2955 = vunpack.c.l.b16 %v1788
        %v2956 = vunpack.c.l.b16 %v1789
        %v2957 = vunpack.c.h.b16 %v1789
        %v2958 = vunpack.c.l.b16 %v1790
        %v2959 = vunpack.c.l.b16 %v1791
        %v2960 = vunpack.c.h.b16 %v1791
        %v2961 = vunpack.c.l.b16 %v1792
        %v2962 = vunpack.c.l.b16 %v1793
        %v2963 = vunpack.c.h.b16 %v1793
        %v2964 = vunpack.c.l.b16 %v1794
        %v2965 = vunpack.c.l.b16 %v1795
        %v2966 = vunpack.c.h.b16 %v1795
        %v2967 = vunpack.c.l.b16 %v1796
        %v2968 = vunpack.c.l.b16 %v1797
        %v2969 = vunpack.c.h.b16 %v1797
        %v2970 = vunpack.c.l.b16 %v1798
        %v2971 = vunpack.c.l.b16 %v1799
        %v2972 = vunpack.c.h.b16 %v1799
        %v2973 = vunpack.c.l.b16 %v1800
        %v2974 = vunpack.c.l.b16 %v1801
        %v2975 = vunpack.c.h.b16 %v1801
        %v2976 = vunpack.c.l.b16 %v1802
        %v2977 = vunpack.c.l.b16 %v1803
        %v2978 = vunpack.c.h.b16 %v1803
        %v2979 = vunpack.c.l.b16 %v1804
        %v2980 = vunpack.c.l.b16 %v1805
        %v2981 = vunpack.c.h.b16 %v1805
        %v2982 = vunpack.c.l.b16 %v1806
        %v2983 = vunpack.c.l.b16 %v1807
        %v2984 = vunpack.c.h.b16 %v1807
        %v2985 = vunpack.c.l.b16 %v1808
        %v2986 = vunpack.c.l.b16 %v1809
        %v2987 = vunpack.c.h.b16 %v1809
        %v2988 = vunpack.c.l.b16 %v1810
        %v2989 = vunpack.c.l.b16 %v1811
        %v2990 = vunpack.c.h.b16 %v1811
        %v2991 = vunpack.c.l.b16 %v1812
        %v2992 = vunpack.c.l.b16 %v1813
        %v2993 = vunpack.c.h.b16 %v1813
        %v2994 = vunpack.c.l.b16 %v1814
        %v2995 = vunpack.c.l.b16 %v1815
        %v2996 = vunpack.c.h.b16 %v1815
        %v2997 = vunpack.c.l.b16 %v1816
        %v2998 = vunpack.c.l.b16 %v1817
        %v2999 = vunpack.c.h.b16 %v1817
        %v3000 = vunpack.c.l.b16 %v1818
        %v3001 = vunpack.c.l.b16 %v1819
        %v3002 = vunpack.c.h.b16 %v1819
        %v3003 = vunpack.c.l.b16 %v1820
        %v3004 = vunpack.c.l.b16 %v1821
        %v3005 = vunpack.c.h.b16 %v1821
        %v3006 = vunpack.c.l.b16 %v1822
        %v3007 = vunpack.c.l.b16 %v1823
        %v3008 = vunpack.c.h.b16 %v1823
        %v3009 = vunpack.c.l.b16 %v1824
        %v3010 = vunpack.c.l.b16 %v1825
        %v3011 = vunpack.c.h.b16 %v1825
        %v3012 = vunpack.c.l.b16 %v1826
        %v3013 = vunpack.c.l.b16 %v1827
        %v3014 = vunpack.c.h.b16 %v1827
        %v3015 = vunpack.c.l.b16 %v1828
        %v3016 = vunpack.c.l.b16 %v1829
        %v3017 = vunpack.c.h.b16 %v1829
        %v3018 = vunpack.c.l.b16 %v1830
        %v3019 = vunpack.c.l.b16 %v1831
        %v3020 = vunpack.c.h.b16 %v1831
        %v3021 = vunpack.c.l.b16 %v1832
        %v3022 = vunpack.c.l.b16 %v1833
        %v3023 = vunpack.c.h.b16 %v1833
        %v3024 = vunpack.c.l.b16 %v1834
        %v3025 = vunpack.c.l.b16 %v1835
        %v3026 = vunpack.c.h.b16 %v1835
        %v3027 = vunpack.c.l.b16 %v1836
        %v3028 = vunpack.c.l.b16 %v1837
        %v3029 = vunpack.c.h.b16 %v1837
        %v3030 = vunpack.c.l.b16 %v1838
        %v3031 = vunpack.c.l.b16 %v1839
        %v3032 = vunpack.c.h.b16 %v1839
        %v3033 = vunpack.c.l.b16 %v1840
        %v3034 = vunpack.c.l.b16 %v1841
        %v3035 = vunpack.c.h.b16 %v1841
        %v3036 = vunpack.c.l.b16 %v1842
        %v3037 = vunpack.c.l.b16 %v1843
        %v3038 = vunpack.c.h.b16 %v1843
        %v3039 = vunpack.c.l.b16 %v1844
        %v3040 = vunpack.c.l.b16 %v1845
        %v3041 = vunpack.c.h.b16 %v1845
        %v3042 = vunpack.c.l.b16 %v1846
        %v3043 = vunpack.c.l.b16 %v1847
        %v3044 = vunpack.c.h.b16 %v1847
        %v3045 = vunpack.c.l.b16 %v1848
        %v3046 = vunpack.c.l.b16 %v1849
        %v3047 = vunpack.c.h.b16 %v1849
        %v3048 = vunpack.c.l.b16 %v1850
        %v3049 = vunpack.c.l.b16 %v1851
        %v3050 = vunpack.c.h.b16 %v1851
        %v3051 = vunpack.c.l.b16 %v1852
        %v3052 = vunpack.c.l.b16 %v1853
        %v3053 = vunpack.c.h.b16 %v1853
        %v3054 = vunpack.c.l.b16 %v1854
        %v3055 = vunpack.c.l.b16 %v1855
        %v3056 = vunpack.c.h.b16 %v1855
        %v3057 = vunpack.c.l.b16 %v1856
        %v3058 = vunpack.c.l.b16 %v1857
        %v3059 = vunpack.c.h.b16 %v1857
        %v3060 = vunpack.c.l.b16 %v1858
        %v3061 = vunpack.c.l.b16 %v1859
        %v3062 = vunpack.c.h.b16 %v1859
        %v3063 = vunpack.c.l.b16 %v1860
        %v3064 = vunpack.c.l.b16 %v1861
        %v3065 = vunpack.c.h.b16 %v1861
        %v3066 = vunpack.c.l.b16 %v1862
        %v3067 = vunpack.c.l.b16 %v1863
        %v3068 = vunpack.c.h.b16 %v1863
        %v3069 = vunpack.c.l.b16 %v1864
        %v3070 = vunpack.c.l.b16 %v1865
        %v3071 = vunpack.c.h.b16 %v1865
        %v3072 = vunpack.c.l.b16 %v1866
        %v3073 = vunpack.c.l.b16 %v1867
        %v3074 = vunpack.c.h.b16 %v1867
        %v3075 = vunpack.c.l.b16 %v1868
        %v3076 = vunpack.c.l.b16 %v1869
        %v3077 = vunpack.c.h.b16 %v1869
        %v3078 = vunpack.c.l.b16 %v1870
        %v3079 = vunpack.c.l.b16 %v1871
        %v3080 = vunpack.c.h.b16 %v1871
        %v3081 = vunpack.c.l.b16 %v1872
        %v3082 = vunpack.c.l.b16 %v1873
        %v3083 = vunpack.c.h.b16 %v1873
        %v3084 = vunpack.c.l.b16 %v1874
        %v3085 = vunpack.c.l.b16 %v1875
        %v3086 = vunpack.c.h.b16 %v1875
        %v3087 = vunpack.c.l.b16 %v1876
        %v3088 = vunpack.c.l.b16 %v1877
        %v3089 = vunpack.c.h.b16 %v1877
        %v3090 = vunpack.c.l.b16 %v1878
        %v3091 = vunpack.c.l.b16 %v1879
        %v3092 = vunpack.c.h.b16 %v1879
        %v3093 = vunpack.c.l.b16 %v1880
        %v3094 = vunpack.c.l.b16 %v1881
        %v3095 = vunpack.c.h.b16 %v1881
        %v3096 = vunpack.c.l.b16 %v1882
        %v3097 = vunpack.c.l.b16 %v1883
        %v3098 = vunpack.c.h.b16 %v1883
        %v3099 = vunpack.c.l.b16 %v1884
        %v3100 = vunpack.c.l.b16 %v1885
        %v3101 = vunpack.c.h.b16 %v1885
        %v3102 = vunpack.c.l.b16 %v1886
        %v3103 = vunpack.c.l.b16 %v1887
        %v3104 = vunpack.c.h.b16 %v1887
        %v3105 = vunpack.c.l.b16 %v1888
        %v3106 = vunpack.c.l.b16 %v1889
        %v3107 = vunpack.c.h.b16 %v1889
        %v3108 = vunpack.c.l.b16 %v1890
        %v3109 = vunpack.c.l.b16 %v1891
        %v3110 = vunpack.c.h.b16 %v1891
        %v3111 = vunpack.c.l.b16 %v1892
        %v3112 = vunpack.c.l.b16 %v1893
        %v3113 = vunpack.c.h.b16 %v1893
        %v3114 = vunpack.c.l.b16 %v1894
        %v3115 = vunpack.c.l.b16 %v1895
        %v3116 = vunpack.c.h.b16 %v1895
        %v3117 = vunpack.c.l.b16 %v1896
        %v3118 = vunpack.c.l.b16 %v1897
        %v3119 = vunpack.c.h.b16 %v1897
        %v3120 = vunpack.c.l.b16 %v1898
        %v3121 = vunpack.c.l.b16 %v1899
        %v3122 = vunpack.c.h.b16 %v1899
        %v3123 = vunpack.c.l.b16 %v1900
        %v3124 = vunpack.c.l.b16 %v1901
        %v3125 = vunpack.c.h.b16 %v1901
        %v3126 = vunpack.c.l.b16 %v1902
        %v3127 = vunpack.c.l.b16 %v1903
        %v3128 = vunpack.c.h.b16 %v1903
        %v3129 = vunpack.c.l.b16 %v1904
        %v3130 = vunpack.c.l.b16 %v1905
        %v3131 = vunpack.c.h.b16 %v1905
        %v3132 = vunpack.c.l.b16 %v1906
        %v3133 = vunpack.c.l.b16 %v1907
        %v3134 = vunpack.c.h.b16 %v1907
        %v3135 = vunpack.c.l.b16 %v1908
        %v3136 = vunpack.c.l.b16 %v1909
        %v3137 = vunpack.c.h.b16 %v1909
        %v3138 = vunpack.c.l.b16 %v1910
        %v3139 = vunpack.c.l.b16 %v1911
        %v3140 = vunpack.c.h.b16 %v1911
        %v3141 = vunpack.c.l.b16 %v1912
        %v3142 = vunpack.c.l.b16 %v1913
        %v3143 = vunpack.c.h.b16 %v1913
        %v3144 = vunpack.c.l.b16 %v1914
        %v3145 = vunpack.c.l.b16 %v1915
        %v3146 = vunpack.c.h.b16 %v1915
        %v3147 = vunpack.c.l.b16 %v1916
        %v3148 = vunpack.c.l.b16 %v1917
        %v3149 = vunpack.c.h.b16 %v1917
        %v3150 = vunpack.c.l.b16 %v1918
        %v3151 = vunpack.c.l.b16 %v1919
        %v3152 = vunpack.c.h.b16 %v1919
        %v3153 = vunpack.c.l.b16 %v1920
        %v3154 = vunpack.c.l.b16 %v1921
        %v3155 = vunpack.c.h.b16 %v1921
        %v3156 = vunpack.c.l.b16 %v1922
        %v3157 = vunpack.c.l.b16 %v1923
        %v3158 = vunpack.c.h.b16 %v1923
        %v3159 = vunpack.c.l.b16 %v1924
        %v3160 = vunpack.c.l.b16 %v1925
        %v3161 = vunpack.c.h.b16 %v1925
        %v3162 = vunpack.c.l.b16 %v1926
        %v3163 = vunpack.c.l.b16 %v1927
        %v3164 = vunpack.c.h.b16 %v1927
        %v3165 = vunpack.c.l.b16 %v1928
        %v3166 = vunpack.c.l.b16 %v1929
        %v3167 = vunpack.c.h.b16 %v1929
        %v3168 = vunpack.c.l.b16 %v1930
        %v3169 = vunpack.c.l.b16 %v1931
        %v3170 = vunpack.c.h.b16 %v1931
        %v3171 = vunpack.c.l.b16 %v1932
        %v3172 = vunpack.c.l.b16 %v1933
        %v3173 = vunpack.c.h.b16 %v1933
        %v3174 = vunpack.c.l.b16 %v1934
        %v3175 = vunpack.c.l.b16 %v1935
        %v3176 = vunpack.c.h.b16 %v1935
        %v3177 = vunpack.c.l.b16 %v1936
        %v3178 = vunpack.c.l.b16 %v1937
        %v3179 = vunpack.c.h.b16 %v1937
        %v3180 = vunpack.c.l.b16 %v1938
        %v3181 = vunpack.c.l.b16 %v1939
        %v3182 = vunpack.c.h.b16 %v1939
        %v3183 = vunpack.c.l.b16 %v1940
        %v3184 = vunpack.c.l.b16 %v1941
        %v3185 = vunpack.c.h.b16 %v1941
        %v3186 = vunpack.c.l.b16 %v1942
        %v3187 = vunpack.c.l.b16 %v1943
        %v3188 = vunpack.c.h.b16 %v1943
        %v3189 = vunpack.c.l.b16 %v1944
        %v3190 = vunpack.c.l.b16 %v1945
        %v3191 = vunpack.c.h.b16 %v1945
        %v3192 = vunpack.c.l.b16 %v1946
        %v3193 = vunpack.c.l.b16 %v1947
        %v3194 = vunpack.c.h.b16 %v1947
        %v3195 = vunpack.c.l.b16 %v1948
        %v3196 = vunpack.c.l.b16 %v1949
        %v3197 = vunpack.c.h.b16 %v1949
        %v3198 = vunpack.c.l.b16 %v1950
        %v3199 = vunpack.c.l.b16 %v1951
        %v3200 = vunpack.c.h.b16 %v1951
        %v3201 = vunpack.c.l.b16 %v1952
        %v3202 = vunpack.c.l.b16 %v1953
        %v3203 = vunpack.c.h.b16 %v1953
        %v3204 = vunpack.c.l.b16 %v1954
        %v3205 = vunpack.c.l.b16 %v1955
        %v3206 = vunpack.c.h.b16 %v1955
        %v3207 = vunpack.c.l.b16 %v1956
        %v3208 = vunpack.c.l.b16 %v1957
        %v3209 = vunpack.c.h.b16 %v1957
        %v3210 = vunpack.c.l.b16 %v1958
        %v3211 = vunpack.c.l.b16 %v1959
        %v3212 = vunpack.c.h.b16 %v1959
        %v3213 = vunpack.c.l.b16 %v1960
        %v3214 = vunpack.c.l.b16 %v1961
        %v3215 = vunpack.c.h.b16 %v1961
        %v3216 = vunpack.c.l.b16 %v1962
        %v3217 = vunpack.c.l.b16 %v1963
        %v3218 = vunpack.c.h.b16 %v1963
        %v3219 = vunpack.c.l.b16 %v1964
        %v3220 = vunpack.c.l.b16 %v1965
        %v3221 = vunpack.c.h.b16 %v1965
        %v3222 = vunpack.c.l.b16 %v1966
        %v3223 = vunpack.c.l.b16 %v1967
        %v3224 = vunpack.c.h.b16 %v1967
        %v3225 = vunpack.c.l.b16 %v1968
        %v3226 = vunpack.c.l.b16 %v1969
        %v3227 = vunpack.c.h.b16 %v1969
        %v3228 = vunpack.c.l.b16 %v1970
        %v3229 = vunpack.c.l.b16 %v1971
        %v3230 = vunpack.c.h.b16 %v1971
        %v3231 = vunpack.c.l.b16 %v1972
        %v3232 = vunpack.c.l.b16 %v1973
        %v3233 = vunpack.c.h.b16 %v1973
        %v3234 = vunpack.c.l.b16 %v1974
        %v3235 = vunpack.c.l.b16 %v1975
        %v3236 = vunpack.c.h.b16 %v1975
        %v3237 = vunpack.c.l.b16 %v1976
        %v3238 = vunpack.c.l.b16 %v1977
        %v3239 = vunpack.c.h.b16 %v1977
        %v3240 = vunpack.c.l.b16 %v1978
        %v3241 = vunpack.c.l.b16 %v1979
        %v3242 = vunpack.c.h.b16 %v1979
        %v3243 = vunpack.c.l.b16 %v1980
        %v3244 = vunpack.c.l.b16 %v1981
        %v3245 = vunpack.c.h.b16 %v1981
        %v3246 = vunpack.c.l.b16 %v1982
        %v3247 = vunpack.c.l.b16 %v1983
        %v3248 = vunpack.c.h.b16 %v1983
        %v3249 = vunpack.c.l.b16 %v1984
        %v3250 = vunpack.c.l.b16 %v1985
        %v3251 = vunpack.c.h.b16 %v1985
        %v3252 = vunpack.c.l.b16 %v1986
        %v3253 = vunpack.c.l.b16 %v1987
        %v3254 = vunpack.c.h.b16 %v1987
        %v3255 = vunpack.c.l.b16 %v1988
        %v3256 = vunpack.c.l.b16 %v1989
        %v3257 = vunpack.c.h.b16 %v1989
        %v3258 = vunpack.c.l.b16 %v1990
        %v3259 = vunpack.c.l.b16 %v1991
        %v3260 = vunpack.c.h.b16 %v1991
        %v3261 = vunpack.c.l.b16 %v1992
        %v3262 = vunpack.c.l.b16 %v1993
        %v3263 = vunpack.c.h.b16 %v1993
        %v3264 = vunpack.c.l.b16 %v1994
        %v3265 = vunpack.c.l.b16 %v1995
        %v3266 = vunpack.c.h.b16 %v1995
        %v3267 = vunpack.c.l.b16 %v1996
        %v3268 = vunpack.c.l.b16 %v1997
        %v3269 = vunpack.c.h.b16 %v1997
        %v3270 = vunpack.c.l.b16 %v1998
        %v3271 = vunpack.c.l.b16 %v1999
        %v3272 = vunpack.c.h.b16 %v1999
        %v3273 = vunpack.c.l.b16 %v2000
        %v3274 = vunpack.c.l.b16 %v2001
        %v3275 = vunpack.c.h.b16 %v2001
        %v3276 = vunpack.c.l.b16 %v2002
        %v3277 = vunpack.c.l.b16 %v2003
        %v3278 = vunpack.c.h.b16 %v2003
        %v3279 = vunpack.c.l.b16 %v2004
        %v3280 = vunpack.c.l.b16 %v2005
        %v3281 = vunpack.c.h.b16 %v2005
        %v3282 = vunpack.c.l.b16 %v2006
        %v3283 = vunpack.c.l.b16 %v2007
        %v3284 = vunpack.c.h.b16 %v2007
        %v3285 = vunpack.c.l.b16 %v2008
        %v3286 = vunpack.c.l.b16 %v2009
        %v3287 = vunpack.c.h.b16 %v2009
        %v3288 = vunpack.c.l.b16 %v2010
        %v3289 = vunpack.c.l.b16 %v2011
        %v3290 = vunpack.c.h.b16 %v2011
        %v3291 = vunpack.c.l.b16 %v2012
        %v3292 = vunpack.c.l.b16 %v2013
        %v3293 = vunpack.c.h.b16 %v2013
        %v3294 = vunpack.c.l.b16 %v2014
        %v3295 = vunpack.c.l.b16 %v2015
        %v3296 = vunpack.c.h.b16 %v2015
        %v3297 = vunpack.c.l.b16 %v2016
        %v3298 = vunpack.c.l.b16 %v2017
        %v3299 = vunpack.c.h.b16 %v2017
        %v3300 = vunpack.c.l.b16 %v2018
        %v3301 = vunpack.c.l.b16 %v2019
        %v3302 = vunpack.c.h.b16 %v2019
        %v3303 = vunpack.c.l.b16 %v2020
        %v3304 = vunpack.c.l.b16 %v2021
        %v3305 = vunpack.c.h.b16 %v2021
        %v3306 = vunpack.c.l.b16 %v2022
        %v3307 = vunpack.c.l.b16 %v2023
        %v3308 = vunpack.c.h.b16 %v2023
        %v3309 = vunpack.c.l.b16 %v2024
        %v3310 = vunpack.c.l.b16 %v2025
        %v3311 = vunpack.c.h.b16 %v2025
        %v3312 = vunpack.c.l.b16 %v2026
        %v3313 = vunpack.c.l.b16 %v2027
        %v3314 = vunpack.c.h.b16 %v2027
        %v3315 = vunpack.c.l.b16 %v2028
        %v3316 = vunpack.c.l.b16 %v2029
        %v3317 = vunpack.c.h.b16 %v2029
        %v3318 = vunpack.c.l.b16 %v2030
        %v3319 = vunpack.c.l.b16 %v2031
        %v3320 = vunpack.c.h.b16 %v2031
        %v3321 = vunpack.c.l.b16 %v2032
        %v3322 = vunpack.c.l.b16 %v2033
        %v3323 = vunpack.c.h.b16 %v2033
        %v3324 = vunpack.c.l.b16 %v2034
        %v3325 = vunpack.c.l.b16 %v2035
        %v3326 = vunpack.c.h.b16 %v2035
        %v3327 = vunpack.c.l.b16 %v2036
        %v3328 = vunpack.c.l.b16 %v2037
        %v3329 = vunpack.c.h.b16 %v2037
        %v3330 = vunpack.c.l.b16 %v2038
        %v3331 = vunpack.c.l.b16 %v2039
        %v3332 = vunpack.c.h.b16 %v2039
        %v3333 = vunpack.c.l.b16 %v2040
        %v3334 = vunpack.c.l.b16 %v2041
        %v3335 = vunpack.c.h.b16 %v2041
        %v3336 = vunpack.c.l.b16 %v2042
        %v3337 = vunpack.c.l.b16 %v2043
        %v3338 = vunpack.c.h.b16 %v2043
        %v3339 = vunpack.c.l.b16 %v2044
        %v3340 = vunpack.c.l.b16 %v2045
        %v3341 = vunpack.c.h.b16 %v2045
        %v3342 = vunpack.c.l.b16 %v2046
        %v3343 = vunpack.c.l.b16 %v2047
        %v3344 = vunpack.c.h.b16 %v2047
        %v3345 = vunpack.c.l.b16 %v2048
        %v3346 = vunpack.c.l.b16 %v2049
        %v3347 = vunpack.c.h.b16 %v2049
        %v3348 = vunpack.c.l.b16 %v2050
        %v3349 = vunpack.c.l.b16 %v2051
        %v3350 = vunpack.c.h.b16 %v2051
        %v3351 = vunpack.c.l.b16 %v2052
        %v3352 = vunpack.c.l.b16 %v2053
        %v3353 = vunpack.c.h.b16 %v2053
        %v3354 = vunpack.c.l.b16 %v2054
        %v3355 = vunpack.c.l.b16 %v2055
        %v3356 = vunpack.c.h.b16 %v2055
        %v3357 = vunpack.c.l.b16 %v2056
        %v3358 = vunpack.c.l.b16 %v2057
        %v3359 = vunpack.c.h.b16 %v2057
        %v3360 = vunpack.c.l.b16 %v2058
        %v3361 = vunpack.c.l.b16 %v2059
        %v3362 = vunpack.c.h.b16 %v2059
        %v3363 = vunpack.c.l.b16 %v2060
        %v3364 = vunpack.c.l.b16 %v2061
        %v3365 = vunpack.c.h.b16 %v2061
        %v3366 = vunpack.c.l.b16 %v2062
        %v3367 = vunpack.c.l.b16 %v2063
        %v3368 = vunpack.c.h.b16 %v2063
        %v3369 = vunpack.c.l.b16 %v2064
        %v3370 = vunpack.c.l.b16 %v2065
        %v3371 = vunpack.c.h.b16 %v2065
        %v3372 = vunpack.c.l.b16 %v2066
        %v3373 = vunpack.c.l.b16 %v2067
        %v3374 = vunpack.c.h.b16 %v2067
        %v3375 = vunpack.c.l.b16 %v2068
        %v3376 = vunpack.c.l.b16 %v2069
        %v3377 = vunpack.c.h.b16 %v2069
        %v3378 = vunpack.c.l.b16 %v2070
        %v3379 = vunpack.c.l.b16 %v2071
        %v3380 = vunpack.c.h.b16 %v2071
        %v3381 = vunpack.c.l.b16 %v2072
        %v3382 = vunpack.c.l.b16 %v2073
        %v3383 = vunpack.c.h.b16 %v2073
        %v3384 = vunpack.c.l.b16 %v2074
        %v3385 = vunpack.c.l.b16 %v2075
        %v3386 = vunpack.c.h.b16 %v2075
        %v3387 = vunpack.c.l.b16 %v2076
        %v3388 = vunpack.c.l.b16 %v2077
        %v3389 = vunpack.c.h.b16 %v2077
        %v3390 = vunpack.c.l.b16 %v2078
        %v3391 = vunpack.c.l.b16 %v2079
        %v3392 = vunpack.c.h.b16 %v2079
        %v3393 = vunpack.c.l.b16 %v2080
        %v3394 = vunpack.c.l.b16 %v2081
        %v3395 = vunpack.c.h.b16 %v2081
        %v3396 = vunpack.c.l.b16 %v2082
        %v3397 = vunpack.c.l.b16 %v2083
        %v3398 = vunpack.c.h.b16 %v2083
        %v3399 = vunpack.c.l.b16 %v2084
        %v3400 = vunpack.c.l.b16 %v2085
        %v3401 = vunpack.c.h.b16 %v2085
        %v3402 = vunpack.c.l.b16 %v2086
        %v3403 = vunpack.c.l.b16 %v2087
        %v3404 = vunpack.c.h.b16 %v2087
        %v3405 = vunpack.c.l.b16 %v2088
        %v3406 = vunpack.c.l.b16 %v2089
        %v3407 = vunpack.c.h.b16 %v2089
        %v3408 = vunpack.c.l.b16 %v2090
        %v3409 = vunpack.c.l.b16 %v2091
        %v3410 = vunpack.c.h.b16 %v2091
        %v3411 = vunpack.c.l.b16 %v2092
        %v3412 = vunpack.c.l.b16 %v2093
        %v3413 = vunpack.c.h.b16 %v2093
        %v3414 = vunpack.c.l.b16 %v2094
        %v3415 = vunpack.c.l.b16 %v2095
        %v3416 = vunpack.c.h.b16 %v2095
        %v3417 = vunpack.c.l.b16 %v2096
        %v3418 = vunpack.c.l.b16 %v2097
        %v3419 = vunpack.c.h.b16 %v2097
        %v3420 = vunpack.c.l.b16 %v2098
        %v3421 = vunpack.c.l.b16 %v2099
        %v3422 = vunpack.c.h.b16 %v2099
        %v3423 = vunpack.c.l.b16 %v2100
        %v3424 = vunpack.c.l.b16 %v2101
        %v3425 = vunpack.c.h.b16 %v2101
        %v3426 = vunpack.c.l.b16 %v2102
        %v3427 = vunpack.c.l.b16 %v2103
        %v3428 = vunpack.c.h.b16 %v2103
        %v3429 = vunpack.c.l.b16 %v2104
        %v3430 = vunpack.c.l.b16 %v2105
        %v3431 = vunpack.c.h.b16 %v2105
        %v3432 = vunpack.c.l.b16 %v2106
        %v3433 = vunpack.c.l.b16 %v2107
        %v3434 = vunpack.c.h.b16 %v2107
        %v3435 = vunpack.c.l.b16 %v2108
        %v3436 = vunpack.c.l.b16 %v2109
        %v3437 = vunpack.c.h.b16 %v2109
        %v3438 = vunpack.c.l.b16 %v2110
        %v3439 = vunpack.c.l.b16 %v2111
        %v3440 = vunpack.c.h.b16 %v2111
        %v3441 = vunpack.c.l.b16 %v2112
        %v3442 = vunpack.c.l.b16 %v2113
        %v3443 = vunpack.c.h.b16 %v2113
        %v3444 = vunpack.c.l.b16 %v2114
        %v3445 = vunpack.c.l.b16 %v2115
        %v3446 = vunpack.c.h.b16 %v2115
        %v3447 = vunpack.c.l.b16 %v2116
        %v3448 = vunpack.c.l.b16 %v2117
        %v3449 = vunpack.c.h.b16 %v2117
        %v3450 = vunpack.c.l.b16 %v2118
        %v3451 = vunpack.c.l.b16 %v2119
        %v3452 = vunpack.c.h.b16 %v2119
        %v3453 = vunpack.c.l.b16 %v2120
        %v3454 = vunpack.c.l.b16 %v2121
        %v3455 = vunpack.c.h.b16 %v2121
        %v3456 = vunpack.c.l.b16 %v2122
        %v3457 = vunpack.c.l.b16 %v2123
        %v3458 = vunpack.c.h.b16 %v2123
        %v3459 = vunpack.c.l.b16 %v2124
        %v3460 = vunpack.c.l.b16 %v2125
        %v3461 = vunpack.c.h.b16 %v2125
        %v3462 = vunpack.c.l.b16 %v2126
        %v3463 = vpack.c.b16 %v2698, %v2695
        %v3464 = vpack.c.b16 %v2699, %v2696
        %v3465 = vpack.c.b16 %v2700, %v2697
        %v3466 = vpack.c.b16 %v2704, %v2701
        %v3467 = vpack.c.b16 %v2705, %v2702
        %v3468 = vpack.c.b16 %v2706, %v2703
        %v3469 = vpack.c.b16 %v2710, %v2707
        %v3470 = vpack.c.b16 %v2711, %v2708
        %v3471 = vpack.c.b16 %v2712, %v2709
        %v3472 = vpack.c.b16 %v2716, %v2713
        %v3473 = vpack.c.b16 %v2717, %v2714
        %v3474 = vpack.c.b16 %v2718, %v2715
        %v3475 = vpack.c.b16 %v2722, %v2719
        %v3476 = vpack.c.b16 %v2723, %v2720
        %v3477 = vpack.c.b16 %v2724, %v2721
        %v3478 = vpack.c.b16 %v2728, %v2725
        %v3479 = vpack.c.b16 %v2729, %v2726
        %v3480 = vpack.c.b16 %v2730, %v2727
        %v3481 = vpack.c.b16 %v2734, %v2731
        %v3482 = vpack.c.b16 %v2735, %v2732
        %v3483 = vpack.c.b16 %v2736, %v2733
        %v3484 = vpack.c.b16 %v2740, %v2737
        %v3485 = vpack.c.b16 %v2741, %v2738
        %v3486 = vpack.c.b16 %v2742, %v2739
        %v3487 = vpack.c.b16 %v2746, %v2743
        %v3488 = vpack.c.b16 %v2747, %v2744
        %v3489 = vpack.c.b16 %v2748, %v2745
        %v3490 = vpack.c.b16 %v2752, %v2749
        %v3491 = vpack.c.b16 %v2753, %v2750
        %v3492 = vpack.c.b16 %v2754, %v2751
        %v3493 = vpack.c.b16 %v2758, %v2755
        %v3494 = vpack.c.b16 %v2759, %v2756
        %v3495 = vpack.c.b16 %v2760, %v2757
        %v3496 = vpack.c.b16 %v2764, %v2761
        %v3497 = vpack.c.b16 %v2765, %v2762
        %v3498 = vpack.c.b16 %v2766, %v2763
        %v3499 = vpack.c.b16 %v2770, %v2767
        %v3500 = vpack.c.b16 %v2771, %v2768
        %v3501 = vpack.c.b16 %v2772, %v2769
        %v3502 = vpack.c.b16 %v2776, %v2773
        %v3503 = vpack.c.b16 %v2777, %v2774
        %v3504 = vpack.c.b16 %v2778, %v2775
        %v3505 = vpack.c.b16 %v2782, %v2779
        %v3506 = vpack.c.b16 %v2783, %v2780
        %v3507 = vpack.c.b16 %v2784, %v2781
        %v3508 = vpack.c.b16 %v2788, %v2785
        %v3509 = vpack.c.b16 %v2789, %v2786
        %v3510 = vpack.c.b16 %v2790, %v2787
        %v3511 = vpack.c.b16 %v2794, %v2791
        %v3512 = vpack.c.b16 %v2795, %v2792
        %v3513 = vpack.c.b16 %v2796, %v2793
        %v3514 = vpack.c.b16 %v2800, %v2797
        %v3515 = vpack.c.b16 %v2801, %v2798
        %v3516 = vpack.c.b16 %v2802, %v2799
        %v3517 = vpack.c.b16 %v2806, %v2803
        %v3518 = vpack.c.b16 %v2807, %v2804
        %v3519 = vpack.c.b16 %v2808, %v2805
        %v3520 = vpack.c.b16 %v2812, %v2809
        %v3521 = vpack.c.b16 %v2813, %v2810
        %v3522 = vpack.c.b16 %v2814, %v2811
        %v3523 = vpack.c.b16 %v2818, %v2815
        %v3524 = vpack.c.b16 %v2819, %v2816
        %v3525 = vpack.c.b16 %v2820, %v2817
        %v3526 = vpack.c.b16 %v2824, %v2821
        %v3527 = vpack.c.b16 %v2825, %v2822
        %v3528 = vpack.c.b16 %v2826, %v2823
        %v3529 = vpack.c.b16 %v2830, %v2827
        %v3530 = vpack.c.b16 %v2831, %v2828
        %v3531 = vpack.c.b16 %v2832, %v2829
        %v3532 = vpack.c.b16 %v2836, %v2833
        %v3533 = vpack.c.b16 %v2837, %v2834
        %v3534 = vpack.c.b16 %v2838, %v2835
        %v3535 = vpack.c.b16 %v2842, %v2839
        %v3536 = vpack.c.b16 %v2843, %v2840
        %v3537 = vpack.c.b16 %v2844, %v2841
        %v3538 = vpack.c.b16 %v2848, %v2845
        %v3539 = vpack.c.b16 %v2849, %v2846
        %v3540 = vpack.c.b16 %v2850, %v2847
        %v3541 = vpack.c.b16 %v2854, %v2851
        %v3542 = vpack.c.b16 %v2855, %v2852
        %v3543 = vpack.c.b16 %v2856, %v2853
        %v3544 = vpack.c.b16 %v2860, %v2857
        %v3545 = vpack.c.b16 %v2861, %v2858
        %v3546 = vpack.c.b16 %v2862, %v2859
        %v3547 = vpack.c.b16 %v2866, %v2863
        %v3548 = vpack.c.b16 %v2867, %v2864
        %v3549 = vpack.c.b16 %v2868, %v2865
        %v3550 = vpack.c.b16 %v2872, %v2869
        %v3551 = vpack.c.b16 %v2873, %v2870
        %v3552 = vpack.c.b16 %v2874, %v2871
        %v3553 = vpack.c.b16 %v2878, %v2875
        %v3554 = vpack.c.b16 %v2879, %v2876
        %v3555 = vpack.c.b16 %v2880, %v2877
        %v3556 = vpack.c.b16 %v2884, %v2881
        %v3557 = vpack.c.b16 %v2885, %v2882
        %v3558 = vpack.c.b16 %v2886, %v2883
        %v3559 = vpack.c.b16 %v2890, %v2887
        %v3560 = vpack.c.b16 %v2891, %v2888
        %v3561 = vpack.c.b16 %v2892, %v2889
        %v3562 = vpack.c.b16 %v2896, %v2893
        %v3563 = vpack.c.b16 %v2897, %v2894
        %v3564 = vpack.c.b16 %v2898, %v2895
        %v3565 = vpack.c.b16 %v2902, %v2899
        %v3566 = vpack.c.b16 %v2903, %v2900
        %v3567 = vpack.c.b16 %v2904, %v2901
        %v3568 = vpack.c.b16 %v2908, %v2905
        %v3569 = vpack.c.b16 %v2909, %v2906
        %v3570 = vpack.c.b16 %v2910, %v2907
        %v3571 = vpack.c.b16 %v2914, %v2911
        %v3572 = vpack.c.b16 %v2915, %v2912
        %v3573 = vpack.c.b16 %v2916, %v2913
        %v3574 = vpack.c.b16 %v2920, %v2917
        %v3575 = vpack.c.b16 %v2921, %v2918
        %v3576 = vpack.c.b16 %v2922, %v2919
        %v3577 = vpack.c.b16 %v2926, %v2923
        %v3578 = vpack.c.b16 %v2927, %v2924
        %v3579 = vpack.c.b16 %v2928, %v2925
        %v3580 = vpack.c.b16 %v2932, %v2929
        %v3581 = vpack.c.b16 %v2933, %v2930
        %v3582 = vpack.c.b16 %v2934, %v2931
        %v3583 = vpack.c.b16 %v2938, %v2935
        %v3584 = vpack.c.b16 %v2939, %v2936
        %v3585 = vpack.c.b16 %v2940, %v2937
        %v3586 = vpack.c.b16 %v2944, %v2941
        %v3587 = vpack.c.b16 %v2945, %v2942
        %v3588 = vpack.c.b16 %v2946, %v2943
        %v3589 = vpack.c.b16 %v2950, %v2947
        %v3590 = vpack.c.b16 %v2951, %v2948
        %v3591 = vpack.c.b16 %v2952, %v2949
        %v3592 = vpack.c.b16 %v2956, %v2953
        %v3593 = vpack.c.b16 %v2957, %v2954
        %v3594 = vpack.c.b16 %v2958, %v2955
        %v3595 = vpack.c.b16 %v2962, %v2959
        %v3596 = vpack.c.b16 %v2963, %v2960
        %v3597 = vpack.c.b16 %v2964, %v2961
        %v3598 = vpack.c.b16 %v2968, %v2965
        %v3599 = vpack.c.b16 %v2969, %v2966
        %v3600 = vpack.c.b16 %v2970, %v2967
        %v3601 = vpack.c.b16 %v2974, %v2971
        %v3602 = vpack.c.b16 %v2975, %v2972
        %v3603 = vpack.c.b16 %v2976, %v2973
        %v3604 = vpack.c.b16 %v2980, %v2977
        %v3605 = vpack.c.b16 %v2981, %v2978
        %v3606 = vpack.c.b16 %v2982, %v2979
        %v3607 = vpack.c.b16 %v2986, %v2983
        %v3608 = vpack.c.b16 %v2987, %v2984
        %v3609 = vpack.c.b16 %v2988, %v2985
        %v3610 = vpack.c.b16 %v2992, %v2989
        %v3611 = vpack.c.b16 %v2993, %v2990
        %v3612 = vpack.c.b16 %v2994, %v2991
        %v3613 = vpack.c.b16 %v2998, %v2995
        %v3614 = vpack.c.b16 %v2999, %v2996
        %v3615 = vpack.c.b16 %v3000, %v2997
        %v3616 = vpack.c.b16 %v3004, %v3001
        %v3617 = vpack.c.b16 %v3005, %v3002
        %v3618 = vpack.c.b16 %v3006, %v3003
        %v3619 = vpack.c.b16 %v3010, %v3007
        %v3620 = vpack.c.b16 %v3011, %v3008
        %v3621 = vpack.c.b16 %v3012, %v3009
        %v3622 = vpack.c.b16 %v3016, %v3013
        %v3623 = vpack.c.b16 %v3017, %v3014
        %v3624 = vpack.c.b16 %v3018, %v3015
        %v3625 = vpack.c.b16 %v3022, %v3019
        %v3626 = vpack.c.b16 %v3023, %v3020
        %v3627 = vpack.c.b16 %v3024, %v3021
        %v3628 = vpack.c.b16 %v3028, %v3025
        %v3629 = vpack.c.b16 %v3029, %v3026
        %v3630 = vpack.c.b16 %v3030, %v3027
        %v3631 = vpack.c.b16 %v3034, %v3031
        %v3632 = vpack.c.b16 %v3035, %v3032
        %v3633 = vpack.c.b16 %v3036, %v3033
        %v3634 = vpack.c.b16 %v3040, %v3037
        %v3635 = vpack.c.b16 %v3041, %v3038
        %v3636 = vpack.c.b16 %v3042, %v3039
        %v3637 = vpack.c.b16 %v3046, %v3043
        %v3638 = vpack.c.b16 %v3047, %v3044
        %v3639 = vpack.c.b16 %v3048, %v3045
        %v3640 = vpack.c.b16 %v3052, %v3049
        %v3641 = vpack.c.b16 %v3053, %v3050
        %v3642 = vpack.c.b16 %v3054, %v3051
        %v3643 = vpack.c.b16 %v3058, %v3055
        %v3644 = vpack.c.b16 %v3059, %v3056
        %v3645 = vpack.c.b16 %v3060, %v3057
        %v3646 = vpack.c.b16 %v3064, %v3061
        %v3647 = vpack.c.b16 %v3065, %v3062
        %v3648 = vpack.c.b16 %v3066, %v3063
        %v3649 = vpack.c.b16 %v3070, %v3067
        %v3650 = vpack.c.b16 %v3071, %v3068
        %v3651 = vpack.c.b16 %v3072, %v3069
        %v3652 = vpack.c.b16 %v3076, %v3073
        %v3653 = vpack.c.b16 %v3077, %v3074
        %v3654 = vpack.c.b16 %v3078, %v3075
        %v3655 = vpack.c.b16 %v3082, %v3079
        %v3656 = vpack.c.b16 %v3083, %v3080
        %v3657 = vpack.c.b16 %v3084, %v3081
        %v3658 = vpack.c.b16 %v3088, %v3085
        %v3659 = vpack.c.b16 %v3089, %v3086
        %v3660 = vpack.c.b16 %v3090, %v3087
        %v3661 = vpack.c.b16 %v3094, %v3091
        %v3662 = vpack.c.b16 %v3095, %v3092
        %v3663 = vpack.c.b16 %v3096, %v3093
        %v3664 = vpack.c.b16 %v3100, %v3097
        %v3665 = vpack.c.b16 %v3101, %v3098
        %v3666 = vpack.c.b16 %v3102, %v3099
        %v3667 = vpack.c.b16 %v3106, %v3103
        %v3668 = vpack.c.b16 %v3107, %v3104
        %v3669 = vpack.c.b16 %v3108, %v3105
        %v3670 = vpack.c.b16 %v3112, %v3109
        %v3671 = vpack.c.b16 %v3113, %v3110
        %v3672 = vpack.c.b16 %v3114, %v3111
        %v3673 = vpack.c.b16 %v3118, %v3115
        %v3674 = vpack.c.b16 %v3119, %v3116
        %v3675 = vpack.c.b16 %v3120, %v3117
        %v3676 = vpack.c.b16 %v3124, %v3121
        %v3677 = vpack.c.b16 %v3125, %v3122
        %v3678 = vpack.c.b16 %v3126, %v3123
        %v3679 = vpack.c.b16 %v3130, %v3127
        %v3680 = vpack.c.b16 %v3131, %v3128
        %v3681 = vpack.c.b16 %v3132, %v3129
        %v3682 = vpack.c.b16 %v3136, %v3133
        %v3683 = vpack.c.b16 %v3137, %v3134
        %v3684 = vpack.c.b16 %v3138, %v3135
        %v3685 = vpack.c.b16 %v3142, %v3139
        %v3686 = vpack.c.b16 %v3143, %v3140
        %v3687 = vpack.c.b16 %v3144, %v3141
        %v3688 = vpack.c.b16 %v3148, %v3145
        %v3689 = vpack.c.b16 %v3149, %v3146
        %v3690 = vpack.c.b16 %v3150, %v3147
        %v3691 = vpack.c.b16 %v3154, %v3151
        %v3692 = vpack.c.b16 %v3155, %v3152
        %v3693 = vpack.c.b16 %v3156, %v3153
        %v3694 = vpack.c.b16 %v3160, %v3157
        %v3695 = vpack.c.b16 %v3161, %v3158
        %v3696 = vpack.c.b16 %v3162, %v3159
        %v3697 = vpack.c.b16 %v3166, %v3163
        %v3698 = vpack.c.b16 %v3167, %v3164
        %v3699 = vpack.c.b16 %v3168, %v3165
        %v3700 = vpack.c.b16 %v3172, %v3169
        %v3701 = vpack.c.b16 %v3173, %v3170
        %v3702 = vpack.c.b16 %v3174, %v3171
        %v3703 = vpack.c.b16 %v3178, %v3175
        %v3704 = vpack.c.b16 %v3179, %v3176
        %v3705 = vpack.c.b16 %v3180, %v3177
        %v3706 = vpack.c.b16 %v3184, %v3181
        %v3707 = vpack.c.b16 %v3185, %v3182
        %v3708 = vpack.c.b16 %v3186, %v3183
        %v3709 = vpack.c.b16 %v3190, %v3187
        %v3710 = vpack.c.b16 %v3191, %v3188
        %v3711 = vpack.c.b16 %v3192, %v3189
        %v3712 = vpack.c.b16 %v3196, %v3193
        %v3713 = vpack.c.b16 %v3197, %v3194
        %v3714 = vpack.c.b16 %v3198, %v3195
        %v3715 = vpack.c.b16 %v3202, %v3199
        %v3716 = vpack.c.b16 %v3203, %v3200
        %v3717 = vpack.c.b16 %v3204, %v3201
        %v3718 = vpack.c.b16 %v3208, %v3205
        %v3719 = vpack.c.b16 %v3209, %v3206
        %v3720 = vpack.c.b16 %v3210, %v3207
        %v3721 = vpack.c.b16 %v3214, %v3211
        %v3722 = vpack.c.b16 %v3215, %v3212
        %v3723 = vpack.c.b16 %v3216, %v3213
        %v3724 = vpack.c.b16 %v3220, %v3217
        %v3725 = vpack.c.b16 %v3221, %v3218
        %v3726 = vpack.c.b16 %v3222, %v3219
        %v3727 = vpack.c.b16 %v3226, %v3223
        %v3728 = vpack.c.b16 %v3227, %v3224
        %v3729 = vpack.c.b16 %v3228, %v3225
        %v3730 = vpack.c.b16 %v3232, %v3229
        %v3731 = vpack.c.b16 %v3233, %v3230
        %v3732 = vpack.c.b16 %v3234, %v3231
        %v3733 = vpack.c.b16 %v3238, %v3235
        %v3734 = vpack.c.b16 %v3239, %v3236
        %v3735 = vpack.c.b16 %v3240, %v3237
        %v3736 = vpack.c.b16 %v3244, %v3241
        %v3737 = vpack.c.b16 %v3245, %v3242
        %v3738 = vpack.c.b16 %v3246, %v3243
        %v3739 = vpack.c.b16 %v3250, %v3247
        %v3740 = vpack.c.b16 %v3251, %v3248
        %v3741 = vpack.c.b16 %v3252, %v3249
        %v3742 = vpack.c.b16 %v3256, %v3253
        %v3743 = vpack.c.b16 %v3257, %v3254
        %v3744 = vpack.c.b16 %v3258, %v3255
        %v3745 = vpack.c.b16 %v3262, %v3259
        %v3746 = vpack.c.b16 %v3263, %v3260
        %v3747 = vpack.c.b16 %v3264, %v3261
        %v3748 = vpack.c.b16 %v3268, %v3265
        %v3749 = vpack.c.b16 %v3269, %v3266
        %v3750 = vpack.c.b16 %v3270, %v3267
        %v3751 = vpack.c.b16 %v3274, %v3271
        %v3752 = vpack.c.b16 %v3275, %v3272
        %v3753 = vpack.c.b16 %v3276, %v3273
        %v3754 = vpack.c.b16 %v3280, %v3277
        %v3755 = vpack.c.b16 %v3281, %v3278
        %v3756 = vpack.c.b16 %v3282, %v3279
        %v3757 = vpack.c.b16 %v3286, %v3283
        %v3758 = vpack.c.b16 %v3287, %v3284
        %v3759 = vpack.c.b16 %v3288, %v3285
        %v3760 = vpack.c.b16 %v3292, %v3289
        %v3761 = vpack.c.b16 %v3293, %v3290
        %v3762 = vpack.c.b16 %v3294, %v3291
        %v3763 = vpack.c.b16 %v3298, %v3295
        %v3764 = vpack.c.b16 %v3299, %v3296
        %v3765 = vpack.c.b16 %v3300, %v3297
        %v3766 = vpack.c.b16 %v3304, %v3301
        %v3767 = vpack.c.b16 %v3305, %v3302
        %v3768 = vpack.c.b16 %v3306, %v3303
        %v3769 = vpack.c.b16 %v3310, %v3307
        %v3770 = vpack.c.b16 %v3311, %v3308
        %v3771 = vpack.c.b16 %v3312, %v3309
        %v3772 = vpack.c.b16 %v3316, %v3313
        %v3773 = vpack.c.b16 %v3317, %v3314
        %v3774 = vpack.c.b16 %v3318, %v3315
        %v3775 = vpack.c.b16 %v3322, %v3319
        %v3776 = vpack.c.b16 %v3323, %v3320
        %v3777 = vpack.c.b16 %v3324, %v3321
        %v3778 = vpack.c.b16 %v3328, %v3325
        %v3779 = vpack.c.b16 %v3329, %v3326
        %v3780 = vpack.c.b16 %v3330, %v3327
        %v3781 = vpack.c.b16 %v3334, %v3331
        %v3782 = vpack.c.b16 %v3335, %v3332
        %v3783 = vpack.c.b16 %v3336, %v3333
        %v3784 = vpack.c.b16 %v3340, %v3337
        %v3785 = vpack.c.b16 %v3341, %v3338
        %v3786 = vpack.c.b16 %v3342, %v3339
        %v3787 = vpack.c.b16 %v3346, %v3343
        %v3788 = vpack.c.b16 %v3347, %v3344
        %v3789 = vpack.c.b16 %v3348, %v3345
        %v3790 = vpack.c.b16 %v3352, %v3349
        %v3791 = vpack.c.b16 %v3353, %v3350
        %v3792 = vpack.c.b16 %v3354, %v3351
        %v3793 = vpack.c.b16 %v3358, %v3355
        %v3794 = vpack.c.b16 %v3359, %v3356
        %v3795 = vpack.c.b16 %v3360, %v3357
        %v3796 = vpack.c.b16 %v3364, %v3361
        %v3797 = vpack.c.b16 %v3365, %v3362
        %v3798 = vpack.c.b16 %v3366, %v3363
        %v3799 = vpack.c.b16 %v3370, %v3367
        %v3800 = vpack.c.b16 %v3371, %v3368
        %v3801 = vpack.c.b16 %v3372, %v3369
        %v3802 = vpack.c.b16 %v3376, %v3373
        %v3803 = vpack.c.b16 %v3377, %v3374
        %v3804 = vpack.c.b16 %v3378, %v3375
        %v3805 = vpack.c.b16 %v3382, %v3379
        %v3806 = vpack.c.b16 %v3383, %v3380
        %v3807 = vpack.c.b16 %v3384, %v3381
        %v3808 = vpack.c.b16 %v3388, %v3385
        %v3809 = vpack.c.b16 %v3389, %v3386
        %v3810 = vpack.c.b16 %v3390, %v3387
        %v3811 = vpack.c.b16 %v3394, %v3391
        %v3812 = vpack.c.b16 %v3395, %v3392
        %v3813 = vpack.c.b16 %v3396, %v3393
        %v3814 = vpack.c.b16 %v3400, %v3397
        %v3815 = vpack.c.b16 %v3401, %v3398
        %v3816 = vpack.c.b16 %v3402, %v3399
        %v3817 = vpack.c.b16 %v3406, %v3403
        %v3818 = vpack.c.b16 %v3407, %v3404
        %v3819 = vpack.c.b16 %v3408, %v3405
        %v3820 = vpack.c.b16 %v3412, %v3409
        %v3821 = vpack.c.b16 %v3413, %v3410
        %v3822 = vpack.c.b16 %v3414, %v3411
        %v3823 = vpack.c.b16 %v3418, %v3415
        %v3824 = vpack.c.b16 %v3419, %v3416
        %v3825 = vpack.c.b16 %v3420, %v3417
        %v3826 = vpack.c.b16 %v3424, %v3421
        %v3827 = vpack.c.b16 %v3425, %v3422
        %v3828 = vpack.c.b16 %v3426, %v3423
        %v3829 = vpack.c.b16 %v3430, %v3427
        %v3830 = vpack.c.b16 %v3431, %v3428
        %v3831 = vpack.c.b16 %v3432, %v3429
        %v3832 = vpack.c.b16 %v3436, %v3433
        %v3833 = vpack.c.b16 %v3437, %v3434
        %v3834 = vpack.c.b16 %v3438, %v3435
        %v3835 = vpack.c.b16 %v3442, %v3439
        %v3836 = vpack.c.b16 %v3443, %v3440
        %v3837 = vpack.c.b16 %v3444, %v3441
        %v3838 = vpack.c.b16 %v3448, %v3445
        %v3839 = vpack.c.b16 %v3449, %v3446
        %v3840 = vpack.c.b16 %v3450, %v3447
        %v3841 = vpack.c.b16 %v3454, %v3451
        %v3842 = vpack.c.b16 %v3455, %v3452
        %v3843 = vpack.c.b16 %v3456, %v3453
        %v3844 = vpack.c.b16 %v3460, %v3457
        %v3845 = vpack.c.b16 %v3461, %v3458
        %v3846 = vpack.c.b16 %v3462, %v3459
        %v4147 = vunpack.c.l.b16 %v2127
        %v4148 = vunpack.c.h.b16 %v2127
        %v4149 = vunpack.c.l.b16 %v2128
        %v4150 = vunpack.c.h.b16 %v2128
        %v4151 = vunpack.c.l.b16 %v2129
        %v4152 = vunpack.c.h.b16 %v2129
        %v4153 = vunpack.c.l.b16 %v2130
        %v4154 = vunpack.c.h.b16 %v2130
        %v4155 = vunpack.c.l.b16 %v2131
        %v4156 = vunpack.c.h.b16 %v2131
        %v4157 = vunpack.c.l.b16 %v2132
        %v4158 = vunpack.c.h.b16 %v2132
        %v4159 = vunpack.c.l.b16 %v2133
        %v4160 = vunpack.c.h.b16 %v2133
        %v4161 = vunpack.c.l.b16 %v2134
        %v4162 = vunpack.c.h.b16 %v2134
        %v4163 = vunpack.c.l.b16 %v2135
        %v4164 = vunpack.c.h.b16 %v2135
        %v4165 = vunpack.c.l.b16 %v2136
        %v4166 = vunpack.c.h.b16 %v2136
        %v4167 = vunpack.c.l.b16 %v2137
        %v4168 = vunpack.c.h.b16 %v2137
        %v4169 = vunpack.c.l.b16 %v2138
        %v4170 = vunpack.c.h.b16 %v2138
        %v4171 = vunpack.c.l.b16 %v2139
        %v4172 = vunpack.c.h.b16 %v2139
        %v4173 = vunpack.c.l.b16 %v2140
        %v4174 = vunpack.c.h.b16 %v2140
        %v4175 = vunpack.c.l.b16 %v2141
        %v4176 = vunpack.c.h.b16 %v2141
        %v4177 = vunpack.c.l.b16 %v2142
        %v4178 = vunpack.c.h.b16 %v2142
        %v4179 = vunpack.c.l.b16 %v2143
        %v4180 = vunpack.c.h.b16 %v2143
        %v4181 = vunpack.c.l.b16 %v2144
        %v4182 = vunpack.c.h.b16 %v2144
        %v4183 = vunpack.c.l.b16 %v2145
        %v4184 = vunpack.c.h.b16 %v2145
        %v4185 = vunpack.c.l.b16 %v2146
        %v4186 = vunpack.c.h.b16 %v2146
        %v4187 = vunpack.c.l.b16 %v2147
        %v4188 = vunpack.c.h.b16 %v2147
        %v4189 = vunpack.c.l.b16 %v2148
        %v4190 = vunpack.c.h.b16 %v2148
        %v4191 = vunpack.c.l.b16 %v2149
        %v4192 = vunpack.c.h.b16 %v2149
        %v4193 = vunpack.c.l.b16 %v2150
        %v4194 = vunpack.c.h.b16 %v2150
        %v4195 = vunpack.c.l.b16 %v2151
        %v4196 = vunpack.c.h.b16 %v2151
        %v4197 = vunpack.c.l.b16 %v2152
        %v4198 = vunpack.c.h.b16 %v2152
        %v4199 = vunpack.c.l.b16 %v2153
        %v4200 = vunpack.c.h.b16 %v2153
        %v4201 = vunpack.c.l.b16 %v2154
        %v4202 = vunpack.c.h.b16 %v2154
        %v4203 = vunpack.c.l.b16 %v2155
        %v4204 = vunpack.c.h.b16 %v2155
        %v4205 = vunpack.c.l.b16 %v2156
        %v4206 = vunpack.c.h.b16 %v2156
        %v4207 = vunpack.c.l.b16 %v2157
        %v4208 = vunpack.c.h.b16 %v2157
        %v4209 = vunpack.c.l.b16 %v2158
        %v4210 = vunpack.c.h.b16 %v2158
        %v4211 = vunpack.c.l.b16 %v2159
        %v4212 = vunpack.c.h.b16 %v2159
        %v4213 = vunpack.c.l.b16 %v2160
        %v4214 = vunpack.c.h.b16 %v2160
        %v4215 = vunpack.c.l.b16 %v2161
        %v4216 = vunpack.c.h.b16 %v2161
        %v4217 = vunpack.c.l.b16 %v2162
        %v4218 = vunpack.c.h.b16 %v2162
        %v4219 = vunpack.c.l.b16 %v2163
        %v4220 = vunpack.c.h.b16 %v2163
        %v4221 = vunpack.c.l.b16 %v2164
        %v4222 = vunpack.c.h.b16 %v2164
        %v4223 = vunpack.c.l.b16 %v2165
        %v4224 = vunpack.c.h.b16 %v2165
        %v4225 = vunpack.c.l.b16 %v2166
        %v4226 = vunpack.c.h.b16 %v2166
        %v4227 = vunpack.c.l.b16 %v2167
        %v4228 = vunpack.c.h.b16 %v2167
        %v4229 = vunpack.c.l.b16 %v2168
        %v4230 = vunpack.c.h.b16 %v2168
        %v4231 = vunpack.c.l.b16 %v2169
        %v4232 = vunpack.c.h.b16 %v2169
        %v4233 = vunpack.c.l.b16 %v2170
        %v4234 = vunpack.c.h.b16 %v2170
        %v4235 = vpack.c.b16 %v4149, %v4147
        %v4236 = vpack.c.b16 %v4150, %v4148
        %v4237 = vpack.c.b16 %v4153, %v4151
        %v4238 = vpack.c.b16 %v4154, %v4152
        %v4239 = vpack.c.b16 %v4157, %v4155
        %v4240 = vpack.c.b16 %v4158, %v4156
        %v4241 = vpack.c.b16 %v4161, %v4159
        %v4242 = vpack.c.b16 %v4162, %v4160
        %v4243 = vpack.c.b16 %v4165, %v4163
        %v4244 = vpack.c.b16 %v4166, %v4164
        %v4245 = vpack.c.b16 %v4169, %v4167
        %v4246 = vpack.c.b16 %v4170, %v4168
        %v4247 = vpack.c.b16 %v4173, %v4171
        %v4248 = vpack.c.b16 %v4174, %v4172
        %v4249 = vpack.c.b16 %v4177, %v4175
        %v4250 = vpack.c.b16 %v4178, %v4176
        %v4251 = vpack.c.b16 %v4181, %v4179
        %v4252 = vpack.c.b16 %v4182, %v4180
        %v4253 = vpack.c.b16 %v4185, %v4183
        %v4254 = vpack.c.b16 %v4186, %v4184
        %v4255 = vpack.c.b16 %v4189, %v4187
        %v4256 = vpack.c.b16 %v4190, %v4188
        %v4257 = vpack.c.b16 %v4193, %v4191
        %v4258 = vpack.c.b16 %v4194, %v4192
        %v4259 = vpack.c.b16 %v4197, %v4195
        %v4260 = vpack.c.b16 %v4198, %v4196
        %v4261 = vpack.c.b16 %v4201, %v4199
        %v4262 = vpack.c.b16 %v4202, %v4200
        %v4263 = vpack.c.b16 %v4205, %v4203
        %v4264 = vpack.c.b16 %v4206, %v4204
        %v4265 = vpack.c.b16 %v4209, %v4207
        %v4266 = vpack.c.b16 %v4210, %v4208
        %v4267 = vpack.c.b16 %v4213, %v4211
        %v4268 = vpack.c.b16 %v4214, %v4212
        %v4269 = vpack.c.b16 %v4217, %v4215
        %v4270 = vpack.c.b16 %v4218, %v4216
        %v4271 = vpack.c.b16 %v4221, %v4219
        %v4272 = vpack.c.b16 %v4222, %v4220
        %v4273 = vpack.c.b16 %v4225, %v4223
        %v4274 = vpack.c.b16 %v4226, %v4224
        %v4275 = vpack.c.b16 %v4229, %v4227
        %v4276 = vpack.c.b16 %v4230, %v4228
        %v4277 = vpack.c.b16 %v4233, %v4231
        %v4278 = vpack.c.b16 %v4234, %v4232
        %vm4323 = vcmask 785408
        %v4325 = vsel %vm4323, %v3465, 0
        %v4328 = vsel %vm4323, %v3468, 0
        %v4331 = vsel %vm4323, %v3471, 0
        %v4334 = vsel %vm4323, %v3474, 0
        %v4337 = vsel %vm4323, %v3477, 0
        %v4340 = vsel %vm4323, %v3480, 0
        %v4343 = vsel %vm4323, %v3483, 0
        %v4346 = vsel %vm4323, %v3486, 0
        %v4349 = vsel %vm4323, %v3489, 0
        %v4352 = vsel %vm4323, %v3492, 0
        %v4355 = vsel %vm4323, %v3495, 0
        %v4358 = vsel %vm4323, %v3498, 0
        %v4361 = vsel %vm4323, %v3501, 0
        %v4364 = vsel %vm4323, %v3504, 0
        %v4367 = vsel %vm4323, %v3507, 0
        %v4370 = vsel %vm4323, %v3510, 0
        %v4373 = vsel %vm4323, %v3513, 0
        %v4376 = vsel %vm4323, %v3516, 0
        %v4379 = vsel %vm4323, %v3519, 0
        %v4382 = vsel %vm4323, %v3522, 0
        %v4385 = vsel %vm4323, %v3525, 0
        %v4388 = vsel %vm4323, %v3528, 0
        %v4391 = vsel %vm4323, %v3531, 0
        %v4394 = vsel %vm4323, %v3534, 0
        %v4397 = vsel %vm4323, %v3537, 0
        %v4400 = vsel %vm4323, %v3540, 0
        %v4403 = vsel %vm4323, %v3543, 0
        %v4406 = vsel %vm4323, %v3546, 0
        %v4409 = vsel %vm4323, %v3549, 0
        %v4412 = vsel %vm4323, %v3552, 0
        %v4415 = vsel %vm4323, %v3555, 0
        %v4418 = vsel %vm4323, %v3558, 0
        %v4421 = vsel %vm4323, %v3561, 0
        %v4424 = vsel %vm4323, %v3564, 0
        %v4427 = vsel %vm4323, %v3567, 0
        %v4430 = vsel %vm4323, %v3570, 0
        %v4433 = vsel %vm4323, %v3573, 0
        %v4436 = vsel %vm4323, %v3576, 0
        %v4439 = vsel %vm4323, %v3579, 0
        %v4442 = vsel %vm4323, %v3582, 0
        %v4445 = vsel %vm4323, %v3585, 0
        %v4448 = vsel %vm4323, %v3588, 0
        %v4451 = vsel %vm4323, %v3591, 0
        %v4454 = vsel %vm4323, %v3594, 0
        %v4457 = vsel %vm4323, %v3597, 0
        %v4460 = vsel %vm4323, %v3600, 0
        %v4463 = vsel %vm4323, %v3603, 0
        %v4466 = vsel %vm4323, %v3606, 0
        %v4469 = vsel %vm4323, %v3609, 0
        %v4472 = vsel %vm4323, %v3612, 0
        %v4475 = vsel %vm4323, %v3615, 0
        %v4478 = vsel %vm4323, %v3618, 0
        %v4481 = vsel %vm4323, %v3621, 0
        %v4484 = vsel %vm4323, %v3624, 0
        %v4487 = vsel %vm4323, %v3627, 0
        %v4490 = vsel %vm4323, %v3630, 0
        %v4493 = vsel %vm4323, %v3633, 0
        %v4496 = vsel %vm4323, %v3636, 0
        %v4499 = vsel %vm4323, %v3639, 0
        %v4502 = vsel %vm4323, %v3642, 0
        %v4505 = vsel %vm4323, %v3645, 0
        %v4508 = vsel %vm4323, %v3648, 0
        %v4511 = vsel %vm4323, %v3651, 0
        %v4514 = vsel %vm4323, %v3654, 0
        %v4517 = vsel %vm4323, %v3657, 0
        %v4520 = vsel %vm4323, %v3660, 0
        %v4523 = vsel %vm4323, %v3663, 0
        %v4526 = vsel %vm4323, %v3666, 0
        %v4529 = vsel %vm4323, %v3669, 0
        %v4532 = vsel %vm4323, %v3672, 0
        %v4535 = vsel %vm4323, %v3675, 0
        %v4538 = vsel %vm4323, %v3678, 0
        %v4541 = vsel %vm4323, %v3681, 0
        %v4544 = vsel %vm4323, %v3684, 0
        %v4547 = vsel %vm4323, %v3687, 0
        %v4550 = vsel %vm4323, %v3690, 0
        %v4553 = vsel %vm4323, %v3693, 0
        %v4556 = vsel %vm4323, %v3696, 0
        %v4559 = vsel %vm4323, %v3699, 0
        %v4562 = vsel %vm4323, %v3702, 0
        %v4565 = vsel %vm4323, %v3705, 0
        %v4568 = vsel %vm4323, %v3708, 0
        %v4571 = vsel %vm4323, %v3711, 0
        %v4574 = vsel %vm4323, %v3714, 0
        %v4577 = vsel %vm4323, %v3717, 0
        %v4580 = vsel %vm4323, %v3720, 0
        %v4583 = vsel %vm4323, %v3723, 0
        %v4586 = vsel %vm4323, %v3726, 0
        %v4589 = vsel %vm4323, %v3729, 0
        %v4592 = vsel %vm4323, %v3732, 0
        %v4595 = vsel %vm4323, %v3735, 0
        %v4598 = vsel %vm4323, %v3738, 0
        %v4601 = vsel %vm4323, %v3741, 0
        %v4604 = vsel %vm4323, %v3744, 0
        %v4607 = vsel %vm4323, %v3747, 0
        %v4610 = vsel %vm4323, %v3750, 0
        %v4613 = vsel %vm4323, %v3753, 0
        %v4616 = vsel %vm4323, %v3756, 0
        %v4619 = vsel %vm4323, %v3759, 0
        %v4622 = vsel %vm4323, %v3762, 0
        %v4625 = vsel %vm4323, %v3765, 0
        %v4628 = vsel %vm4323, %v3768, 0
        %v4631 = vsel %vm4323, %v3771, 0
        %v4634 = vsel %vm4323, %v3774, 0
        %v4637 = vsel %vm4323, %v3777, 0
        %v4640 = vsel %vm4323, %v3780, 0
        %v4643 = vsel %vm4323, %v3783, 0
        %v4646 = vsel %vm4323, %v3786, 0
        %v4649 = vsel %vm4323, %v3789, 0
        %v4652 = vsel %vm4323, %v3792, 0
        %v4655 = vsel %vm4323, %v3795, 0
        %v4658 = vsel %vm4323, %v3798, 0
        %v4661 = vsel %vm4323, %v3801, 0
        %v4664 = vsel %vm4323, %v3804, 0
        %v4667 = vsel %vm4323, %v3807, 0
        %v4670 = vsel %vm4323, %v3810, 0
        %v4673 = vsel %vm4323, %v3813, 0
        %v4676 = vsel %vm4323, %v3816, 0
        %v4679 = vsel %vm4323, %v3819, 0
        %v4682 = vsel %vm4323, %v3822, 0
        %v4685 = vsel %vm4323, %v3825, 0
        %v4688 = vsel %vm4323, %v3828, 0
        %v4691 = vsel %vm4323, %v3831, 0
        %v4694 = vsel %vm4323, %v3834, 0
        %v4697 = vsel %vm4323, %v3837, 0
        %v4700 = vsel %vm4323, %v3840, 0
        %v4703 = vsel %vm4323, %v3843, 0
        %v4706 = vsel %vm4323, %v3846, 0
        %4708 = vmatprep.subr.bf16.mxu0 %v4250
        %4709 = vmatpush1.bf16.msra.mxu0 %v4249
        %4710 = vmatprep.subr.bf16.mxu0 %v4248
        %4711 = vmatpush1.bf16.msra.mxu0 %v4247
        %4712 = vmatprep.subr.bf16.mxu0 %v4246
        %4713 = vmatpush1.bf16.msra.mxu0 %v4245
        %4714 = vmatprep.subr.bf16.mxu0 %v4244
        %4715 = vmatpush1.bf16.msra.mxu0 %v4243
        %4716 = vmatprep.subr.bf16.mxu0 %v4242
        %4717 = vmatpush1.bf16.msra.mxu0 %v4241
        %4718 = vmatprep.subr.bf16.mxu0 %v4240
        %4719 = vmatpush1.bf16.msra.mxu0 %v4239
        %4720 = vmatprep.subr.bf16.mxu0 %v4238
        %4721 = vmatpush1.bf16.msra.mxu0 %v4237
        %4722 = vmatprep.subr.bf16.mxu0 %v4236
        %4723 = vmatpush1.bf16.msra.mxu0 %v4235
        %4724 = vmatprep.subr.bf16.mxu0 %v4266
        %4725 = vmatpush2.bf16.msra.mxu0 %v4265
        %4726 = vmatprep.subr.bf16.mxu0 %v4264
        %4727 = vmatpush2.bf16.msra.mxu0 %v4263
        %4728 = vmatprep.subr.bf16.mxu0 %v4262
        %4729 = vmatpush2.bf16.msra.mxu0 %v4261
        %4730 = vmatprep.subr.bf16.mxu0 %v4260
        %4731 = vmatpush2.bf16.msra.mxu0 %v4259
        %4732 = vmatprep.subr.bf16.mxu0 %v4258
        %4733 = vmatpush2.bf16.msra.mxu0 %v4257
        %4734 = vmatprep.subr.bf16.mxu0 %v4256
        %4735 = vmatpush2.bf16.msra.mxu0 %v4255
        %4736 = vmatprep.subr.bf16.mxu0 %v4254
        %4737 = vmatpush2.bf16.msra.mxu0 %v4253
        %4738 = vmatprep.subr.bf16.mxu0 %v4252
        %4739 = vmatpush2.bf16.msra.mxu0 %v4251
        %4740 = vmatprep.mubr.bf16.mxu0 %v3464
        %4741 = vmatmul.mubr.bf16.gmra.mxu0 %v3463
        %v4742 = vpop.f32.mrf.mxu0
        %v4743 = vadd.f32 %v2176, %v4742
        %v4744 = vpop.f32.mrf.mxu0
        %v4745 = vadd.f32 %v2180, %v4744
        %v4746 = vpop.f32.mrf.mxu0
        %v4747 = vadd.f32 %v2176, %v4746
        %v4748 = vpop.f32.mrf.mxu0
        %v4749 = vadd.f32 %v2180, %v4748
        %4750 = vmatprep.mubr.bf16.mxu0 %v3467
        %4751 = vmatmul.mubr.bf16.gmra.mxu0 %v3466
        %v4752 = vpop.f32.mrf.mxu0
        %v4753 = vadd.f32 %v2176, %v4752
        %v4754 = vpop.f32.mrf.mxu0
        %v4755 = vadd.f32 %v2180, %v4754
        %v4756 = vpop.f32.mrf.mxu0
        %v4757 = vadd.f32 %v2176, %v4756
        %v4758 = vpop.f32.mrf.mxu0
        %v4759 = vadd.f32 %v2180, %v4758
        %4760 = vmatprep.mubr.bf16.mxu0 %v3470
        %4761 = vmatmul.mubr.bf16.gmra.mxu0 %v3469
        %v4762 = vpop.f32.mrf.mxu0
        %v4763 = vadd.f32 %v2176, %v4762
        %v4764 = vpop.f32.mrf.mxu0
        %v4765 = vadd.f32 %v2180, %v4764
        %v4766 = vpop.f32.mrf.mxu0
        %v4767 = vadd.f32 %v2176, %v4766
        %v4768 = vpop.f32.mrf.mxu0
        %v4769 = vadd.f32 %v2180, %v4768
        %4770 = vmatprep.mubr.bf16.mxu0 %v3473
        %4771 = vmatmul.mubr.bf16.gmra.mxu0 %v3472
        %v4772 = vpop.f32.mrf.mxu0
        %v4773 = vadd.f32 %v2176, %v4772
        %v4774 = vpop.f32.mrf.mxu0
        %v4775 = vadd.f32 %v2180, %v4774
        %v4776 = vpop.f32.mrf.mxu0
        %v4777 = vadd.f32 %v2176, %v4776
        %v4778 = vpop.f32.mrf.mxu0
        %v4779 = vadd.f32 %v2180, %v4778
        %4780 = vmatprep.mubr.bf16.mxu0 %v3476
        %4781 = vmatmul.mubr.bf16.gmra.mxu0 %v3475
        %v4782 = vpop.f32.mrf.mxu0
        %v4783 = vadd.f32 %v2176, %v4782
        %v4784 = vpop.f32.mrf.mxu0
        %v4785 = vadd.f32 %v2180, %v4784
        %v4786 = vpop.f32.mrf.mxu0
        %v4787 = vadd.f32 %v2176, %v4786
        %v4788 = vpop.f32.mrf.mxu0
        %v4789 = vadd.f32 %v2180, %v4788
        %4790 = vmatprep.mubr.bf16.mxu0 %v3479
        %4791 = vmatmul.mubr.bf16.gmra.mxu0 %v3478
        %v4792 = vpop.f32.mrf.mxu0
        %v4793 = vadd.f32 %v2176, %v4792
        %v4794 = vpop.f32.mrf.mxu0
        %v4795 = vadd.f32 %v2180, %v4794
        %v4796 = vpop.f32.mrf.mxu0
        %v4797 = vadd.f32 %v2176, %v4796
        %v4798 = vpop.f32.mrf.mxu0
        %v4799 = vadd.f32 %v2180, %v4798
        %4800 = vmatprep.mubr.bf16.mxu0 %v3482
        %4801 = vmatmul.mubr.bf16.gmra.mxu0 %v3481
        %v4802 = vpop.f32.mrf.mxu0
        %v4803 = vadd.f32 %v2176, %v4802
        %v4804 = vpop.f32.mrf.mxu0
        %v4805 = vadd.f32 %v2180, %v4804
        %v4806 = vpop.f32.mrf.mxu0
        %v4807 = vadd.f32 %v2176, %v4806
        %v4808 = vpop.f32.mrf.mxu0
        %v4809 = vadd.f32 %v2180, %v4808
        %4810 = vmatprep.mubr.bf16.mxu0 %v3485
        %4811 = vmatmul.mubr.bf16.gmra.mxu0 %v3484
        %v4812 = vpop.f32.mrf.mxu0
        %v4813 = vadd.f32 %v2176, %v4812
        %v4814 = vpop.f32.mrf.mxu0
        %v4815 = vadd.f32 %v2180, %v4814
        %v4816 = vpop.f32.mrf.mxu0
        %v4817 = vadd.f32 %v2176, %v4816
        %v4818 = vpop.f32.mrf.mxu0
        %v4819 = vadd.f32 %v2180, %v4818
        %4820 = vmatprep.mubr.bf16.mxu0 %v3488
        %4821 = vmatmul.mubr.bf16.gmra.mxu0 %v3487
        %v4822 = vpop.f32.mrf.mxu0
        %v4823 = vadd.f32 %v2176, %v4822
        %v4824 = vpop.f32.mrf.mxu0
        %v4825 = vadd.f32 %v2180, %v4824
        %v4826 = vpop.f32.mrf.mxu0
        %v4827 = vadd.f32 %v2176, %v4826
        %v4828 = vpop.f32.mrf.mxu0
        %v4829 = vadd.f32 %v2180, %v4828
        %4830 = vmatprep.mubr.bf16.mxu0 %v3491
        %4831 = vmatmul.mubr.bf16.gmra.mxu0 %v3490
        %v4832 = vpop.f32.mrf.mxu0
        %v4833 = vadd.f32 %v2176, %v4832
        %v4834 = vpop.f32.mrf.mxu0
        %v4835 = vadd.f32 %v2180, %v4834
        %v4836 = vpop.f32.mrf.mxu0
        %v4837 = vadd.f32 %v2176, %v4836
        %v4838 = vpop.f32.mrf.mxu0
        %v4839 = vadd.f32 %v2180, %v4838
        %4840 = vmatprep.mubr.bf16.mxu0 %v3494
        %4841 = vmatmul.mubr.bf16.gmra.mxu0 %v3493
        %v4842 = vpop.f32.mrf.mxu0
        %v4843 = vadd.f32 %v2176, %v4842
        %v4844 = vpop.f32.mrf.mxu0
        %v4845 = vadd.f32 %v2180, %v4844
        %v4846 = vpop.f32.mrf.mxu0
        %v4847 = vadd.f32 %v2176, %v4846
        %v4848 = vpop.f32.mrf.mxu0
        %v4849 = vadd.f32 %v2180, %v4848
        %4850 = vmatprep.mubr.bf16.mxu0 %v3497
        %4851 = vmatmul.mubr.bf16.gmra.mxu0 %v3496
        %v4852 = vpop.f32.mrf.mxu0
        %v4853 = vadd.f32 %v2176, %v4852
        %v4854 = vpop.f32.mrf.mxu0
        %v4855 = vadd.f32 %v2180, %v4854
        %v4856 = vpop.f32.mrf.mxu0
        %v4857 = vadd.f32 %v2176, %v4856
        %v4858 = vpop.f32.mrf.mxu0
        %v4859 = vadd.f32 %v2180, %v4858
        %4860 = vmatprep.mubr.bf16.mxu0 %v3500
        %4861 = vmatmul.mubr.bf16.gmra.mxu0 %v3499
        %v4862 = vpop.f32.mrf.mxu0
        %v4863 = vadd.f32 %v2176, %v4862
        %v4864 = vpop.f32.mrf.mxu0
        %v4865 = vadd.f32 %v2180, %v4864
        %v4866 = vpop.f32.mrf.mxu0
        %v4867 = vadd.f32 %v2176, %v4866
        %v4868 = vpop.f32.mrf.mxu0
        %v4869 = vadd.f32 %v2180, %v4868
        %4870 = vmatprep.mubr.bf16.mxu0 %v3503
        %4871 = vmatmul.mubr.bf16.gmra.mxu0 %v3502
        %v4872 = vpop.f32.mrf.mxu0
        %v4873 = vadd.f32 %v2176, %v4872
        %v4874 = vpop.f32.mrf.mxu0
        %v4875 = vadd.f32 %v2180, %v4874
        %v4876 = vpop.f32.mrf.mxu0
        %v4877 = vadd.f32 %v2176, %v4876
        %v4878 = vpop.f32.mrf.mxu0
        %v4879 = vadd.f32 %v2180, %v4878
        %4880 = vmatprep.mubr.bf16.mxu0 %v3506
        %4881 = vmatmul.mubr.bf16.gmra.mxu0 %v3505
        %v4882 = vpop.f32.mrf.mxu0
        %v4883 = vadd.f32 %v2176, %v4882
        %v4884 = vpop.f32.mrf.mxu0
        %v4885 = vadd.f32 %v2180, %v4884
        %v4886 = vpop.f32.mrf.mxu0
        %v4887 = vadd.f32 %v2176, %v4886
        %v4888 = vpop.f32.mrf.mxu0
        %v4889 = vadd.f32 %v2180, %v4888
        %4890 = vmatprep.mubr.bf16.mxu0 %v3509
        %4891 = vmatmul.mubr.bf16.gmra.mxu0 %v3508
        %v4892 = vpop.f32.mrf.mxu0
        %v4893 = vadd.f32 %v2176, %v4892
        %v4894 = vpop.f32.mrf.mxu0
        %v4895 = vadd.f32 %v2180, %v4894
        %v4896 = vpop.f32.mrf.mxu0
        %v4897 = vadd.f32 %v2176, %v4896
        %v4898 = vpop.f32.mrf.mxu0
        %v4899 = vadd.f32 %v2180, %v4898
        %4900 = vmatprep.mubr.bf16.mxu0 %v3512
        %4901 = vmatmul.mubr.bf16.gmra.mxu0 %v3511
        %v4902 = vpop.f32.mrf.mxu0
        %v4903 = vadd.f32 %v2176, %v4902
        %v4904 = vpop.f32.mrf.mxu0
        %v4905 = vadd.f32 %v2180, %v4904
        %v4906 = vpop.f32.mrf.mxu0
        %v4907 = vadd.f32 %v2176, %v4906
        %v4908 = vpop.f32.mrf.mxu0
        %v4909 = vadd.f32 %v2180, %v4908
        %4910 = vmatprep.mubr.bf16.mxu0 %v3515
        %4911 = vmatmul.mubr.bf16.gmra.mxu0 %v3514
        %v4912 = vpop.f32.mrf.mxu0
        %v4913 = vadd.f32 %v2176, %v4912
        %v4914 = vpop.f32.mrf.mxu0
        %v4915 = vadd.f32 %v2180, %v4914
        %v4916 = vpop.f32.mrf.mxu0
        %v4917 = vadd.f32 %v2176, %v4916
        %v4918 = vpop.f32.mrf.mxu0
        %v4919 = vadd.f32 %v2180, %v4918
        %4920 = vmatprep.mubr.bf16.mxu0 %v3518
        %4921 = vmatmul.mubr.bf16.gmra.mxu0 %v3517
        %v4922 = vpop.f32.mrf.mxu0
        %v4923 = vadd.f32 %v2176, %v4922
        %v4924 = vpop.f32.mrf.mxu0
        %v4925 = vadd.f32 %v2180, %v4924
        %v4926 = vpop.f32.mrf.mxu0
        %v4927 = vadd.f32 %v2176, %v4926
        %v4928 = vpop.f32.mrf.mxu0
        %v4929 = vadd.f32 %v2180, %v4928
        %4930 = vmatprep.mubr.bf16.mxu0 %v3521
        %4931 = vmatmul.mubr.bf16.gmra.mxu0 %v3520
        %v4932 = vpop.f32.mrf.mxu0
        %v4933 = vadd.f32 %v2176, %v4932
        %v4934 = vpop.f32.mrf.mxu0
        %v4935 = vadd.f32 %v2180, %v4934
        %v4936 = vpop.f32.mrf.mxu0
        %v4937 = vadd.f32 %v2176, %v4936
        %v4938 = vpop.f32.mrf.mxu0
        %v4939 = vadd.f32 %v2180, %v4938
        %4940 = vmatprep.mubr.bf16.mxu0 %v3524
        %4941 = vmatmul.mubr.bf16.gmra.mxu0 %v3523
        %v4942 = vpop.f32.mrf.mxu0
        %v4943 = vadd.f32 %v2176, %v4942
        %v4944 = vpop.f32.mrf.mxu0
        %v4945 = vadd.f32 %v2180, %v4944
        %v4946 = vpop.f32.mrf.mxu0
        %v4947 = vadd.f32 %v2176, %v4946
        %v4948 = vpop.f32.mrf.mxu0
        %v4949 = vadd.f32 %v2180, %v4948
        %4950 = vmatprep.mubr.bf16.mxu0 %v3527
        %4951 = vmatmul.mubr.bf16.gmra.mxu0 %v3526
        %v4952 = vpop.f32.mrf.mxu0
        %v4953 = vadd.f32 %v2176, %v4952
        %v4954 = vpop.f32.mrf.mxu0
        %v4955 = vadd.f32 %v2180, %v4954
        %v4956 = vpop.f32.mrf.mxu0
        %v4957 = vadd.f32 %v2176, %v4956
        %v4958 = vpop.f32.mrf.mxu0
        %v4959 = vadd.f32 %v2180, %v4958
        %4960 = vmatprep.mubr.bf16.mxu0 %v3530
        %4961 = vmatmul.mubr.bf16.gmra.mxu0 %v3529
        %v4962 = vpop.f32.mrf.mxu0
        %v4963 = vadd.f32 %v2176, %v4962
        %v4964 = vpop.f32.mrf.mxu0
        %v4965 = vadd.f32 %v2180, %v4964
        %v4966 = vpop.f32.mrf.mxu0
        %v4967 = vadd.f32 %v2176, %v4966
        %v4968 = vpop.f32.mrf.mxu0
        %v4969 = vadd.f32 %v2180, %v4968
        %4970 = vmatprep.mubr.bf16.mxu0 %v3533
        %4971 = vmatmul.mubr.bf16.gmra.mxu0 %v3532
        %v4972 = vpop.f32.mrf.mxu0
        %v4973 = vadd.f32 %v2176, %v4972
        %v4974 = vpop.f32.mrf.mxu0
        %v4975 = vadd.f32 %v2180, %v4974
        %v4976 = vpop.f32.mrf.mxu0
        %v4977 = vadd.f32 %v2176, %v4976
        %v4978 = vpop.f32.mrf.mxu0
        %v4979 = vadd.f32 %v2180, %v4978
        %4980 = vmatprep.mubr.bf16.mxu0 %v3536
        %4981 = vmatmul.mubr.bf16.gmra.mxu0 %v3535
        %v4982 = vpop.f32.mrf.mxu0
        %v4983 = vadd.f32 %v2176, %v4982
        %v4984 = vpop.f32.mrf.mxu0
        %v4985 = vadd.f32 %v2180, %v4984
        %v4986 = vpop.f32.mrf.mxu0
        %v4987 = vadd.f32 %v2176, %v4986
        %v4988 = vpop.f32.mrf.mxu0
        %v4989 = vadd.f32 %v2180, %v4988
        %4990 = vmatprep.mubr.bf16.mxu0 %v3539
        %4991 = vmatmul.mubr.bf16.gmra.mxu0 %v3538
        %v4992 = vpop.f32.mrf.mxu0
        %v4993 = vadd.f32 %v2176, %v4992
        %v4994 = vpop.f32.mrf.mxu0
        %v4995 = vadd.f32 %v2180, %v4994
        %v4996 = vpop.f32.mrf.mxu0
        %v4997 = vadd.f32 %v2176, %v4996
        %v4998 = vpop.f32.mrf.mxu0
        %v4999 = vadd.f32 %v2180, %v4998
        %5000 = vmatprep.mubr.bf16.mxu0 %v3542
        %5001 = vmatmul.mubr.bf16.gmra.mxu0 %v3541
        %v5002 = vpop.f32.mrf.mxu0
        %v5003 = vadd.f32 %v2176, %v5002
        %v5004 = vpop.f32.mrf.mxu0
        %v5005 = vadd.f32 %v2180, %v5004
        %v5006 = vpop.f32.mrf.mxu0
        %v5007 = vadd.f32 %v2176, %v5006
        %v5008 = vpop.f32.mrf.mxu0
        %v5009 = vadd.f32 %v2180, %v5008
        %5010 = vmatprep.mubr.bf16.mxu0 %v3545
        %5011 = vmatmul.mubr.bf16.gmra.mxu0 %v3544
        %v5012 = vpop.f32.mrf.mxu0
        %v5013 = vadd.f32 %v2176, %v5012
        %v5014 = vpop.f32.mrf.mxu0
        %v5015 = vadd.f32 %v2180, %v5014
        %v5016 = vpop.f32.mrf.mxu0
        %v5017 = vadd.f32 %v2176, %v5016
        %v5018 = vpop.f32.mrf.mxu0
        %v5019 = vadd.f32 %v2180, %v5018
        %5020 = vmatprep.mubr.bf16.mxu0 %v3548
        %5021 = vmatmul.mubr.bf16.gmra.mxu0 %v3547
        %v5022 = vpop.f32.mrf.mxu0
        %v5023 = vadd.f32 %v2176, %v5022
        %v5024 = vpop.f32.mrf.mxu0
        %v5025 = vadd.f32 %v2180, %v5024
        %v5026 = vpop.f32.mrf.mxu0
        %v5027 = vadd.f32 %v2176, %v5026
        %v5028 = vpop.f32.mrf.mxu0
        %v5029 = vadd.f32 %v2180, %v5028
        %5030 = vmatprep.mubr.bf16.mxu0 %v3551
        %5031 = vmatmul.mubr.bf16.gmra.mxu0 %v3550
        %v5032 = vpop.f32.mrf.mxu0
        %v5033 = vadd.f32 %v2176, %v5032
        %v5034 = vpop.f32.mrf.mxu0
        %v5035 = vadd.f32 %v2180, %v5034
        %v5036 = vpop.f32.mrf.mxu0
        %v5037 = vadd.f32 %v2176, %v5036
        %v5038 = vpop.f32.mrf.mxu0
        %v5039 = vadd.f32 %v2180, %v5038
        %5040 = vmatprep.mubr.bf16.mxu0 %v3554
        %5041 = vmatmul.mubr.bf16.gmra.mxu0 %v3553
        %v5042 = vpop.f32.mrf.mxu0
        %v5043 = vadd.f32 %v2176, %v5042
        %v5044 = vpop.f32.mrf.mxu0
        %v5045 = vadd.f32 %v2180, %v5044
        %v5046 = vpop.f32.mrf.mxu0
        %v5047 = vadd.f32 %v2176, %v5046
        %v5048 = vpop.f32.mrf.mxu0
        %v5049 = vadd.f32 %v2180, %v5048
        %5050 = vmatprep.mubr.bf16.mxu0 %v3557
        %5051 = vmatmul.mubr.bf16.gmra.mxu0 %v3556
        %v5052 = vpop.f32.mrf.mxu0
        %v5053 = vadd.f32 %v2176, %v5052
        %v5054 = vpop.f32.mrf.mxu0
        %v5055 = vadd.f32 %v2180, %v5054
        %v5056 = vpop.f32.mrf.mxu0
        %v5057 = vadd.f32 %v2176, %v5056
        %v5058 = vpop.f32.mrf.mxu0
        %v5059 = vadd.f32 %v2180, %v5058
        %5060 = vmatprep.mubr.bf16.mxu0 %v3560
        %5061 = vmatmul.mubr.bf16.gmra.mxu0 %v3559
        %v5062 = vpop.f32.mrf.mxu0
        %v5063 = vadd.f32 %v2176, %v5062
        %v5064 = vpop.f32.mrf.mxu0
        %v5065 = vadd.f32 %v2180, %v5064
        %v5066 = vpop.f32.mrf.mxu0
        %v5067 = vadd.f32 %v2176, %v5066
        %v5068 = vpop.f32.mrf.mxu0
        %v5069 = vadd.f32 %v2180, %v5068
        %5070 = vmatprep.mubr.bf16.mxu0 %v3563
        %5071 = vmatmul.mubr.bf16.gmra.mxu0 %v3562
        %v5072 = vpop.f32.mrf.mxu0
        %v5073 = vadd.f32 %v2176, %v5072
        %v5074 = vpop.f32.mrf.mxu0
        %v5075 = vadd.f32 %v2180, %v5074
        %v5076 = vpop.f32.mrf.mxu0
        %v5077 = vadd.f32 %v2176, %v5076
        %v5078 = vpop.f32.mrf.mxu0
        %v5079 = vadd.f32 %v2180, %v5078
        %5080 = vmatprep.mubr.bf16.mxu0 %v3566
        %5081 = vmatmul.mubr.bf16.gmra.mxu0 %v3565
        %v5082 = vpop.f32.mrf.mxu0
        %v5083 = vadd.f32 %v2176, %v5082
        %v5084 = vpop.f32.mrf.mxu0
        %v5085 = vadd.f32 %v2180, %v5084
        %v5086 = vpop.f32.mrf.mxu0
        %v5087 = vadd.f32 %v2176, %v5086
        %v5088 = vpop.f32.mrf.mxu0
        %v5089 = vadd.f32 %v2180, %v5088
        %5090 = vmatprep.mubr.bf16.mxu0 %v3569
        %5091 = vmatmul.mubr.bf16.gmra.mxu0 %v3568
        %v5092 = vpop.f32.mrf.mxu0
        %v5093 = vadd.f32 %v2176, %v5092
        %v5094 = vpop.f32.mrf.mxu0
        %v5095 = vadd.f32 %v2180, %v5094
        %v5096 = vpop.f32.mrf.mxu0
        %v5097 = vadd.f32 %v2176, %v5096
        %v5098 = vpop.f32.mrf.mxu0
        %v5099 = vadd.f32 %v2180, %v5098
        %5100 = vmatprep.mubr.bf16.mxu0 %v3572
        %5101 = vmatmul.mubr.bf16.gmra.mxu0 %v3571
        %v5102 = vpop.f32.mrf.mxu0
        %v5103 = vadd.f32 %v2176, %v5102
        %v5104 = vpop.f32.mrf.mxu0
        %v5105 = vadd.f32 %v2180, %v5104
        %v5106 = vpop.f32.mrf.mxu0
        %v5107 = vadd.f32 %v2176, %v5106
        %v5108 = vpop.f32.mrf.mxu0
        %v5109 = vadd.f32 %v2180, %v5108
        %5110 = vmatprep.mubr.bf16.mxu0 %v3575
        %5111 = vmatmul.mubr.bf16.gmra.mxu0 %v3574
        %v5112 = vpop.f32.mrf.mxu0
        %v5113 = vadd.f32 %v2176, %v5112
        %v5114 = vpop.f32.mrf.mxu0
        %v5115 = vadd.f32 %v2180, %v5114
        %v5116 = vpop.f32.mrf.mxu0
        %v5117 = vadd.f32 %v2176, %v5116
        %v5118 = vpop.f32.mrf.mxu0
        %v5119 = vadd.f32 %v2180, %v5118
        %5120 = vmatprep.mubr.bf16.mxu0 %v3578
        %5121 = vmatmul.mubr.bf16.gmra.mxu0 %v3577
        %v5122 = vpop.f32.mrf.mxu0
        %v5123 = vadd.f32 %v2176, %v5122
        %v5124 = vpop.f32.mrf.mxu0
        %v5125 = vadd.f32 %v2180, %v5124
        %v5126 = vpop.f32.mrf.mxu0
        %v5127 = vadd.f32 %v2176, %v5126
        %v5128 = vpop.f32.mrf.mxu0
        %v5129 = vadd.f32 %v2180, %v5128
        %5130 = vmatprep.mubr.bf16.mxu0 %v3581
        %5131 = vmatmul.mubr.bf16.gmra.mxu0 %v3580
        %v5132 = vpop.f32.mrf.mxu0
        %v5133 = vadd.f32 %v2176, %v5132
        %v5134 = vpop.f32.mrf.mxu0
        %v5135 = vadd.f32 %v2180, %v5134
        %v5136 = vpop.f32.mrf.mxu0
        %v5137 = vadd.f32 %v2176, %v5136
        %v5138 = vpop.f32.mrf.mxu0
        %v5139 = vadd.f32 %v2180, %v5138
        %5140 = vmatprep.mubr.bf16.mxu0 %v3584
        %5141 = vmatmul.mubr.bf16.gmra.mxu0 %v3583
        %v5142 = vpop.f32.mrf.mxu0
        %v5143 = vadd.f32 %v2176, %v5142
        %v5144 = vpop.f32.mrf.mxu0
        %v5145 = vadd.f32 %v2180, %v5144
        %v5146 = vpop.f32.mrf.mxu0
        %v5147 = vadd.f32 %v2176, %v5146
        %v5148 = vpop.f32.mrf.mxu0
        %v5149 = vadd.f32 %v2180, %v5148
        %5150 = vmatprep.mubr.bf16.mxu0 %v3587
        %5151 = vmatmul.mubr.bf16.gmra.mxu0 %v3586
        %v5152 = vpop.f32.mrf.mxu0
        %v5153 = vadd.f32 %v2176, %v5152
        %v5154 = vpop.f32.mrf.mxu0
        %v5155 = vadd.f32 %v2180, %v5154
        %v5156 = vpop.f32.mrf.mxu0
        %v5157 = vadd.f32 %v2176, %v5156
        %v5158 = vpop.f32.mrf.mxu0
        %v5159 = vadd.f32 %v2180, %v5158
        %5160 = vmatprep.mubr.bf16.mxu0 %v3590
        %5161 = vmatmul.mubr.bf16.gmra.mxu0 %v3589
        %v5162 = vpop.f32.mrf.mxu0
        %v5163 = vadd.f32 %v2176, %v5162
        %v5164 = vpop.f32.mrf.mxu0
        %v5165 = vadd.f32 %v2180, %v5164
        %v5166 = vpop.f32.mrf.mxu0
        %v5167 = vadd.f32 %v2176, %v5166
        %v5168 = vpop.f32.mrf.mxu0
        %v5169 = vadd.f32 %v2180, %v5168
        %5170 = vmatprep.mubr.bf16.mxu0 %v3593
        %5171 = vmatmul.mubr.bf16.gmra.mxu0 %v3592
        %v5172 = vpop.f32.mrf.mxu0
        %v5173 = vadd.f32 %v2176, %v5172
        %v5174 = vpop.f32.mrf.mxu0
        %v5175 = vadd.f32 %v2180, %v5174
        %v5176 = vpop.f32.mrf.mxu0
        %v5177 = vadd.f32 %v2176, %v5176
        %v5178 = vpop.f32.mrf.mxu0
        %v5179 = vadd.f32 %v2180, %v5178
        %5180 = vmatprep.mubr.bf16.mxu0 %v3596
        %5181 = vmatmul.mubr.bf16.gmra.mxu0 %v3595
        %v5182 = vpop.f32.mrf.mxu0
        %v5183 = vadd.f32 %v2176, %v5182
        %v5184 = vpop.f32.mrf.mxu0
        %v5185 = vadd.f32 %v2180, %v5184
        %v5186 = vpop.f32.mrf.mxu0
        %v5187 = vadd.f32 %v2176, %v5186
        %v5188 = vpop.f32.mrf.mxu0
        %v5189 = vadd.f32 %v2180, %v5188
        %5190 = vmatprep.mubr.bf16.mxu0 %v3599
        %5191 = vmatmul.mubr.bf16.gmra.mxu0 %v3598
        %v5192 = vpop.f32.mrf.mxu0
        %v5193 = vadd.f32 %v2176, %v5192
        %v5194 = vpop.f32.mrf.mxu0
        %v5195 = vadd.f32 %v2180, %v5194
        %v5196 = vpop.f32.mrf.mxu0
        %v5197 = vadd.f32 %v2176, %v5196
        %v5198 = vpop.f32.mrf.mxu0
        %v5199 = vadd.f32 %v2180, %v5198
        %5200 = vmatprep.mubr.bf16.mxu0 %v3602
        %5201 = vmatmul.mubr.bf16.gmra.mxu0 %v3601
        %v5202 = vpop.f32.mrf.mxu0
        %v5203 = vadd.f32 %v2176, %v5202
        %v5204 = vpop.f32.mrf.mxu0
        %v5205 = vadd.f32 %v2180, %v5204
        %v5206 = vpop.f32.mrf.mxu0
        %v5207 = vadd.f32 %v2176, %v5206
        %v5208 = vpop.f32.mrf.mxu0
        %v5209 = vadd.f32 %v2180, %v5208
        %5210 = vmatprep.mubr.bf16.mxu0 %v3605
        %5211 = vmatmul.mubr.bf16.gmra.mxu0 %v3604
        %v5212 = vpop.f32.mrf.mxu0
        %v5213 = vadd.f32 %v2176, %v5212
        %v5214 = vpop.f32.mrf.mxu0
        %v5215 = vadd.f32 %v2180, %v5214
        %v5216 = vpop.f32.mrf.mxu0
        %v5217 = vadd.f32 %v2176, %v5216
        %v5218 = vpop.f32.mrf.mxu0
        %v5219 = vadd.f32 %v2180, %v5218
        %5220 = vmatprep.mubr.bf16.mxu0 %v3608
        %5221 = vmatmul.mubr.bf16.gmra.mxu0 %v3607
        %v5222 = vpop.f32.mrf.mxu0
        %v5223 = vadd.f32 %v2176, %v5222
        %v5224 = vpop.f32.mrf.mxu0
        %v5225 = vadd.f32 %v2180, %v5224
        %v5226 = vpop.f32.mrf.mxu0
        %v5227 = vadd.f32 %v2176, %v5226
        %v5228 = vpop.f32.mrf.mxu0
        %v5229 = vadd.f32 %v2180, %v5228
        %5230 = vmatprep.mubr.bf16.mxu0 %v3611
        %5231 = vmatmul.mubr.bf16.gmra.mxu0 %v3610
        %v5232 = vpop.f32.mrf.mxu0
        %v5233 = vadd.f32 %v2176, %v5232
        %v5234 = vpop.f32.mrf.mxu0
        %v5235 = vadd.f32 %v2180, %v5234
        %v5236 = vpop.f32.mrf.mxu0
        %v5237 = vadd.f32 %v2176, %v5236
        %v5238 = vpop.f32.mrf.mxu0
        %v5239 = vadd.f32 %v2180, %v5238
        %5240 = vmatprep.mubr.bf16.mxu0 %v3614
        %5241 = vmatmul.mubr.bf16.gmra.mxu0 %v3613
        %v5242 = vpop.f32.mrf.mxu0
        %v5243 = vadd.f32 %v2176, %v5242
        %v5244 = vpop.f32.mrf.mxu0
        %v5245 = vadd.f32 %v2180, %v5244
        %v5246 = vpop.f32.mrf.mxu0
        %v5247 = vadd.f32 %v2176, %v5246
        %v5248 = vpop.f32.mrf.mxu0
        %v5249 = vadd.f32 %v2180, %v5248
        %5250 = vmatprep.mubr.bf16.mxu0 %v3617
        %5251 = vmatmul.mubr.bf16.gmra.mxu0 %v3616
        %v5252 = vpop.f32.mrf.mxu0
        %v5253 = vadd.f32 %v2176, %v5252
        %v5254 = vpop.f32.mrf.mxu0
        %v5255 = vadd.f32 %v2180, %v5254
        %v5256 = vpop.f32.mrf.mxu0
        %v5257 = vadd.f32 %v2176, %v5256
        %v5258 = vpop.f32.mrf.mxu0
        %v5259 = vadd.f32 %v2180, %v5258
        %5260 = vmatprep.mubr.bf16.mxu0 %v3620
        %5261 = vmatmul.mubr.bf16.gmra.mxu0 %v3619
        %v5262 = vpop.f32.mrf.mxu0
        %v5263 = vadd.f32 %v2176, %v5262
        %v5264 = vpop.f32.mrf.mxu0
        %v5265 = vadd.f32 %v2180, %v5264
        %v5266 = vpop.f32.mrf.mxu0
        %v5267 = vadd.f32 %v2176, %v5266
        %v5268 = vpop.f32.mrf.mxu0
        %v5269 = vadd.f32 %v2180, %v5268
        %5270 = vmatprep.mubr.bf16.mxu0 %v3623
        %5271 = vmatmul.mubr.bf16.gmra.mxu0 %v3622
        %v5272 = vpop.f32.mrf.mxu0
        %v5273 = vadd.f32 %v2176, %v5272
        %v5274 = vpop.f32.mrf.mxu0
        %v5275 = vadd.f32 %v2180, %v5274
        %v5276 = vpop.f32.mrf.mxu0
        %v5277 = vadd.f32 %v2176, %v5276
        %v5278 = vpop.f32.mrf.mxu0
        %v5279 = vadd.f32 %v2180, %v5278
        %5280 = vmatprep.mubr.bf16.mxu0 %v3626
        %5281 = vmatmul.mubr.bf16.gmra.mxu0 %v3625
        %v5282 = vpop.f32.mrf.mxu0
        %v5283 = vadd.f32 %v2176, %v5282
        %v5284 = vpop.f32.mrf.mxu0
        %v5285 = vadd.f32 %v2180, %v5284
        %v5286 = vpop.f32.mrf.mxu0
        %v5287 = vadd.f32 %v2176, %v5286
        %v5288 = vpop.f32.mrf.mxu0
        %v5289 = vadd.f32 %v2180, %v5288
        %5290 = vmatprep.mubr.bf16.mxu0 %v3629
        %5291 = vmatmul.mubr.bf16.gmra.mxu0 %v3628
        %v5292 = vpop.f32.mrf.mxu0
        %v5293 = vadd.f32 %v2176, %v5292
        %v5294 = vpop.f32.mrf.mxu0
        %v5295 = vadd.f32 %v2180, %v5294
        %v5296 = vpop.f32.mrf.mxu0
        %v5297 = vadd.f32 %v2176, %v5296
        %v5298 = vpop.f32.mrf.mxu0
        %v5299 = vadd.f32 %v2180, %v5298
        %5300 = vmatprep.mubr.bf16.mxu0 %v3632
        %5301 = vmatmul.mubr.bf16.gmra.mxu0 %v3631
        %v5302 = vpop.f32.mrf.mxu0
        %v5303 = vadd.f32 %v2176, %v5302
        %v5304 = vpop.f32.mrf.mxu0
        %v5305 = vadd.f32 %v2180, %v5304
        %v5306 = vpop.f32.mrf.mxu0
        %v5307 = vadd.f32 %v2176, %v5306
        %v5308 = vpop.f32.mrf.mxu0
        %v5309 = vadd.f32 %v2180, %v5308
        %5310 = vmatprep.mubr.bf16.mxu0 %v3635
        %5311 = vmatmul.mubr.bf16.gmra.mxu0 %v3634
        %v5312 = vpop.f32.mrf.mxu0
        %v5313 = vadd.f32 %v2176, %v5312
        %v5314 = vpop.f32.mrf.mxu0
        %v5315 = vadd.f32 %v2180, %v5314
        %v5316 = vpop.f32.mrf.mxu0
        %v5317 = vadd.f32 %v2176, %v5316
        %v5318 = vpop.f32.mrf.mxu0
        %v5319 = vadd.f32 %v2180, %v5318
        %5320 = vmatprep.mubr.bf16.mxu0 %v3638
        %5321 = vmatmul.mubr.bf16.gmra.mxu0 %v3637
        %v5322 = vpop.f32.mrf.mxu0
        %v5323 = vadd.f32 %v2176, %v5322
        %v5324 = vpop.f32.mrf.mxu0
        %v5325 = vadd.f32 %v2180, %v5324
        %v5326 = vpop.f32.mrf.mxu0
        %v5327 = vadd.f32 %v2176, %v5326
        %v5328 = vpop.f32.mrf.mxu0
        %v5329 = vadd.f32 %v2180, %v5328
        %5330 = vmatprep.mubr.bf16.mxu0 %v3641
        %5331 = vmatmul.mubr.bf16.gmra.mxu0 %v3640
        %v5332 = vpop.f32.mrf.mxu0
        %v5333 = vadd.f32 %v2176, %v5332
        %v5334 = vpop.f32.mrf.mxu0
        %v5335 = vadd.f32 %v2180, %v5334
        %v5336 = vpop.f32.mrf.mxu0
        %v5337 = vadd.f32 %v2176, %v5336
        %v5338 = vpop.f32.mrf.mxu0
        %v5339 = vadd.f32 %v2180, %v5338
        %5340 = vmatprep.mubr.bf16.mxu0 %v3644
        %5341 = vmatmul.mubr.bf16.gmra.mxu0 %v3643
        %v5342 = vpop.f32.mrf.mxu0
        %v5343 = vadd.f32 %v2176, %v5342
        %v5344 = vpop.f32.mrf.mxu0
        %v5345 = vadd.f32 %v2180, %v5344
        %v5346 = vpop.f32.mrf.mxu0
        %v5347 = vadd.f32 %v2176, %v5346
        %v5348 = vpop.f32.mrf.mxu0
        %v5349 = vadd.f32 %v2180, %v5348
        %5350 = vmatprep.mubr.bf16.mxu0 %v3647
        %5351 = vmatmul.mubr.bf16.gmra.mxu0 %v3646
        %v5352 = vpop.f32.mrf.mxu0
        %v5353 = vadd.f32 %v2176, %v5352
        %v5354 = vpop.f32.mrf.mxu0
        %v5355 = vadd.f32 %v2180, %v5354
        %v5356 = vpop.f32.mrf.mxu0
        %v5357 = vadd.f32 %v2176, %v5356
        %v5358 = vpop.f32.mrf.mxu0
        %v5359 = vadd.f32 %v2180, %v5358
        %5360 = vmatprep.mubr.bf16.mxu0 %v3650
        %5361 = vmatmul.mubr.bf16.gmra.mxu0 %v3649
        %v5362 = vpop.f32.mrf.mxu0
        %v5363 = vadd.f32 %v2176, %v5362
        %v5364 = vpop.f32.mrf.mxu0
        %v5365 = vadd.f32 %v2180, %v5364
        %v5366 = vpop.f32.mrf.mxu0
        %v5367 = vadd.f32 %v2176, %v5366
        %v5368 = vpop.f32.mrf.mxu0
        %v5369 = vadd.f32 %v2180, %v5368
        %5370 = vmatprep.mubr.bf16.mxu0 %v3653
        %5371 = vmatmul.mubr.bf16.gmra.mxu0 %v3652
        %v5372 = vpop.f32.mrf.mxu0
        %v5373 = vadd.f32 %v2176, %v5372
        %v5374 = vpop.f32.mrf.mxu0
        %v5375 = vadd.f32 %v2180, %v5374
        %v5376 = vpop.f32.mrf.mxu0
        %v5377 = vadd.f32 %v2176, %v5376
        %v5378 = vpop.f32.mrf.mxu0
        %v5379 = vadd.f32 %v2180, %v5378
        %5380 = vmatprep.mubr.bf16.mxu0 %v3656
        %5381 = vmatmul.mubr.bf16.gmra.mxu0 %v3655
        %v5382 = vpop.f32.mrf.mxu0
        %v5383 = vadd.f32 %v2176, %v5382
        %v5384 = vpop.f32.mrf.mxu0
        %v5385 = vadd.f32 %v2180, %v5384
        %v5386 = vpop.f32.mrf.mxu0
        %v5387 = vadd.f32 %v2176, %v5386
        %v5388 = vpop.f32.mrf.mxu0
        %v5389 = vadd.f32 %v2180, %v5388
        %5390 = vmatprep.mubr.bf16.mxu0 %v3659
        %5391 = vmatmul.mubr.bf16.gmra.mxu0 %v3658
        %v5392 = vpop.f32.mrf.mxu0
        %v5393 = vadd.f32 %v2176, %v5392
        %v5394 = vpop.f32.mrf.mxu0
        %v5395 = vadd.f32 %v2180, %v5394
        %v5396 = vpop.f32.mrf.mxu0
        %v5397 = vadd.f32 %v2176, %v5396
        %v5398 = vpop.f32.mrf.mxu0
        %v5399 = vadd.f32 %v2180, %v5398
        %5400 = vmatprep.mubr.bf16.mxu0 %v3662
        %5401 = vmatmul.mubr.bf16.gmra.mxu0 %v3661
        %v5402 = vpop.f32.mrf.mxu0
        %v5403 = vadd.f32 %v2176, %v5402
        %v5404 = vpop.f32.mrf.mxu0
        %v5405 = vadd.f32 %v2180, %v5404
        %v5406 = vpop.f32.mrf.mxu0
        %v5407 = vadd.f32 %v2176, %v5406
        %v5408 = vpop.f32.mrf.mxu0
        %v5409 = vadd.f32 %v2180, %v5408
        %5410 = vmatprep.mubr.bf16.mxu0 %v3665
        %5411 = vmatmul.mubr.bf16.gmra.mxu0 %v3664
        %v5412 = vpop.f32.mrf.mxu0
        %v5413 = vadd.f32 %v2176, %v5412
        %v5414 = vpop.f32.mrf.mxu0
        %v5415 = vadd.f32 %v2180, %v5414
        %v5416 = vpop.f32.mrf.mxu0
        %v5417 = vadd.f32 %v2176, %v5416
        %v5418 = vpop.f32.mrf.mxu0
        %v5419 = vadd.f32 %v2180, %v5418
        %5420 = vmatprep.mubr.bf16.mxu0 %v3668
        %5421 = vmatmul.mubr.bf16.gmra.mxu0 %v3667
        %v5422 = vpop.f32.mrf.mxu0
        %v5423 = vadd.f32 %v2176, %v5422
        %v5424 = vpop.f32.mrf.mxu0
        %v5425 = vadd.f32 %v2180, %v5424
        %v5426 = vpop.f32.mrf.mxu0
        %v5427 = vadd.f32 %v2176, %v5426
        %v5428 = vpop.f32.mrf.mxu0
        %v5429 = vadd.f32 %v2180, %v5428
        %5430 = vmatprep.mubr.bf16.mxu0 %v3671
        %5431 = vmatmul.mubr.bf16.gmra.mxu0 %v3670
        %v5432 = vpop.f32.mrf.mxu0
        %v5433 = vadd.f32 %v2176, %v5432
        %v5434 = vpop.f32.mrf.mxu0
        %v5435 = vadd.f32 %v2180, %v5434
        %v5436 = vpop.f32.mrf.mxu0
        %v5437 = vadd.f32 %v2176, %v5436
        %v5438 = vpop.f32.mrf.mxu0
        %v5439 = vadd.f32 %v2180, %v5438
        %5440 = vmatprep.mubr.bf16.mxu0 %v3674
        %5441 = vmatmul.mubr.bf16.gmra.mxu0 %v3673
        %v5442 = vpop.f32.mrf.mxu0
        %v5443 = vadd.f32 %v2176, %v5442
        %v5444 = vpop.f32.mrf.mxu0
        %v5445 = vadd.f32 %v2180, %v5444
        %v5446 = vpop.f32.mrf.mxu0
        %v5447 = vadd.f32 %v2176, %v5446
        %v5448 = vpop.f32.mrf.mxu0
        %v5449 = vadd.f32 %v2180, %v5448
        %5450 = vmatprep.mubr.bf16.mxu0 %v3677
        %5451 = vmatmul.mubr.bf16.gmra.mxu0 %v3676
        %v5452 = vpop.f32.mrf.mxu0
        %v5453 = vadd.f32 %v2176, %v5452
        %v5454 = vpop.f32.mrf.mxu0
        %v5455 = vadd.f32 %v2180, %v5454
        %v5456 = vpop.f32.mrf.mxu0
        %v5457 = vadd.f32 %v2176, %v5456
        %v5458 = vpop.f32.mrf.mxu0
        %v5459 = vadd.f32 %v2180, %v5458
        %5460 = vmatprep.mubr.bf16.mxu0 %v3680
        %5461 = vmatmul.mubr.bf16.gmra.mxu0 %v3679
        %v5462 = vpop.f32.mrf.mxu0
        %v5463 = vadd.f32 %v2176, %v5462
        %v5464 = vpop.f32.mrf.mxu0
        %v5465 = vadd.f32 %v2180, %v5464
        %v5466 = vpop.f32.mrf.mxu0
        %v5467 = vadd.f32 %v2176, %v5466
        %v5468 = vpop.f32.mrf.mxu0
        %v5469 = vadd.f32 %v2180, %v5468
        %5470 = vmatprep.mubr.bf16.mxu0 %v3683
        %5471 = vmatmul.mubr.bf16.gmra.mxu0 %v3682
        %v5472 = vpop.f32.mrf.mxu0
        %v5473 = vadd.f32 %v2176, %v5472
        %v5474 = vpop.f32.mrf.mxu0
        %v5475 = vadd.f32 %v2180, %v5474
        %v5476 = vpop.f32.mrf.mxu0
        %v5477 = vadd.f32 %v2176, %v5476
        %v5478 = vpop.f32.mrf.mxu0
        %v5479 = vadd.f32 %v2180, %v5478
        %5480 = vmatprep.mubr.bf16.mxu0 %v3686
        %5481 = vmatmul.mubr.bf16.gmra.mxu0 %v3685
        %v5482 = vpop.f32.mrf.mxu0
        %v5483 = vadd.f32 %v2176, %v5482
        %v5484 = vpop.f32.mrf.mxu0
        %v5485 = vadd.f32 %v2180, %v5484
        %v5486 = vpop.f32.mrf.mxu0
        %v5487 = vadd.f32 %v2176, %v5486
        %v5488 = vpop.f32.mrf.mxu0
        %v5489 = vadd.f32 %v2180, %v5488
        %5490 = vmatprep.mubr.bf16.mxu0 %v3689
        %5491 = vmatmul.mubr.bf16.gmra.mxu0 %v3688
        %v5492 = vpop.f32.mrf.mxu0
        %v5493 = vadd.f32 %v2176, %v5492
        %v5494 = vpop.f32.mrf.mxu0
        %v5495 = vadd.f32 %v2180, %v5494
        %v5496 = vpop.f32.mrf.mxu0
        %v5497 = vadd.f32 %v2176, %v5496
        %v5498 = vpop.f32.mrf.mxu0
        %v5499 = vadd.f32 %v2180, %v5498
        %5500 = vmatprep.mubr.bf16.mxu0 %v3692
        %5501 = vmatmul.mubr.bf16.gmra.mxu0 %v3691
        %v5502 = vpop.f32.mrf.mxu0
        %v5503 = vadd.f32 %v2176, %v5502
        %v5504 = vpop.f32.mrf.mxu0
        %v5505 = vadd.f32 %v2180, %v5504
        %v5506 = vpop.f32.mrf.mxu0
        %v5507 = vadd.f32 %v2176, %v5506
        %v5508 = vpop.f32.mrf.mxu0
        %v5509 = vadd.f32 %v2180, %v5508
        %5510 = vmatprep.mubr.bf16.mxu0 %v3695
        %5511 = vmatmul.mubr.bf16.gmra.mxu0 %v3694
        %v5512 = vpop.f32.mrf.mxu0
        %v5513 = vadd.f32 %v2176, %v5512
        %v5514 = vpop.f32.mrf.mxu0
        %v5515 = vadd.f32 %v2180, %v5514
        %v5516 = vpop.f32.mrf.mxu0
        %v5517 = vadd.f32 %v2176, %v5516
        %v5518 = vpop.f32.mrf.mxu0
        %v5519 = vadd.f32 %v2180, %v5518
        %5520 = vmatprep.mubr.bf16.mxu0 %v3698
        %5521 = vmatmul.mubr.bf16.gmra.mxu0 %v3697
        %v5522 = vpop.f32.mrf.mxu0
        %v5523 = vadd.f32 %v2176, %v5522
        %v5524 = vpop.f32.mrf.mxu0
        %v5525 = vadd.f32 %v2180, %v5524
        %v5526 = vpop.f32.mrf.mxu0
        %v5527 = vadd.f32 %v2176, %v5526
        %v5528 = vpop.f32.mrf.mxu0
        %v5529 = vadd.f32 %v2180, %v5528
        %5530 = vmatprep.mubr.bf16.mxu0 %v3701
        %5531 = vmatmul.mubr.bf16.gmra.mxu0 %v3700
        %v5532 = vpop.f32.mrf.mxu0
        %v5533 = vadd.f32 %v2176, %v5532
        %v5534 = vpop.f32.mrf.mxu0
        %v5535 = vadd.f32 %v2180, %v5534
        %v5536 = vpop.f32.mrf.mxu0
        %v5537 = vadd.f32 %v2176, %v5536
        %v5538 = vpop.f32.mrf.mxu0
        %v5539 = vadd.f32 %v2180, %v5538
        %5540 = vmatprep.mubr.bf16.mxu0 %v3704
        %5541 = vmatmul.mubr.bf16.gmra.mxu0 %v3703
        %v5542 = vpop.f32.mrf.mxu0
        %v5543 = vadd.f32 %v2176, %v5542
        %v5544 = vpop.f32.mrf.mxu0
        %v5545 = vadd.f32 %v2180, %v5544
        %v5546 = vpop.f32.mrf.mxu0
        %v5547 = vadd.f32 %v2176, %v5546
        %v5548 = vpop.f32.mrf.mxu0
        %v5549 = vadd.f32 %v2180, %v5548
        %5550 = vmatprep.mubr.bf16.mxu0 %v3707
        %5551 = vmatmul.mubr.bf16.gmra.mxu0 %v3706
        %v5552 = vpop.f32.mrf.mxu0
        %v5553 = vadd.f32 %v2176, %v5552
        %v5554 = vpop.f32.mrf.mxu0
        %v5555 = vadd.f32 %v2180, %v5554
        %v5556 = vpop.f32.mrf.mxu0
        %v5557 = vadd.f32 %v2176, %v5556
        %v5558 = vpop.f32.mrf.mxu0
        %v5559 = vadd.f32 %v2180, %v5558
        %5560 = vmatprep.mubr.bf16.mxu0 %v3710
        %5561 = vmatmul.mubr.bf16.gmra.mxu0 %v3709
        %v5562 = vpop.f32.mrf.mxu0
        %v5563 = vadd.f32 %v2176, %v5562
        %v5564 = vpop.f32.mrf.mxu0
        %v5565 = vadd.f32 %v2180, %v5564
        %v5566 = vpop.f32.mrf.mxu0
        %v5567 = vadd.f32 %v2176, %v5566
        %v5568 = vpop.f32.mrf.mxu0
        %v5569 = vadd.f32 %v2180, %v5568
        %5570 = vmatprep.mubr.bf16.mxu0 %v3713
        %5571 = vmatmul.mubr.bf16.gmra.mxu0 %v3712
        %v5572 = vpop.f32.mrf.mxu0
        %v5573 = vadd.f32 %v2176, %v5572
        %v5574 = vpop.f32.mrf.mxu0
        %v5575 = vadd.f32 %v2180, %v5574
        %v5576 = vpop.f32.mrf.mxu0
        %v5577 = vadd.f32 %v2176, %v5576
        %v5578 = vpop.f32.mrf.mxu0
        %v5579 = vadd.f32 %v2180, %v5578
        %5580 = vmatprep.mubr.bf16.mxu0 %v3716
        %5581 = vmatmul.mubr.bf16.gmra.mxu0 %v3715
        %v5582 = vpop.f32.mrf.mxu0
        %v5583 = vadd.f32 %v2176, %v5582
        %v5584 = vpop.f32.mrf.mxu0
        %v5585 = vadd.f32 %v2180, %v5584
        %v5586 = vpop.f32.mrf.mxu0
        %v5587 = vadd.f32 %v2176, %v5586
        %v5588 = vpop.f32.mrf.mxu0
        %v5589 = vadd.f32 %v2180, %v5588
        %5590 = vmatprep.mubr.bf16.mxu0 %v3719
        %5591 = vmatmul.mubr.bf16.gmra.mxu0 %v3718
        %v5592 = vpop.f32.mrf.mxu0
        %v5593 = vadd.f32 %v2176, %v5592
        %v5594 = vpop.f32.mrf.mxu0
        %v5595 = vadd.f32 %v2180, %v5594
        %v5596 = vpop.f32.mrf.mxu0
        %v5597 = vadd.f32 %v2176, %v5596
        %v5598 = vpop.f32.mrf.mxu0
        %v5599 = vadd.f32 %v2180, %v5598
        %5600 = vmatprep.mubr.bf16.mxu0 %v3722
        %5601 = vmatmul.mubr.bf16.gmra.mxu0 %v3721
        %v5602 = vpop.f32.mrf.mxu0
        %v5603 = vadd.f32 %v2176, %v5602
        %v5604 = vpop.f32.mrf.mxu0
        %v5605 = vadd.f32 %v2180, %v5604
        %v5606 = vpop.f32.mrf.mxu0
        %v5607 = vadd.f32 %v2176, %v5606
        %v5608 = vpop.f32.mrf.mxu0
        %v5609 = vadd.f32 %v2180, %v5608
        %5610 = vmatprep.mubr.bf16.mxu0 %v3725
        %5611 = vmatmul.mubr.bf16.gmra.mxu0 %v3724
        %v5612 = vpop.f32.mrf.mxu0
        %v5613 = vadd.f32 %v2176, %v5612
        %v5614 = vpop.f32.mrf.mxu0
        %v5615 = vadd.f32 %v2180, %v5614
        %v5616 = vpop.f32.mrf.mxu0
        %v5617 = vadd.f32 %v2176, %v5616
        %v5618 = vpop.f32.mrf.mxu0
        %v5619 = vadd.f32 %v2180, %v5618
        %5620 = vmatprep.mubr.bf16.mxu0 %v3728
        %5621 = vmatmul.mubr.bf16.gmra.mxu0 %v3727
        %v5622 = vpop.f32.mrf.mxu0
        %v5623 = vadd.f32 %v2176, %v5622
        %v5624 = vpop.f32.mrf.mxu0
        %v5625 = vadd.f32 %v2180, %v5624
        %v5626 = vpop.f32.mrf.mxu0
        %v5627 = vadd.f32 %v2176, %v5626
        %v5628 = vpop.f32.mrf.mxu0
        %v5629 = vadd.f32 %v2180, %v5628
        %5630 = vmatprep.mubr.bf16.mxu0 %v3731
        %5631 = vmatmul.mubr.bf16.gmra.mxu0 %v3730
        %v5632 = vpop.f32.mrf.mxu0
        %v5633 = vadd.f32 %v2176, %v5632
        %v5634 = vpop.f32.mrf.mxu0
        %v5635 = vadd.f32 %v2180, %v5634
        %v5636 = vpop.f32.mrf.mxu0
        %v5637 = vadd.f32 %v2176, %v5636
        %v5638 = vpop.f32.mrf.mxu0
        %v5639 = vadd.f32 %v2180, %v5638
        %5640 = vmatprep.mubr.bf16.mxu0 %v3734
        %5641 = vmatmul.mubr.bf16.gmra.mxu0 %v3733
        %v5642 = vpop.f32.mrf.mxu0
        %v5643 = vadd.f32 %v2176, %v5642
        %v5644 = vpop.f32.mrf.mxu0
        %v5645 = vadd.f32 %v2180, %v5644
        %v5646 = vpop.f32.mrf.mxu0
        %v5647 = vadd.f32 %v2176, %v5646
        %v5648 = vpop.f32.mrf.mxu0
        %v5649 = vadd.f32 %v2180, %v5648
        %5650 = vmatprep.mubr.bf16.mxu0 %v3737
        %5651 = vmatmul.mubr.bf16.gmra.mxu0 %v3736
        %v5652 = vpop.f32.mrf.mxu0
        %v5653 = vadd.f32 %v2176, %v5652
        %v5654 = vpop.f32.mrf.mxu0
        %v5655 = vadd.f32 %v2180, %v5654
        %v5656 = vpop.f32.mrf.mxu0
        %v5657 = vadd.f32 %v2176, %v5656
        %v5658 = vpop.f32.mrf.mxu0
        %v5659 = vadd.f32 %v2180, %v5658
        %5660 = vmatprep.mubr.bf16.mxu0 %v3740
        %5661 = vmatmul.mubr.bf16.gmra.mxu0 %v3739
        %v5662 = vpop.f32.mrf.mxu0
        %v5663 = vadd.f32 %v2176, %v5662
        %v5664 = vpop.f32.mrf.mxu0
        %v5665 = vadd.f32 %v2180, %v5664
        %v5666 = vpop.f32.mrf.mxu0
        %v5667 = vadd.f32 %v2176, %v5666
        %v5668 = vpop.f32.mrf.mxu0
        %v5669 = vadd.f32 %v2180, %v5668
        %5670 = vmatprep.mubr.bf16.mxu0 %v3743
        %5671 = vmatmul.mubr.bf16.gmra.mxu0 %v3742
        %v5672 = vpop.f32.mrf.mxu0
        %v5673 = vadd.f32 %v2176, %v5672
        %v5674 = vpop.f32.mrf.mxu0
        %v5675 = vadd.f32 %v2180, %v5674
        %v5676 = vpop.f32.mrf.mxu0
        %v5677 = vadd.f32 %v2176, %v5676
        %v5678 = vpop.f32.mrf.mxu0
        %v5679 = vadd.f32 %v2180, %v5678
        %5680 = vmatprep.mubr.bf16.mxu0 %v3746
        %5681 = vmatmul.mubr.bf16.gmra.mxu0 %v3745
        %v5682 = vpop.f32.mrf.mxu0
        %v5683 = vadd.f32 %v2176, %v5682
        %v5684 = vpop.f32.mrf.mxu0
        %v5685 = vadd.f32 %v2180, %v5684
        %v5686 = vpop.f32.mrf.mxu0
        %v5687 = vadd.f32 %v2176, %v5686
        %v5688 = vpop.f32.mrf.mxu0
        %v5689 = vadd.f32 %v2180, %v5688
        %5690 = vmatprep.mubr.bf16.mxu0 %v3749
        %5691 = vmatmul.mubr.bf16.gmra.mxu0 %v3748
        %v5692 = vpop.f32.mrf.mxu0
        %v5693 = vadd.f32 %v2176, %v5692
        %v5694 = vpop.f32.mrf.mxu0
        %v5695 = vadd.f32 %v2180, %v5694
        %v5696 = vpop.f32.mrf.mxu0
        %v5697 = vadd.f32 %v2176, %v5696
        %v5698 = vpop.f32.mrf.mxu0
        %v5699 = vadd.f32 %v2180, %v5698
        %5700 = vmatprep.mubr.bf16.mxu0 %v3752
        %5701 = vmatmul.mubr.bf16.gmra.mxu0 %v3751
        %v5702 = vpop.f32.mrf.mxu0
        %v5703 = vadd.f32 %v2176, %v5702
        %v5704 = vpop.f32.mrf.mxu0
        %v5705 = vadd.f32 %v2180, %v5704
        %v5706 = vpop.f32.mrf.mxu0
        %v5707 = vadd.f32 %v2176, %v5706
        %v5708 = vpop.f32.mrf.mxu0
        %v5709 = vadd.f32 %v2180, %v5708
        %5710 = vmatprep.mubr.bf16.mxu0 %v3755
        %5711 = vmatmul.mubr.bf16.gmra.mxu0 %v3754
        %v5712 = vpop.f32.mrf.mxu0
        %v5713 = vadd.f32 %v2176, %v5712
        %v5714 = vpop.f32.mrf.mxu0
        %v5715 = vadd.f32 %v2180, %v5714
        %v5716 = vpop.f32.mrf.mxu0
        %v5717 = vadd.f32 %v2176, %v5716
        %v5718 = vpop.f32.mrf.mxu0
        %v5719 = vadd.f32 %v2180, %v5718
        %5720 = vmatprep.mubr.bf16.mxu0 %v3758
        %5721 = vmatmul.mubr.bf16.gmra.mxu0 %v3757
        %v5722 = vpop.f32.mrf.mxu0
        %v5723 = vadd.f32 %v2176, %v5722
        %v5724 = vpop.f32.mrf.mxu0
        %v5725 = vadd.f32 %v2180, %v5724
        %v5726 = vpop.f32.mrf.mxu0
        %v5727 = vadd.f32 %v2176, %v5726
        %v5728 = vpop.f32.mrf.mxu0
        %v5729 = vadd.f32 %v2180, %v5728
        %5730 = vmatprep.mubr.bf16.mxu0 %v3761
        %5731 = vmatmul.mubr.bf16.gmra.mxu0 %v3760
        %v5732 = vpop.f32.mrf.mxu0
        %v5733 = vadd.f32 %v2176, %v5732
        %v5734 = vpop.f32.mrf.mxu0
        %v5735 = vadd.f32 %v2180, %v5734
        %v5736 = vpop.f32.mrf.mxu0
        %v5737 = vadd.f32 %v2176, %v5736
        %v5738 = vpop.f32.mrf.mxu0
        %v5739 = vadd.f32 %v2180, %v5738
        %5740 = vmatprep.mubr.bf16.mxu0 %v3764
        %5741 = vmatmul.mubr.bf16.gmra.mxu0 %v3763
        %v5742 = vpop.f32.mrf.mxu0
        %v5743 = vadd.f32 %v2176, %v5742
        %v5744 = vpop.f32.mrf.mxu0
        %v5745 = vadd.f32 %v2180, %v5744
        %v5746 = vpop.f32.mrf.mxu0
        %v5747 = vadd.f32 %v2176, %v5746
        %v5748 = vpop.f32.mrf.mxu0
        %v5749 = vadd.f32 %v2180, %v5748
        %5750 = vmatprep.mubr.bf16.mxu0 %v3767
        %5751 = vmatmul.mubr.bf16.gmra.mxu0 %v3766
        %v5752 = vpop.f32.mrf.mxu0
        %v5753 = vadd.f32 %v2176, %v5752
        %v5754 = vpop.f32.mrf.mxu0
        %v5755 = vadd.f32 %v2180, %v5754
        %v5756 = vpop.f32.mrf.mxu0
        %v5757 = vadd.f32 %v2176, %v5756
        %v5758 = vpop.f32.mrf.mxu0
        %v5759 = vadd.f32 %v2180, %v5758
        %5760 = vmatprep.mubr.bf16.mxu0 %v3770
        %5761 = vmatmul.mubr.bf16.gmra.mxu0 %v3769
        %v5762 = vpop.f32.mrf.mxu0
        %v5763 = vadd.f32 %v2176, %v5762
        %v5764 = vpop.f32.mrf.mxu0
        %v5765 = vadd.f32 %v2180, %v5764
        %v5766 = vpop.f32.mrf.mxu0
        %v5767 = vadd.f32 %v2176, %v5766
        %v5768 = vpop.f32.mrf.mxu0
        %v5769 = vadd.f32 %v2180, %v5768
        %5770 = vmatprep.mubr.bf16.mxu0 %v3773
        %5771 = vmatmul.mubr.bf16.gmra.mxu0 %v3772
        %v5772 = vpop.f32.mrf.mxu0
        %v5773 = vadd.f32 %v2176, %v5772
        %v5774 = vpop.f32.mrf.mxu0
        %v5775 = vadd.f32 %v2180, %v5774
        %v5776 = vpop.f32.mrf.mxu0
        %v5777 = vadd.f32 %v2176, %v5776
        %v5778 = vpop.f32.mrf.mxu0
        %v5779 = vadd.f32 %v2180, %v5778
        %5780 = vmatprep.mubr.bf16.mxu0 %v3776
        %5781 = vmatmul.mubr.bf16.gmra.mxu0 %v3775
        %v5782 = vpop.f32.mrf.mxu0
        %v5783 = vadd.f32 %v2176, %v5782
        %v5784 = vpop.f32.mrf.mxu0
        %v5785 = vadd.f32 %v2180, %v5784
        %v5786 = vpop.f32.mrf.mxu0
        %v5787 = vadd.f32 %v2176, %v5786
        %v5788 = vpop.f32.mrf.mxu0
        %v5789 = vadd.f32 %v2180, %v5788
        %5790 = vmatprep.mubr.bf16.mxu0 %v3779
        %5791 = vmatmul.mubr.bf16.gmra.mxu0 %v3778
        %v5792 = vpop.f32.mrf.mxu0
        %v5793 = vadd.f32 %v2176, %v5792
        %v5794 = vpop.f32.mrf.mxu0
        %v5795 = vadd.f32 %v2180, %v5794
        %v5796 = vpop.f32.mrf.mxu0
        %v5797 = vadd.f32 %v2176, %v5796
        %v5798 = vpop.f32.mrf.mxu0
        %v5799 = vadd.f32 %v2180, %v5798
        %5800 = vmatprep.mubr.bf16.mxu0 %v3782
        %5801 = vmatmul.mubr.bf16.gmra.mxu0 %v3781
        %v5802 = vpop.f32.mrf.mxu0
        %v5803 = vadd.f32 %v2176, %v5802
        %v5804 = vpop.f32.mrf.mxu0
        %v5805 = vadd.f32 %v2180, %v5804
        %v5806 = vpop.f32.mrf.mxu0
        %v5807 = vadd.f32 %v2176, %v5806
        %v5808 = vpop.f32.mrf.mxu0
        %v5809 = vadd.f32 %v2180, %v5808
        %5810 = vmatprep.mubr.bf16.mxu0 %v3785
        %5811 = vmatmul.mubr.bf16.gmra.mxu0 %v3784
        %v5812 = vpop.f32.mrf.mxu0
        %v5813 = vadd.f32 %v2176, %v5812
        %v5814 = vpop.f32.mrf.mxu0
        %v5815 = vadd.f32 %v2180, %v5814
        %v5816 = vpop.f32.mrf.mxu0
        %v5817 = vadd.f32 %v2176, %v5816
        %v5818 = vpop.f32.mrf.mxu0
        %v5819 = vadd.f32 %v2180, %v5818
        %5820 = vmatprep.mubr.bf16.mxu0 %v3788
        %5821 = vmatmul.mubr.bf16.gmra.mxu0 %v3787
        %v5822 = vpop.f32.mrf.mxu0
        %v5823 = vadd.f32 %v2176, %v5822
        %v5824 = vpop.f32.mrf.mxu0
        %v5825 = vadd.f32 %v2180, %v5824
        %v5826 = vpop.f32.mrf.mxu0
        %v5827 = vadd.f32 %v2176, %v5826
        %v5828 = vpop.f32.mrf.mxu0
        %v5829 = vadd.f32 %v2180, %v5828
        %5830 = vmatprep.mubr.bf16.mxu0 %v3791
        %5831 = vmatmul.mubr.bf16.gmra.mxu0 %v3790
        %v5832 = vpop.f32.mrf.mxu0
        %v5833 = vadd.f32 %v2176, %v5832
        %v5834 = vpop.f32.mrf.mxu0
        %v5835 = vadd.f32 %v2180, %v5834
        %v5836 = vpop.f32.mrf.mxu0
        %v5837 = vadd.f32 %v2176, %v5836
        %v5838 = vpop.f32.mrf.mxu0
        %v5839 = vadd.f32 %v2180, %v5838
        %5840 = vmatprep.mubr.bf16.mxu0 %v3794
        %5841 = vmatmul.mubr.bf16.gmra.mxu0 %v3793
        %v5842 = vpop.f32.mrf.mxu0
        %v5843 = vadd.f32 %v2176, %v5842
        %v5844 = vpop.f32.mrf.mxu0
        %v5845 = vadd.f32 %v2180, %v5844
        %v5846 = vpop.f32.mrf.mxu0
        %v5847 = vadd.f32 %v2176, %v5846
        %v5848 = vpop.f32.mrf.mxu0
        %v5849 = vadd.f32 %v2180, %v5848
        %5850 = vmatprep.mubr.bf16.mxu0 %v3797
        %5851 = vmatmul.mubr.bf16.gmra.mxu0 %v3796
        %v5852 = vpop.f32.mrf.mxu0
        %v5853 = vadd.f32 %v2176, %v5852
        %v5854 = vpop.f32.mrf.mxu0
        %v5855 = vadd.f32 %v2180, %v5854
        %v5856 = vpop.f32.mrf.mxu0
        %v5857 = vadd.f32 %v2176, %v5856
        %v5858 = vpop.f32.mrf.mxu0
        %v5859 = vadd.f32 %v2180, %v5858
        %5860 = vmatprep.mubr.bf16.mxu0 %v3800
        %5861 = vmatmul.mubr.bf16.gmra.mxu0 %v3799
        %v5862 = vpop.f32.mrf.mxu0
        %v5863 = vadd.f32 %v2176, %v5862
        %v5864 = vpop.f32.mrf.mxu0
        %v5865 = vadd.f32 %v2180, %v5864
        %v5866 = vpop.f32.mrf.mxu0
        %v5867 = vadd.f32 %v2176, %v5866
        %v5868 = vpop.f32.mrf.mxu0
        %v5869 = vadd.f32 %v2180, %v5868
        %5870 = vmatprep.mubr.bf16.mxu0 %v3803
        %5871 = vmatmul.mubr.bf16.gmra.mxu0 %v3802
        %v5872 = vpop.f32.mrf.mxu0
        %v5873 = vadd.f32 %v2176, %v5872
        %v5874 = vpop.f32.mrf.mxu0
        %v5875 = vadd.f32 %v2180, %v5874
        %v5876 = vpop.f32.mrf.mxu0
        %v5877 = vadd.f32 %v2176, %v5876
        %v5878 = vpop.f32.mrf.mxu0
        %v5879 = vadd.f32 %v2180, %v5878
        %5880 = vmatprep.mubr.bf16.mxu0 %v3806
        %5881 = vmatmul.mubr.bf16.gmra.mxu0 %v3805
        %v5882 = vpop.f32.mrf.mxu0
        %v5883 = vadd.f32 %v2176, %v5882
        %v5884 = vpop.f32.mrf.mxu0
        %v5885 = vadd.f32 %v2180, %v5884
        %v5886 = vpop.f32.mrf.mxu0
        %v5887 = vadd.f32 %v2176, %v5886
        %v5888 = vpop.f32.mrf.mxu0
        %v5889 = vadd.f32 %v2180, %v5888
        %5890 = vmatprep.mubr.bf16.mxu0 %v3809
        %5891 = vmatmul.mubr.bf16.gmra.mxu0 %v3808
        %v5892 = vpop.f32.mrf.mxu0
        %v5893 = vadd.f32 %v2176, %v5892
        %v5894 = vpop.f32.mrf.mxu0
        %v5895 = vadd.f32 %v2180, %v5894
        %v5896 = vpop.f32.mrf.mxu0
        %v5897 = vadd.f32 %v2176, %v5896
        %v5898 = vpop.f32.mrf.mxu0
        %v5899 = vadd.f32 %v2180, %v5898
        %5900 = vmatprep.mubr.bf16.mxu0 %v3812
        %5901 = vmatmul.mubr.bf16.gmra.mxu0 %v3811
        %v5902 = vpop.f32.mrf.mxu0
        %v5903 = vadd.f32 %v2176, %v5902
        %v5904 = vpop.f32.mrf.mxu0
        %v5905 = vadd.f32 %v2180, %v5904
        %v5906 = vpop.f32.mrf.mxu0
        %v5907 = vadd.f32 %v2176, %v5906
        %v5908 = vpop.f32.mrf.mxu0
        %v5909 = vadd.f32 %v2180, %v5908
        %5910 = vmatprep.mubr.bf16.mxu0 %v3815
        %5911 = vmatmul.mubr.bf16.gmra.mxu0 %v3814
        %v5912 = vpop.f32.mrf.mxu0
        %v5913 = vadd.f32 %v2176, %v5912
        %v5914 = vpop.f32.mrf.mxu0
        %v5915 = vadd.f32 %v2180, %v5914
        %v5916 = vpop.f32.mrf.mxu0
        %v5917 = vadd.f32 %v2176, %v5916
        %v5918 = vpop.f32.mrf.mxu0
        %v5919 = vadd.f32 %v2180, %v5918
        %5920 = vmatprep.mubr.bf16.mxu0 %v3818
        %5921 = vmatmul.mubr.bf16.gmra.mxu0 %v3817
        %v5922 = vpop.f32.mrf.mxu0
        %v5923 = vadd.f32 %v2176, %v5922
        %v5924 = vpop.f32.mrf.mxu0
        %v5925 = vadd.f32 %v2180, %v5924
        %v5926 = vpop.f32.mrf.mxu0
        %v5927 = vadd.f32 %v2176, %v5926
        %v5928 = vpop.f32.mrf.mxu0
        %v5929 = vadd.f32 %v2180, %v5928
        %5930 = vmatprep.mubr.bf16.mxu0 %v3821
        %5931 = vmatmul.mubr.bf16.gmra.mxu0 %v3820
        %v5932 = vpop.f32.mrf.mxu0
        %v5933 = vadd.f32 %v2176, %v5932
        %v5934 = vpop.f32.mrf.mxu0
        %v5935 = vadd.f32 %v2180, %v5934
        %v5936 = vpop.f32.mrf.mxu0
        %v5937 = vadd.f32 %v2176, %v5936
        %v5938 = vpop.f32.mrf.mxu0
        %v5939 = vadd.f32 %v2180, %v5938
        %5940 = vmatprep.mubr.bf16.mxu0 %v3824
        %5941 = vmatmul.mubr.bf16.gmra.mxu0 %v3823
        %v5942 = vpop.f32.mrf.mxu0
        %v5943 = vadd.f32 %v2176, %v5942
        %v5944 = vpop.f32.mrf.mxu0
        %v5945 = vadd.f32 %v2180, %v5944
        %v5946 = vpop.f32.mrf.mxu0
        %v5947 = vadd.f32 %v2176, %v5946
        %v5948 = vpop.f32.mrf.mxu0
        %v5949 = vadd.f32 %v2180, %v5948
        %5950 = vmatprep.mubr.bf16.mxu0 %v3827
        %5951 = vmatmul.mubr.bf16.gmra.mxu0 %v3826
        %v5952 = vpop.f32.mrf.mxu0
        %v5953 = vadd.f32 %v2176, %v5952
        %v5954 = vpop.f32.mrf.mxu0
        %v5955 = vadd.f32 %v2180, %v5954
        %v5956 = vpop.f32.mrf.mxu0
        %v5957 = vadd.f32 %v2176, %v5956
        %v5958 = vpop.f32.mrf.mxu0
        %v5959 = vadd.f32 %v2180, %v5958
        %5960 = vmatprep.mubr.bf16.mxu0 %v3830
        %5961 = vmatmul.mubr.bf16.gmra.mxu0 %v3829
        %v5962 = vpop.f32.mrf.mxu0
        %v5963 = vadd.f32 %v2176, %v5962
        %v5964 = vpop.f32.mrf.mxu0
        %v5965 = vadd.f32 %v2180, %v5964
        %v5966 = vpop.f32.mrf.mxu0
        %v5967 = vadd.f32 %v2176, %v5966
        %v5968 = vpop.f32.mrf.mxu0
        %v5969 = vadd.f32 %v2180, %v5968
        %5970 = vmatprep.mubr.bf16.mxu0 %v3833
        %5971 = vmatmul.mubr.bf16.gmra.mxu0 %v3832
        %v5972 = vpop.f32.mrf.mxu0
        %v5973 = vadd.f32 %v2176, %v5972
        %v5974 = vpop.f32.mrf.mxu0
        %v5975 = vadd.f32 %v2180, %v5974
        %v5976 = vpop.f32.mrf.mxu0
        %v5977 = vadd.f32 %v2176, %v5976
        %v5978 = vpop.f32.mrf.mxu0
        %v5979 = vadd.f32 %v2180, %v5978
        %5980 = vmatprep.mubr.bf16.mxu0 %v3836
        %5981 = vmatmul.mubr.bf16.gmra.mxu0 %v3835
        %v5982 = vpop.f32.mrf.mxu0
        %v5983 = vadd.f32 %v2176, %v5982
        %v5984 = vpop.f32.mrf.mxu0
        %v5985 = vadd.f32 %v2180, %v5984
        %v5986 = vpop.f32.mrf.mxu0
        %v5987 = vadd.f32 %v2176, %v5986
        %v5988 = vpop.f32.mrf.mxu0
        %v5989 = vadd.f32 %v2180, %v5988
        %5990 = vmatprep.mubr.bf16.mxu0 %v3839
        %5991 = vmatmul.mubr.bf16.gmra.mxu0 %v3838
        %v5992 = vpop.f32.mrf.mxu0
        %v5993 = vadd.f32 %v2176, %v5992
        %v5994 = vpop.f32.mrf.mxu0
        %v5995 = vadd.f32 %v2180, %v5994
        %v5996 = vpop.f32.mrf.mxu0
        %v5997 = vadd.f32 %v2176, %v5996
        %v5998 = vpop.f32.mrf.mxu0
        %v5999 = vadd.f32 %v2180, %v5998
        %6000 = vmatprep.mubr.bf16.mxu0 %v3842
        %6001 = vmatmul.mubr.bf16.gmra.mxu0 %v3841
        %v6002 = vpop.f32.mrf.mxu0
        %v6003 = vadd.f32 %v2176, %v6002
        %v6004 = vpop.f32.mrf.mxu0
        %v6005 = vadd.f32 %v2180, %v6004
        %v6006 = vpop.f32.mrf.mxu0
        %v6007 = vadd.f32 %v2176, %v6006
        %v6008 = vpop.f32.mrf.mxu0
        %v6009 = vadd.f32 %v2180, %v6008
        %6010 = vmatprep.mubr.bf16.mxu0 %v3845
        %6011 = vmatmul.mubr.bf16.gmra.mxu0 %v3844
        %v6012 = vpop.f32.mrf.mxu0
        %v6013 = vadd.f32 %v2176, %v6012
        %v6014 = vpop.f32.mrf.mxu0
        %v6015 = vadd.f32 %v2180, %v6014
        %v6016 = vpop.f32.mrf.mxu0
        %v6017 = vadd.f32 %v2176, %v6016
        %v6018 = vpop.f32.mrf.mxu0
        %v6019 = vadd.f32 %v2180, %v6018
        %6020 = vdwg.mxu0
        %6021 = vmatprep.subr.bf16.mxu0 0
        %6022 = vmatpush1.bf16.msra.mxu0 0
        %6023 = vmatprep.subr.bf16.mxu0 0
        %6024 = vmatpush1.bf16.msra.mxu0 0
        %6025 = vmatprep.subr.bf16.mxu0 %v4278
        %6026 = vmatpush1.bf16.msra.mxu0 %v4277
        %6027 = vmatprep.subr.bf16.mxu0 %v4276
        %6028 = vmatpush1.bf16.msra.mxu0 %v4275
        %6029 = vmatprep.subr.bf16.mxu0 %v4274
        %6030 = vmatpush1.bf16.msra.mxu0 %v4273
        %6031 = vmatprep.subr.bf16.mxu0 %v4272
        %6032 = vmatpush1.bf16.msra.mxu0 %v4271
        %6033 = vmatprep.subr.bf16.mxu0 %v4270
        %6034 = vmatpush1.bf16.msra.mxu0 %v4269
        %6035 = vmatprep.subr.bf16.mxu0 %v4268
        %6036 = vmatpush1.bf16.msra.mxu0 %v4267
        %6037 = vmatprep.subr.bf16.mxu0 0
        %6038 = vmatpush2.bf16.msra.mxu0 0
        %6039 = vmatprep.subr.bf16.mxu0 0
        %6040 = vmatpush2.bf16.msra.mxu0 0
        %6041 = vmatprep.subr.bf16.mxu0 0
        %6042 = vmatpush2.bf16.msra.mxu0 0
        %6043 = vmatprep.subr.bf16.mxu0 0
        %6044 = vmatpush2.bf16.msra.mxu0 0
        %6045 = vmatprep.subr.bf16.mxu0 0
        %6046 = vmatpush2.bf16.msra.mxu0 0
        %6047 = vmatprep.subr.bf16.mxu0 0
        %6048 = vmatpush2.bf16.msra.mxu0 0
        %6049 = vmatprep.subr.bf16.mxu0 0
        %6050 = vmatpush2.bf16.msra.mxu0 0
        %6051 = vmatprep.subr.bf16.mxu0 0
        %6052 = vmatpush2.bf16.msra.mxu0 0
        %6053 = vmatprep.mubr.bf16.mxu0 0
        %6054 = vmatmul.mubr.bf16.gmra.mxu0 %v4325
        %v6055 = vpop.f32.mrf.mxu0
        %v6056 = vadd.f32 %v4743, %v6055
        %v6057 = vpop.f32.mrf.mxu0
        %v6058 = vadd.f32 %v4745, %v6057
        %v6059 = vpop.f32.mrf.mxu0
        %v6060 = vadd.f32 %v4747, %v6059
        %v6061 = vpop.f32.mrf.mxu0
        %v6062 = vadd.f32 %v4749, %v6061
        %6063 = vmatprep.mubr.bf16.mxu0 0
        %6064 = vmatmul.mubr.bf16.gmra.mxu0 %v4328
        %v6065 = vpop.f32.mrf.mxu0
        %v6066 = vadd.f32 %v4753, %v6065
        %v6067 = vpop.f32.mrf.mxu0
        %v6068 = vadd.f32 %v4755, %v6067
        %v6069 = vpop.f32.mrf.mxu0
        %v6070 = vadd.f32 %v4757, %v6069
        %v6071 = vpop.f32.mrf.mxu0
        %v6072 = vadd.f32 %v4759, %v6071
        %6073 = vmatprep.mubr.bf16.mxu0 0
        %6074 = vmatmul.mubr.bf16.gmra.mxu0 %v4331
        %v6075 = vpop.f32.mrf.mxu0
        %v6076 = vadd.f32 %v4763, %v6075
        %v6077 = vpop.f32.mrf.mxu0
        %v6078 = vadd.f32 %v4765, %v6077
        %v6079 = vpop.f32.mrf.mxu0
        %v6080 = vadd.f32 %v4767, %v6079
        %v6081 = vpop.f32.mrf.mxu0
        %v6082 = vadd.f32 %v4769, %v6081
        %6083 = vmatprep.mubr.bf16.mxu0 0
        %6084 = vmatmul.mubr.bf16.gmra.mxu0 %v4334
        %v6085 = vpop.f32.mrf.mxu0
        %v6086 = vadd.f32 %v4773, %v6085
        %v6087 = vpop.f32.mrf.mxu0
        %v6088 = vadd.f32 %v4775, %v6087
        %v6089 = vpop.f32.mrf.mxu0
        %v6090 = vadd.f32 %v4777, %v6089
        %v6091 = vpop.f32.mrf.mxu0
        %v6092 = vadd.f32 %v4779, %v6091
        %6093 = vmatprep.mubr.bf16.mxu0 0
        %6094 = vmatmul.mubr.bf16.gmra.mxu0 %v4337
        %v6095 = vpop.f32.mrf.mxu0
        %v6096 = vadd.f32 %v4783, %v6095
        %v6097 = vpop.f32.mrf.mxu0
        %v6098 = vadd.f32 %v4785, %v6097
        %v6099 = vpop.f32.mrf.mxu0
        %v6100 = vadd.f32 %v4787, %v6099
        %v6101 = vpop.f32.mrf.mxu0
        %v6102 = vadd.f32 %v4789, %v6101
        %6103 = vmatprep.mubr.bf16.mxu0 0
        %6104 = vmatmul.mubr.bf16.gmra.mxu0 %v4340
        %v6105 = vpop.f32.mrf.mxu0
        %v6106 = vadd.f32 %v4793, %v6105
        %v6107 = vpop.f32.mrf.mxu0
        %v6108 = vadd.f32 %v4795, %v6107
        %v6109 = vpop.f32.mrf.mxu0
        %v6110 = vadd.f32 %v4797, %v6109
        %v6111 = vpop.f32.mrf.mxu0
        %v6112 = vadd.f32 %v4799, %v6111
        %6113 = vmatprep.mubr.bf16.mxu0 0
        %6114 = vmatmul.mubr.bf16.gmra.mxu0 %v4343
        %v6115 = vpop.f32.mrf.mxu0
        %v6116 = vadd.f32 %v4803, %v6115
        %v6117 = vpop.f32.mrf.mxu0
        %v6118 = vadd.f32 %v4805, %v6117
        %v6119 = vpop.f32.mrf.mxu0
        %v6120 = vadd.f32 %v4807, %v6119
        %v6121 = vpop.f32.mrf.mxu0
        %v6122 = vadd.f32 %v4809, %v6121
        %6123 = vmatprep.mubr.bf16.mxu0 0
        %6124 = vmatmul.mubr.bf16.gmra.mxu0 %v4346
        %v6125 = vpop.f32.mrf.mxu0
        %v6126 = vadd.f32 %v4813, %v6125
        %v6127 = vpop.f32.mrf.mxu0
        %v6128 = vadd.f32 %v4815, %v6127
        %v6129 = vpop.f32.mrf.mxu0
        %v6130 = vadd.f32 %v4817, %v6129
        %v6131 = vpop.f32.mrf.mxu0
        %v6132 = vadd.f32 %v4819, %v6131
        %6133 = vmatprep.mubr.bf16.mxu0 0
        %6134 = vmatmul.mubr.bf16.gmra.mxu0 %v4349
        %v6135 = vpop.f32.mrf.mxu0
        %v6136 = vadd.f32 %v4823, %v6135
        %v6137 = vpop.f32.mrf.mxu0
        %v6138 = vadd.f32 %v4825, %v6137
        %v6139 = vpop.f32.mrf.mxu0
        %v6140 = vadd.f32 %v4827, %v6139
        %v6141 = vpop.f32.mrf.mxu0
        %v6142 = vadd.f32 %v4829, %v6141
        %6143 = vmatprep.mubr.bf16.mxu0 0
        %6144 = vmatmul.mubr.bf16.gmra.mxu0 %v4352
        %v6145 = vpop.f32.mrf.mxu0
        %v6146 = vadd.f32 %v4833, %v6145
        %v6147 = vpop.f32.mrf.mxu0
        %v6148 = vadd.f32 %v4835, %v6147
        %v6149 = vpop.f32.mrf.mxu0
        %v6150 = vadd.f32 %v4837, %v6149
        %v6151 = vpop.f32.mrf.mxu0
        %v6152 = vadd.f32 %v4839, %v6151
        %6153 = vmatprep.mubr.bf16.mxu0 0
        %6154 = vmatmul.mubr.bf16.gmra.mxu0 %v4355
        %v6155 = vpop.f32.mrf.mxu0
        %v6156 = vadd.f32 %v4843, %v6155
        %v6157 = vpop.f32.mrf.mxu0
        %v6158 = vadd.f32 %v4845, %v6157
        %v6159 = vpop.f32.mrf.mxu0
        %v6160 = vadd.f32 %v4847, %v6159
        %v6161 = vpop.f32.mrf.mxu0
        %v6162 = vadd.f32 %v4849, %v6161
        %6163 = vmatprep.mubr.bf16.mxu0 0
        %6164 = vmatmul.mubr.bf16.gmra.mxu0 %v4358
        %v6165 = vpop.f32.mrf.mxu0
        %v6166 = vadd.f32 %v4853, %v6165
        %v6167 = vpop.f32.mrf.mxu0
        %v6168 = vadd.f32 %v4855, %v6167
        %v6169 = vpop.f32.mrf.mxu0
        %v6170 = vadd.f32 %v4857, %v6169
        %v6171 = vpop.f32.mrf.mxu0
        %v6172 = vadd.f32 %v4859, %v6171
        %6173 = vmatprep.mubr.bf16.mxu0 0
        %6174 = vmatmul.mubr.bf16.gmra.mxu0 %v4361
        %v6175 = vpop.f32.mrf.mxu0
        %v6176 = vadd.f32 %v4863, %v6175
        %v6177 = vpop.f32.mrf.mxu0
        %v6178 = vadd.f32 %v4865, %v6177
        %v6179 = vpop.f32.mrf.mxu0
        %v6180 = vadd.f32 %v4867, %v6179
        %v6181 = vpop.f32.mrf.mxu0
        %v6182 = vadd.f32 %v4869, %v6181
        %6183 = vmatprep.mubr.bf16.mxu0 0
        %6184 = vmatmul.mubr.bf16.gmra.mxu0 %v4364
        %v6185 = vpop.f32.mrf.mxu0
        %v6186 = vadd.f32 %v4873, %v6185
        %v6187 = vpop.f32.mrf.mxu0
        %v6188 = vadd.f32 %v4875, %v6187
        %v6189 = vpop.f32.mrf.mxu0
        %v6190 = vadd.f32 %v4877, %v6189
        %v6191 = vpop.f32.mrf.mxu0
        %v6192 = vadd.f32 %v4879, %v6191
        %6193 = vmatprep.mubr.bf16.mxu0 0
        %6194 = vmatmul.mubr.bf16.gmra.mxu0 %v4367
        %v6195 = vpop.f32.mrf.mxu0
        %v6196 = vadd.f32 %v4883, %v6195
        %v6197 = vpop.f32.mrf.mxu0
        %v6198 = vadd.f32 %v4885, %v6197
        %v6199 = vpop.f32.mrf.mxu0
        %v6200 = vadd.f32 %v4887, %v6199
        %v6201 = vpop.f32.mrf.mxu0
        %v6202 = vadd.f32 %v4889, %v6201
        %6203 = vmatprep.mubr.bf16.mxu0 0
        %6204 = vmatmul.mubr.bf16.gmra.mxu0 %v4370
        %v6205 = vpop.f32.mrf.mxu0
        %v6206 = vadd.f32 %v4893, %v6205
        %v6207 = vpop.f32.mrf.mxu0
        %v6208 = vadd.f32 %v4895, %v6207
        %v6209 = vpop.f32.mrf.mxu0
        %v6210 = vadd.f32 %v4897, %v6209
        %v6211 = vpop.f32.mrf.mxu0
        %v6212 = vadd.f32 %v4899, %v6211
        %6213 = vmatprep.mubr.bf16.mxu0 0
        %6214 = vmatmul.mubr.bf16.gmra.mxu0 %v4373
        %v6215 = vpop.f32.mrf.mxu0
        %v6216 = vadd.f32 %v4903, %v6215
        %v6217 = vpop.f32.mrf.mxu0
        %v6218 = vadd.f32 %v4905, %v6217
        %v6219 = vpop.f32.mrf.mxu0
        %v6220 = vadd.f32 %v4907, %v6219
        %v6221 = vpop.f32.mrf.mxu0
        %v6222 = vadd.f32 %v4909, %v6221
        %6223 = vmatprep.mubr.bf16.mxu0 0
        %6224 = vmatmul.mubr.bf16.gmra.mxu0 %v4376
        %v6225 = vpop.f32.mrf.mxu0
        %v6226 = vadd.f32 %v4913, %v6225
        %v6227 = vpop.f32.mrf.mxu0
        %v6228 = vadd.f32 %v4915, %v6227
        %v6229 = vpop.f32.mrf.mxu0
        %v6230 = vadd.f32 %v4917, %v6229
        %v6231 = vpop.f32.mrf.mxu0
        %v6232 = vadd.f32 %v4919, %v6231
        %6233 = vmatprep.mubr.bf16.mxu0 0
        %6234 = vmatmul.mubr.bf16.gmra.mxu0 %v4379
        %v6235 = vpop.f32.mrf.mxu0
        %v6236 = vadd.f32 %v4923, %v6235
        %v6237 = vpop.f32.mrf.mxu0
        %v6238 = vadd.f32 %v4925, %v6237
        %v6239 = vpop.f32.mrf.mxu0
        %v6240 = vadd.f32 %v4927, %v6239
        %v6241 = vpop.f32.mrf.mxu0
        %v6242 = vadd.f32 %v4929, %v6241
        %6243 = vmatprep.mubr.bf16.mxu0 0
        %6244 = vmatmul.mubr.bf16.gmra.mxu0 %v4382
        %v6245 = vpop.f32.mrf.mxu0
        %v6246 = vadd.f32 %v4933, %v6245
        %v6247 = vpop.f32.mrf.mxu0
        %v6248 = vadd.f32 %v4935, %v6247
        %v6249 = vpop.f32.mrf.mxu0
        %v6250 = vadd.f32 %v4937, %v6249
        %v6251 = vpop.f32.mrf.mxu0
        %v6252 = vadd.f32 %v4939, %v6251
        %6253 = vmatprep.mubr.bf16.mxu0 0
        %6254 = vmatmul.mubr.bf16.gmra.mxu0 %v4385
        %v6255 = vpop.f32.mrf.mxu0
        %v6256 = vadd.f32 %v4943, %v6255
        %v6257 = vpop.f32.mrf.mxu0
        %v6258 = vadd.f32 %v4945, %v6257
        %v6259 = vpop.f32.mrf.mxu0
        %v6260 = vadd.f32 %v4947, %v6259
        %v6261 = vpop.f32.mrf.mxu0
        %v6262 = vadd.f32 %v4949, %v6261
        %6263 = vmatprep.mubr.bf16.mxu0 0
        %6264 = vmatmul.mubr.bf16.gmra.mxu0 %v4388
        %v6265 = vpop.f32.mrf.mxu0
        %v6266 = vadd.f32 %v4953, %v6265
        %v6267 = vpop.f32.mrf.mxu0
        %v6268 = vadd.f32 %v4955, %v6267
        %v6269 = vpop.f32.mrf.mxu0
        %v6270 = vadd.f32 %v4957, %v6269
        %v6271 = vpop.f32.mrf.mxu0
        %v6272 = vadd.f32 %v4959, %v6271
        %6273 = vmatprep.mubr.bf16.mxu0 0
        %6274 = vmatmul.mubr.bf16.gmra.mxu0 %v4391
        %v6275 = vpop.f32.mrf.mxu0
        %v6276 = vadd.f32 %v4963, %v6275
        %v6277 = vpop.f32.mrf.mxu0
        %v6278 = vadd.f32 %v4965, %v6277
        %v6279 = vpop.f32.mrf.mxu0
        %v6280 = vadd.f32 %v4967, %v6279
        %v6281 = vpop.f32.mrf.mxu0
        %v6282 = vadd.f32 %v4969, %v6281
        %6283 = vmatprep.mubr.bf16.mxu0 0
        %6284 = vmatmul.mubr.bf16.gmra.mxu0 %v4394
        %v6285 = vpop.f32.mrf.mxu0
        %v6286 = vadd.f32 %v4973, %v6285
        %v6287 = vpop.f32.mrf.mxu0
        %v6288 = vadd.f32 %v4975, %v6287
        %v6289 = vpop.f32.mrf.mxu0
        %v6290 = vadd.f32 %v4977, %v6289
        %v6291 = vpop.f32.mrf.mxu0
        %v6292 = vadd.f32 %v4979, %v6291
        %6293 = vmatprep.mubr.bf16.mxu0 0
        %6294 = vmatmul.mubr.bf16.gmra.mxu0 %v4397
        %v6295 = vpop.f32.mrf.mxu0
        %v6296 = vadd.f32 %v4983, %v6295
        %v6297 = vpop.f32.mrf.mxu0
        %v6298 = vadd.f32 %v4985, %v6297
        %v6299 = vpop.f32.mrf.mxu0
        %v6300 = vadd.f32 %v4987, %v6299
        %v6301 = vpop.f32.mrf.mxu0
        %v6302 = vadd.f32 %v4989, %v6301
        %6303 = vmatprep.mubr.bf16.mxu0 0
        %6304 = vmatmul.mubr.bf16.gmra.mxu0 %v4400
        %v6305 = vpop.f32.mrf.mxu0
        %v6306 = vadd.f32 %v4993, %v6305
        %v6307 = vpop.f32.mrf.mxu0
        %v6308 = vadd.f32 %v4995, %v6307
        %v6309 = vpop.f32.mrf.mxu0
        %v6310 = vadd.f32 %v4997, %v6309
        %v6311 = vpop.f32.mrf.mxu0
        %v6312 = vadd.f32 %v4999, %v6311
        %6313 = vmatprep.mubr.bf16.mxu0 0
        %6314 = vmatmul.mubr.bf16.gmra.mxu0 %v4403
        %v6315 = vpop.f32.mrf.mxu0
        %v6316 = vadd.f32 %v5003, %v6315
        %v6317 = vpop.f32.mrf.mxu0
        %v6318 = vadd.f32 %v5005, %v6317
        %v6319 = vpop.f32.mrf.mxu0
        %v6320 = vadd.f32 %v5007, %v6319
        %v6321 = vpop.f32.mrf.mxu0
        %v6322 = vadd.f32 %v5009, %v6321
        %6323 = vmatprep.mubr.bf16.mxu0 0
        %6324 = vmatmul.mubr.bf16.gmra.mxu0 %v4406
        %v6325 = vpop.f32.mrf.mxu0
        %v6326 = vadd.f32 %v5013, %v6325
        %v6327 = vpop.f32.mrf.mxu0
        %v6328 = vadd.f32 %v5015, %v6327
        %v6329 = vpop.f32.mrf.mxu0
        %v6330 = vadd.f32 %v5017, %v6329
        %v6331 = vpop.f32.mrf.mxu0
        %v6332 = vadd.f32 %v5019, %v6331
        %6333 = vmatprep.mubr.bf16.mxu0 0
        %6334 = vmatmul.mubr.bf16.gmra.mxu0 %v4409
        %v6335 = vpop.f32.mrf.mxu0
        %v6336 = vadd.f32 %v5023, %v6335
        %v6337 = vpop.f32.mrf.mxu0
        %v6338 = vadd.f32 %v5025, %v6337
        %v6339 = vpop.f32.mrf.mxu0
        %v6340 = vadd.f32 %v5027, %v6339
        %v6341 = vpop.f32.mrf.mxu0
        %v6342 = vadd.f32 %v5029, %v6341
        %6343 = vmatprep.mubr.bf16.mxu0 0
        %6344 = vmatmul.mubr.bf16.gmra.mxu0 %v4412
        %v6345 = vpop.f32.mrf.mxu0
        %v6346 = vadd.f32 %v5033, %v6345
        %v6347 = vpop.f32.mrf.mxu0
        %v6348 = vadd.f32 %v5035, %v6347
        %v6349 = vpop.f32.mrf.mxu0
        %v6350 = vadd.f32 %v5037, %v6349
        %v6351 = vpop.f32.mrf.mxu0
        %v6352 = vadd.f32 %v5039, %v6351
        %6353 = vmatprep.mubr.bf16.mxu0 0
        %6354 = vmatmul.mubr.bf16.gmra.mxu0 %v4415
        %v6355 = vpop.f32.mrf.mxu0
        %v6356 = vadd.f32 %v5043, %v6355
        %v6357 = vpop.f32.mrf.mxu0
        %v6358 = vadd.f32 %v5045, %v6357
        %v6359 = vpop.f32.mrf.mxu0
        %v6360 = vadd.f32 %v5047, %v6359
        %v6361 = vpop.f32.mrf.mxu0
        %v6362 = vadd.f32 %v5049, %v6361
        %6363 = vmatprep.mubr.bf16.mxu0 0
        %6364 = vmatmul.mubr.bf16.gmra.mxu0 %v4418
        %v6365 = vpop.f32.mrf.mxu0
        %v6366 = vadd.f32 %v5053, %v6365
        %v6367 = vpop.f32.mrf.mxu0
        %v6368 = vadd.f32 %v5055, %v6367
        %v6369 = vpop.f32.mrf.mxu0
        %v6370 = vadd.f32 %v5057, %v6369
        %v6371 = vpop.f32.mrf.mxu0
        %v6372 = vadd.f32 %v5059, %v6371
        %6373 = vmatprep.mubr.bf16.mxu0 0
        %6374 = vmatmul.mubr.bf16.gmra.mxu0 %v4421
        %v6375 = vpop.f32.mrf.mxu0
        %v6376 = vadd.f32 %v5063, %v6375
        %v6377 = vpop.f32.mrf.mxu0
        %v6378 = vadd.f32 %v5065, %v6377
        %v6379 = vpop.f32.mrf.mxu0
        %v6380 = vadd.f32 %v5067, %v6379
        %v6381 = vpop.f32.mrf.mxu0
        %v6382 = vadd.f32 %v5069, %v6381
        %6383 = vmatprep.mubr.bf16.mxu0 0
        %6384 = vmatmul.mubr.bf16.gmra.mxu0 %v4424
        %v6385 = vpop.f32.mrf.mxu0
        %v6386 = vadd.f32 %v5073, %v6385
        %v6387 = vpop.f32.mrf.mxu0
        %v6388 = vadd.f32 %v5075, %v6387
        %v6389 = vpop.f32.mrf.mxu0
        %v6390 = vadd.f32 %v5077, %v6389
        %v6391 = vpop.f32.mrf.mxu0
        %v6392 = vadd.f32 %v5079, %v6391
        %6393 = vmatprep.mubr.bf16.mxu0 0
        %6394 = vmatmul.mubr.bf16.gmra.mxu0 %v4427
        %v6395 = vpop.f32.mrf.mxu0
        %v6396 = vadd.f32 %v5083, %v6395
        %v6397 = vpop.f32.mrf.mxu0
        %v6398 = vadd.f32 %v5085, %v6397
        %v6399 = vpop.f32.mrf.mxu0
        %v6400 = vadd.f32 %v5087, %v6399
        %v6401 = vpop.f32.mrf.mxu0
        %v6402 = vadd.f32 %v5089, %v6401
        %6403 = vmatprep.mubr.bf16.mxu0 0
        %6404 = vmatmul.mubr.bf16.gmra.mxu0 %v4430
        %v6405 = vpop.f32.mrf.mxu0
        %v6406 = vadd.f32 %v5093, %v6405
        %v6407 = vpop.f32.mrf.mxu0
        %v6408 = vadd.f32 %v5095, %v6407
        %v6409 = vpop.f32.mrf.mxu0
        %v6410 = vadd.f32 %v5097, %v6409
        %v6411 = vpop.f32.mrf.mxu0
        %v6412 = vadd.f32 %v5099, %v6411
        %6413 = vmatprep.mubr.bf16.mxu0 0
        %6414 = vmatmul.mubr.bf16.gmra.mxu0 %v4433
        %v6415 = vpop.f32.mrf.mxu0
        %v6416 = vadd.f32 %v5103, %v6415
        %v6417 = vpop.f32.mrf.mxu0
        %v6418 = vadd.f32 %v5105, %v6417
        %v6419 = vpop.f32.mrf.mxu0
        %v6420 = vadd.f32 %v5107, %v6419
        %v6421 = vpop.f32.mrf.mxu0
        %v6422 = vadd.f32 %v5109, %v6421
        %6423 = vmatprep.mubr.bf16.mxu0 0
        %6424 = vmatmul.mubr.bf16.gmra.mxu0 %v4436
        %v6425 = vpop.f32.mrf.mxu0
        %v6426 = vadd.f32 %v5113, %v6425
        %v6427 = vpop.f32.mrf.mxu0
        %v6428 = vadd.f32 %v5115, %v6427
        %v6429 = vpop.f32.mrf.mxu0
        %v6430 = vadd.f32 %v5117, %v6429
        %v6431 = vpop.f32.mrf.mxu0
        %v6432 = vadd.f32 %v5119, %v6431
        %6433 = vmatprep.mubr.bf16.mxu0 0
        %6434 = vmatmul.mubr.bf16.gmra.mxu0 %v4439
        %v6435 = vpop.f32.mrf.mxu0
        %v6436 = vadd.f32 %v5123, %v6435
        %v6437 = vpop.f32.mrf.mxu0
        %v6438 = vadd.f32 %v5125, %v6437
        %v6439 = vpop.f32.mrf.mxu0
        %v6440 = vadd.f32 %v5127, %v6439
        %v6441 = vpop.f32.mrf.mxu0
        %v6442 = vadd.f32 %v5129, %v6441
        %6443 = vmatprep.mubr.bf16.mxu0 0
        %6444 = vmatmul.mubr.bf16.gmra.mxu0 %v4442
        %v6445 = vpop.f32.mrf.mxu0
        %v6446 = vadd.f32 %v5133, %v6445
        %v6447 = vpop.f32.mrf.mxu0
        %v6448 = vadd.f32 %v5135, %v6447
        %v6449 = vpop.f32.mrf.mxu0
        %v6450 = vadd.f32 %v5137, %v6449
        %v6451 = vpop.f32.mrf.mxu0
        %v6452 = vadd.f32 %v5139, %v6451
        %6453 = vmatprep.mubr.bf16.mxu0 0
        %6454 = vmatmul.mubr.bf16.gmra.mxu0 %v4445
        %v6455 = vpop.f32.mrf.mxu0
        %v6456 = vadd.f32 %v5143, %v6455
        %v6457 = vpop.f32.mrf.mxu0
        %v6458 = vadd.f32 %v5145, %v6457
        %v6459 = vpop.f32.mrf.mxu0
        %v6460 = vadd.f32 %v5147, %v6459
        %v6461 = vpop.f32.mrf.mxu0
        %v6462 = vadd.f32 %v5149, %v6461
        %6463 = vmatprep.mubr.bf16.mxu0 0
        %6464 = vmatmul.mubr.bf16.gmra.mxu0 %v4448
        %v6465 = vpop.f32.mrf.mxu0
        %v6466 = vadd.f32 %v5153, %v6465
        %v6467 = vpop.f32.mrf.mxu0
        %v6468 = vadd.f32 %v5155, %v6467
        %v6469 = vpop.f32.mrf.mxu0
        %v6470 = vadd.f32 %v5157, %v6469
        %v6471 = vpop.f32.mrf.mxu0
        %v6472 = vadd.f32 %v5159, %v6471
        %6473 = vmatprep.mubr.bf16.mxu0 0
        %6474 = vmatmul.mubr.bf16.gmra.mxu0 %v4451
        %v6475 = vpop.f32.mrf.mxu0
        %v6476 = vadd.f32 %v5163, %v6475
        %v6477 = vpop.f32.mrf.mxu0
        %v6478 = vadd.f32 %v5165, %v6477
        %v6479 = vpop.f32.mrf.mxu0
        %v6480 = vadd.f32 %v5167, %v6479
        %v6481 = vpop.f32.mrf.mxu0
        %v6482 = vadd.f32 %v5169, %v6481
        %6483 = vmatprep.mubr.bf16.mxu0 0
        %6484 = vmatmul.mubr.bf16.gmra.mxu0 %v4454
        %v6485 = vpop.f32.mrf.mxu0
        %v6486 = vadd.f32 %v5173, %v6485
        %v6487 = vpop.f32.mrf.mxu0
        %v6488 = vadd.f32 %v5175, %v6487
        %v6489 = vpop.f32.mrf.mxu0
        %v6490 = vadd.f32 %v5177, %v6489
        %v6491 = vpop.f32.mrf.mxu0
        %v6492 = vadd.f32 %v5179, %v6491
        %6493 = vmatprep.mubr.bf16.mxu0 0
        %6494 = vmatmul.mubr.bf16.gmra.mxu0 %v4457
        %v6495 = vpop.f32.mrf.mxu0
        %v6496 = vadd.f32 %v5183, %v6495
        %v6497 = vpop.f32.mrf.mxu0
        %v6498 = vadd.f32 %v5185, %v6497
        %v6499 = vpop.f32.mrf.mxu0
        %v6500 = vadd.f32 %v5187, %v6499
        %v6501 = vpop.f32.mrf.mxu0
        %v6502 = vadd.f32 %v5189, %v6501
        %6503 = vmatprep.mubr.bf16.mxu0 0
        %6504 = vmatmul.mubr.bf16.gmra.mxu0 %v4460
        %v6505 = vpop.f32.mrf.mxu0
        %v6506 = vadd.f32 %v5193, %v6505
        %v6507 = vpop.f32.mrf.mxu0
        %v6508 = vadd.f32 %v5195, %v6507
        %v6509 = vpop.f32.mrf.mxu0
        %v6510 = vadd.f32 %v5197, %v6509
        %v6511 = vpop.f32.mrf.mxu0
        %v6512 = vadd.f32 %v5199, %v6511
        %6513 = vmatprep.mubr.bf16.mxu0 0
        %6514 = vmatmul.mubr.bf16.gmra.mxu0 %v4463
        %v6515 = vpop.f32.mrf.mxu0
        %v6516 = vadd.f32 %v5203, %v6515
        %v6517 = vpop.f32.mrf.mxu0
        %v6518 = vadd.f32 %v5205, %v6517
        %v6519 = vpop.f32.mrf.mxu0
        %v6520 = vadd.f32 %v5207, %v6519
        %v6521 = vpop.f32.mrf.mxu0
        %v6522 = vadd.f32 %v5209, %v6521
        %6523 = vmatprep.mubr.bf16.mxu0 0
        %6524 = vmatmul.mubr.bf16.gmra.mxu0 %v4466
        %v6525 = vpop.f32.mrf.mxu0
        %v6526 = vadd.f32 %v5213, %v6525
        %v6527 = vpop.f32.mrf.mxu0
        %v6528 = vadd.f32 %v5215, %v6527
        %v6529 = vpop.f32.mrf.mxu0
        %v6530 = vadd.f32 %v5217, %v6529
        %v6531 = vpop.f32.mrf.mxu0
        %v6532 = vadd.f32 %v5219, %v6531
        %6533 = vmatprep.mubr.bf16.mxu0 0
        %6534 = vmatmul.mubr.bf16.gmra.mxu0 %v4469
        %v6535 = vpop.f32.mrf.mxu0
        %v6536 = vadd.f32 %v5223, %v6535
        %v6537 = vpop.f32.mrf.mxu0
        %v6538 = vadd.f32 %v5225, %v6537
        %v6539 = vpop.f32.mrf.mxu0
        %v6540 = vadd.f32 %v5227, %v6539
        %v6541 = vpop.f32.mrf.mxu0
        %v6542 = vadd.f32 %v5229, %v6541
        %6543 = vmatprep.mubr.bf16.mxu0 0
        %6544 = vmatmul.mubr.bf16.gmra.mxu0 %v4472
        %v6545 = vpop.f32.mrf.mxu0
        %v6546 = vadd.f32 %v5233, %v6545
        %v6547 = vpop.f32.mrf.mxu0
        %v6548 = vadd.f32 %v5235, %v6547
        %v6549 = vpop.f32.mrf.mxu0
        %v6550 = vadd.f32 %v5237, %v6549
        %v6551 = vpop.f32.mrf.mxu0
        %v6552 = vadd.f32 %v5239, %v6551
        %6553 = vmatprep.mubr.bf16.mxu0 0
        %6554 = vmatmul.mubr.bf16.gmra.mxu0 %v4475
        %v6555 = vpop.f32.mrf.mxu0
        %v6556 = vadd.f32 %v5243, %v6555
        %v6557 = vpop.f32.mrf.mxu0
        %v6558 = vadd.f32 %v5245, %v6557
        %v6559 = vpop.f32.mrf.mxu0
        %v6560 = vadd.f32 %v5247, %v6559
        %v6561 = vpop.f32.mrf.mxu0
        %v6562 = vadd.f32 %v5249, %v6561
        %6563 = vmatprep.mubr.bf16.mxu0 0
        %6564 = vmatmul.mubr.bf16.gmra.mxu0 %v4478
        %v6565 = vpop.f32.mrf.mxu0
        %v6566 = vadd.f32 %v5253, %v6565
        %v6567 = vpop.f32.mrf.mxu0
        %v6568 = vadd.f32 %v5255, %v6567
        %v6569 = vpop.f32.mrf.mxu0
        %v6570 = vadd.f32 %v5257, %v6569
        %v6571 = vpop.f32.mrf.mxu0
        %v6572 = vadd.f32 %v5259, %v6571
        %6573 = vmatprep.mubr.bf16.mxu0 0
        %6574 = vmatmul.mubr.bf16.gmra.mxu0 %v4481
        %v6575 = vpop.f32.mrf.mxu0
        %v6576 = vadd.f32 %v5263, %v6575
        %v6577 = vpop.f32.mrf.mxu0
        %v6578 = vadd.f32 %v5265, %v6577
        %v6579 = vpop.f32.mrf.mxu0
        %v6580 = vadd.f32 %v5267, %v6579
        %v6581 = vpop.f32.mrf.mxu0
        %v6582 = vadd.f32 %v5269, %v6581
        %6583 = vmatprep.mubr.bf16.mxu0 0
        %6584 = vmatmul.mubr.bf16.gmra.mxu0 %v4484
        %v6585 = vpop.f32.mrf.mxu0
        %v6586 = vadd.f32 %v5273, %v6585
        %v6587 = vpop.f32.mrf.mxu0
        %v6588 = vadd.f32 %v5275, %v6587
        %v6589 = vpop.f32.mrf.mxu0
        %v6590 = vadd.f32 %v5277, %v6589
        %v6591 = vpop.f32.mrf.mxu0
        %v6592 = vadd.f32 %v5279, %v6591
        %6593 = vmatprep.mubr.bf16.mxu0 0
        %6594 = vmatmul.mubr.bf16.gmra.mxu0 %v4487
        %v6595 = vpop.f32.mrf.mxu0
        %v6596 = vadd.f32 %v5283, %v6595
        %v6597 = vpop.f32.mrf.mxu0
        %v6598 = vadd.f32 %v5285, %v6597
        %v6599 = vpop.f32.mrf.mxu0
        %v6600 = vadd.f32 %v5287, %v6599
        %v6601 = vpop.f32.mrf.mxu0
        %v6602 = vadd.f32 %v5289, %v6601
        %6603 = vmatprep.mubr.bf16.mxu0 0
        %6604 = vmatmul.mubr.bf16.gmra.mxu0 %v4490
        %v6605 = vpop.f32.mrf.mxu0
        %v6606 = vadd.f32 %v5293, %v6605
        %v6607 = vpop.f32.mrf.mxu0
        %v6608 = vadd.f32 %v5295, %v6607
        %v6609 = vpop.f32.mrf.mxu0
        %v6610 = vadd.f32 %v5297, %v6609
        %v6611 = vpop.f32.mrf.mxu0
        %v6612 = vadd.f32 %v5299, %v6611
        %6613 = vmatprep.mubr.bf16.mxu0 0
        %6614 = vmatmul.mubr.bf16.gmra.mxu0 %v4493
        %v6615 = vpop.f32.mrf.mxu0
        %v6616 = vadd.f32 %v5303, %v6615
        %v6617 = vpop.f32.mrf.mxu0
        %v6618 = vadd.f32 %v5305, %v6617
        %v6619 = vpop.f32.mrf.mxu0
        %v6620 = vadd.f32 %v5307, %v6619
        %v6621 = vpop.f32.mrf.mxu0
        %v6622 = vadd.f32 %v5309, %v6621
        %6623 = vmatprep.mubr.bf16.mxu0 0
        %6624 = vmatmul.mubr.bf16.gmra.mxu0 %v4496
        %v6625 = vpop.f32.mrf.mxu0
        %v6626 = vadd.f32 %v5313, %v6625
        %v6627 = vpop.f32.mrf.mxu0
        %v6628 = vadd.f32 %v5315, %v6627
        %v6629 = vpop.f32.mrf.mxu0
        %v6630 = vadd.f32 %v5317, %v6629
        %v6631 = vpop.f32.mrf.mxu0
        %v6632 = vadd.f32 %v5319, %v6631
        %6633 = vmatprep.mubr.bf16.mxu0 0
        %6634 = vmatmul.mubr.bf16.gmra.mxu0 %v4499
        %v6635 = vpop.f32.mrf.mxu0
        %v6636 = vadd.f32 %v5323, %v6635
        %v6637 = vpop.f32.mrf.mxu0
        %v6638 = vadd.f32 %v5325, %v6637
        %v6639 = vpop.f32.mrf.mxu0
        %v6640 = vadd.f32 %v5327, %v6639
        %v6641 = vpop.f32.mrf.mxu0
        %v6642 = vadd.f32 %v5329, %v6641
        %6643 = vmatprep.mubr.bf16.mxu0 0
        %6644 = vmatmul.mubr.bf16.gmra.mxu0 %v4502
        %v6645 = vpop.f32.mrf.mxu0
        %v6646 = vadd.f32 %v5333, %v6645
        %v6647 = vpop.f32.mrf.mxu0
        %v6648 = vadd.f32 %v5335, %v6647
        %v6649 = vpop.f32.mrf.mxu0
        %v6650 = vadd.f32 %v5337, %v6649
        %v6651 = vpop.f32.mrf.mxu0
        %v6652 = vadd.f32 %v5339, %v6651
        %6653 = vmatprep.mubr.bf16.mxu0 0
        %6654 = vmatmul.mubr.bf16.gmra.mxu0 %v4505
        %v6655 = vpop.f32.mrf.mxu0
        %v6656 = vadd.f32 %v5343, %v6655
        %v6657 = vpop.f32.mrf.mxu0
        %v6658 = vadd.f32 %v5345, %v6657
        %v6659 = vpop.f32.mrf.mxu0
        %v6660 = vadd.f32 %v5347, %v6659
        %v6661 = vpop.f32.mrf.mxu0
        %v6662 = vadd.f32 %v5349, %v6661
        %6663 = vmatprep.mubr.bf16.mxu0 0
        %6664 = vmatmul.mubr.bf16.gmra.mxu0 %v4508
        %v6665 = vpop.f32.mrf.mxu0
        %v6666 = vadd.f32 %v5353, %v6665
        %v6667 = vpop.f32.mrf.mxu0
        %v6668 = vadd.f32 %v5355, %v6667
        %v6669 = vpop.f32.mrf.mxu0
        %v6670 = vadd.f32 %v5357, %v6669
        %v6671 = vpop.f32.mrf.mxu0
        %v6672 = vadd.f32 %v5359, %v6671
        %6673 = vmatprep.mubr.bf16.mxu0 0
        %6674 = vmatmul.mubr.bf16.gmra.mxu0 %v4511
        %v6675 = vpop.f32.mrf.mxu0
        %v6676 = vadd.f32 %v5363, %v6675
        %v6677 = vpop.f32.mrf.mxu0
        %v6678 = vadd.f32 %v5365, %v6677
        %v6679 = vpop.f32.mrf.mxu0
        %v6680 = vadd.f32 %v5367, %v6679
        %v6681 = vpop.f32.mrf.mxu0
        %v6682 = vadd.f32 %v5369, %v6681
        %6683 = vmatprep.mubr.bf16.mxu0 0
        %6684 = vmatmul.mubr.bf16.gmra.mxu0 %v4514
        %v6685 = vpop.f32.mrf.mxu0
        %v6686 = vadd.f32 %v5373, %v6685
        %v6687 = vpop.f32.mrf.mxu0
        %v6688 = vadd.f32 %v5375, %v6687
        %v6689 = vpop.f32.mrf.mxu0
        %v6690 = vadd.f32 %v5377, %v6689
        %v6691 = vpop.f32.mrf.mxu0
        %v6692 = vadd.f32 %v5379, %v6691
        %6693 = vmatprep.mubr.bf16.mxu0 0
        %6694 = vmatmul.mubr.bf16.gmra.mxu0 %v4517
        %v6695 = vpop.f32.mrf.mxu0
        %v6696 = vadd.f32 %v5383, %v6695
        %v6697 = vpop.f32.mrf.mxu0
        %v6698 = vadd.f32 %v5385, %v6697
        %v6699 = vpop.f32.mrf.mxu0
        %v6700 = vadd.f32 %v5387, %v6699
        %v6701 = vpop.f32.mrf.mxu0
        %v6702 = vadd.f32 %v5389, %v6701
        %6703 = vmatprep.mubr.bf16.mxu0 0
        %6704 = vmatmul.mubr.bf16.gmra.mxu0 %v4520
        %v6705 = vpop.f32.mrf.mxu0
        %v6706 = vadd.f32 %v5393, %v6705
        %v6707 = vpop.f32.mrf.mxu0
        %v6708 = vadd.f32 %v5395, %v6707
        %v6709 = vpop.f32.mrf.mxu0
        %v6710 = vadd.f32 %v5397, %v6709
        %v6711 = vpop.f32.mrf.mxu0
        %v6712 = vadd.f32 %v5399, %v6711
        %6713 = vmatprep.mubr.bf16.mxu0 0
        %6714 = vmatmul.mubr.bf16.gmra.mxu0 %v4523
        %v6715 = vpop.f32.mrf.mxu0
        %v6716 = vadd.f32 %v5403, %v6715
        %v6717 = vpop.f32.mrf.mxu0
        %v6718 = vadd.f32 %v5405, %v6717
        %v6719 = vpop.f32.mrf.mxu0
        %v6720 = vadd.f32 %v5407, %v6719
        %v6721 = vpop.f32.mrf.mxu0
        %v6722 = vadd.f32 %v5409, %v6721
        %6723 = vmatprep.mubr.bf16.mxu0 0
        %6724 = vmatmul.mubr.bf16.gmra.mxu0 %v4526
        %v6725 = vpop.f32.mrf.mxu0
        %v6726 = vadd.f32 %v5413, %v6725
        %v6727 = vpop.f32.mrf.mxu0
        %v6728 = vadd.f32 %v5415, %v6727
        %v6729 = vpop.f32.mrf.mxu0
        %v6730 = vadd.f32 %v5417, %v6729
        %v6731 = vpop.f32.mrf.mxu0
        %v6732 = vadd.f32 %v5419, %v6731
        %6733 = vmatprep.mubr.bf16.mxu0 0
        %6734 = vmatmul.mubr.bf16.gmra.mxu0 %v4529
        %v6735 = vpop.f32.mrf.mxu0
        %v6736 = vadd.f32 %v5423, %v6735
        %v6737 = vpop.f32.mrf.mxu0
        %v6738 = vadd.f32 %v5425, %v6737
        %v6739 = vpop.f32.mrf.mxu0
        %v6740 = vadd.f32 %v5427, %v6739
        %v6741 = vpop.f32.mrf.mxu0
        %v6742 = vadd.f32 %v5429, %v6741
        %6743 = vmatprep.mubr.bf16.mxu0 0
        %6744 = vmatmul.mubr.bf16.gmra.mxu0 %v4532
        %v6745 = vpop.f32.mrf.mxu0
        %v6746 = vadd.f32 %v5433, %v6745
        %v6747 = vpop.f32.mrf.mxu0
        %v6748 = vadd.f32 %v5435, %v6747
        %v6749 = vpop.f32.mrf.mxu0
        %v6750 = vadd.f32 %v5437, %v6749
        %v6751 = vpop.f32.mrf.mxu0
        %v6752 = vadd.f32 %v5439, %v6751
        %6753 = vmatprep.mubr.bf16.mxu0 0
        %6754 = vmatmul.mubr.bf16.gmra.mxu0 %v4535
        %v6755 = vpop.f32.mrf.mxu0
        %v6756 = vadd.f32 %v5443, %v6755
        %v6757 = vpop.f32.mrf.mxu0
        %v6758 = vadd.f32 %v5445, %v6757
        %v6759 = vpop.f32.mrf.mxu0
        %v6760 = vadd.f32 %v5447, %v6759
        %v6761 = vpop.f32.mrf.mxu0
        %v6762 = vadd.f32 %v5449, %v6761
        %6763 = vmatprep.mubr.bf16.mxu0 0
        %6764 = vmatmul.mubr.bf16.gmra.mxu0 %v4538
        %v6765 = vpop.f32.mrf.mxu0
        %v6766 = vadd.f32 %v5453, %v6765
        %v6767 = vpop.f32.mrf.mxu0
        %v6768 = vadd.f32 %v5455, %v6767
        %v6769 = vpop.f32.mrf.mxu0
        %v6770 = vadd.f32 %v5457, %v6769
        %v6771 = vpop.f32.mrf.mxu0
        %v6772 = vadd.f32 %v5459, %v6771
        %6773 = vmatprep.mubr.bf16.mxu0 0
        %6774 = vmatmul.mubr.bf16.gmra.mxu0 %v4541
        %v6775 = vpop.f32.mrf.mxu0
        %v6776 = vadd.f32 %v5463, %v6775
        %v6777 = vpop.f32.mrf.mxu0
        %v6778 = vadd.f32 %v5465, %v6777
        %v6779 = vpop.f32.mrf.mxu0
        %v6780 = vadd.f32 %v5467, %v6779
        %v6781 = vpop.f32.mrf.mxu0
        %v6782 = vadd.f32 %v5469, %v6781
        %6783 = vmatprep.mubr.bf16.mxu0 0
        %6784 = vmatmul.mubr.bf16.gmra.mxu0 %v4544
        %v6785 = vpop.f32.mrf.mxu0
        %v6786 = vadd.f32 %v5473, %v6785
        %v6787 = vpop.f32.mrf.mxu0
        %v6788 = vadd.f32 %v5475, %v6787
        %v6789 = vpop.f32.mrf.mxu0
        %v6790 = vadd.f32 %v5477, %v6789
        %v6791 = vpop.f32.mrf.mxu0
        %v6792 = vadd.f32 %v5479, %v6791
        %6793 = vmatprep.mubr.bf16.mxu0 0
        %6794 = vmatmul.mubr.bf16.gmra.mxu0 %v4547
        %v6795 = vpop.f32.mrf.mxu0
        %v6796 = vadd.f32 %v5483, %v6795
        %v6797 = vpop.f32.mrf.mxu0
        %v6798 = vadd.f32 %v5485, %v6797
        %v6799 = vpop.f32.mrf.mxu0
        %v6800 = vadd.f32 %v5487, %v6799
        %v6801 = vpop.f32.mrf.mxu0
        %v6802 = vadd.f32 %v5489, %v6801
        %6803 = vmatprep.mubr.bf16.mxu0 0
        %6804 = vmatmul.mubr.bf16.gmra.mxu0 %v4550
        %v6805 = vpop.f32.mrf.mxu0
        %v6806 = vadd.f32 %v5493, %v6805
        %v6807 = vpop.f32.mrf.mxu0
        %v6808 = vadd.f32 %v5495, %v6807
        %v6809 = vpop.f32.mrf.mxu0
        %v6810 = vadd.f32 %v5497, %v6809
        %v6811 = vpop.f32.mrf.mxu0
        %v6812 = vadd.f32 %v5499, %v6811
        %6813 = vmatprep.mubr.bf16.mxu0 0
        %6814 = vmatmul.mubr.bf16.gmra.mxu0 %v4553
        %v6815 = vpop.f32.mrf.mxu0
        %v6816 = vadd.f32 %v5503, %v6815
        %v6817 = vpop.f32.mrf.mxu0
        %v6818 = vadd.f32 %v5505, %v6817
        %v6819 = vpop.f32.mrf.mxu0
        %v6820 = vadd.f32 %v5507, %v6819
        %v6821 = vpop.f32.mrf.mxu0
        %v6822 = vadd.f32 %v5509, %v6821
        %6823 = vmatprep.mubr.bf16.mxu0 0
        %6824 = vmatmul.mubr.bf16.gmra.mxu0 %v4556
        %v6825 = vpop.f32.mrf.mxu0
        %v6826 = vadd.f32 %v5513, %v6825
        %v6827 = vpop.f32.mrf.mxu0
        %v6828 = vadd.f32 %v5515, %v6827
        %v6829 = vpop.f32.mrf.mxu0
        %v6830 = vadd.f32 %v5517, %v6829
        %v6831 = vpop.f32.mrf.mxu0
        %v6832 = vadd.f32 %v5519, %v6831
        %6833 = vmatprep.mubr.bf16.mxu0 0
        %6834 = vmatmul.mubr.bf16.gmra.mxu0 %v4559
        %v6835 = vpop.f32.mrf.mxu0
        %v6836 = vadd.f32 %v5523, %v6835
        %v6837 = vpop.f32.mrf.mxu0
        %v6838 = vadd.f32 %v5525, %v6837
        %v6839 = vpop.f32.mrf.mxu0
        %v6840 = vadd.f32 %v5527, %v6839
        %v6841 = vpop.f32.mrf.mxu0
        %v6842 = vadd.f32 %v5529, %v6841
        %6843 = vmatprep.mubr.bf16.mxu0 0
        %6844 = vmatmul.mubr.bf16.gmra.mxu0 %v4562
        %v6845 = vpop.f32.mrf.mxu0
        %v6846 = vadd.f32 %v5533, %v6845
        %v6847 = vpop.f32.mrf.mxu0
        %v6848 = vadd.f32 %v5535, %v6847
        %v6849 = vpop.f32.mrf.mxu0
        %v6850 = vadd.f32 %v5537, %v6849
        %v6851 = vpop.f32.mrf.mxu0
        %v6852 = vadd.f32 %v5539, %v6851
        %6853 = vmatprep.mubr.bf16.mxu0 0
        %6854 = vmatmul.mubr.bf16.gmra.mxu0 %v4565
        %v6855 = vpop.f32.mrf.mxu0
        %v6856 = vadd.f32 %v5543, %v6855
        %v6857 = vpop.f32.mrf.mxu0
        %v6858 = vadd.f32 %v5545, %v6857
        %v6859 = vpop.f32.mrf.mxu0
        %v6860 = vadd.f32 %v5547, %v6859
        %v6861 = vpop.f32.mrf.mxu0
        %v6862 = vadd.f32 %v5549, %v6861
        %6863 = vmatprep.mubr.bf16.mxu0 0
        %6864 = vmatmul.mubr.bf16.gmra.mxu0 %v4568
        %v6865 = vpop.f32.mrf.mxu0
        %v6866 = vadd.f32 %v5553, %v6865
        %v6867 = vpop.f32.mrf.mxu0
        %v6868 = vadd.f32 %v5555, %v6867
        %v6869 = vpop.f32.mrf.mxu0
        %v6870 = vadd.f32 %v5557, %v6869
        %v6871 = vpop.f32.mrf.mxu0
        %v6872 = vadd.f32 %v5559, %v6871
        %6873 = vmatprep.mubr.bf16.mxu0 0
        %6874 = vmatmul.mubr.bf16.gmra.mxu0 %v4571
        %v6875 = vpop.f32.mrf.mxu0
        %v6876 = vadd.f32 %v5563, %v6875
        %v6877 = vpop.f32.mrf.mxu0
        %v6878 = vadd.f32 %v5565, %v6877
        %v6879 = vpop.f32.mrf.mxu0
        %v6880 = vadd.f32 %v5567, %v6879
        %v6881 = vpop.f32.mrf.mxu0
        %v6882 = vadd.f32 %v5569, %v6881
        %6883 = vmatprep.mubr.bf16.mxu0 0
        %6884 = vmatmul.mubr.bf16.gmra.mxu0 %v4574
        %v6885 = vpop.f32.mrf.mxu0
        %v6886 = vadd.f32 %v5573, %v6885
        %v6887 = vpop.f32.mrf.mxu0
        %v6888 = vadd.f32 %v5575, %v6887
        %v6889 = vpop.f32.mrf.mxu0
        %v6890 = vadd.f32 %v5577, %v6889
        %v6891 = vpop.f32.mrf.mxu0
        %v6892 = vadd.f32 %v5579, %v6891
        %6893 = vmatprep.mubr.bf16.mxu0 0
        %6894 = vmatmul.mubr.bf16.gmra.mxu0 %v4577
        %v6895 = vpop.f32.mrf.mxu0
        %v6896 = vadd.f32 %v5583, %v6895
        %v6897 = vpop.f32.mrf.mxu0
        %v6898 = vadd.f32 %v5585, %v6897
        %v6899 = vpop.f32.mrf.mxu0
        %v6900 = vadd.f32 %v5587, %v6899
        %v6901 = vpop.f32.mrf.mxu0
        %v6902 = vadd.f32 %v5589, %v6901
        %6903 = vmatprep.mubr.bf16.mxu0 0
        %6904 = vmatmul.mubr.bf16.gmra.mxu0 %v4580
        %v6905 = vpop.f32.mrf.mxu0
        %v6906 = vadd.f32 %v5593, %v6905
        %v6907 = vpop.f32.mrf.mxu0
        %v6908 = vadd.f32 %v5595, %v6907
        %v6909 = vpop.f32.mrf.mxu0
        %v6910 = vadd.f32 %v5597, %v6909
        %v6911 = vpop.f32.mrf.mxu0
        %v6912 = vadd.f32 %v5599, %v6911
        %6913 = vmatprep.mubr.bf16.mxu0 0
        %6914 = vmatmul.mubr.bf16.gmra.mxu0 %v4583
        %v6915 = vpop.f32.mrf.mxu0
        %v6916 = vadd.f32 %v5603, %v6915
        %v6917 = vpop.f32.mrf.mxu0
        %v6918 = vadd.f32 %v5605, %v6917
        %v6919 = vpop.f32.mrf.mxu0
        %v6920 = vadd.f32 %v5607, %v6919
        %v6921 = vpop.f32.mrf.mxu0
        %v6922 = vadd.f32 %v5609, %v6921
        %6923 = vmatprep.mubr.bf16.mxu0 0
        %6924 = vmatmul.mubr.bf16.gmra.mxu0 %v4586
        %v6925 = vpop.f32.mrf.mxu0
        %v6926 = vadd.f32 %v5613, %v6925
        %v6927 = vpop.f32.mrf.mxu0
        %v6928 = vadd.f32 %v5615, %v6927
        %v6929 = vpop.f32.mrf.mxu0
        %v6930 = vadd.f32 %v5617, %v6929
        %v6931 = vpop.f32.mrf.mxu0
        %v6932 = vadd.f32 %v5619, %v6931
        %6933 = vmatprep.mubr.bf16.mxu0 0
        %6934 = vmatmul.mubr.bf16.gmra.mxu0 %v4589
        %v6935 = vpop.f32.mrf.mxu0
        %v6936 = vadd.f32 %v5623, %v6935
        %v6937 = vpop.f32.mrf.mxu0
        %v6938 = vadd.f32 %v5625, %v6937
        %v6939 = vpop.f32.mrf.mxu0
        %v6940 = vadd.f32 %v5627, %v6939
        %v6941 = vpop.f32.mrf.mxu0
        %v6942 = vadd.f32 %v5629, %v6941
        %6943 = vmatprep.mubr.bf16.mxu0 0
        %6944 = vmatmul.mubr.bf16.gmra.mxu0 %v4592
        %v6945 = vpop.f32.mrf.mxu0
        %v6946 = vadd.f32 %v5633, %v6945
        %v6947 = vpop.f32.mrf.mxu0
        %v6948 = vadd.f32 %v5635, %v6947
        %v6949 = vpop.f32.mrf.mxu0
        %v6950 = vadd.f32 %v5637, %v6949
        %v6951 = vpop.f32.mrf.mxu0
        %v6952 = vadd.f32 %v5639, %v6951
        %6953 = vmatprep.mubr.bf16.mxu0 0
        %6954 = vmatmul.mubr.bf16.gmra.mxu0 %v4595
        %v6955 = vpop.f32.mrf.mxu0
        %v6956 = vadd.f32 %v5643, %v6955
        %v6957 = vpop.f32.mrf.mxu0
        %v6958 = vadd.f32 %v5645, %v6957
        %v6959 = vpop.f32.mrf.mxu0
        %v6960 = vadd.f32 %v5647, %v6959
        %v6961 = vpop.f32.mrf.mxu0
        %v6962 = vadd.f32 %v5649, %v6961
        %6963 = vmatprep.mubr.bf16.mxu0 0
        %6964 = vmatmul.mubr.bf16.gmra.mxu0 %v4598
        %v6965 = vpop.f32.mrf.mxu0
        %v6966 = vadd.f32 %v5653, %v6965
        %v6967 = vpop.f32.mrf.mxu0
        %v6968 = vadd.f32 %v5655, %v6967
        %v6969 = vpop.f32.mrf.mxu0
        %v6970 = vadd.f32 %v5657, %v6969
        %v6971 = vpop.f32.mrf.mxu0
        %v6972 = vadd.f32 %v5659, %v6971
        %6973 = vmatprep.mubr.bf16.mxu0 0
        %6974 = vmatmul.mubr.bf16.gmra.mxu0 %v4601
        %v6975 = vpop.f32.mrf.mxu0
        %v6976 = vadd.f32 %v5663, %v6975
        %v6977 = vpop.f32.mrf.mxu0
        %v6978 = vadd.f32 %v5665, %v6977
        %v6979 = vpop.f32.mrf.mxu0
        %v6980 = vadd.f32 %v5667, %v6979
        %v6981 = vpop.f32.mrf.mxu0
        %v6982 = vadd.f32 %v5669, %v6981
        %6983 = vmatprep.mubr.bf16.mxu0 0
        %6984 = vmatmul.mubr.bf16.gmra.mxu0 %v4604
        %v6985 = vpop.f32.mrf.mxu0
        %v6986 = vadd.f32 %v5673, %v6985
        %v6987 = vpop.f32.mrf.mxu0
        %v6988 = vadd.f32 %v5675, %v6987
        %v6989 = vpop.f32.mrf.mxu0
        %v6990 = vadd.f32 %v5677, %v6989
        %v6991 = vpop.f32.mrf.mxu0
        %v6992 = vadd.f32 %v5679, %v6991
        %6993 = vmatprep.mubr.bf16.mxu0 0
        %6994 = vmatmul.mubr.bf16.gmra.mxu0 %v4607
        %v6995 = vpop.f32.mrf.mxu0
        %v6996 = vadd.f32 %v5683, %v6995
        %v6997 = vpop.f32.mrf.mxu0
        %v6998 = vadd.f32 %v5685, %v6997
        %v6999 = vpop.f32.mrf.mxu0
        %v7000 = vadd.f32 %v5687, %v6999
        %v7001 = vpop.f32.mrf.mxu0
        %v7002 = vadd.f32 %v5689, %v7001
        %7003 = vmatprep.mubr.bf16.mxu0 0
        %7004 = vmatmul.mubr.bf16.gmra.mxu0 %v4610
        %v7005 = vpop.f32.mrf.mxu0
        %v7006 = vadd.f32 %v5693, %v7005
        %v7007 = vpop.f32.mrf.mxu0
        %v7008 = vadd.f32 %v5695, %v7007
        %v7009 = vpop.f32.mrf.mxu0
        %v7010 = vadd.f32 %v5697, %v7009
        %v7011 = vpop.f32.mrf.mxu0
        %v7012 = vadd.f32 %v5699, %v7011
        %7013 = vmatprep.mubr.bf16.mxu0 0
        %7014 = vmatmul.mubr.bf16.gmra.mxu0 %v4613
        %v7015 = vpop.f32.mrf.mxu0
        %v7016 = vadd.f32 %v5703, %v7015
        %v7017 = vpop.f32.mrf.mxu0
        %v7018 = vadd.f32 %v5705, %v7017
        %v7019 = vpop.f32.mrf.mxu0
        %v7020 = vadd.f32 %v5707, %v7019
        %v7021 = vpop.f32.mrf.mxu0
        %v7022 = vadd.f32 %v5709, %v7021
        %7023 = vmatprep.mubr.bf16.mxu0 0
        %7024 = vmatmul.mubr.bf16.gmra.mxu0 %v4616
        %v7025 = vpop.f32.mrf.mxu0
        %v7026 = vadd.f32 %v5713, %v7025
        %v7027 = vpop.f32.mrf.mxu0
        %v7028 = vadd.f32 %v5715, %v7027
        %v7029 = vpop.f32.mrf.mxu0
        %v7030 = vadd.f32 %v5717, %v7029
        %v7031 = vpop.f32.mrf.mxu0
        %v7032 = vadd.f32 %v5719, %v7031
        %7033 = vmatprep.mubr.bf16.mxu0 0
        %7034 = vmatmul.mubr.bf16.gmra.mxu0 %v4619
        %v7035 = vpop.f32.mrf.mxu0
        %v7036 = vadd.f32 %v5723, %v7035
        %v7037 = vpop.f32.mrf.mxu0
        %v7038 = vadd.f32 %v5725, %v7037
        %v7039 = vpop.f32.mrf.mxu0
        %v7040 = vadd.f32 %v5727, %v7039
        %v7041 = vpop.f32.mrf.mxu0
        %v7042 = vadd.f32 %v5729, %v7041
        %7043 = vmatprep.mubr.bf16.mxu0 0
        %7044 = vmatmul.mubr.bf16.gmra.mxu0 %v4622
        %v7045 = vpop.f32.mrf.mxu0
        %v7046 = vadd.f32 %v5733, %v7045
        %v7047 = vpop.f32.mrf.mxu0
        %v7048 = vadd.f32 %v5735, %v7047
        %v7049 = vpop.f32.mrf.mxu0
        %v7050 = vadd.f32 %v5737, %v7049
        %v7051 = vpop.f32.mrf.mxu0
        %v7052 = vadd.f32 %v5739, %v7051
        %7053 = vmatprep.mubr.bf16.mxu0 0
        %7054 = vmatmul.mubr.bf16.gmra.mxu0 %v4625
        %v7055 = vpop.f32.mrf.mxu0
        %v7056 = vadd.f32 %v5743, %v7055
        %v7057 = vpop.f32.mrf.mxu0
        %v7058 = vadd.f32 %v5745, %v7057
        %v7059 = vpop.f32.mrf.mxu0
        %v7060 = vadd.f32 %v5747, %v7059
        %v7061 = vpop.f32.mrf.mxu0
        %v7062 = vadd.f32 %v5749, %v7061
        %7063 = vmatprep.mubr.bf16.mxu0 0
        %7064 = vmatmul.mubr.bf16.gmra.mxu0 %v4628
        %v7065 = vpop.f32.mrf.mxu0
        %v7066 = vadd.f32 %v5753, %v7065
        %v7067 = vpop.f32.mrf.mxu0
        %v7068 = vadd.f32 %v5755, %v7067
        %v7069 = vpop.f32.mrf.mxu0
        %v7070 = vadd.f32 %v5757, %v7069
        %v7071 = vpop.f32.mrf.mxu0
        %v7072 = vadd.f32 %v5759, %v7071
        %7073 = vmatprep.mubr.bf16.mxu0 0
        %7074 = vmatmul.mubr.bf16.gmra.mxu0 %v4631
        %v7075 = vpop.f32.mrf.mxu0
        %v7076 = vadd.f32 %v5763, %v7075
        %v7077 = vpop.f32.mrf.mxu0
        %v7078 = vadd.f32 %v5765, %v7077
        %v7079 = vpop.f32.mrf.mxu0
        %v7080 = vadd.f32 %v5767, %v7079
        %v7081 = vpop.f32.mrf.mxu0
        %v7082 = vadd.f32 %v5769, %v7081
        %7083 = vmatprep.mubr.bf16.mxu0 0
        %7084 = vmatmul.mubr.bf16.gmra.mxu0 %v4634
        %v7085 = vpop.f32.mrf.mxu0
        %v7086 = vadd.f32 %v5773, %v7085
        %v7087 = vpop.f32.mrf.mxu0
        %v7088 = vadd.f32 %v5775, %v7087
        %v7089 = vpop.f32.mrf.mxu0
        %v7090 = vadd.f32 %v5777, %v7089
        %v7091 = vpop.f32.mrf.mxu0
        %v7092 = vadd.f32 %v5779, %v7091
        %7093 = vmatprep.mubr.bf16.mxu0 0
        %7094 = vmatmul.mubr.bf16.gmra.mxu0 %v4637
        %v7095 = vpop.f32.mrf.mxu0
        %v7096 = vadd.f32 %v5783, %v7095
        %v7097 = vpop.f32.mrf.mxu0
        %v7098 = vadd.f32 %v5785, %v7097
        %v7099 = vpop.f32.mrf.mxu0
        %v7100 = vadd.f32 %v5787, %v7099
        %v7101 = vpop.f32.mrf.mxu0
        %v7102 = vadd.f32 %v5789, %v7101
        %7103 = vmatprep.mubr.bf16.mxu0 0
        %7104 = vmatmul.mubr.bf16.gmra.mxu0 %v4640
        %v7105 = vpop.f32.mrf.mxu0
        %v7106 = vadd.f32 %v5793, %v7105
        %v7107 = vpop.f32.mrf.mxu0
        %v7108 = vadd.f32 %v5795, %v7107
        %v7109 = vpop.f32.mrf.mxu0
        %v7110 = vadd.f32 %v5797, %v7109
        %v7111 = vpop.f32.mrf.mxu0
        %v7112 = vadd.f32 %v5799, %v7111
        %7113 = vmatprep.mubr.bf16.mxu0 0
        %7114 = vmatmul.mubr.bf16.gmra.mxu0 %v4643
        %v7115 = vpop.f32.mrf.mxu0
        %v7116 = vadd.f32 %v5803, %v7115
        %v7117 = vpop.f32.mrf.mxu0
        %v7118 = vadd.f32 %v5805, %v7117
        %v7119 = vpop.f32.mrf.mxu0
        %v7120 = vadd.f32 %v5807, %v7119
        %v7121 = vpop.f32.mrf.mxu0
        %v7122 = vadd.f32 %v5809, %v7121
        %7123 = vmatprep.mubr.bf16.mxu0 0
        %7124 = vmatmul.mubr.bf16.gmra.mxu0 %v4646
        %v7125 = vpop.f32.mrf.mxu0
        %v7126 = vadd.f32 %v5813, %v7125
        %v7127 = vpop.f32.mrf.mxu0
        %v7128 = vadd.f32 %v5815, %v7127
        %v7129 = vpop.f32.mrf.mxu0
        %v7130 = vadd.f32 %v5817, %v7129
        %v7131 = vpop.f32.mrf.mxu0
        %v7132 = vadd.f32 %v5819, %v7131
        %7133 = vmatprep.mubr.bf16.mxu0 0
        %7134 = vmatmul.mubr.bf16.gmra.mxu0 %v4649
        %v7135 = vpop.f32.mrf.mxu0
        %v7136 = vadd.f32 %v5823, %v7135
        %v7137 = vpop.f32.mrf.mxu0
        %v7138 = vadd.f32 %v5825, %v7137
        %v7139 = vpop.f32.mrf.mxu0
        %v7140 = vadd.f32 %v5827, %v7139
        %v7141 = vpop.f32.mrf.mxu0
        %v7142 = vadd.f32 %v5829, %v7141
        %7143 = vmatprep.mubr.bf16.mxu0 0
        %7144 = vmatmul.mubr.bf16.gmra.mxu0 %v4652
        %v7145 = vpop.f32.mrf.mxu0
        %v7146 = vadd.f32 %v5833, %v7145
        %v7147 = vpop.f32.mrf.mxu0
        %v7148 = vadd.f32 %v5835, %v7147
        %v7149 = vpop.f32.mrf.mxu0
        %v7150 = vadd.f32 %v5837, %v7149
        %v7151 = vpop.f32.mrf.mxu0
        %v7152 = vadd.f32 %v5839, %v7151
        %7153 = vmatprep.mubr.bf16.mxu0 0
        %7154 = vmatmul.mubr.bf16.gmra.mxu0 %v4655
        %v7155 = vpop.f32.mrf.mxu0
        %v7156 = vadd.f32 %v5843, %v7155
        %v7157 = vpop.f32.mrf.mxu0
        %v7158 = vadd.f32 %v5845, %v7157
        %v7159 = vpop.f32.mrf.mxu0
        %v7160 = vadd.f32 %v5847, %v7159
        %v7161 = vpop.f32.mrf.mxu0
        %v7162 = vadd.f32 %v5849, %v7161
        %7163 = vmatprep.mubr.bf16.mxu0 0
        %7164 = vmatmul.mubr.bf16.gmra.mxu0 %v4658
        %v7165 = vpop.f32.mrf.mxu0
        %v7166 = vadd.f32 %v5853, %v7165
        %v7167 = vpop.f32.mrf.mxu0
        %v7168 = vadd.f32 %v5855, %v7167
        %v7169 = vpop.f32.mrf.mxu0
        %v7170 = vadd.f32 %v5857, %v7169
        %v7171 = vpop.f32.mrf.mxu0
        %v7172 = vadd.f32 %v5859, %v7171
        %7173 = vmatprep.mubr.bf16.mxu0 0
        %7174 = vmatmul.mubr.bf16.gmra.mxu0 %v4661
        %v7175 = vpop.f32.mrf.mxu0
        %v7176 = vadd.f32 %v5863, %v7175
        %v7177 = vpop.f32.mrf.mxu0
        %v7178 = vadd.f32 %v5865, %v7177
        %v7179 = vpop.f32.mrf.mxu0
        %v7180 = vadd.f32 %v5867, %v7179
        %v7181 = vpop.f32.mrf.mxu0
        %v7182 = vadd.f32 %v5869, %v7181
        %7183 = vmatprep.mubr.bf16.mxu0 0
        %7184 = vmatmul.mubr.bf16.gmra.mxu0 %v4664
        %v7185 = vpop.f32.mrf.mxu0
        %v7186 = vadd.f32 %v5873, %v7185
        %v7187 = vpop.f32.mrf.mxu0
        %v7188 = vadd.f32 %v5875, %v7187
        %v7189 = vpop.f32.mrf.mxu0
        %v7190 = vadd.f32 %v5877, %v7189
        %v7191 = vpop.f32.mrf.mxu0
        %v7192 = vadd.f32 %v5879, %v7191
        %7193 = vmatprep.mubr.bf16.mxu0 0
        %7194 = vmatmul.mubr.bf16.gmra.mxu0 %v4667
        %v7195 = vpop.f32.mrf.mxu0
        %v7196 = vadd.f32 %v5883, %v7195
        %v7197 = vpop.f32.mrf.mxu0
        %v7198 = vadd.f32 %v5885, %v7197
        %v7199 = vpop.f32.mrf.mxu0
        %v7200 = vadd.f32 %v5887, %v7199
        %v7201 = vpop.f32.mrf.mxu0
        %v7202 = vadd.f32 %v5889, %v7201
        %7203 = vmatprep.mubr.bf16.mxu0 0
        %7204 = vmatmul.mubr.bf16.gmra.mxu0 %v4670
        %v7205 = vpop.f32.mrf.mxu0
        %v7206 = vadd.f32 %v5893, %v7205
        %v7207 = vpop.f32.mrf.mxu0
        %v7208 = vadd.f32 %v5895, %v7207
        %v7209 = vpop.f32.mrf.mxu0
        %v7210 = vadd.f32 %v5897, %v7209
        %v7211 = vpop.f32.mrf.mxu0
        %v7212 = vadd.f32 %v5899, %v7211
        %7213 = vmatprep.mubr.bf16.mxu0 0
        %7214 = vmatmul.mubr.bf16.gmra.mxu0 %v4673
        %v7215 = vpop.f32.mrf.mxu0
        %v7216 = vadd.f32 %v5903, %v7215
        %v7217 = vpop.f32.mrf.mxu0
        %v7218 = vadd.f32 %v5905, %v7217
        %v7219 = vpop.f32.mrf.mxu0
        %v7220 = vadd.f32 %v5907, %v7219
        %v7221 = vpop.f32.mrf.mxu0
        %v7222 = vadd.f32 %v5909, %v7221
        %7223 = vmatprep.mubr.bf16.mxu0 0
        %7224 = vmatmul.mubr.bf16.gmra.mxu0 %v4676
        %v7225 = vpop.f32.mrf.mxu0
        %v7226 = vadd.f32 %v5913, %v7225
        %v7227 = vpop.f32.mrf.mxu0
        %v7228 = vadd.f32 %v5915, %v7227
        %v7229 = vpop.f32.mrf.mxu0
        %v7230 = vadd.f32 %v5917, %v7229
        %v7231 = vpop.f32.mrf.mxu0
        %v7232 = vadd.f32 %v5919, %v7231
        %7233 = vmatprep.mubr.bf16.mxu0 0
        %7234 = vmatmul.mubr.bf16.gmra.mxu0 %v4679
        %v7235 = vpop.f32.mrf.mxu0
        %v7236 = vadd.f32 %v5923, %v7235
        %v7237 = vpop.f32.mrf.mxu0
        %v7238 = vadd.f32 %v5925, %v7237
        %v7239 = vpop.f32.mrf.mxu0
        %v7240 = vadd.f32 %v5927, %v7239
        %v7241 = vpop.f32.mrf.mxu0
        %v7242 = vadd.f32 %v5929, %v7241
        %7243 = vmatprep.mubr.bf16.mxu0 0
        %7244 = vmatmul.mubr.bf16.gmra.mxu0 %v4682
        %v7245 = vpop.f32.mrf.mxu0
        %v7246 = vadd.f32 %v5933, %v7245
        %v7247 = vpop.f32.mrf.mxu0
        %v7248 = vadd.f32 %v5935, %v7247
        %v7249 = vpop.f32.mrf.mxu0
        %v7250 = vadd.f32 %v5937, %v7249
        %v7251 = vpop.f32.mrf.mxu0
        %v7252 = vadd.f32 %v5939, %v7251
        %7253 = vmatprep.mubr.bf16.mxu0 0
        %7254 = vmatmul.mubr.bf16.gmra.mxu0 %v4685
        %v7255 = vpop.f32.mrf.mxu0
        %v7256 = vadd.f32 %v5943, %v7255
        %v7257 = vpop.f32.mrf.mxu0
        %v7258 = vadd.f32 %v5945, %v7257
        %v7259 = vpop.f32.mrf.mxu0
        %v7260 = vadd.f32 %v5947, %v7259
        %v7261 = vpop.f32.mrf.mxu0
        %v7262 = vadd.f32 %v5949, %v7261
        %7263 = vmatprep.mubr.bf16.mxu0 0
        %7264 = vmatmul.mubr.bf16.gmra.mxu0 %v4688
        %v7265 = vpop.f32.mrf.mxu0
        %v7266 = vadd.f32 %v5953, %v7265
        %v7267 = vpop.f32.mrf.mxu0
        %v7268 = vadd.f32 %v5955, %v7267
        %v7269 = vpop.f32.mrf.mxu0
        %v7270 = vadd.f32 %v5957, %v7269
        %v7271 = vpop.f32.mrf.mxu0
        %v7272 = vadd.f32 %v5959, %v7271
        %7273 = vmatprep.mubr.bf16.mxu0 0
        %7274 = vmatmul.mubr.bf16.gmra.mxu0 %v4691
        %v7275 = vpop.f32.mrf.mxu0
        %v7276 = vadd.f32 %v5963, %v7275
        %v7277 = vpop.f32.mrf.mxu0
        %v7278 = vadd.f32 %v5965, %v7277
        %v7279 = vpop.f32.mrf.mxu0
        %v7280 = vadd.f32 %v5967, %v7279
        %v7281 = vpop.f32.mrf.mxu0
        %v7282 = vadd.f32 %v5969, %v7281
        %7283 = vmatprep.mubr.bf16.mxu0 0
        %7284 = vmatmul.mubr.bf16.gmra.mxu0 %v4694
        %v7285 = vpop.f32.mrf.mxu0
        %v7286 = vadd.f32 %v5973, %v7285
        %v7287 = vpop.f32.mrf.mxu0
        %v7288 = vadd.f32 %v5975, %v7287
        %v7289 = vpop.f32.mrf.mxu0
        %v7290 = vadd.f32 %v5977, %v7289
        %v7291 = vpop.f32.mrf.mxu0
        %v7292 = vadd.f32 %v5979, %v7291
        %7293 = vmatprep.mubr.bf16.mxu0 0
        %7294 = vmatmul.mubr.bf16.gmra.mxu0 %v4697
        %v7295 = vpop.f32.mrf.mxu0
        %v7296 = vadd.f32 %v5983, %v7295
        %v7297 = vpop.f32.mrf.mxu0
        %v7298 = vadd.f32 %v5985, %v7297
        %v7299 = vpop.f32.mrf.mxu0
        %v7300 = vadd.f32 %v5987, %v7299
        %v7301 = vpop.f32.mrf.mxu0
        %v7302 = vadd.f32 %v5989, %v7301
        %7303 = vmatprep.mubr.bf16.mxu0 0
        %7304 = vmatmul.mubr.bf16.gmra.mxu0 %v4700
        %v7305 = vpop.f32.mrf.mxu0
        %v7306 = vadd.f32 %v5993, %v7305
        %v7307 = vpop.f32.mrf.mxu0
        %v7308 = vadd.f32 %v5995, %v7307
        %v7309 = vpop.f32.mrf.mxu0
        %v7310 = vadd.f32 %v5997, %v7309
        %v7311 = vpop.f32.mrf.mxu0
        %v7312 = vadd.f32 %v5999, %v7311
        %7313 = vmatprep.mubr.bf16.mxu0 0
        %7314 = vmatmul.mubr.bf16.gmra.mxu0 %v4703
        %v7315 = vpop.f32.mrf.mxu0
        %v7316 = vadd.f32 %v6003, %v7315
        %v7317 = vpop.f32.mrf.mxu0
        %v7318 = vadd.f32 %v6005, %v7317
        %v7319 = vpop.f32.mrf.mxu0
        %v7320 = vadd.f32 %v6007, %v7319
        %v7321 = vpop.f32.mrf.mxu0
        %v7322 = vadd.f32 %v6009, %v7321
        %7323 = vmatprep.mubr.bf16.mxu0 0
        %7324 = vmatmul.mubr.bf16.gmra.mxu0 %v4706
        %v7325 = vpop.f32.mrf.mxu0
        %v7326 = vadd.f32 %v6013, %v7325
        %v7327 = vpop.f32.mrf.mxu0
        %v7328 = vadd.f32 %v6015, %v7327
        %v7329 = vpop.f32.mrf.mxu0
        %v7330 = vadd.f32 %v6017, %v7329
        %v7331 = vpop.f32.mrf.mxu0
        %v7332 = vadd.f32 %v6019, %v7331
        %7333 = vdwg.mxu0
        %v7334 = vmax.f32 %v6056, 0.0
        %v7335 = vmax.f32 %v6058, 0.0
        %v7336 = vmax.f32 %v6060, 0.0
        %v7337 = vmax.f32 %v6062, 0.0
        %v7338 = vmax.f32 %v6066, 0.0
        %v7339 = vmax.f32 %v6068, 0.0
        %v7340 = vmax.f32 %v6070, 0.0
        %v7341 = vmax.f32 %v6072, 0.0
        %v7342 = vmax.f32 %v6076, 0.0
        %v7343 = vmax.f32 %v6078, 0.0
        %v7344 = vmax.f32 %v6080, 0.0
        %v7345 = vmax.f32 %v6082, 0.0
        %v7346 = vmax.f32 %v6086, 0.0
        %v7347 = vmax.f32 %v6088, 0.0
        %v7348 = vmax.f32 %v6090, 0.0
        %v7349 = vmax.f32 %v6092, 0.0
        %v7350 = vmax.f32 %v6096, 0.0
        %v7351 = vmax.f32 %v6098, 0.0
        %v7352 = vmax.f32 %v6100, 0.0
        %v7353 = vmax.f32 %v6102, 0.0
        %v7354 = vmax.f32 %v6106, 0.0
        %v7355 = vmax.f32 %v6108, 0.0
        %v7356 = vmax.f32 %v6110, 0.0
        %v7357 = vmax.f32 %v6112, 0.0
        %v7358 = vmax.f32 %v6116, 0.0
        %v7359 = vmax.f32 %v6118, 0.0
        %v7360 = vmax.f32 %v6120, 0.0
        %v7361 = vmax.f32 %v6122, 0.0
        %v7362 = vmax.f32 %v6126, 0.0
        %v7363 = vmax.f32 %v6128, 0.0
        %v7364 = vmax.f32 %v6130, 0.0
        %v7365 = vmax.f32 %v6132, 0.0
        %v7366 = vmax.f32 %v6136, 0.0
        %v7367 = vmax.f32 %v6138, 0.0
        %v7368 = vmax.f32 %v6140, 0.0
        %v7369 = vmax.f32 %v6142, 0.0
        %v7370 = vmax.f32 %v6146, 0.0
        %v7371 = vmax.f32 %v6148, 0.0
        %v7372 = vmax.f32 %v6150, 0.0
        %v7373 = vmax.f32 %v6152, 0.0
        %v7374 = vmax.f32 %v6156, 0.0
        %v7375 = vmax.f32 %v6158, 0.0
        %v7376 = vmax.f32 %v6160, 0.0
        %v7377 = vmax.f32 %v6162, 0.0
        %v7378 = vmax.f32 %v6166, 0.0
        %v7379 = vmax.f32 %v6168, 0.0
        %v7380 = vmax.f32 %v6170, 0.0
        %v7381 = vmax.f32 %v6172, 0.0
        %v7382 = vmax.f32 %v6176, 0.0
        %v7383 = vmax.f32 %v6178, 0.0
        %v7384 = vmax.f32 %v6180, 0.0
        %v7385 = vmax.f32 %v6182, 0.0
        %v7386 = vmax.f32 %v6186, 0.0
        %v7387 = vmax.f32 %v6188, 0.0
        %v7388 = vmax.f32 %v6190, 0.0
        %v7389 = vmax.f32 %v6192, 0.0
        %v7390 = vmax.f32 %v6196, 0.0
        %v7391 = vmax.f32 %v6198, 0.0
        %v7392 = vmax.f32 %v6200, 0.0
        %v7393 = vmax.f32 %v6202, 0.0
        %v7394 = vmax.f32 %v6206, 0.0
        %v7395 = vmax.f32 %v6208, 0.0
        %v7396 = vmax.f32 %v6210, 0.0
        %v7397 = vmax.f32 %v6212, 0.0
        %v7398 = vmax.f32 %v6216, 0.0
        %v7399 = vmax.f32 %v6218, 0.0
        %v7400 = vmax.f32 %v6220, 0.0
        %v7401 = vmax.f32 %v6222, 0.0
        %v7402 = vmax.f32 %v6226, 0.0
        %v7403 = vmax.f32 %v6228, 0.0
        %v7404 = vmax.f32 %v6230, 0.0
        %v7405 = vmax.f32 %v6232, 0.0
        %v7406 = vmax.f32 %v6236, 0.0
        %v7407 = vmax.f32 %v6238, 0.0
        %v7408 = vmax.f32 %v6240, 0.0
        %v7409 = vmax.f32 %v6242, 0.0
        %v7410 = vmax.f32 %v6246, 0.0
        %v7411 = vmax.f32 %v6248, 0.0
        %v7412 = vmax.f32 %v6250, 0.0
        %v7413 = vmax.f32 %v6252, 0.0
        %v7414 = vmax.f32 %v6256, 0.0
        %v7415 = vmax.f32 %v6258, 0.0
        %v7416 = vmax.f32 %v6260, 0.0
        %v7417 = vmax.f32 %v6262, 0.0
        %v7418 = vmax.f32 %v6266, 0.0
        %v7419 = vmax.f32 %v6268, 0.0
        %v7420 = vmax.f32 %v6270, 0.0
        %v7421 = vmax.f32 %v6272, 0.0
        %v7422 = vmax.f32 %v6276, 0.0
        %v7423 = vmax.f32 %v6278, 0.0
        %v7424 = vmax.f32 %v6280, 0.0
        %v7425 = vmax.f32 %v6282, 0.0
        %v7426 = vmax.f32 %v6286, 0.0
        %v7427 = vmax.f32 %v6288, 0.0
        %v7428 = vmax.f32 %v6290, 0.0
        %v7429 = vmax.f32 %v6292, 0.0
        %v7430 = vmax.f32 %v6296, 0.0
        %v7431 = vmax.f32 %v6298, 0.0
        %v7432 = vmax.f32 %v6300, 0.0
        %v7433 = vmax.f32 %v6302, 0.0
        %v7434 = vmax.f32 %v6306, 0.0
        %v7435 = vmax.f32 %v6308, 0.0
        %v7436 = vmax.f32 %v6310, 0.0
        %v7437 = vmax.f32 %v6312, 0.0
        %v7438 = vmax.f32 %v6316, 0.0
        %v7439 = vmax.f32 %v6318, 0.0
        %v7440 = vmax.f32 %v6320, 0.0
        %v7441 = vmax.f32 %v6322, 0.0
        %v7442 = vmax.f32 %v6326, 0.0
        %v7443 = vmax.f32 %v6328, 0.0
        %v7444 = vmax.f32 %v6330, 0.0
        %v7445 = vmax.f32 %v6332, 0.0
        %v7446 = vmax.f32 %v6336, 0.0
        %v7447 = vmax.f32 %v6338, 0.0
        %v7448 = vmax.f32 %v6340, 0.0
        %v7449 = vmax.f32 %v6342, 0.0
        %v7450 = vmax.f32 %v6346, 0.0
        %v7451 = vmax.f32 %v6348, 0.0
        %v7452 = vmax.f32 %v6350, 0.0
        %v7453 = vmax.f32 %v6352, 0.0
        %v7454 = vmax.f32 %v6356, 0.0
        %v7455 = vmax.f32 %v6358, 0.0
        %v7456 = vmax.f32 %v6360, 0.0
        %v7457 = vmax.f32 %v6362, 0.0
        %v7458 = vmax.f32 %v6366, 0.0
        %v7459 = vmax.f32 %v6368, 0.0
        %v7460 = vmax.f32 %v6370, 0.0
        %v7461 = vmax.f32 %v6372, 0.0
        %v7462 = vmax.f32 %v6376, 0.0
        %v7463 = vmax.f32 %v6378, 0.0
        %v7464 = vmax.f32 %v6380, 0.0
        %v7465 = vmax.f32 %v6382, 0.0
        %v7466 = vmax.f32 %v6386, 0.0
        %v7467 = vmax.f32 %v6388, 0.0
        %v7468 = vmax.f32 %v6390, 0.0
        %v7469 = vmax.f32 %v6392, 0.0
        %v7470 = vmax.f32 %v6396, 0.0
        %v7471 = vmax.f32 %v6398, 0.0
        %v7472 = vmax.f32 %v6400, 0.0
        %v7473 = vmax.f32 %v6402, 0.0
        %v7474 = vmax.f32 %v6406, 0.0
        %v7475 = vmax.f32 %v6408, 0.0
        %v7476 = vmax.f32 %v6410, 0.0
        %v7477 = vmax.f32 %v6412, 0.0
        %v7478 = vmax.f32 %v6416, 0.0
        %v7479 = vmax.f32 %v6418, 0.0
        %v7480 = vmax.f32 %v6420, 0.0
        %v7481 = vmax.f32 %v6422, 0.0
        %v7482 = vmax.f32 %v6426, 0.0
        %v7483 = vmax.f32 %v6428, 0.0
        %v7484 = vmax.f32 %v6430, 0.0
        %v7485 = vmax.f32 %v6432, 0.0
        %v7486 = vmax.f32 %v6436, 0.0
        %v7487 = vmax.f32 %v6438, 0.0
        %v7488 = vmax.f32 %v6440, 0.0
        %v7489 = vmax.f32 %v6442, 0.0
        %v7490 = vmax.f32 %v6446, 0.0
        %v7491 = vmax.f32 %v6448, 0.0
        %v7492 = vmax.f32 %v6450, 0.0
        %v7493 = vmax.f32 %v6452, 0.0
        %v7494 = vmax.f32 %v6456, 0.0
        %v7495 = vmax.f32 %v6458, 0.0
        %v7496 = vmax.f32 %v6460, 0.0
        %v7497 = vmax.f32 %v6462, 0.0
        %v7498 = vmax.f32 %v6466, 0.0
        %v7499 = vmax.f32 %v6468, 0.0
        %v7500 = vmax.f32 %v6470, 0.0
        %v7501 = vmax.f32 %v6472, 0.0
        %v7502 = vmax.f32 %v6476, 0.0
        %v7503 = vmax.f32 %v6478, 0.0
        %v7504 = vmax.f32 %v6480, 0.0
        %v7505 = vmax.f32 %v6482, 0.0
        %v7506 = vmax.f32 %v6486, 0.0
        %v7507 = vmax.f32 %v6488, 0.0
        %v7508 = vmax.f32 %v6490, 0.0
        %v7509 = vmax.f32 %v6492, 0.0
        %v7510 = vmax.f32 %v6496, 0.0
        %v7511 = vmax.f32 %v6498, 0.0
        %v7512 = vmax.f32 %v6500, 0.0
        %v7513 = vmax.f32 %v6502, 0.0
        %v7514 = vmax.f32 %v6506, 0.0
        %v7515 = vmax.f32 %v6508, 0.0
        %v7516 = vmax.f32 %v6510, 0.0
        %v7517 = vmax.f32 %v6512, 0.0
        %v7518 = vmax.f32 %v6516, 0.0
        %v7519 = vmax.f32 %v6518, 0.0
        %v7520 = vmax.f32 %v6520, 0.0
        %v7521 = vmax.f32 %v6522, 0.0
        %v7522 = vmax.f32 %v6526, 0.0
        %v7523 = vmax.f32 %v6528, 0.0
        %v7524 = vmax.f32 %v6530, 0.0
        %v7525 = vmax.f32 %v6532, 0.0
        %v7526 = vmax.f32 %v6536, 0.0
        %v7527 = vmax.f32 %v6538, 0.0
        %v7528 = vmax.f32 %v6540, 0.0
        %v7529 = vmax.f32 %v6542, 0.0
        %v7530 = vmax.f32 %v6546, 0.0
        %v7531 = vmax.f32 %v6548, 0.0
        %v7532 = vmax.f32 %v6550, 0.0
        %v7533 = vmax.f32 %v6552, 0.0
        %v7534 = vmax.f32 %v6556, 0.0
        %v7535 = vmax.f32 %v6558, 0.0
        %v7536 = vmax.f32 %v6560, 0.0
        %v7537 = vmax.f32 %v6562, 0.0
        %v7538 = vmax.f32 %v6566, 0.0
        %v7539 = vmax.f32 %v6568, 0.0
        %v7540 = vmax.f32 %v6570, 0.0
        %v7541 = vmax.f32 %v6572, 0.0
        %v7542 = vmax.f32 %v6576, 0.0
        %v7543 = vmax.f32 %v6578, 0.0
        %v7544 = vmax.f32 %v6580, 0.0
        %v7545 = vmax.f32 %v6582, 0.0
        %v7546 = vmax.f32 %v6586, 0.0
        %v7547 = vmax.f32 %v6588, 0.0
        %v7548 = vmax.f32 %v6590, 0.0
        %v7549 = vmax.f32 %v6592, 0.0
        %v7550 = vmax.f32 %v6596, 0.0
        %v7551 = vmax.f32 %v6598, 0.0
        %v7552 = vmax.f32 %v6600, 0.0
        %v7553 = vmax.f32 %v6602, 0.0
        %v7554 = vmax.f32 %v6606, 0.0
        %v7555 = vmax.f32 %v6608, 0.0
        %v7556 = vmax.f32 %v6610, 0.0
        %v7557 = vmax.f32 %v6612, 0.0
        %v7558 = vmax.f32 %v6616, 0.0
        %v7559 = vmax.f32 %v6618, 0.0
        %v7560 = vmax.f32 %v6620, 0.0
        %v7561 = vmax.f32 %v6622, 0.0
        %v7562 = vmax.f32 %v6626, 0.0
        %v7563 = vmax.f32 %v6628, 0.0
        %v7564 = vmax.f32 %v6630, 0.0
        %v7565 = vmax.f32 %v6632, 0.0
        %v7566 = vmax.f32 %v6636, 0.0
        %v7567 = vmax.f32 %v6638, 0.0
        %v7568 = vmax.f32 %v6640, 0.0
        %v7569 = vmax.f32 %v6642, 0.0
        %v7570 = vmax.f32 %v6646, 0.0
        %v7571 = vmax.f32 %v6648, 0.0
        %v7572 = vmax.f32 %v6650, 0.0
        %v7573 = vmax.f32 %v6652, 0.0
        %v7574 = vmax.f32 %v6656, 0.0
        %v7575 = vmax.f32 %v6658, 0.0
        %v7576 = vmax.f32 %v6660, 0.0
        %v7577 = vmax.f32 %v6662, 0.0
        %v7578 = vmax.f32 %v6666, 0.0
        %v7579 = vmax.f32 %v6668, 0.0
        %v7580 = vmax.f32 %v6670, 0.0
        %v7581 = vmax.f32 %v6672, 0.0
        %v7582 = vmax.f32 %v6676, 0.0
        %v7583 = vmax.f32 %v6678, 0.0
        %v7584 = vmax.f32 %v6680, 0.0
        %v7585 = vmax.f32 %v6682, 0.0
        %v7586 = vmax.f32 %v6686, 0.0
        %v7587 = vmax.f32 %v6688, 0.0
        %v7588 = vmax.f32 %v6690, 0.0
        %v7589 = vmax.f32 %v6692, 0.0
        %v7590 = vmax.f32 %v6696, 0.0
        %v7591 = vmax.f32 %v6698, 0.0
        %v7592 = vmax.f32 %v6700, 0.0
        %v7593 = vmax.f32 %v6702, 0.0
        %v7594 = vmax.f32 %v6706, 0.0
        %v7595 = vmax.f32 %v6708, 0.0
        %v7596 = vmax.f32 %v6710, 0.0
        %v7597 = vmax.f32 %v6712, 0.0
        %v7598 = vmax.f32 %v6716, 0.0
        %v7599 = vmax.f32 %v6718, 0.0
        %v7600 = vmax.f32 %v6720, 0.0
        %v7601 = vmax.f32 %v6722, 0.0
        %v7602 = vmax.f32 %v6726, 0.0
        %v7603 = vmax.f32 %v6728, 0.0
        %v7604 = vmax.f32 %v6730, 0.0
        %v7605 = vmax.f32 %v6732, 0.0
        %v7606 = vmax.f32 %v6736, 0.0
        %v7607 = vmax.f32 %v6738, 0.0
        %v7608 = vmax.f32 %v6740, 0.0
        %v7609 = vmax.f32 %v6742, 0.0
        %v7610 = vmax.f32 %v6746, 0.0
        %v7611 = vmax.f32 %v6748, 0.0
        %v7612 = vmax.f32 %v6750, 0.0
        %v7613 = vmax.f32 %v6752, 0.0
        %v7614 = vmax.f32 %v6756, 0.0
        %v7615 = vmax.f32 %v6758, 0.0
        %v7616 = vmax.f32 %v6760, 0.0
        %v7617 = vmax.f32 %v6762, 0.0
        %v7618 = vmax.f32 %v6766, 0.0
        %v7619 = vmax.f32 %v6768, 0.0
        %v7620 = vmax.f32 %v6770, 0.0
        %v7621 = vmax.f32 %v6772, 0.0
        %v7622 = vmax.f32 %v6776, 0.0
        %v7623 = vmax.f32 %v6778, 0.0
        %v7624 = vmax.f32 %v6780, 0.0
        %v7625 = vmax.f32 %v6782, 0.0
        %v7626 = vmax.f32 %v6786, 0.0
        %v7627 = vmax.f32 %v6788, 0.0
        %v7628 = vmax.f32 %v6790, 0.0
        %v7629 = vmax.f32 %v6792, 0.0
        %v7630 = vmax.f32 %v6796, 0.0
        %v7631 = vmax.f32 %v6798, 0.0
        %v7632 = vmax.f32 %v6800, 0.0
        %v7633 = vmax.f32 %v6802, 0.0
        %v7634 = vmax.f32 %v6806, 0.0
        %v7635 = vmax.f32 %v6808, 0.0
        %v7636 = vmax.f32 %v6810, 0.0
        %v7637 = vmax.f32 %v6812, 0.0
        %v7638 = vmax.f32 %v6816, 0.0
        %v7639 = vmax.f32 %v6818, 0.0
        %v7640 = vmax.f32 %v6820, 0.0
        %v7641 = vmax.f32 %v6822, 0.0
        %v7642 = vmax.f32 %v6826, 0.0
        %v7643 = vmax.f32 %v6828, 0.0
        %v7644 = vmax.f32 %v6830, 0.0
        %v7645 = vmax.f32 %v6832, 0.0
        %v7646 = vmax.f32 %v6836, 0.0
        %v7647 = vmax.f32 %v6838, 0.0
        %v7648 = vmax.f32 %v6840, 0.0
        %v7649 = vmax.f32 %v6842, 0.0
        %v7650 = vmax.f32 %v6846, 0.0
        %v7651 = vmax.f32 %v6848, 0.0
        %v7652 = vmax.f32 %v6850, 0.0
        %v7653 = vmax.f32 %v6852, 0.0
        %v7654 = vmax.f32 %v6856, 0.0
        %v7655 = vmax.f32 %v6858, 0.0
        %v7656 = vmax.f32 %v6860, 0.0
        %v7657 = vmax.f32 %v6862, 0.0
        %v7658 = vmax.f32 %v6866, 0.0
        %v7659 = vmax.f32 %v6868, 0.0
        %v7660 = vmax.f32 %v6870, 0.0
        %v7661 = vmax.f32 %v6872, 0.0
        %v7662 = vmax.f32 %v6876, 0.0
        %v7663 = vmax.f32 %v6878, 0.0
        %v7664 = vmax.f32 %v6880, 0.0
        %v7665 = vmax.f32 %v6882, 0.0
        %v7666 = vmax.f32 %v6886, 0.0
        %v7667 = vmax.f32 %v6888, 0.0
        %v7668 = vmax.f32 %v6890, 0.0
        %v7669 = vmax.f32 %v6892, 0.0
        %v7670 = vmax.f32 %v6896, 0.0
        %v7671 = vmax.f32 %v6898, 0.0
        %v7672 = vmax.f32 %v6900, 0.0
        %v7673 = vmax.f32 %v6902, 0.0
        %v7674 = vmax.f32 %v6906, 0.0
        %v7675 = vmax.f32 %v6908, 0.0
        %v7676 = vmax.f32 %v6910, 0.0
        %v7677 = vmax.f32 %v6912, 0.0
        %v7678 = vmax.f32 %v6916, 0.0
        %v7679 = vmax.f32 %v6918, 0.0
        %v7680 = vmax.f32 %v6920, 0.0
        %v7681 = vmax.f32 %v6922, 0.0
        %v7682 = vmax.f32 %v6926, 0.0
        %v7683 = vmax.f32 %v6928, 0.0
        %v7684 = vmax.f32 %v6930, 0.0
        %v7685 = vmax.f32 %v6932, 0.0
        %v7686 = vmax.f32 %v6936, 0.0
        %v7687 = vmax.f32 %v6938, 0.0
        %v7688 = vmax.f32 %v6940, 0.0
        %v7689 = vmax.f32 %v6942, 0.0
        %v7690 = vmax.f32 %v6946, 0.0
        %v7691 = vmax.f32 %v6948, 0.0
        %v7692 = vmax.f32 %v6950, 0.0
        %v7693 = vmax.f32 %v6952, 0.0
        %v7694 = vmax.f32 %v6956, 0.0
        %v7695 = vmax.f32 %v6958, 0.0
        %v7696 = vmax.f32 %v6960, 0.0
        %v7697 = vmax.f32 %v6962, 0.0
        %v7698 = vmax.f32 %v6966, 0.0
        %v7699 = vmax.f32 %v6968, 0.0
        %v7700 = vmax.f32 %v6970, 0.0
        %v7701 = vmax.f32 %v6972, 0.0
        %v7702 = vmax.f32 %v6976, 0.0
        %v7703 = vmax.f32 %v6978, 0.0
        %v7704 = vmax.f32 %v6980, 0.0
        %v7705 = vmax.f32 %v6982, 0.0
        %v7706 = vmax.f32 %v6986, 0.0
        %v7707 = vmax.f32 %v6988, 0.0
        %v7708 = vmax.f32 %v6990, 0.0
        %v7709 = vmax.f32 %v6992, 0.0
        %v7710 = vmax.f32 %v6996, 0.0
        %v7711 = vmax.f32 %v6998, 0.0
        %v7712 = vmax.f32 %v7000, 0.0
        %v7713 = vmax.f32 %v7002, 0.0
        %v7714 = vmax.f32 %v7006, 0.0
        %v7715 = vmax.f32 %v7008, 0.0
        %v7716 = vmax.f32 %v7010, 0.0
        %v7717 = vmax.f32 %v7012, 0.0
        %v7718 = vmax.f32 %v7016, 0.0
        %v7719 = vmax.f32 %v7018, 0.0
        %v7720 = vmax.f32 %v7020, 0.0
        %v7721 = vmax.f32 %v7022, 0.0
        %v7722 = vmax.f32 %v7026, 0.0
        %v7723 = vmax.f32 %v7028, 0.0
        %v7724 = vmax.f32 %v7030, 0.0
        %v7725 = vmax.f32 %v7032, 0.0
        %v7726 = vmax.f32 %v7036, 0.0
        %v7727 = vmax.f32 %v7038, 0.0
        %v7728 = vmax.f32 %v7040, 0.0
        %v7729 = vmax.f32 %v7042, 0.0
        %v7730 = vmax.f32 %v7046, 0.0
        %v7731 = vmax.f32 %v7048, 0.0
        %v7732 = vmax.f32 %v7050, 0.0
        %v7733 = vmax.f32 %v7052, 0.0
        %v7734 = vmax.f32 %v7056, 0.0
        %v7735 = vmax.f32 %v7058, 0.0
        %v7736 = vmax.f32 %v7060, 0.0
        %v7737 = vmax.f32 %v7062, 0.0
        %v7738 = vmax.f32 %v7066, 0.0
        %v7739 = vmax.f32 %v7068, 0.0
        %v7740 = vmax.f32 %v7070, 0.0
        %v7741 = vmax.f32 %v7072, 0.0
        %v7742 = vmax.f32 %v7076, 0.0
        %v7743 = vmax.f32 %v7078, 0.0
        %v7744 = vmax.f32 %v7080, 0.0
        %v7745 = vmax.f32 %v7082, 0.0
        %v7746 = vmax.f32 %v7086, 0.0
        %v7747 = vmax.f32 %v7088, 0.0
        %v7748 = vmax.f32 %v7090, 0.0
        %v7749 = vmax.f32 %v7092, 0.0
        %v7750 = vmax.f32 %v7096, 0.0
        %v7751 = vmax.f32 %v7098, 0.0
        %v7752 = vmax.f32 %v7100, 0.0
        %v7753 = vmax.f32 %v7102, 0.0
        %v7754 = vmax.f32 %v7106, 0.0
        %v7755 = vmax.f32 %v7108, 0.0
        %v7756 = vmax.f32 %v7110, 0.0
        %v7757 = vmax.f32 %v7112, 0.0
        %v7758 = vmax.f32 %v7116, 0.0
        %v7759 = vmax.f32 %v7118, 0.0
        %v7760 = vmax.f32 %v7120, 0.0
        %v7761 = vmax.f32 %v7122, 0.0
        %v7762 = vmax.f32 %v7126, 0.0
        %v7763 = vmax.f32 %v7128, 0.0
        %v7764 = vmax.f32 %v7130, 0.0
        %v7765 = vmax.f32 %v7132, 0.0
        %v7766 = vmax.f32 %v7136, 0.0
        %v7767 = vmax.f32 %v7138, 0.0
        %v7768 = vmax.f32 %v7140, 0.0
        %v7769 = vmax.f32 %v7142, 0.0
        %v7770 = vmax.f32 %v7146, 0.0
        %v7771 = vmax.f32 %v7148, 0.0
        %v7772 = vmax.f32 %v7150, 0.0
        %v7773 = vmax.f32 %v7152, 0.0
        %v7774 = vmax.f32 %v7156, 0.0
        %v7775 = vmax.f32 %v7158, 0.0
        %v7776 = vmax.f32 %v7160, 0.0
        %v7777 = vmax.f32 %v7162, 0.0
        %v7778 = vmax.f32 %v7166, 0.0
        %v7779 = vmax.f32 %v7168, 0.0
        %v7780 = vmax.f32 %v7170, 0.0
        %v7781 = vmax.f32 %v7172, 0.0
        %v7782 = vmax.f32 %v7176, 0.0
        %v7783 = vmax.f32 %v7178, 0.0
        %v7784 = vmax.f32 %v7180, 0.0
        %v7785 = vmax.f32 %v7182, 0.0
        %v7786 = vmax.f32 %v7186, 0.0
        %v7787 = vmax.f32 %v7188, 0.0
        %v7788 = vmax.f32 %v7190, 0.0
        %v7789 = vmax.f32 %v7192, 0.0
        %v7790 = vmax.f32 %v7196, 0.0
        %v7791 = vmax.f32 %v7198, 0.0
        %v7792 = vmax.f32 %v7200, 0.0
        %v7793 = vmax.f32 %v7202, 0.0
        %v7794 = vmax.f32 %v7206, 0.0
        %v7795 = vmax.f32 %v7208, 0.0
        %v7796 = vmax.f32 %v7210, 0.0
        %v7797 = vmax.f32 %v7212, 0.0
        %v7798 = vmax.f32 %v7216, 0.0
        %v7799 = vmax.f32 %v7218, 0.0
        %v7800 = vmax.f32 %v7220, 0.0
        %v7801 = vmax.f32 %v7222, 0.0
        %v7802 = vmax.f32 %v7226, 0.0
        %v7803 = vmax.f32 %v7228, 0.0
        %v7804 = vmax.f32 %v7230, 0.0
        %v7805 = vmax.f32 %v7232, 0.0
        %v7806 = vmax.f32 %v7236, 0.0
        %v7807 = vmax.f32 %v7238, 0.0
        %v7808 = vmax.f32 %v7240, 0.0
        %v7809 = vmax.f32 %v7242, 0.0
        %v7810 = vmax.f32 %v7246, 0.0
        %v7811 = vmax.f32 %v7248, 0.0
        %v7812 = vmax.f32 %v7250, 0.0
        %v7813 = vmax.f32 %v7252, 0.0
        %v7814 = vmax.f32 %v7256, 0.0
        %v7815 = vmax.f32 %v7258, 0.0
        %v7816 = vmax.f32 %v7260, 0.0
        %v7817 = vmax.f32 %v7262, 0.0
        %v7818 = vmax.f32 %v7266, 0.0
        %v7819 = vmax.f32 %v7268, 0.0
        %v7820 = vmax.f32 %v7270, 0.0
        %v7821 = vmax.f32 %v7272, 0.0
        %v7822 = vmax.f32 %v7276, 0.0
        %v7823 = vmax.f32 %v7278, 0.0
        %v7824 = vmax.f32 %v7280, 0.0
        %v7825 = vmax.f32 %v7282, 0.0
        %v7826 = vmax.f32 %v7286, 0.0
        %v7827 = vmax.f32 %v7288, 0.0
        %v7828 = vmax.f32 %v7290, 0.0
        %v7829 = vmax.f32 %v7292, 0.0
        %v7830 = vmax.f32 %v7296, 0.0
        %v7831 = vmax.f32 %v7298, 0.0
        %v7832 = vmax.f32 %v7300, 0.0
        %v7833 = vmax.f32 %v7302, 0.0
        %v7834 = vmax.f32 %v7306, 0.0
        %v7835 = vmax.f32 %v7308, 0.0
        %v7836 = vmax.f32 %v7310, 0.0
        %v7837 = vmax.f32 %v7312, 0.0
        %v7838 = vmax.f32 %v7316, 0.0
        %v7839 = vmax.f32 %v7318, 0.0
        %v7840 = vmax.f32 %v7320, 0.0
        %v7841 = vmax.f32 %v7322, 0.0
        %v7842 = vmax.f32 %v7326, 0.0
        %v7843 = vmax.f32 %v7328, 0.0
        %v7844 = vmax.f32 %v7330, 0.0
        %v7845 = vmax.f32 %v7332, 0.0
        %v7846 = vld [vmem:[#allocation13] sm:$0xff]
        %v7847 = vpack.c.bf16 %v7336, %v7334
        %v7848 = vpack.c.bf16 %v7337, %v7335
        %v7849 = vpack.c.bf16 %v7340, %v7338
        %v7850 = vpack.c.bf16 %v7341, %v7339
        %v7851 = vpack.c.bf16 %v7344, %v7342
        %v7852 = vpack.c.bf16 %v7345, %v7343
        %v7853 = vpack.c.bf16 %v7348, %v7346
        %v7854 = vpack.c.bf16 %v7349, %v7347
        %v7855 = vpack.c.bf16 %v7352, %v7350
        %v7856 = vpack.c.bf16 %v7353, %v7351
        %v7857 = vpack.c.bf16 %v7356, %v7354
        %v7858 = vpack.c.bf16 %v7357, %v7355
        %v7859 = vpack.c.bf16 %v7360, %v7358
        %v7860 = vpack.c.bf16 %v7361, %v7359
        %v7861 = vpack.c.bf16 %v7364, %v7362
        %v7862 = vpack.c.bf16 %v7365, %v7363
        %v7863 = vpack.c.bf16 %v7368, %v7366
        %v7864 = vpack.c.bf16 %v7369, %v7367
        %v7865 = vpack.c.bf16 %v7372, %v7370
        %v7866 = vpack.c.bf16 %v7373, %v7371
        %v7867 = vpack.c.bf16 %v7376, %v7374
        %v7868 = vpack.c.bf16 %v7377, %v7375
        %v7869 = vpack.c.bf16 %v7380, %v7378
        %v7870 = vpack.c.bf16 %v7381, %v7379
        %v7871 = vpack.c.bf16 %v7384, %v7382
        %v7872 = vpack.c.bf16 %v7385, %v7383
        %v7873 = vpack.c.bf16 %v7388, %v7386
        %v7874 = vpack.c.bf16 %v7389, %v7387
        %v7875 = vpack.c.bf16 %v7392, %v7390
        %v7876 = vpack.c.bf16 %v7393, %v7391
        %v7877 = vpack.c.bf16 %v7396, %v7394
        %v7878 = vpack.c.bf16 %v7397, %v7395
        %v7879 = vpack.c.bf16 %v7400, %v7398
        %v7880 = vpack.c.bf16 %v7401, %v7399
        %v7881 = vpack.c.bf16 %v7404, %v7402
        %v7882 = vpack.c.bf16 %v7405, %v7403
        %v7883 = vpack.c.bf16 %v7408, %v7406
        %v7884 = vpack.c.bf16 %v7409, %v7407
        %v7885 = vpack.c.bf16 %v7412, %v7410
        %v7886 = vpack.c.bf16 %v7413, %v7411
        %v7887 = vpack.c.bf16 %v7416, %v7414
        %v7888 = vpack.c.bf16 %v7417, %v7415
        %v7889 = vpack.c.bf16 %v7420, %v7418
        %v7890 = vpack.c.bf16 %v7421, %v7419
        %v7891 = vpack.c.bf16 %v7424, %v7422
        %v7892 = vpack.c.bf16 %v7425, %v7423
        %v7893 = vpack.c.bf16 %v7428, %v7426
        %v7894 = vpack.c.bf16 %v7429, %v7427
        %v7895 = vpack.c.bf16 %v7432, %v7430
        %v7896 = vpack.c.bf16 %v7433, %v7431
        %v7897 = vpack.c.bf16 %v7436, %v7434
        %v7898 = vpack.c.bf16 %v7437, %v7435
        %v7899 = vpack.c.bf16 %v7440, %v7438
        %v7900 = vpack.c.bf16 %v7441, %v7439
        %v7901 = vpack.c.bf16 %v7444, %v7442
        %v7902 = vpack.c.bf16 %v7445, %v7443
        %v7903 = vpack.c.bf16 %v7448, %v7446
        %v7904 = vpack.c.bf16 %v7449, %v7447
        %v7905 = vpack.c.bf16 %v7452, %v7450
        %v7906 = vpack.c.bf16 %v7453, %v7451
        %v7907 = vpack.c.bf16 %v7456, %v7454
        %v7908 = vpack.c.bf16 %v7457, %v7455
        %v7909 = vpack.c.bf16 %v7460, %v7458
        %v7910 = vpack.c.bf16 %v7461, %v7459
        %v7911 = vpack.c.bf16 %v7464, %v7462
        %v7912 = vpack.c.bf16 %v7465, %v7463
        %v7913 = vpack.c.bf16 %v7468, %v7466
        %v7914 = vpack.c.bf16 %v7469, %v7467
        %v7915 = vpack.c.bf16 %v7472, %v7470
        %v7916 = vpack.c.bf16 %v7473, %v7471
        %v7917 = vpack.c.bf16 %v7476, %v7474
        %v7918 = vpack.c.bf16 %v7477, %v7475
        %v7919 = vpack.c.bf16 %v7480, %v7478
        %v7920 = vpack.c.bf16 %v7481, %v7479
        %v7921 = vpack.c.bf16 %v7484, %v7482
        %v7922 = vpack.c.bf16 %v7485, %v7483
        %v7923 = vpack.c.bf16 %v7488, %v7486
        %v7924 = vpack.c.bf16 %v7489, %v7487
        %v7925 = vpack.c.bf16 %v7492, %v7490
        %v7926 = vpack.c.bf16 %v7493, %v7491
        %v7927 = vpack.c.bf16 %v7496, %v7494
        %v7928 = vpack.c.bf16 %v7497, %v7495
        %v7929 = vpack.c.bf16 %v7500, %v7498
        %v7930 = vpack.c.bf16 %v7501, %v7499
        %v7931 = vpack.c.bf16 %v7504, %v7502
        %v7932 = vpack.c.bf16 %v7505, %v7503
        %v7933 = vpack.c.bf16 %v7508, %v7506
        %v7934 = vpack.c.bf16 %v7509, %v7507
        %v7935 = vpack.c.bf16 %v7512, %v7510
        %v7936 = vpack.c.bf16 %v7513, %v7511
        %v7937 = vpack.c.bf16 %v7516, %v7514
        %v7938 = vpack.c.bf16 %v7517, %v7515
        %v7939 = vpack.c.bf16 %v7520, %v7518
        %v7940 = vpack.c.bf16 %v7521, %v7519
        %v7941 = vpack.c.bf16 %v7524, %v7522
        %v7942 = vpack.c.bf16 %v7525, %v7523
        %v7943 = vpack.c.bf16 %v7528, %v7526
        %v7944 = vpack.c.bf16 %v7529, %v7527
        %v7945 = vpack.c.bf16 %v7532, %v7530
        %v7946 = vpack.c.bf16 %v7533, %v7531
        %v7947 = vpack.c.bf16 %v7536, %v7534
        %v7948 = vpack.c.bf16 %v7537, %v7535
        %v7949 = vpack.c.bf16 %v7540, %v7538
        %v7950 = vpack.c.bf16 %v7541, %v7539
        %v7951 = vpack.c.bf16 %v7544, %v7542
        %v7952 = vpack.c.bf16 %v7545, %v7543
        %v7953 = vpack.c.bf16 %v7548, %v7546
        %v7954 = vpack.c.bf16 %v7549, %v7547
        %v7955 = vpack.c.bf16 %v7552, %v7550
        %v7956 = vpack.c.bf16 %v7553, %v7551
        %v7957 = vpack.c.bf16 %v7556, %v7554
        %v7958 = vpack.c.bf16 %v7557, %v7555
        %v7959 = vpack.c.bf16 %v7560, %v7558
        %v7960 = vpack.c.bf16 %v7561, %v7559
        %v7961 = vpack.c.bf16 %v7564, %v7562
        %v7962 = vpack.c.bf16 %v7565, %v7563
        %v7963 = vpack.c.bf16 %v7568, %v7566
        %v7964 = vpack.c.bf16 %v7569, %v7567
        %v7965 = vpack.c.bf16 %v7572, %v7570
        %v7966 = vpack.c.bf16 %v7573, %v7571
        %v7967 = vpack.c.bf16 %v7576, %v7574
        %v7968 = vpack.c.bf16 %v7577, %v7575
        %v7969 = vpack.c.bf16 %v7580, %v7578
        %v7970 = vpack.c.bf16 %v7581, %v7579
        %v7971 = vpack.c.bf16 %v7584, %v7582
        %v7972 = vpack.c.bf16 %v7585, %v7583
        %v7973 = vpack.c.bf16 %v7588, %v7586
        %v7974 = vpack.c.bf16 %v7589, %v7587
        %v7975 = vpack.c.bf16 %v7592, %v7590
        %v7976 = vpack.c.bf16 %v7593, %v7591
        %v7977 = vpack.c.bf16 %v7596, %v7594
        %v7978 = vpack.c.bf16 %v7597, %v7595
        %v7979 = vpack.c.bf16 %v7600, %v7598
        %v7980 = vpack.c.bf16 %v7601, %v7599
        %v7981 = vpack.c.bf16 %v7604, %v7602
        %v7982 = vpack.c.bf16 %v7605, %v7603
        %v7983 = vpack.c.bf16 %v7608, %v7606
        %v7984 = vpack.c.bf16 %v7609, %v7607
        %v7985 = vpack.c.bf16 %v7612, %v7610
        %v7986 = vpack.c.bf16 %v7613, %v7611
        %v7987 = vpack.c.bf16 %v7616, %v7614
        %v7988 = vpack.c.bf16 %v7617, %v7615
        %v7989 = vpack.c.bf16 %v7620, %v7618
        %v7990 = vpack.c.bf16 %v7621, %v7619
        %v7991 = vpack.c.bf16 %v7624, %v7622
        %v7992 = vpack.c.bf16 %v7625, %v7623
        %v7993 = vpack.c.bf16 %v7628, %v7626
        %v7994 = vpack.c.bf16 %v7629, %v7627
        %v7995 = vpack.c.bf16 %v7632, %v7630
        %v7996 = vpack.c.bf16 %v7633, %v7631
        %v7997 = vpack.c.bf16 %v7636, %v7634
        %v7998 = vpack.c.bf16 %v7637, %v7635
        %v7999 = vpack.c.bf16 %v7640, %v7638
        %v8000 = vpack.c.bf16 %v7641, %v7639
        %v8001 = vpack.c.bf16 %v7644, %v7642
        %v8002 = vpack.c.bf16 %v7645, %v7643
        %v8003 = vpack.c.bf16 %v7648, %v7646
        %v8004 = vpack.c.bf16 %v7649, %v7647
        %v8005 = vpack.c.bf16 %v7652, %v7650
        %v8006 = vpack.c.bf16 %v7653, %v7651
        %v8007 = vpack.c.bf16 %v7656, %v7654
        %v8008 = vpack.c.bf16 %v7657, %v7655
        %v8009 = vpack.c.bf16 %v7660, %v7658
        %v8010 = vpack.c.bf16 %v7661, %v7659
        %v8011 = vpack.c.bf16 %v7664, %v7662
        %v8012 = vpack.c.bf16 %v7665, %v7663
        %v8013 = vpack.c.bf16 %v7668, %v7666
        %v8014 = vpack.c.bf16 %v7669, %v7667
        %v8015 = vpack.c.bf16 %v7672, %v7670
        %v8016 = vpack.c.bf16 %v7673, %v7671
        %v8017 = vpack.c.bf16 %v7676, %v7674
        %v8018 = vpack.c.bf16 %v7677, %v7675
        %v8019 = vpack.c.bf16 %v7680, %v7678
        %v8020 = vpack.c.bf16 %v7681, %v7679
        %v8021 = vpack.c.bf16 %v7684, %v7682
        %v8022 = vpack.c.bf16 %v7685, %v7683
        %v8023 = vpack.c.bf16 %v7688, %v7686
        %v8024 = vpack.c.bf16 %v7689, %v7687
        %v8025 = vpack.c.bf16 %v7692, %v7690
        %v8026 = vpack.c.bf16 %v7693, %v7691
        %v8027 = vpack.c.bf16 %v7696, %v7694
        %v8028 = vpack.c.bf16 %v7697, %v7695
        %v8029 = vpack.c.bf16 %v7700, %v7698
        %v8030 = vpack.c.bf16 %v7701, %v7699
        %v8031 = vpack.c.bf16 %v7704, %v7702
        %v8032 = vpack.c.bf16 %v7705, %v7703
        %v8033 = vpack.c.bf16 %v7708, %v7706
        %v8034 = vpack.c.bf16 %v7709, %v7707
        %v8035 = vpack.c.bf16 %v7712, %v7710
        %v8036 = vpack.c.bf16 %v7713, %v7711
        %v8037 = vpack.c.bf16 %v7716, %v7714
        %v8038 = vpack.c.bf16 %v7717, %v7715
        %v8039 = vpack.c.bf16 %v7720, %v7718
        %v8040 = vpack.c.bf16 %v7721, %v7719
        %v8041 = vpack.c.bf16 %v7724, %v7722
        %v8042 = vpack.c.bf16 %v7725, %v7723
        %v8043 = vpack.c.bf16 %v7728, %v7726
        %v8044 = vpack.c.bf16 %v7729, %v7727
        %v8045 = vpack.c.bf16 %v7732, %v7730
        %v8046 = vpack.c.bf16 %v7733, %v7731
        %v8047 = vpack.c.bf16 %v7736, %v7734
        %v8048 = vpack.c.bf16 %v7737, %v7735
        %v8049 = vpack.c.bf16 %v7740, %v7738
        %v8050 = vpack.c.bf16 %v7741, %v7739
        %v8051 = vpack.c.bf16 %v7744, %v7742
        %v8052 = vpack.c.bf16 %v7745, %v7743
        %v8053 = vpack.c.bf16 %v7748, %v7746
        %v8054 = vpack.c.bf16 %v7749, %v7747
        %v8055 = vpack.c.bf16 %v7752, %v7750
        %v8056 = vpack.c.bf16 %v7753, %v7751
        %v8057 = vpack.c.bf16 %v7756, %v7754
        %v8058 = vpack.c.bf16 %v7757, %v7755
        %v8059 = vpack.c.bf16 %v7760, %v7758
        %v8060 = vpack.c.bf16 %v7761, %v7759
        %v8061 = vpack.c.bf16 %v7764, %v7762
        %v8062 = vpack.c.bf16 %v7765, %v7763
        %v8063 = vpack.c.bf16 %v7768, %v7766
        %v8064 = vpack.c.bf16 %v7769, %v7767
        %v8065 = vpack.c.bf16 %v7772, %v7770
        %v8066 = vpack.c.bf16 %v7773, %v7771
        %v8067 = vpack.c.bf16 %v7776, %v7774
        %v8068 = vpack.c.bf16 %v7777, %v7775
        %v8069 = vpack.c.bf16 %v7780, %v7778
        %v8070 = vpack.c.bf16 %v7781, %v7779
        %v8071 = vpack.c.bf16 %v7784, %v7782
        %v8072 = vpack.c.bf16 %v7785, %v7783
        %v8073 = vpack.c.bf16 %v7788, %v7786
        %v8074 = vpack.c.bf16 %v7789, %v7787
        %v8075 = vpack.c.bf16 %v7792, %v7790
        %v8076 = vpack.c.bf16 %v7793, %v7791
        %v8077 = vpack.c.bf16 %v7796, %v7794
        %v8078 = vpack.c.bf16 %v7797, %v7795
        %v8079 = vpack.c.bf16 %v7800, %v7798
        %v8080 = vpack.c.bf16 %v7801, %v7799
        %v8081 = vpack.c.bf16 %v7804, %v7802
        %v8082 = vpack.c.bf16 %v7805, %v7803
        %v8083 = vpack.c.bf16 %v7808, %v7806
        %v8084 = vpack.c.bf16 %v7809, %v7807
        %v8085 = vpack.c.bf16 %v7812, %v7810
        %v8086 = vpack.c.bf16 %v7813, %v7811
        %v8087 = vpack.c.bf16 %v7816, %v7814
        %v8088 = vpack.c.bf16 %v7817, %v7815
        %v8089 = vpack.c.bf16 %v7820, %v7818
        %v8090 = vpack.c.bf16 %v7821, %v7819
        %v8091 = vpack.c.bf16 %v7824, %v7822
        %v8092 = vpack.c.bf16 %v7825, %v7823
        %v8093 = vpack.c.bf16 %v7828, %v7826
        %v8094 = vpack.c.bf16 %v7829, %v7827
        %v8095 = vpack.c.bf16 %v7832, %v7830
        %v8096 = vpack.c.bf16 %v7833, %v7831
        %v8097 = vpack.c.bf16 %v7836, %v7834
        %v8098 = vpack.c.bf16 %v7837, %v7835
        %v8099 = vpack.c.bf16 %v7840, %v7838
        %v8100 = vpack.c.bf16 %v7841, %v7839
        %v8101 = vpack.c.bf16 %v7844, %v7842
        %v8102 = vpack.c.bf16 %v7845, %v7843
        %v8103 = vld [vmem:[#allocation14] sm:$0xff]
        %8105 = vset.pattern.permute.xlu0 0
        %8106 = vperm.xlu0 %8105, %v8103
        %v8107 = vpop.permute.xlu0 %8106
        %v8110 = vunpack.c.l.b16 %v7846
        %v8111 = vunpack.c.h.b16 %v7846
        %v8112 = vpack.c.b16 %v8110, %v8110
        %v8113 = vpack.c.b16 %v8111, %v8111
        %8116 = vmatprep.subr.bf16.mxu0 %v7862
        %8117 = vmatpush1.bf16.xpose.msra.mxu0 %v7861
        %8118 = vmatprep.subr.bf16.mxu0 %v7860
        %8119 = vmatpush1.bf16.xpose.msra.mxu0 %v7859
        %8120 = vmatprep.subr.bf16.mxu0 %v7858
        %8121 = vmatpush1.bf16.xpose.msra.mxu0 %v7857
        %8122 = vmatprep.subr.bf16.mxu0 %v7856
        %8123 = vmatpush1.bf16.xpose.msra.mxu0 %v7855
        %8124 = vmatprep.subr.bf16.mxu0 %v7854
        %8125 = vmatpush1.bf16.xpose.msra.mxu0 %v7853
        %8126 = vmatprep.subr.bf16.mxu0 %v7852
        %8127 = vmatpush1.bf16.xpose.msra.mxu0 %v7851
        %8128 = vmatprep.subr.bf16.mxu0 %v7850
        %8129 = vmatpush1.bf16.xpose.msra.mxu0 %v7849
        %8130 = vmatprep.subr.bf16.mxu0 %v7848
        %8131 = vmatpush1.bf16.xpose.msra.mxu0 %v7847
        %8132 = vmatprep.subr.bf16.mxu0 %v7878
        %8133 = vmatpush2.bf16.xpose.msra.mxu0 %v7877
        %8134 = vmatprep.subr.bf16.mxu0 %v7876
        %8135 = vmatpush2.bf16.xpose.msra.mxu0 %v7875
        %8136 = vmatprep.subr.bf16.mxu0 %v7874
        %8137 = vmatpush2.bf16.xpose.msra.mxu0 %v7873
        %8138 = vmatprep.subr.bf16.mxu0 %v7872
        %8139 = vmatpush2.bf16.xpose.msra.mxu0 %v7871
        %8140 = vmatprep.subr.bf16.mxu0 %v7870
        %8141 = vmatpush2.bf16.xpose.msra.mxu0 %v7869
        %8142 = vmatprep.subr.bf16.mxu0 %v7868
        %8143 = vmatpush2.bf16.xpose.msra.mxu0 %v7867
        %8144 = vmatprep.subr.bf16.mxu0 %v7866
        %8145 = vmatpush2.bf16.xpose.msra.mxu0 %v7865
        %8146 = vmatprep.subr.bf16.mxu0 %v7864
        %8147 = vmatpush2.bf16.xpose.msra.mxu0 %v7863
        %8148 = vmatprep.mubr.bf16.mxu0 %v8113
        %8149 = vmatmul.mubr.bf16.gmra.mxu0 %v8112
        %v8150 = vpop.f32.mrf.mxu0
        %v8151 = vadd.f32 %v8107, %v8150
        %v8152 = vpop.f32.mrf.mxu0
        %v8153 = vadd.f32 %v8107, %v8152
        %v8154 = vpop.f32.mrf.mxu0
        %v8155 = vpop.f32.mrf.mxu0
        %8156 = vdwg.mxu0
        %8157 = vmatprep.subr.bf16.mxu0 %v7894
        %8158 = vmatpush1.bf16.xpose.msra.mxu0 %v7893
        %8159 = vmatprep.subr.bf16.mxu0 %v7892
        %8160 = vmatpush1.bf16.xpose.msra.mxu0 %v7891
        %8161 = vmatprep.subr.bf16.mxu0 %v7890
        %8162 = vmatpush1.bf16.xpose.msra.mxu0 %v7889
        %8163 = vmatprep.subr.bf16.mxu0 %v7888
        %8164 = vmatpush1.bf16.xpose.msra.mxu0 %v7887
        %8165 = vmatprep.subr.bf16.mxu0 %v7886
        %8166 = vmatpush1.bf16.xpose.msra.mxu0 %v7885
        %8167 = vmatprep.subr.bf16.mxu0 %v7884
        %8168 = vmatpush1.bf16.xpose.msra.mxu0 %v7883
        %8169 = vmatprep.subr.bf16.mxu0 %v7882
        %8170 = vmatpush1.bf16.xpose.msra.mxu0 %v7881
        %8171 = vmatprep.subr.bf16.mxu0 %v7880
        %8172 = vmatpush1.bf16.xpose.msra.mxu0 %v7879
        %8173 = vmatprep.subr.bf16.mxu0 %v7910
        %8174 = vmatpush2.bf16.xpose.msra.mxu0 %v7909
        %8175 = vmatprep.subr.bf16.mxu0 %v7908
        %8176 = vmatpush2.bf16.xpose.msra.mxu0 %v7907
        %8177 = vmatprep.subr.bf16.mxu0 %v7906
        %8178 = vmatpush2.bf16.xpose.msra.mxu0 %v7905
        %8179 = vmatprep.subr.bf16.mxu0 %v7904
        %8180 = vmatpush2.bf16.xpose.msra.mxu0 %v7903
        %8181 = vmatprep.subr.bf16.mxu0 %v7902
        %8182 = vmatpush2.bf16.xpose.msra.mxu0 %v7901
        %8183 = vmatprep.subr.bf16.mxu0 %v7900
        %8184 = vmatpush2.bf16.xpose.msra.mxu0 %v7899
        %8185 = vmatprep.subr.bf16.mxu0 %v7898
        %8186 = vmatpush2.bf16.xpose.msra.mxu0 %v7897
        %8187 = vmatprep.subr.bf16.mxu0 %v7896
        %8188 = vmatpush2.bf16.xpose.msra.mxu0 %v7895
        %8189 = vmatprep.mubr.bf16.mxu0 %v8113
        %8190 = vmatmul.mubr.bf16.gmra.mxu0 %v8112
        %v8191 = vpop.f32.mrf.mxu0
        %v8192 = vadd.f32 %v8107, %v8191
        %v8193 = vpop.f32.mrf.mxu0
        %v8194 = vadd.f32 %v8107, %v8193
        %v8195 = vpop.f32.mrf.mxu0
        %v8196 = vpop.f32.mrf.mxu0
        %8197 = vdwg.mxu0
        %8198 = vmatprep.subr.bf16.mxu0 %v7926
        %8199 = vmatpush1.bf16.xpose.msra.mxu0 %v7925
        %8200 = vmatprep.subr.bf16.mxu0 %v7924
        %8201 = vmatpush1.bf16.xpose.msra.mxu0 %v7923
        %8202 = vmatprep.subr.bf16.mxu0 %v7922
        %8203 = vmatpush1.bf16.xpose.msra.mxu0 %v7921
        %8204 = vmatprep.subr.bf16.mxu0 %v7920
        %8205 = vmatpush1.bf16.xpose.msra.mxu0 %v7919
        %8206 = vmatprep.subr.bf16.mxu0 %v7918
        %8207 = vmatpush1.bf16.xpose.msra.mxu0 %v7917
        %8208 = vmatprep.subr.bf16.mxu0 %v7916
        %8209 = vmatpush1.bf16.xpose.msra.mxu0 %v7915
        %8210 = vmatprep.subr.bf16.mxu0 %v7914
        %8211 = vmatpush1.bf16.xpose.msra.mxu0 %v7913
        %8212 = vmatprep.subr.bf16.mxu0 %v7912
        %8213 = vmatpush1.bf16.xpose.msra.mxu0 %v7911
        %8214 = vmatprep.subr.bf16.mxu0 %v7942
        %8215 = vmatpush2.bf16.xpose.msra.mxu0 %v7941
        %8216 = vmatprep.subr.bf16.mxu0 %v7940
        %8217 = vmatpush2.bf16.xpose.msra.mxu0 %v7939
        %8218 = vmatprep.subr.bf16.mxu0 %v7938
        %8219 = vmatpush2.bf16.xpose.msra.mxu0 %v7937
        %8220 = vmatprep.subr.bf16.mxu0 %v7936
        %8221 = vmatpush2.bf16.xpose.msra.mxu0 %v7935
        %8222 = vmatprep.subr.bf16.mxu0 %v7934
        %8223 = vmatpush2.bf16.xpose.msra.mxu0 %v7933
        %8224 = vmatprep.subr.bf16.mxu0 %v7932
        %8225 = vmatpush2.bf16.xpose.msra.mxu0 %v7931
        %8226 = vmatprep.subr.bf16.mxu0 %v7930
        %8227 = vmatpush2.bf16.xpose.msra.mxu0 %v7929
        %8228 = vmatprep.subr.bf16.mxu0 %v7928
        %8229 = vmatpush2.bf16.xpose.msra.mxu0 %v7927
        %8230 = vmatprep.mubr.bf16.mxu0 %v8113
        %8231 = vmatmul.mubr.bf16.gmra.mxu0 %v8112
        %v8232 = vpop.f32.mrf.mxu0
        %v8233 = vadd.f32 %v8107, %v8232
        %v8234 = vpop.f32.mrf.mxu0
        %v8235 = vadd.f32 %v8107, %v8234
        %v8236 = vpop.f32.mrf.mxu0
        %v8237 = vpop.f32.mrf.mxu0
        %8238 = vdwg.mxu0
        %8239 = vmatprep.subr.bf16.mxu0 %v7958
        %8240 = vmatpush1.bf16.xpose.msra.mxu0 %v7957
        %8241 = vmatprep.subr.bf16.mxu0 %v7956
        %8242 = vmatpush1.bf16.xpose.msra.mxu0 %v7955
        %8243 = vmatprep.subr.bf16.mxu0 %v7954
        %8244 = vmatpush1.bf16.xpose.msra.mxu0 %v7953
        %8245 = vmatprep.subr.bf16.mxu0 %v7952
        %8246 = vmatpush1.bf16.xpose.msra.mxu0 %v7951
        %8247 = vmatprep.subr.bf16.mxu0 %v7950
        %8248 = vmatpush1.bf16.xpose.msra.mxu0 %v7949
        %8249 = vmatprep.subr.bf16.mxu0 %v7948
        %8250 = vmatpush1.bf16.xpose.msra.mxu0 %v7947
        %8251 = vmatprep.subr.bf16.mxu0 %v7946
        %8252 = vmatpush1.bf16.xpose.msra.mxu0 %v7945
        %8253 = vmatprep.subr.bf16.mxu0 %v7944
        %8254 = vmatpush1.bf16.xpose.msra.mxu0 %v7943
        %8255 = vmatprep.subr.bf16.mxu0 %v7974
        %8256 = vmatpush2.bf16.xpose.msra.mxu0 %v7973
        %8257 = vmatprep.subr.bf16.mxu0 %v7972
        %8258 = vmatpush2.bf16.xpose.msra.mxu0 %v7971
        %8259 = vmatprep.subr.bf16.mxu0 %v7970
        %8260 = vmatpush2.bf16.xpose.msra.mxu0 %v7969
        %8261 = vmatprep.subr.bf16.mxu0 %v7968
        %8262 = vmatpush2.bf16.xpose.msra.mxu0 %v7967
        %8263 = vmatprep.subr.bf16.mxu0 %v7966
        %8264 = vmatpush2.bf16.xpose.msra.mxu0 %v7965
        %8265 = vmatprep.subr.bf16.mxu0 %v7964
        %8266 = vmatpush2.bf16.xpose.msra.mxu0 %v7963
        %8267 = vmatprep.subr.bf16.mxu0 %v7962
        %8268 = vmatpush2.bf16.xpose.msra.mxu0 %v7961
        %8269 = vmatprep.subr.bf16.mxu0 %v7960
        %8270 = vmatpush2.bf16.xpose.msra.mxu0 %v7959
        %8271 = vmatprep.mubr.bf16.mxu0 %v8113
        %8272 = vmatmul.mubr.bf16.gmra.mxu0 %v8112
        %v8273 = vpop.f32.mrf.mxu0
        %v8274 = vadd.f32 %v8107, %v8273
        %v8275 = vpop.f32.mrf.mxu0
        %v8276 = vadd.f32 %v8107, %v8275
        %v8277 = vpop.f32.mrf.mxu0
        %v8278 = vpop.f32.mrf.mxu0
        %8279 = vdwg.mxu0
        %8280 = vmatprep.subr.bf16.mxu0 %v7990
        %8281 = vmatpush1.bf16.xpose.msra.mxu0 %v7989
        %8282 = vmatprep.subr.bf16.mxu0 %v7988
        %8283 = vmatpush1.bf16.xpose.msra.mxu0 %v7987
        %8284 = vmatprep.subr.bf16.mxu0 %v7986
        %8285 = vmatpush1.bf16.xpose.msra.mxu0 %v7985
        %8286 = vmatprep.subr.bf16.mxu0 %v7984
        %8287 = vmatpush1.bf16.xpose.msra.mxu0 %v7983
        %8288 = vmatprep.subr.bf16.mxu0 %v7982
        %8289 = vmatpush1.bf16.xpose.msra.mxu0 %v7981
        %8290 = vmatprep.subr.bf16.mxu0 %v7980
        %8291 = vmatpush1.bf16.xpose.msra.mxu0 %v7979
        %8292 = vmatprep.subr.bf16.mxu0 %v7978
        %8293 = vmatpush1.bf16.xpose.msra.mxu0 %v7977
        %8294 = vmatprep.subr.bf16.mxu0 %v7976
        %8295 = vmatpush1.bf16.xpose.msra.mxu0 %v7975
        %8296 = vmatprep.subr.bf16.mxu0 %v8006
        %8297 = vmatpush2.bf16.xpose.msra.mxu0 %v8005
        %8298 = vmatprep.subr.bf16.mxu0 %v8004
        %8299 = vmatpush2.bf16.xpose.msra.mxu0 %v8003
        %8300 = vmatprep.subr.bf16.mxu0 %v8002
        %8301 = vmatpush2.bf16.xpose.msra.mxu0 %v8001
        %8302 = vmatprep.subr.bf16.mxu0 %v8000
        %8303 = vmatpush2.bf16.xpose.msra.mxu0 %v7999
        %8304 = vmatprep.subr.bf16.mxu0 %v7998
        %8305 = vmatpush2.bf16.xpose.msra.mxu0 %v7997
        %8306 = vmatprep.subr.bf16.mxu0 %v7996
        %8307 = vmatpush2.bf16.xpose.msra.mxu0 %v7995
        %8308 = vmatprep.subr.bf16.mxu0 %v7994
        %8309 = vmatpush2.bf16.xpose.msra.mxu0 %v7993
        %8310 = vmatprep.subr.bf16.mxu0 %v7992
        %8311 = vmatpush2.bf16.xpose.msra.mxu0 %v7991
        %8312 = vmatprep.mubr.bf16.mxu0 %v8113
        %8313 = vmatmul.mubr.bf16.gmra.mxu0 %v8112
        %v8314 = vpop.f32.mrf.mxu0
        %v8315 = vadd.f32 %v8107, %v8314
        %v8316 = vpop.f32.mrf.mxu0
        %v8317 = vadd.f32 %v8107, %v8316
        %v8318 = vpop.f32.mrf.mxu0
        %v8319 = vpop.f32.mrf.mxu0
        %8320 = vdwg.mxu0
        %8321 = vmatprep.subr.bf16.mxu0 %v8022
        %8322 = vmatpush1.bf16.xpose.msra.mxu0 %v8021
        %8323 = vmatprep.subr.bf16.mxu0 %v8020
        %8324 = vmatpush1.bf16.xpose.msra.mxu0 %v8019
        %8325 = vmatprep.subr.bf16.mxu0 %v8018
        %8326 = vmatpush1.bf16.xpose.msra.mxu0 %v8017
        %8327 = vmatprep.subr.bf16.mxu0 %v8016
        %8328 = vmatpush1.bf16.xpose.msra.mxu0 %v8015
        %8329 = vmatprep.subr.bf16.mxu0 %v8014
        %8330 = vmatpush1.bf16.xpose.msra.mxu0 %v8013
        %8331 = vmatprep.subr.bf16.mxu0 %v8012
        %8332 = vmatpush1.bf16.xpose.msra.mxu0 %v8011
        %8333 = vmatprep.subr.bf16.mxu0 %v8010
        %8334 = vmatpush1.bf16.xpose.msra.mxu0 %v8009
        %8335 = vmatprep.subr.bf16.mxu0 %v8008
        %8336 = vmatpush1.bf16.xpose.msra.mxu0 %v8007
        %8337 = vmatprep.subr.bf16.mxu0 %v8038
        %8338 = vmatpush2.bf16.xpose.msra.mxu0 %v8037
        %8339 = vmatprep.subr.bf16.mxu0 %v8036
        %8340 = vmatpush2.bf16.xpose.msra.mxu0 %v8035
        %8341 = vmatprep.subr.bf16.mxu0 %v8034
        %8342 = vmatpush2.bf16.xpose.msra.mxu0 %v8033
        %8343 = vmatprep.subr.bf16.mxu0 %v8032
        %8344 = vmatpush2.bf16.xpose.msra.mxu0 %v8031
        %8345 = vmatprep.subr.bf16.mxu0 %v8030
        %8346 = vmatpush2.bf16.xpose.msra.mxu0 %v8029
        %8347 = vmatprep.subr.bf16.mxu0 %v8028
        %8348 = vmatpush2.bf16.xpose.msra.mxu0 %v8027
        %8349 = vmatprep.subr.bf16.mxu0 %v8026
        %8350 = vmatpush2.bf16.xpose.msra.mxu0 %v8025
        %8351 = vmatprep.subr.bf16.mxu0 %v8024
        %8352 = vmatpush2.bf16.xpose.msra.mxu0 %v8023
        %8353 = vmatprep.mubr.bf16.mxu0 %v8113
        %8354 = vmatmul.mubr.bf16.gmra.mxu0 %v8112
        %v8355 = vpop.f32.mrf.mxu0
        %v8356 = vadd.f32 %v8107, %v8355
        %v8357 = vpop.f32.mrf.mxu0
        %v8358 = vadd.f32 %v8107, %v8357
        %v8359 = vpop.f32.mrf.mxu0
        %v8360 = vpop.f32.mrf.mxu0
        %8361 = vdwg.mxu0
        %8362 = vmatprep.subr.bf16.mxu0 %v8054
        %8363 = vmatpush1.bf16.xpose.msra.mxu0 %v8053
        %8364 = vmatprep.subr.bf16.mxu0 %v8052
        %8365 = vmatpush1.bf16.xpose.msra.mxu0 %v8051
        %8366 = vmatprep.subr.bf16.mxu0 %v8050
        %8367 = vmatpush1.bf16.xpose.msra.mxu0 %v8049
        %8368 = vmatprep.subr.bf16.mxu0 %v8048
        %8369 = vmatpush1.bf16.xpose.msra.mxu0 %v8047
        %8370 = vmatprep.subr.bf16.mxu0 %v8046
        %8371 = vmatpush1.bf16.xpose.msra.mxu0 %v8045
        %8372 = vmatprep.subr.bf16.mxu0 %v8044
        %8373 = vmatpush1.bf16.xpose.msra.mxu0 %v8043
        %8374 = vmatprep.subr.bf16.mxu0 %v8042
        %8375 = vmatpush1.bf16.xpose.msra.mxu0 %v8041
        %8376 = vmatprep.subr.bf16.mxu0 %v8040
        %8377 = vmatpush1.bf16.xpose.msra.mxu0 %v8039
        %8378 = vmatprep.subr.bf16.mxu0 %v8070
        %8379 = vmatpush2.bf16.xpose.msra.mxu0 %v8069
        %8380 = vmatprep.subr.bf16.mxu0 %v8068
        %8381 = vmatpush2.bf16.xpose.msra.mxu0 %v8067
        %8382 = vmatprep.subr.bf16.mxu0 %v8066
        %8383 = vmatpush2.bf16.xpose.msra.mxu0 %v8065
        %8384 = vmatprep.subr.bf16.mxu0 %v8064
        %8385 = vmatpush2.bf16.xpose.msra.mxu0 %v8063
        %8386 = vmatprep.subr.bf16.mxu0 %v8062
        %8387 = vmatpush2.bf16.xpose.msra.mxu0 %v8061
        %8388 = vmatprep.subr.bf16.mxu0 %v8060
        %8389 = vmatpush2.bf16.xpose.msra.mxu0 %v8059
        %8390 = vmatprep.subr.bf16.mxu0 %v8058
        %8391 = vmatpush2.bf16.xpose.msra.mxu0 %v8057
        %8392 = vmatprep.subr.bf16.mxu0 %v8056
        %8393 = vmatpush2.bf16.xpose.msra.mxu0 %v8055
        %8394 = vmatprep.mubr.bf16.mxu0 %v8113
        %8395 = vmatmul.mubr.bf16.gmra.mxu0 %v8112
        %v8396 = vpop.f32.mrf.mxu0
        %v8397 = vadd.f32 %v8107, %v8396
        %v8398 = vpop.f32.mrf.mxu0
        %v8399 = vadd.f32 %v8107, %v8398
        %v8400 = vpop.f32.mrf.mxu0
        %v8401 = vpop.f32.mrf.mxu0
        %8402 = vdwg.mxu0
        %8403 = vmatprep.subr.bf16.mxu0 %v8086
        %8404 = vmatpush1.bf16.xpose.msra.mxu0 %v8085
        %8405 = vmatprep.subr.bf16.mxu0 %v8084
        %8406 = vmatpush1.bf16.xpose.msra.mxu0 %v8083
        %8407 = vmatprep.subr.bf16.mxu0 %v8082
        %8408 = vmatpush1.bf16.xpose.msra.mxu0 %v8081
        %8409 = vmatprep.subr.bf16.mxu0 %v8080
        %8410 = vmatpush1.bf16.xpose.msra.mxu0 %v8079
        %8411 = vmatprep.subr.bf16.mxu0 %v8078
        %8412 = vmatpush1.bf16.xpose.msra.mxu0 %v8077
        %8413 = vmatprep.subr.bf16.mxu0 %v8076
        %8414 = vmatpush1.bf16.xpose.msra.mxu0 %v8075
        %8415 = vmatprep.subr.bf16.mxu0 %v8074
        %8416 = vmatpush1.bf16.xpose.msra.mxu0 %v8073
        %8417 = vmatprep.subr.bf16.mxu0 %v8072
        %8418 = vmatpush1.bf16.xpose.msra.mxu0 %v8071
        %8419 = vmatprep.subr.bf16.mxu0 %v8102
        %8420 = vmatpush2.bf16.xpose.msra.mxu0 %v8101
        %8421 = vmatprep.subr.bf16.mxu0 %v8100
        %8422 = vmatpush2.bf16.xpose.msra.mxu0 %v8099
        %8423 = vmatprep.subr.bf16.mxu0 %v8098
        %8424 = vmatpush2.bf16.xpose.msra.mxu0 %v8097
        %8425 = vmatprep.subr.bf16.mxu0 %v8096
        %8426 = vmatpush2.bf16.xpose.msra.mxu0 %v8095
        %8427 = vmatprep.subr.bf16.mxu0 %v8094
        %8428 = vmatpush2.bf16.xpose.msra.mxu0 %v8093
        %8429 = vmatprep.subr.bf16.mxu0 %v8092
        %8430 = vmatpush2.bf16.xpose.msra.mxu0 %v8091
        %8431 = vmatprep.subr.bf16.mxu0 %v8090
        %8432 = vmatpush2.bf16.xpose.msra.mxu0 %v8089
        %8433 = vmatprep.subr.bf16.mxu0 %v8088
        %8434 = vmatpush2.bf16.xpose.msra.mxu0 %v8087
        %8435 = vmatprep.mubr.bf16.mxu0 %v8113
        %8436 = vmatmul.mubr.bf16.gmra.mxu0 %v8112
        %v8437 = vpop.f32.mrf.mxu0
        %v8438 = vadd.f32 %v8107, %v8437
        %v8439 = vpop.f32.mrf.mxu0
        %v8440 = vadd.f32 %v8107, %v8439
        %v8441 = vpop.f32.mrf.mxu0
        %v8442 = vpop.f32.mrf.mxu0
        %8443 = vdwg.mxu0
        %8444 = vst [vmem:[%s631] sm:$0xff] %v8151
        %8445 = vst [vmem:[%s631 + $0x8] sm:$0xff] %v8153
        %8446 = vst [vmem:[%s631 + $0x10] sm:$0xff] %v8192
        %8447 = vst [vmem:[%s631 + $0x18] sm:$0xff] %v8194
        %8448 = vst [vmem:[%s631 + $0x20] sm:$0xff] %v8233
        %8449 = vst [vmem:[%s631 + $0x28] sm:$0xff] %v8235
        %8450 = vst [vmem:[%s631 + $0x30] sm:$0xff] %v8274
        %8451 = vst [vmem:[%s631 + $0x38] sm:$0xff] %v8276
        %8452 = vst [vmem:[%s631 + $0x40] sm:$0xff] %v8315
        %8453 = vst [vmem:[%s631 + $0x48] sm:$0xff] %v8317
        %8454 = vst [vmem:[%s631 + $0x50] sm:$0xff] %v8356
        %8455 = vst [vmem:[%s631 + $0x58] sm:$0xff] %v8358
        %8456 = vst [vmem:[%s631 + $0x60] sm:$0xff] %v8397
        %8457 = vst [vmem:[%s631 + $0x68] sm:$0xff] %v8399
        %8458 = vst [vmem:[%s631 + $0x70] sm:$0xff] %v8438
        %8459 = vst [vmem:[%s631 + $0x78] sm:$0xff] %v8440
        %s8460 = smul.u32 16, %s34
        %p8461 = scmp.lt.s32.totalorder %s35, 1
        %s8462 = scalar_select %p8461, %s35, 1
        %p8463 = scmp.lt.s32.totalorder %s8460, 31
        %s8464 = scalar_select %p8463, %s8460, 31
        %s8465 = smul.addr %s8462, 32
        %s8466 = sadd.s32 %s8464, %s8465
        %s8467 = smul.addr %s8466, 8
        %s8468 = scalar_lea.vmem %s12, %s8467
        // Predicated region
        $region101: #{run.1} parent=67 // pred_check
          %p8469 = pneg %p339
        $region102: #{run.1} parent=67 // pred_check_branch
          %8471 = sbr.rel (%p8469) target = $region104
        $region103: #{run.1} parent=67 // pred_region
          %s8472 = smul.u32 16, %s34
        $region104: #{run.1} parent=67 // pred_fallthru
          _
      $region68: #{run.1} parent=5 // pred_fallthru
        _
      %p8473 = scmp.le.s32.totalorder 2, %s25
      // Predicated region
      $region105: #{run.1} parent=5 // pred_check
        %p8474 = pneg %p8473
      $region106: #{run.1} parent=5 // pred_check_branch
        %8476 = sbr.rel (%p8474) target = $region108
      $region107: #{run.1} parent=5 // pred_region
        %s8477 = ssub.s32 %s25, 2
        // Predicated region
        $region109: #{run.1} parent=107 // pred_check
          %p8478 = pneg %p345
        $region110: #{run.1} parent=107 // pred_check_branch
          %8480 = sbr.rel (%p8478) target = $region112
        $region111: #{run.1} parent=107 // pred_region
          %s8481 = smul.u32 16, %s36
          %p8482 = scmp.lt.s32.totalorder %s37, 1
          %s8483 = scalar_select %p8482, %s37, 1
          %p8484 = scmp.lt.s32.totalorder %s8481, 31
          %s8485 = scalar_select %p8484, %s8481, 31
          %s8486 = smul.addr %s8483, 32
          %s8487 = sadd.s32 %s8485, %s8486
          %s8488 = smul.addr %s8487, 8
          %s8489 = scalar_lea.vmem %s12, %s8488
        $region112: #{run.1} parent=107 // pred_fallthru
          _
      $region108: #{run.1} parent=5 // pred_fallthru
        _
    $region6: #{run.1} parent=1 // loop_footer
      %s29 = sadd.s32 1, %s25
    $region7: #{run.1} parent=1 // loop_footer_branch
      %24 = sbr.rel target = $region3
    $region8: #{run.1} parent=1 // loop_exit
      _
    %8490 = vsyncpa [#allocation4], 1
    %s8491 = scalar_lea.sflag [#allocation4], 1
    %8492 = vsyncpa %s8491, 1
    %8493 = vsyncpa [#allocation6], 1
    %8494 = vsyncpa [#allocation9], 1
    %8495 = vsyncpa [#allocation12], 1
    %8496 = vsyncpa [#allocation15], 1

</llo_original>
